<compile_context>
chip_gen: v6e
topology: v6e:2x2x1
jax: 0.10.0
libtpu: 0.0.40
codegen_flags: <defaults>
</compile_context>

<pallas_src>
import functools

import jax
import jax.numpy as jnp
from jax.experimental import pallas as pl
from jax.experimental.pallas import tpu as pltpu


def geo_position_update_kernel(p_aug_ref, proj_a_ref, proj_b_ref, w2_ref, b2_ref,
                               out_ref, onehot_buf, h_buf,
                               *, k, n_coords, matmul_dtype, exact_knn):
    f32 = jnp.float32
    tm = proj_a_ref.shape[0]          # query rows in this tile
    n = p_aug_ref.shape[0]            # total number of points
    cp = p_aug_ref.shape[1]           # padded coordinate width (>= n_coords + 1)

    # ---------------- k-NN selection (f32 distance path) ----------------
    # key[i, j] = |p_j|^2 - 2<q_i, p_j>  (= d2[i, j] - |q_i|^2; the dropped
    # row-constant does not change the per-row argmin).  p_aug already carries
    # |p_j|^2 in the spare column (built once in the wrapper); q_aug = [-2q, 1, 0..]
    # so a single gram matmul produces the whole key.
    row0 = pl.multiple_of(pl.program_id(0) * tm, 8)
    q_rows = p_aug_ref[pl.ds(row0, tm), :]                        # [TM, CP]
    is_sq_col = jax.lax.broadcasted_iota(jnp.int32, (tm, cp), 1) == n_coords
    q_aug = jnp.where(is_sq_col, 1.0, -2.0 * q_rows)              # [TM, CP]
    key = jax.lax.dot_general(q_aug, p_aug_ref[...], (((1,), (1,)), ((), ())),
                              preferred_element_type=f32)         # [TM, N]

    col = jax.lax.broadcasted_iota(jnp.int32, (tm, n), 1)
    one = jnp.ones((), matmul_dtype)
    zero = jnp.zeros((), matmul_dtype)
    if exact_knn:
        # exact argmin + lowest-index tie-break: 2 cross-lane reductions / neighbor
        big = jnp.float32(1e30)
        for j in range(k):            # k is small & static -> unrolled
            mn = jnp.min(key, axis=-1, keepdims=True)             # [TM, 1]
            cand = jnp.where(key <= mn, col, n)
            nearest = jnp.min(cand, axis=-1, keepdims=True)       # [TM, 1]
            sel = col == nearest                                  # strict one-hot
            onehot_buf[j * tm:(j + 1) * tm, :] = jnp.where(sel, one, zero)
            key = jnp.where(sel, big, key)                        # mask chosen column
    else:
        # packed ordering key: 1 cross-lane reduction / neighbor.  The low
        # ceil(log2 N) bits of the monotone int32 key carry the column index, so
        # near-ties within that granularity may pick a different (equally close)
        # neighbor than the reference -- documented deviation, strict one-hot kept.
        kbits = pltpu.bitcast(key, jnp.int32)
        ordered = jnp.where(kbits < 0, kbits ^ jnp.int32(0x7FFFFFFF), kbits)
        idx_bits = max(1, (n - 1).bit_length())
        hi_mask = jnp.int32(-(1 << idx_bits))
        packed = (ordered & hi_mask) | col                        # unique per row
        imax = jnp.int32(0x7FFFFFFF)
        for j in range(k):
            mn = jnp.min(packed, axis=-1, keepdims=True)          # [TM, 1]
            sel = packed == mn                                    # strict one-hot
            onehot_buf[j * tm:(j + 1) * tm, :] = jnp.where(sel, one, zero)
            packed = jnp.where(sel, imax, packed)

    # ------------- batched 2-layer MLP over all k neighbors -------------
    # Layer 1 was hoisted to the wrapper: proj_a_ref = x@W1a + b1 (tiled, f32),
    # proj_b_ref = x@W1b (resident, matmul_dtype).  One batched one-hot matmul
    # gathers all k neighbors of all TM query rows at once (good MXU fill).
    h_center = proj_a_ref[...]                                    # [TM, H] f32
    h_nbr = jnp.dot(onehot_buf[...], proj_b_ref[...],
                    preferred_element_type=f32)                   # [k*TM, H]
    for j in range(k):                # f32 VPU add / relu; MXU work stays batched
        blk = jnp.maximum(h_nbr[j * tm:(j + 1) * tm, :] + h_center, 0.0)
        h_buf[j * tm:(j + 1) * tm, :] = blk.astype(matmul_dtype)

    # single batched layer-2 matmul; b2 is added once AFTER the max over k and the
    # running max is seeded from the first neighbor (no -inf fill).  (If the f32
    # [k*TM, Do] temporary ever busts VMEM, split into two half-k matmuls with an
    # incremental max.)
    o = jnp.dot(h_buf[...], w2_ref[...], preferred_element_type=f32)  # [k*TM, Do]
    acc = o[0:tm, :]
    for j in range(1, k):
        acc = jnp.maximum(acc, o[j * tm:(j + 1) * tm, :])
    out_ref[...] = (acc + b2_ref[...]).astype(out_ref.dtype)


def geometric_position_update(x, pos, w1, b1, w2, b2, *, k=8, block_m=None,
                              matmul_dtype=jnp.bfloat16, exact_knn=True):
    """x: [N, D], pos: [N, C], w1: [2D, H], b1: [H], w2: [H, Do], b2: [Do]."""
    f32 = jnp.float32
    n, d = x.shape
    c = pos.shape[1]
    h_dim = w1.shape[1]
    d_out = w2.shape[1]
    assert w1.shape[0] == 2 * d and w2.shape[0] == h_dim and k <= n

    md = jnp.dtype(matmul_dtype)

    # ---- hoisted precompute (runs ONCE per call, not per grid step) ----
    # augmented positions [pos, |p|^2, 0-pad]: one gram matmul yields the knn key.
    cp = ((c + 1 + 7) // 8) * 8
    pos_f = pos.astype(f32)
    sq = jnp.sum(pos_f * pos_f, axis=-1, keepdims=True)
    p_aug = jnp.concatenate([pos_f, sq, jnp.zeros((n, cp - c - 1), f32)], axis=1)

    # full layer-1 projection as ONE matmul: proj = x @ [W1a | W1b]  ([N, 2H]).
    x_md = x.astype(matmul_dtype)
    w1_cat = jnp.concatenate([w1[:d, :], w1[d:, :]], axis=1).astype(matmul_dtype)
    proj = jnp.dot(x_md, w1_cat, preferred_element_type=f32)       # [N, 2H] f32
    proj_a = proj[:, :h_dim] + b1.astype(f32)[None, :]             # bias folded, f32
    proj_b = proj[:, h_dim:].astype(matmul_dtype)                  # gathered per nbr
    w2_md = w2.astype(matmul_dtype)
    b2_2d = b2.reshape(1, d_out).astype(f32)

    # ---- VMEM- and megacore-aware tile selection + explicit VMEM limit ----
    md_size = md.itemsize
    out_size = jnp.dtype(x.dtype).itemsize
    resident_bytes = (n * cp * 4 + n * h_dim * md_size
                      + h_dim * d_out * md_size + d_out * 4)

    def tile_bytes(tm):
        onehot = k * tm * n * md_size            # one-hot gather scratch
        hbuf = k * tm * h_dim * md_size          # hidden activation scratch
        key_tmp = tm * n * 4                     # distance / packed key temporary
        o_tmp = k * tm * d_out * 4               # f32 layer-2 result temporary
        io = 2 * tm * (h_dim * 4 + d_out * out_size)   # double-buffered tiled in/out
        return onehot + hbuf + key_tmp + o_tmp + io

    if block_m is None:
        # Largest tile fitting ~45 MiB of tile budget (safe inside v7x's 64 MiB,
        # comfortable on v5e/v6e's 128 MiB) with >= 2 programs for megacore.
        budget = (45 << 20) - resident_bytes
        for cand in (512, 256, 128, 64, 32, 16, 8):
            if n % cand == 0 and n // cand >= 2 and tile_bytes(cand) <= budget:
                block_m = cand
                break
        if block_m is None:                      # tiny cloud / huge features
            block_m = next(cand for cand in (8, 16, 32, 64, 128, 256, 512, n)
                           if n % cand == 0)
    assert n % block_m == 0

    est = resident_bytes + tile_bytes(block_m)
    try:
        vmem_cap = int(pltpu.get_tpu_info().vmem_capacity_bytes)
    except Exception:
        vmem_cap = 64 << 20
    vmem_cap = max(vmem_cap, 48 << 20)
    vmem_limit = int(min(max(int(est * 1.5) + (8 << 20), 32 << 20),
                         int(vmem_cap * 0.85), 100 << 20))

    kernel = functools.partial(geo_position_update_kernel, k=k, n_coords=c,
                               matmul_dtype=matmul_dtype, exact_knn=exact_knn)

    def run(single_buffer):
        def resident(a):
            nd = a.ndim
            idx = lambda i: (0,) * nd
            if single_buffer:
                # constant block index -> one VMEM buffer is enough (halves residency)
                return pl.BlockSpec(a.shape, idx, pipeline_mode=pl.Buffered(1))
            return pl.BlockSpec(a.shape, idx)

        return pl.pallas_call(
            kernel,
            out_shape=jax.ShapeDtypeStruct((n, d_out), x.dtype),
            grid=(n // block_m,),
            in_specs=[
                resident(p_aug),                                   # positions + |p|^2
                pl.BlockSpec((block_m, h_dim), lambda i: (i, 0)),  # center proj (+b1)
                resident(proj_b),                                  # neighbor proj
                resident(w2_md),
                resident(b2_2d),
            ],
            # Do is a multiple of 128 (128 here, 1024 in the real module) so output
            # stores are lane-dense unmasked vst; pad Do in the wrapper otherwise.
            out_specs=pl.BlockSpec((block_m, d_out), lambda i: (i, 0)),
            scratch_shapes=[
                pltpu.VMEM((k * block_m, n), matmul_dtype),        # stacked one-hot
                pltpu.VMEM((k * block_m, h_dim), matmul_dtype),    # stacked hidden
            ],
            compiler_params=pltpu.CompilerParams(
                dimension_semantics=("parallel",),                 # 2 TCs on v7x
                vmem_limit_bytes=vmem_limit),
        )(p_aug, proj_a, proj_b, w2_md, b2_2d)

    try:
        return run(single_buffer=True)
    except Exception:
        # Fallback for jax versions without BlockSpec(pipeline_mode=pl.Buffered(1)).
        return run(single_buffer=False)


def reference(x, pos, w1, b1, w2, b2, k=8):
    """Pure-JAX reference mirroring the PyTorch forward."""
    d2 = jnp.sum((pos[:, None, :] - pos[None, :, :]) ** 2, axis=-1)
    _, idx = jax.lax.top_k(-d2, k)                        # [N, k] knn indices (incl. self)
    x_knn = x[idx]                                        # [N, k, D]
    x_center = jnp.broadcast_to(x[:, None, :], x_knn.shape)
    x_cat = jnp.concatenate([x_center, x_knn], axis=-1)   # [N, k, 2D]
    h = jnp.maximum(x_cat @ w1 + b1, 0.0)
    o = h @ w2 + b2
    return jnp.max(o, axis=1)                             # max over the k neighbors


if __name__ == "__main__":
    N, D, K = 128, 128, 8   # small synthetic cloud: 128 points, feature_dim=128, k=8

    key = jax.random.PRNGKey(0)
    kx, kp, k1, kb1, k2, kb2 = jax.random.split(key, 6)
    x = jax.random.normal(kx, (N, D), jnp.float32)
    pos = jax.random.normal(kp, (N, 3), jnp.float32)

    # Deterministic nn.Linear-style init (uniform +-1/sqrt(fan_in)), stored [in, out].
    lim1 = 1.0 / jnp.sqrt(2.0 * D)
    w1 = jax.random.uniform(k1, (2 * D, D), jnp.float32, -lim1, lim1)
    b1 = jax.random.uniform(kb1, (D,), jnp.float32, -lim1, lim1)
    lim2 = 1.0 / jnp.sqrt(1.0 * D)
    w2 = jax.random.uniform(k2, (D, D), jnp.float32, -lim2, lim2)
    b2 = jax.random.uniform(kb2, (D,), jnp.float32, -lim2, lim2)

    ref = reference(x, pos, w1, b1, w2, b2, K)

    # f32-operand run (exact kNN, auto block_m -> 64, grid=(2,)): tight check.
    out_f32 = jax.block_until_ready(
        geometric_position_update(x, pos, w1, b1, w2, b2, k=K,
                                  matmul_dtype=jnp.float32))
    assert out_f32.shape == (N, D)
    err32 = float(jnp.max(jnp.abs(out_f32 - ref)))
    assert jnp.allclose(out_f32, ref, atol=1e-4, rtol=1e-4), f"f32 max abs err {err32}"

    # bf16-operand run (default fast path): bf16 MXU operands, f32 accumulation,
    # f32 distance/argmin path -> looser tolerance.
    out_bf16 = jax.block_until_ready(
        geometric_position_update(x, pos, w1, b1, w2, b2, k=K))
    errbf = float(jnp.max(jnp.abs(out_bf16 - ref)))
    assert jnp.allclose(out_bf16, ref, atol=5e-2, rtol=5e-2), f"bf16 max abs err {errbf}"

    # packed single-reduction kNN (large-N fast path): may legitimately pick a
    # different-but-equally-close neighbor on near-ties, so only a soft check here.
    out_fast = jax.block_until_ready(
        geometric_position_update(x, pos, w1, b1, w2, b2, k=K, exact_knn=False))
    frac_ok = float(jnp.mean((jnp.abs(out_fast - ref) < 5e-2).astype(jnp.float32)))
    assert out_fast.shape == (N, D) and frac_ok > 0.9, f"packed-kNN frac_ok {frac_ok}"

    print("KERNEL_OK")
</pallas_src>

<mosaic_0001>
module attributes {stable_mosaic.version = 11 : i64} {
  func.func @geo_position_update_kernel(%arg0: i32, %arg1: memref<128x8xf32, #tpu.memory_space<vmem>>, %arg2: memref<64x128xf32, #tpu.memory_space<vmem>>, %arg3: memref<128x128xf32, #tpu.memory_space<vmem>>, %arg4: memref<128x128xf32, #tpu.memory_space<vmem>>, %arg5: memref<1x128xf32, #tpu.memory_space<vmem>>, %arg6: memref<64x128xf32, #tpu.memory_space<vmem>>, %arg7: memref<512x128xf32, #tpu.memory_space<vmem>>, %arg8: memref<512x128xf32, #tpu.memory_space<vmem>>) attributes {dimension_semantics = [#tpu.dimension_semantics<parallel>], iteration_bounds = array<i64: 2>, scalar_prefetch = 0 : i64, scratch_operands = 2 : i64, tpu.core_type = #tpu.core_type<tc>, window_params = [{pipeline_mode = #tpu.pipeline_mode<synchronous>, transform_indices = @transform_0, window_bounds = array<i64: 128, 8>}, {transform_indices = @transform_1, window_bounds = array<i64: 64, 128>}, {pipeline_mode = #tpu.pipeline_mode<synchronous>, transform_indices = @transform_2, window_bounds = array<i64: 128, 128>}, {pipeline_mode = #tpu.pipeline_mode<synchronous>, transform_indices = @transform_3, window_bounds = array<i64: 128, 128>}, {pipeline_mode = #tpu.pipeline_mode<synchronous>, transform_indices = @transform_4, window_bounds = array<i64: 1, 128>}, {transform_indices = @transform_5, window_bounds = array<i64: 64, 128>}]} {
    %c64_i32 = arith.constant 64 : i32
    %0 = arith.muli %arg0, %c64_i32 : i32
    %1 = tpu.assume_multiple %0, 8 : i32
    %2 = arith.index_cast %1 : i32 to index
    %c0 = arith.constant 0 : index
    %3 = vector.load %arg1[%2, %c0] : memref<128x8xf32, #tpu.memory_space<vmem>>, vector<64x8xf32>
    %4 = tpu.iota {dimensions = array<i32: 1>} : vector<64x8xi32>
    %c3_i32 = arith.constant 3 : i32
    %5 = vector.broadcast %c3_i32 : i32 to vector<64x8xi32>
    %6 = arith.cmpi eq, %4, %5 : vector<64x8xi32>
    %cst = arith.constant -2.000000e+00 : f32
    %7 = vector.broadcast %cst : f32 to vector<64x8xf32>
    %8 = arith.mulf %7, %3 : vector<64x8xf32>
    %cst_0 = arith.constant 1.000000e+00 : f32
    %9 = vector.broadcast %cst_0 : f32 to vector<64x8xf32>
    %10 = arith.select %6, %9, %8 : vector<64x8xi1>, vector<64x8xf32>
    %c0_1 = arith.constant 0 : index
    %c0_2 = arith.constant 0 : index
    %11 = vector.load %arg1[%c0_1, %c0_2] : memref<128x8xf32, #tpu.memory_space<vmem>>, vector<128x8xf32>
    %cst_3 = arith.constant dense<0.000000e+00> : vector<64x128xf32>
    %12 = tpu.matmul %10, %11, %cst_3 {dimension_numbers = #tpu.dot_dimension_numbers<[1], [1], [0], [0], [0, 0, 1, 0], [], []>} : vector<64x8xf32>, vector<128x8xf32>, vector<64x128xf32> -> vector<64x128xf32>
    %13 = tpu.iota {dimensions = array<i32: 1>} : vector<64x128xi32>
    %cst_4 = arith.constant dense<0x7F800000> : vector<64xf32>
    %14 = vector.multi_reduction <minimumf>, %12, %cst_4 [1] : vector<64x128xf32> to vector<64xf32>
    %15 = vector.shape_cast %14 : vector<64xf32> to vector<64x1xf32>
    %16 = vector.broadcast %15 : vector<64x1xf32> to vector<64x128xf32>
    %17 = arith.cmpf ole, %12, %16 : vector<64x128xf32>
    %c128_i32 = arith.constant 128 : i32
    %18 = vector.broadcast %c128_i32 : i32 to vector<64x128xi32>
    %19 = arith.select %17, %13, %18 : vector<64x128xi1>, vector<64x128xi32>
    %cst_5 = arith.constant dense<2147483647> : vector<64xi32>
    %20 = vector.multi_reduction <minsi>, %19, %cst_5 [1] : vector<64x128xi32> to vector<64xi32>
    %21 = vector.shape_cast %20 : vector<64xi32> to vector<64x1xi32>
    %22 = vector.broadcast %21 : vector<64x1xi32> to vector<64x128xi32>
    %23 = arith.cmpi eq, %13, %22 : vector<64x128xi32>
    %cst_6 = arith.constant 1.000000e+00 : f32
    %cst_7 = arith.constant 0.000000e+00 : f32
    %24 = vector.broadcast %cst_6 : f32 to vector<64x128xf32>
    %25 = vector.broadcast %cst_7 : f32 to vector<64x128xf32>
    %26 = arith.select %23, %24, %25 : vector<64x128xi1>, vector<64x128xf32>
    %c0_8 = arith.constant 0 : index
    %c0_9 = arith.constant 0 : index
    %27 = vector.load %arg7[%c0_8, %c0_9] : memref<512x128xf32, #tpu.memory_space<vmem>>, vector<64x128xf32>
    tpu.vector_store %arg7[%c0_8, %c0_9], %26 {strides = array<i32>} : memref<512x128xf32, #tpu.memory_space<vmem>>, vector<64x128xf32>,
    %cst_10 = arith.constant 1.000000e+30 : f32
    %28 = vector.broadcast %cst_10 : f32 to vector<64x128xf32>
    %29 = arith.select %23, %28, %12 : vector<64x128xi1>, vector<64x128xf32>
    %cst_11 = arith.constant dense<0x7F800000> : vector<64xf32>
    %30 = vector.multi_reduction <minimumf>, %29, %cst_11 [1] : vector<64x128xf32> to vector<64xf32>
    %31 = vector.shape_cast %30 : vector<64xf32> to vector<64x1xf32>
    %32 = vector.broadcast %31 : vector<64x1xf32> to vector<64x128xf32>
    %33 = arith.cmpf ole, %29, %32 : vector<64x128xf32>
    %c128_i32_12 = arith.constant 128 : i32
    %34 = vector.broadcast %c128_i32_12 : i32 to vector<64x128xi32>
    %35 = arith.select %33, %13, %34 : vector<64x128xi1>, vector<64x128xi32>
    %cst_13 = arith.constant dense<2147483647> : vector<64xi32>
    %36 = vector.multi_reduction <minsi>, %35, %cst_13 [1] : vector<64x128xi32> to vector<64xi32>
    %37 = vector.shape_cast %36 : vector<64xi32> to vector<64x1xi32>
    %38 = vector.broadcast %37 : vector<64x1xi32> to vector<64x128xi32>
    %39 = arith.cmpi eq, %13, %38 : vector<64x128xi32>
    %cst_14 = arith.constant 1.000000e+00 : f32
    %cst_15 = arith.constant 0.000000e+00 : f32
    %40 = vector.broadcast %cst_14 : f32 to vector<64x128xf32>
    %41 = vector.broadcast %cst_15 : f32 to vector<64x128xf32>
    %42 = arith.select %39, %40, %41 : vector<64x128xi1>, vector<64x128xf32>
    %c64 = arith.constant 64 : index
    %c0_16 = arith.constant 0 : index
    %43 = vector.load %arg7[%c64, %c0_16] : memref<512x128xf32, #tpu.memory_space<vmem>>, vector<64x128xf32>
    tpu.vector_store %arg7[%c64, %c0_16], %42 {strides = array<i32>} : memref<512x128xf32, #tpu.memory_space<vmem>>, vector<64x128xf32>,
    %cst_17 = arith.constant 1.000000e+30 : f32
    %44 = vector.broadcast %cst_17 : f32 to vector<64x128xf32>
    %45 = arith.select %39, %44, %29 : vector<64x128xi1>, vector<64x128xf32>
    %cst_18 = arith.constant dense<0x7F800000> : vector<64xf32>
    %46 = vector.multi_reduction <minimumf>, %45, %cst_18 [1] : vector<64x128xf32> to vector<64xf32>
    %47 = vector.shape_cast %46 : vector<64xf32> to vector<64x1xf32>
    %48 = vector.broadcast %47 : vector<64x1xf32> to vector<64x128xf32>
    %49 = arith.cmpf ole, %45, %48 : vector<64x128xf32>
    %c128_i32_19 = arith.constant 128 : i32
    %50 = vector.broadcast %c128_i32_19 : i32 to vector<64x128xi32>
    %51 = arith.select %49, %13, %50 : vector<64x128xi1>, vector<64x128xi32>
    %cst_20 = arith.constant dense<2147483647> : vector<64xi32>
    %52 = vector.multi_reduction <minsi>, %51, %cst_20 [1] : vector<64x128xi32> to vector<64xi32>
    %53 = vector.shape_cast %52 : vector<64xi32> to vector<64x1xi32>
    %54 = vector.broadcast %53 : vector<64x1xi32> to vector<64x128xi32>
    %55 = arith.cmpi eq, %13, %54 : vector<64x128xi32>
    %cst_21 = arith.constant 1.000000e+00 : f32
    %cst_22 = arith.constant 0.000000e+00 : f32
    %56 = vector.broadcast %cst_21 : f32 to vector<64x128xf32>
    %57 = vector.broadcast %cst_22 : f32 to vector<64x128xf32>
    %58 = arith.select %55, %56, %57 : vector<64x128xi1>, vector<64x128xf32>
    %c128 = arith.constant 128 : index
    %c0_23 = arith.constant 0 : index
    %59 = vector.load %arg7[%c128, %c0_23] : memref<512x128xf32, #tpu.memory_space<vmem>>, vector<64x128xf32>
    tpu.vector_store %arg7[%c128, %c0_23], %58 {strides = array<i32>} : memref<512x128xf32, #tpu.memory_space<vmem>>, vector<64x128xf32>,
    %cst_24 = arith.constant 1.000000e+30 : f32
    %60 = vector.broadcast %cst_24 : f32 to vector<64x128xf32>
    %61 = arith.select %55, %60, %45 : vector<64x128xi1>, vector<64x128xf32>
    %cst_25 = arith.constant dense<0x7F800000> : vector<64xf32>
    %62 = vector.multi_reduction <minimumf>, %61, %cst_25 [1] : vector<64x128xf32> to vector<64xf32>
    %63 = vector.shape_cast %62 : vector<64xf32> to vector<64x1xf32>
    %64 = vector.broadcast %63 : vector<64x1xf32> to vector<64x128xf32>
    %65 = arith.cmpf ole, %61, %64 : vector<64x128xf32>
    %c128_i32_26 = arith.constant 128 : i32
    %66 = vector.broadcast %c128_i32_26 : i32 to vector<64x128xi32>
    %67 = arith.select %65, %13, %66 : vector<64x128xi1>, vector<64x128xi32>
    %cst_27 = arith.constant dense<2147483647> : vector<64xi32>
    %68 = vector.multi_reduction <minsi>, %67, %cst_27 [1] : vector<64x128xi32> to vector<64xi32>
    %69 = vector.shape_cast %68 : vector<64xi32> to vector<64x1xi32>
    %70 = vector.broadcast %69 : vector<64x1xi32> to vector<64x128xi32>
    %71 = arith.cmpi eq, %13, %70 : vector<64x128xi32>
    %cst_28 = arith.constant 1.000000e+00 : f32
    %cst_29 = arith.constant 0.000000e+00 : f32
    %72 = vector.broadcast %cst_28 : f32 to vector<64x128xf32>
    %73 = vector.broadcast %cst_29 : f32 to vector<64x128xf32>
    %74 = arith.select %71, %72, %73 : vector<64x128xi1>, vector<64x128xf32>
    %c192 = arith.constant 192 : index
    %c0_30 = arith.constant 0 : index
    %75 = vector.load %arg7[%c192, %c0_30] : memref<512x128xf32, #tpu.memory_space<vmem>>, vector<64x128xf32>
    tpu.vector_store %arg7[%c192, %c0_30], %74 {strides = array<i32>} : memref<512x128xf32, #tpu.memory_space<vmem>>, vector<64x128xf32>,
    %cst_31 = arith.constant 1.000000e+30 : f32
    %76 = vector.broadcast %cst_31 : f32 to vector<64x128xf32>
    %77 = arith.select %71, %76, %61 : vector<64x128xi1>, vector<64x128xf32>
    %cst_32 = arith.constant dense<0x7F800000> : vector<64xf32>
    %78 = vector.multi_reduction <minimumf>, %77, %cst_32 [1] : vector<64x128xf32> to vector<64xf32>
    %79 = vector.shape_cast %78 : vector<64xf32> to vector<64x1xf32>
    %80 = vector.broadcast %79 : vector<64x1xf32> to vector<64x128xf32>
    %81 = arith.cmpf ole, %77, %80 : vector<64x128xf32>
    %c128_i32_33 = arith.constant 128 : i32
    %82 = vector.broadcast %c128_i32_33 : i32 to vector<64x128xi32>
    %83 = arith.select %81, %13, %82 : vector<64x128xi1>, vector<64x128xi32>
    %cst_34 = arith.constant dense<2147483647> : vector<64xi32>
    %84 = vector.multi_reduction <minsi>, %83, %cst_34 [1] : vector<64x128xi32> to vector<64xi32>
    %85 = vector.shape_cast %84 : vector<64xi32> to vector<64x1xi32>
    %86 = vector.broadcast %85 : vector<64x1xi32> to vector<64x128xi32>
    %87 = arith.cmpi eq, %13, %86 : vector<64x128xi32>
    %cst_35 = arith.constant 1.000000e+00 : f32
    %cst_36 = arith.constant 0.000000e+00 : f32
    %88 = vector.broadcast %cst_35 : f32 to vector<64x128xf32>
    %89 = vector.broadcast %cst_36 : f32 to vector<64x128xf32>
    %90 = arith.select %87, %88, %89 : vector<64x128xi1>, vector<64x128xf32>
    %c256 = arith.constant 256 : index
    %c0_37 = arith.constant 0 : index
    %91 = vector.load %arg7[%c256, %c0_37] : memref<512x128xf32, #tpu.memory_space<vmem>>, vector<64x128xf32>
    tpu.vector_store %arg7[%c256, %c0_37], %90 {strides = array<i32>} : memref<512x128xf32, #tpu.memory_space<vmem>>, vector<64x128xf32>,
    %cst_38 = arith.constant 1.000000e+30 : f32
    %92 = vector.broadcast %cst_38 : f32 to vector<64x128xf32>
    %93 = arith.select %87, %92, %77 : vector<64x128xi1>, vector<64x128xf32>
    %cst_39 = arith.constant dense<0x7F800000> : vector<64xf32>
    %94 = vector.multi_reduction <minimumf>, %93, %cst_39 [1] : vector<64x128xf32> to vector<64xf32>
    %95 = vector.shape_cast %94 : vector<64xf32> to vector<64x1xf32>
    %96 = vector.broadcast %95 : vector<64x1xf32> to vector<64x128xf32>
    %97 = arith.cmpf ole, %93, %96 : vector<64x128xf32>
    %c128_i32_40 = arith.constant 128 : i32
    %98 = vector.broadcast %c128_i32_40 : i32 to vector<64x128xi32>
    %99 = arith.select %97, %13, %98 : vector<64x128xi1>, vector<64x128xi32>
    %cst_41 = arith.constant dense<2147483647> : vector<64xi32>
    %100 = vector.multi_reduction <minsi>, %99, %cst_41 [1] : vector<64x128xi32> to vector<64xi32>
    %101 = vector.shape_cast %100 : vector<64xi32> to vector<64x1xi32>
    %102 = vector.broadcast %101 : vector<64x1xi32> to vector<64x128xi32>
    %103 = arith.cmpi eq, %13, %102 : vector<64x128xi32>
    %cst_42 = arith.constant 1.000000e+00 : f32
    %cst_43 = arith.constant 0.000000e+00 : f32
    %104 = vector.broadcast %cst_42 : f32 to vector<64x128xf32>
    %105 = vector.broadcast %cst_43 : f32 to vector<64x128xf32>
    %106 = arith.select %103, %104, %105 : vector<64x128xi1>, vector<64x128xf32>
    %c320 = arith.constant 320 : index
    %c0_44 = arith.constant 0 : index
    %107 = vector.load %arg7[%c320, %c0_44] : memref<512x128xf32, #tpu.memory_space<vmem>>, vector<64x128xf32>
    tpu.vector_store %arg7[%c320, %c0_44], %106 {strides = array<i32>} : memref<512x128xf32, #tpu.memory_space<vmem>>, vector<64x128xf32>,
    %cst_45 = arith.constant 1.000000e+30 : f32
    %108 = vector.broadcast %cst_45 : f32 to vector<64x128xf32>
    %109 = arith.select %103, %108, %93 : vector<64x128xi1>, vector<64x128xf32>
    %cst_46 = arith.constant dense<0x7F800000> : vector<64xf32>
    %110 = vector.multi_reduction <minimumf>, %109, %cst_46 [1] : vector<64x128xf32> to vector<64xf32>
    %111 = vector.shape_cast %110 : vector<64xf32> to vector<64x1xf32>
    %112 = vector.broadcast %111 : vector<64x1xf32> to vector<64x128xf32>
    %113 = arith.cmpf ole, %109, %112 : vector<64x128xf32>
    %c128_i32_47 = arith.constant 128 : i32
    %114 = vector.broadcast %c128_i32_47 : i32 to vector<64x128xi32>
    %115 = arith.select %113, %13, %114 : vector<64x128xi1>, vector<64x128xi32>
    %cst_48 = arith.constant dense<2147483647> : vector<64xi32>
    %116 = vector.multi_reduction <minsi>, %115, %cst_48 [1] : vector<64x128xi32> to vector<64xi32>
    %117 = vector.shape_cast %116 : vector<64xi32> to vector<64x1xi32>
    %118 = vector.broadcast %117 : vector<64x1xi32> to vector<64x128xi32>
    %119 = arith.cmpi eq, %13, %118 : vector<64x128xi32>
    %cst_49 = arith.constant 1.000000e+00 : f32
    %cst_50 = arith.constant 0.000000e+00 : f32
    %120 = vector.broadcast %cst_49 : f32 to vector<64x128xf32>
    %121 = vector.broadcast %cst_50 : f32 to vector<64x128xf32>
    %122 = arith.select %119, %120, %121 : vector<64x128xi1>, vector<64x128xf32>
    %c384 = arith.constant 384 : index
    %c0_51 = arith.constant 0 : index
    %123 = vector.load %arg7[%c384, %c0_51] : memref<512x128xf32, #tpu.memory_space<vmem>>, vector<64x128xf32>
    tpu.vector_store %arg7[%c384, %c0_51], %122 {strides = array<i32>} : memref<512x128xf32, #tpu.memory_space<vmem>>, vector<64x128xf32>,
    %cst_52 = arith.constant 1.000000e+30 : f32
    %124 = vector.broadcast %cst_52 : f32 to vector<64x128xf32>
    %125 = arith.select %119, %124, %109 : vector<64x128xi1>, vector<64x128xf32>
    %cst_53 = arith.constant dense<0x7F800000> : vector<64xf32>
    %126 = vector.multi_reduction <minimumf>, %125, %cst_53 [1] : vector<64x128xf32> to vector<64xf32>
    %127 = vector.shape_cast %126 : vector<64xf32> to vector<64x1xf32>
    %128 = vector.broadcast %127 : vector<64x1xf32> to vector<64x128xf32>
    %129 = arith.cmpf ole, %125, %128 : vector<64x128xf32>
    %c128_i32_54 = arith.constant 128 : i32
    %130 = vector.broadcast %c128_i32_54 : i32 to vector<64x128xi32>
    %131 = arith.select %129, %13, %130 : vector<64x128xi1>, vector<64x128xi32>
    %cst_55 = arith.constant dense<2147483647> : vector<64xi32>
    %132 = vector.multi_reduction <minsi>, %131, %cst_55 [1] : vector<64x128xi32> to vector<64xi32>
    %133 = vector.shape_cast %132 : vector<64xi32> to vector<64x1xi32>
    %134 = vector.broadcast %133 : vector<64x1xi32> to vector<64x128xi32>
    %135 = arith.cmpi eq, %13, %134 : vector<64x128xi32>
    %cst_56 = arith.constant 1.000000e+00 : f32
    %cst_57 = arith.constant 0.000000e+00 : f32
    %136 = vector.broadcast %cst_56 : f32 to vector<64x128xf32>
    %137 = vector.broadcast %cst_57 : f32 to vector<64x128xf32>
    %138 = arith.select %135, %136, %137 : vector<64x128xi1>, vector<64x128xf32>
    %c448 = arith.constant 448 : index
    %c0_58 = arith.constant 0 : index
    %139 = vector.load %arg7[%c448, %c0_58] : memref<512x128xf32, #tpu.memory_space<vmem>>, vector<64x128xf32>
    tpu.vector_store %arg7[%c448, %c0_58], %138 {strides = array<i32>} : memref<512x128xf32, #tpu.memory_space<vmem>>, vector<64x128xf32>,
    %c0_59 = arith.constant 0 : index
    %c0_60 = arith.constant 0 : index
    %140 = vector.load %arg2[%c0_59, %c0_60] : memref<64x128xf32, #tpu.memory_space<vmem>>, vector<64x128xf32>
    %c0_61 = arith.constant 0 : index
    %c0_62 = arith.constant 0 : index
    %141 = vector.load %arg7[%c0_61, %c0_62] : memref<512x128xf32, #tpu.memory_space<vmem>>, vector<512x128xf32>
    %c0_63 = arith.constant 0 : index
    %c0_64 = arith.constant 0 : index
    %142 = vector.load %arg3[%c0_63, %c0_64] : memref<128x128xf32, #tpu.memory_space<vmem>>, vector<128x128xf32>
    %cst_65 = arith.constant dense<0.000000e+00> : vector<512x128xf32>
    %143 = tpu.matmul %141, %142, %cst_65 {dimension_numbers = #tpu.dot_dimension_numbers<[1], [0], [0], [1], [0, 0, 1, 1], [], []>} : vector<512x128xf32>, vector<128x128xf32>, vector<512x128xf32> -> vector<512x128xf32>
    %144 = vector.extract_strided_slice %143 {offsets = [0, 0], sizes = [64, 128], strides = [1, 1]} : vector<512x128xf32> to vector<64x128xf32>
    %145 = arith.addf %144, %140 : vector<64x128xf32>
    %cst_66 = arith.constant 0.000000e+00 : f32
    %146 = vector.broadcast %cst_66 : f32 to vector<64x128xf32>
    %147 = arith.maximumf %145, %146 : vector<64x128xf32>
    %c0_67 = arith.constant 0 : index
    %c0_68 = arith.constant 0 : index
    %148 = vector.load %arg8[%c0_67, %c0_68] : memref<512x128xf32, #tpu.memory_space<vmem>>, vector<64x128xf32>
    tpu.vector_store %arg8[%c0_67, %c0_68], %147 {strides = array<i32>} : memref<512x128xf32, #tpu.memory_space<vmem>>, vector<64x128xf32>,
    %149 = vector.extract_strided_slice %143 {offsets = [64, 0], sizes = [64, 128], strides = [1, 1]} : vector<512x128xf32> to vector<64x128xf32>
    %150 = arith.addf %149, %140 : vector<64x128xf32>
    %cst_69 = arith.constant 0.000000e+00 : f32
    %151 = vector.broadcast %cst_69 : f32 to vector<64x128xf32>
    %152 = arith.maximumf %150, %151 : vector<64x128xf32>
    %c64_70 = arith.constant 64 : index
    %c0_71 = arith.constant 0 : index
    %153 = vector.load %arg8[%c64_70, %c0_71] : memref<512x128xf32, #tpu.memory_space<vmem>>, vector<64x128xf32>
    tpu.vector_store %arg8[%c64_70, %c0_71], %152 {strides = array<i32>} : memref<512x128xf32, #tpu.memory_space<vmem>>, vector<64x128xf32>,
    %154 = vector.extract_strided_slice %143 {offsets = [128, 0], sizes = [64, 128], strides = [1, 1]} : vector<512x128xf32> to vector<64x128xf32>
    %155 = arith.addf %154, %140 : vector<64x128xf32>
    %cst_72 = arith.constant 0.000000e+00 : f32
    %156 = vector.broadcast %cst_72 : f32 to vector<64x128xf32>
    %157 = arith.maximumf %155, %156 : vector<64x128xf32>
    %c128_73 = arith.constant 128 : index
    %c0_74 = arith.constant 0 : index
    %158 = vector.load %arg8[%c128_73, %c0_74] : memref<512x128xf32, #tpu.memory_space<vmem>>, vector<64x128xf32>
    tpu.vector_store %arg8[%c128_73, %c0_74], %157 {strides = array<i32>} : memref<512x128xf32, #tpu.memory_space<vmem>>, vector<64x128xf32>,
    %159 = vector.extract_strided_slice %143 {offsets = [192, 0], sizes = [64, 128], strides = [1, 1]} : vector<512x128xf32> to vector<64x128xf32>
    %160 = arith.addf %159, %140 : vector<64x128xf32>
    %cst_75 = arith.constant 0.000000e+00 : f32
    %161 = vector.broadcast %cst_75 : f32 to vector<64x128xf32>
    %162 = arith.maximumf %160, %161 : vector<64x128xf32>
    %c192_76 = arith.constant 192 : index
    %c0_77 = arith.constant 0 : index
    %163 = vector.load %arg8[%c192_76, %c0_77] : memref<512x128xf32, #tpu.memory_space<vmem>>, vector<64x128xf32>
    tpu.vector_store %arg8[%c192_76, %c0_77], %162 {strides = array<i32>} : memref<512x128xf32, #tpu.memory_space<vmem>>, vector<64x128xf32>,
    %164 = vector.extract_strided_slice %143 {offsets = [256, 0], sizes = [64, 128], strides = [1, 1]} : vector<512x128xf32> to vector<64x128xf32>
    %165 = arith.addf %164, %140 : vector<64x128xf32>
    %cst_78 = arith.constant 0.000000e+00 : f32
    %166 = vector.broadcast %cst_78 : f32 to vector<64x128xf32>
    %167 = arith.maximumf %165, %166 : vector<64x128xf32>
    %c256_79 = arith.constant 256 : index
    %c0_80 = arith.constant 0 : index
    %168 = vector.load %arg8[%c256_79, %c0_80] : memref<512x128xf32, #tpu.memory_space<vmem>>, vector<64x128xf32>
    tpu.vector_store %arg8[%c256_79, %c0_80], %167 {strides = array<i32>} : memref<512x128xf32, #tpu.memory_space<vmem>>, vector<64x128xf32>,
    %169 = vector.extract_strided_slice %143 {offsets = [320, 0], sizes = [64, 128], strides = [1, 1]} : vector<512x128xf32> to vector<64x128xf32>
    %170 = arith.addf %169, %140 : vector<64x128xf32>
    %cst_81 = arith.constant 0.000000e+00 : f32
    %171 = vector.broadcast %cst_81 : f32 to vector<64x128xf32>
    %172 = arith.maximumf %170, %171 : vector<64x128xf32>
    %c320_82 = arith.constant 320 : index
    %c0_83 = arith.constant 0 : index
    %173 = vector.load %arg8[%c320_82, %c0_83] : memref<512x128xf32, #tpu.memory_space<vmem>>, vector<64x128xf32>
    tpu.vector_store %arg8[%c320_82, %c0_83], %172 {strides = array<i32>} : memref<512x128xf32, #tpu.memory_space<vmem>>, vector<64x128xf32>,
    %174 = vector.extract_strided_slice %143 {offsets = [384, 0], sizes = [64, 128], strides = [1, 1]} : vector<512x128xf32> to vector<64x128xf32>
    %175 = arith.addf %174, %140 : vector<64x128xf32>
    %cst_84 = arith.constant 0.000000e+00 : f32
    %176 = vector.broadcast %cst_84 : f32 to vector<64x128xf32>
    %177 = arith.maximumf %175, %176 : vector<64x128xf32>
    %c384_85 = arith.constant 384 : index
    %c0_86 = arith.constant 0 : index
    %178 = vector.load %arg8[%c384_85, %c0_86] : memref<512x128xf32, #tpu.memory_space<vmem>>, vector<64x128xf32>
    tpu.vector_store %arg8[%c384_85, %c0_86], %177 {strides = array<i32>} : memref<512x128xf32, #tpu.memory_space<vmem>>, vector<64x128xf32>,
    %179 = vector.extract_strided_slice %143 {offsets = [448, 0], sizes = [64, 128], strides = [1, 1]} : vector<512x128xf32> to vector<64x128xf32>
    %180 = arith.addf %179, %140 : vector<64x128xf32>
    %cst_87 = arith.constant 0.000000e+00 : f32
    %181 = vector.broadcast %cst_87 : f32 to vector<64x128xf32>
    %182 = arith.maximumf %180, %181 : vector<64x128xf32>
    %c448_88 = arith.constant 448 : index
    %c0_89 = arith.constant 0 : index
    %183 = vector.load %arg8[%c448_88, %c0_89] : memref<512x128xf32, #tpu.memory_space<vmem>>, vector<64x128xf32>
    tpu.vector_store %arg8[%c448_88, %c0_89], %182 {strides = array<i32>} : memref<512x128xf32, #tpu.memory_space<vmem>>, vector<64x128xf32>,
    %c0_90 = arith.constant 0 : index
    %c0_91 = arith.constant 0 : index
    %184 = vector.load %arg8[%c0_90, %c0_91] : memref<512x128xf32, #tpu.memory_space<vmem>>, vector<512x128xf32>
    %c0_92 = arith.constant 0 : index
    %c0_93 = arith.constant 0 : index
    %185 = vector.load %arg4[%c0_92, %c0_93] : memref<128x128xf32, #tpu.memory_space<vmem>>, vector<128x128xf32>
    %cst_94 = arith.constant dense<0.000000e+00> : vector<512x128xf32>
    %186 = tpu.matmul %184, %185, %cst_94 {dimension_numbers = #tpu.dot_dimension_numbers<[1], [0], [0], [1], [0, 0, 1, 1], [], []>} : vector<512x128xf32>, vector<128x128xf32>, vector<512x128xf32> -> vector<512x128xf32>
    %187 = vector.extract_strided_slice %186 {offsets = [0, 0], sizes = [64, 128], strides = [1, 1]} : vector<512x128xf32> to vector<64x128xf32>
    %188 = vector.extract_strided_slice %186 {offsets = [64, 0], sizes = [64, 128], strides = [1, 1]} : vector<512x128xf32> to vector<64x128xf32>
    %189 = arith.maximumf %187, %188 : vector<64x128xf32>
    %190 = vector.extract_strided_slice %186 {offsets = [128, 0], sizes = [64, 128], strides = [1, 1]} : vector<512x128xf32> to vector<64x128xf32>
    %191 = arith.maximumf %189, %190 : vector<64x128xf32>
    %192 = vector.extract_strided_slice %186 {offsets = [192, 0], sizes = [64, 128], strides = [1, 1]} : vector<512x128xf32> to vector<64x128xf32>
    %193 = arith.maximumf %191, %192 : vector<64x128xf32>
    %194 = vector.extract_strided_slice %186 {offsets = [256, 0], sizes = [64, 128], strides = [1, 1]} : vector<512x128xf32> to vector<64x128xf32>
    %195 = arith.maximumf %193, %194 : vector<64x128xf32>
    %196 = vector.extract_strided_slice %186 {offsets = [320, 0], sizes = [64, 128], strides = [1, 1]} : vector<512x128xf32> to vector<64x128xf32>
    %197 = arith.maximumf %195, %196 : vector<64x128xf32>
    %198 = vector.extract_strided_slice %186 {offsets = [384, 0], sizes = [64, 128], strides = [1, 1]} : vector<512x128xf32> to vector<64x128xf32>
    %199 = arith.maximumf %197, %198 : vector<64x128xf32>
    %200 = vector.extract_strided_slice %186 {offsets = [448, 0], sizes = [64, 128], strides = [1, 1]} : vector<512x128xf32> to vector<64x128xf32>
    %201 = arith.maximumf %199, %200 : vector<64x128xf32>
    %c0_95 = arith.constant 0 : index
    %c0_96 = arith.constant 0 : index
    %202 = vector.load %arg5[%c0_95, %c0_96] : memref<1x128xf32, #tpu.memory_space<vmem>>, vector<1x128xf32>
    %203 = vector.broadcast %202 : vector<1x128xf32> to vector<64x128xf32>
    %204 = arith.addf %201, %203 : vector<64x128xf32>
    %c0_97 = arith.constant 0 : index
    %c0_98 = arith.constant 0 : index
    %205 = vector.load %arg6[%c0_97, %c0_98] : memref<64x128xf32, #tpu.memory_space<vmem>>, vector<64x128xf32>
    tpu.vector_store %arg6[%c0_97, %c0_98], %204 {strides = array<i32>} : memref<64x128xf32, #tpu.memory_space<vmem>>, vector<64x128xf32>,
    return
  }
  func.func @transform_0(%arg0: i32) -> (i32, i32) {
    %c0_i32 = arith.constant 0 : i32
    %c0_i32_0 = arith.constant 0 : i32
    %c0_i32_1 = arith.constant 0 : i32
    return %c0_i32, %c0_i32_0 : i32, i32
  }
  func.func @transform_1(%arg0: i32) -> (i32, i32) {
    %c0_i32 = arith.constant 0 : i32
    %c0_i32_0 = arith.constant 0 : i32
    return %arg0, %c0_i32 : i32, i32
  }
  func.func @transform_2(%arg0: i32) -> (i32, i32) {
    %c0_i32 = arith.constant 0 : i32
    %c0_i32_0 = arith.constant 0 : i32
    %c0_i32_1 = arith.constant 0 : i32
    return %c0_i32, %c0_i32_0 : i32, i32
  }
  func.func @transform_3(%arg0: i32) -> (i32, i32) {
    %c0_i32 = arith.constant 0 : i32
    %c0_i32_0 = arith.constant 0 : i32
    %c0_i32_1 = arith.constant 0 : i32
    return %c0_i32, %c0_i32_0 : i32, i32
  }
  func.func @transform_4(%arg0: i32) -> (i32, i32) {
    %c0_i32 = arith.constant 0 : i32
    %c0_i32_0 = arith.constant 0 : i32
    %c0_i32_1 = arith.constant 0 : i32
    return %c0_i32, %c0_i32_0 : i32, i32
  }
  func.func @transform_5(%arg0: i32) -> (i32, i32) {
    %c0_i32 = arith.constant 0 : i32
    %c0_i32_0 = arith.constant 0 : i32
    return %arg0, %c0_i32 : i32, i32
  }
}

module attributes {stable_mosaic.version = 11 : i64} {
  func.func @geo_position_update_kernel(%arg0: i32, %arg1: memref<128x8xf32, #tpu.memory_space<vmem>>, %arg2: memref<64x128xf32, #tpu.memory_space<vmem>>, %arg3: memref<128x128xf32, #tpu.memory_space<vmem>>, %arg4: memref<128x128xf32, #tpu.memory_space<vmem>>, %arg5: memref<1x128xf32, #tpu.memory_space<vmem>>, %arg6: memref<64x128xf32, #tpu.memory_space<vmem>>, %arg7: memref<512x128xf32, #tpu.memory_space<vmem>>, %arg8: memref<512x128xf32, #tpu.memory_space<vmem>>) attributes {dimension_semantics = [#tpu.dimension_semantics<parallel>], iteration_bounds = array<i64: 2>, scalar_prefetch = 0 : i64, scratch_operands = 2 : i64, tpu.core_type = #tpu.core_type<tc>, window_params = [{pipeline_mode = #tpu.pipeline_mode<synchronous>, transform_indices = @transform_0, window_bounds = array<i64: 128, 8>}, {transform_indices = @transform_1, window_bounds = array<i64: 64, 128>}, {pipeline_mode = #tpu.pipeline_mode<synchronous>, transform_indices = @transform_2, window_bounds = array<i64: 128, 128>}, {pipeline_mode = #tpu.pipeline_mode<synchronous>, transform_indices = @transform_3, window_bounds = array<i64: 128, 128>}, {pipeline_mode = #tpu.pipeline_mode<synchronous>, transform_indices = @transform_4, window_bounds = array<i64: 1, 128>}, {transform_indices = @transform_5, window_bounds = array<i64: 64, 128>}]} {
    %c64_i32 = arith.constant 64 : i32
    %0 = arith.muli %arg0, %c64_i32 : i32
    %1 = tpu.assume_multiple %0, 8 : i32
    %2 = arith.index_cast %1 : i32 to index
    %c0 = arith.constant 0 : index
    %3 = vector.load %arg1[%2, %c0] : memref<128x8xf32, #tpu.memory_space<vmem>>, vector<64x8xf32>
    %4 = tpu.iota {dimensions = array<i32: 1>} : vector<64x8xi32>
    %c3_i32 = arith.constant 3 : i32
    %5 = vector.broadcast %c3_i32 : i32 to vector<64x8xi32>
    %6 = arith.cmpi eq, %4, %5 : vector<64x8xi32>
    %cst = arith.constant -2.000000e+00 : f32
    %7 = vector.broadcast %cst : f32 to vector<64x8xf32>
    %8 = arith.mulf %7, %3 : vector<64x8xf32>
    %cst_0 = arith.constant 1.000000e+00 : f32
    %9 = vector.broadcast %cst_0 : f32 to vector<64x8xf32>
    %10 = arith.select %6, %9, %8 : vector<64x8xi1>, vector<64x8xf32>
    %c0_1 = arith.constant 0 : index
    %c0_2 = arith.constant 0 : index
    %11 = vector.load %arg1[%c0_1, %c0_2] : memref<128x8xf32, #tpu.memory_space<vmem>>, vector<128x8xf32>
    %cst_3 = arith.constant dense<0.000000e+00> : vector<64x128xf32>
    %12 = tpu.matmul %10, %11, %cst_3 {dimension_numbers = #tpu.dot_dimension_numbers<[1], [1], [0], [0], [0, 0, 1, 0], [], []>} : vector<64x8xf32>, vector<128x8xf32>, vector<64x128xf32> -> vector<64x128xf32>
    %13 = tpu.iota {dimensions = array<i32: 1>} : vector<64x128xi32>
    %cst_4 = arith.constant dense<0x7F800000> : vector<64xf32>
    %14 = vector.multi_reduction <minimumf>, %12, %cst_4 [1] : vector<64x128xf32> to vector<64xf32>
    %15 = vector.shape_cast %14 : vector<64xf32> to vector<64x1xf32>
    %16 = vector.broadcast %15 : vector<64x1xf32> to vector<64x128xf32>
    %17 = arith.cmpf ole, %12, %16 : vector<64x128xf32>
    %c128_i32 = arith.constant 128 : i32
    %18 = vector.broadcast %c128_i32 : i32 to vector<64x128xi32>
    %19 = arith.select %17, %13, %18 : vector<64x128xi1>, vector<64x128xi32>
    %cst_5 = arith.constant dense<2147483647> : vector<64xi32>
    %20 = vector.multi_reduction <minsi>, %19, %cst_5 [1] : vector<64x128xi32> to vector<64xi32>
    %21 = vector.shape_cast %20 : vector<64xi32> to vector<64x1xi32>
    %22 = vector.broadcast %21 : vector<64x1xi32> to vector<64x128xi32>
    %23 = arith.cmpi eq, %13, %22 : vector<64x128xi32>
    %cst_6 = arith.constant 1.000000e+00 : f32
    %cst_7 = arith.constant 0.000000e+00 : f32
    %24 = vector.broadcast %cst_6 : f32 to vector<64x128xf32>
    %25 = vector.broadcast %cst_7 : f32 to vector<64x128xf32>
    %26 = arith.select %23, %24, %25 : vector<64x128xi1>, vector<64x128xf32>
    %c0_8 = arith.constant 0 : index
    %c0_9 = arith.constant 0 : index
    %27 = vector.load %arg7[%c0_8, %c0_9] : memref<512x128xf32, #tpu.memory_space<vmem>>, vector<64x128xf32>
    tpu.vector_store %arg7[%c0_8, %c0_9], %26 {strides = array<i32>} : memref<512x128xf32, #tpu.memory_space<vmem>>, vector<64x128xf32>,
    %cst_10 = arith.constant 1.000000e+30 : f32
    %28 = vector.broadcast %cst_10 : f32 to vector<64x128xf32>
    %29 = arith.select %23, %28, %12 : vector<64x128xi1>, vector<64x128xf32>
    %cst_11 = arith.constant dense<0x7F800000> : vector<64xf32>
    %30 = vector.multi_reduction <minimumf>, %29, %cst_11 [1] : vector<64x128xf32> to vector<64xf32>
    %31 = vector.shape_cast %30 : vector<64xf32> to vector<64x1xf32>
    %32 = vector.broadcast %31 : vector<64x1xf32> to vector<64x128xf32>
    %33 = arith.cmpf ole, %29, %32 : vector<64x128xf32>
    %c128_i32_12 = arith.constant 128 : i32
    %34 = vector.broadcast %c128_i32_12 : i32 to vector<64x128xi32>
    %35 = arith.select %33, %13, %34 : vector<64x128xi1>, vector<64x128xi32>
    %cst_13 = arith.constant dense<2147483647> : vector<64xi32>
    %36 = vector.multi_reduction <minsi>, %35, %cst_13 [1] : vector<64x128xi32> to vector<64xi32>
    %37 = vector.shape_cast %36 : vector<64xi32> to vector<64x1xi32>
    %38 = vector.broadcast %37 : vector<64x1xi32> to vector<64x128xi32>
    %39 = arith.cmpi eq, %13, %38 : vector<64x128xi32>
    %cst_14 = arith.constant 1.000000e+00 : f32
    %cst_15 = arith.constant 0.000000e+00 : f32
    %40 = vector.broadcast %cst_14 : f32 to vector<64x128xf32>
    %41 = vector.broadcast %cst_15 : f32 to vector<64x128xf32>
    %42 = arith.select %39, %40, %41 : vector<64x128xi1>, vector<64x128xf32>
    %c64 = arith.constant 64 : index
    %c0_16 = arith.constant 0 : index
    %43 = vector.load %arg7[%c64, %c0_16] : memref<512x128xf32, #tpu.memory_space<vmem>>, vector<64x128xf32>
    tpu.vector_store %arg7[%c64, %c0_16], %42 {strides = array<i32>} : memref<512x128xf32, #tpu.memory_space<vmem>>, vector<64x128xf32>,
    %cst_17 = arith.constant 1.000000e+30 : f32
    %44 = vector.broadcast %cst_17 : f32 to vector<64x128xf32>
    %45 = arith.select %39, %44, %29 : vector<64x128xi1>, vector<64x128xf32>
    %cst_18 = arith.constant dense<0x7F800000> : vector<64xf32>
    %46 = vector.multi_reduction <minimumf>, %45, %cst_18 [1] : vector<64x128xf32> to vector<64xf32>
    %47 = vector.shape_cast %46 : vector<64xf32> to vector<64x1xf32>
    %48 = vector.broadcast %47 : vector<64x1xf32> to vector<64x128xf32>
    %49 = arith.cmpf ole, %45, %48 : vector<64x128xf32>
    %c128_i32_19 = arith.constant 128 : i32
    %50 = vector.broadcast %c128_i32_19 : i32 to vector<64x128xi32>
    %51 = arith.select %49, %13, %50 : vector<64x128xi1>, vector<64x128xi32>
    %cst_20 = arith.constant dense<2147483647> : vector<64xi32>
    %52 = vector.multi_reduction <minsi>, %51, %cst_20 [1] : vector<64x128xi32> to vector<64xi32>
    %53 = vector.shape_cast %52 : vector<64xi32> to vector<64x1xi32>
    %54 = vector.broadcast %53 : vector<64x1xi32> to vector<64x128xi32>
    %55 = arith.cmpi eq, %13, %54 : vector<64x128xi32>
    %cst_21 = arith.constant 1.000000e+00 : f32
    %cst_22 = arith.constant 0.000000e+00 : f32
    %56 = vector.broadcast %cst_21 : f32 to vector<64x128xf32>
    %57 = vector.broadcast %cst_22 : f32 to vector<64x128xf32>
    %58 = arith.select %55, %56, %57 : vector<64x128xi1>, vector<64x128xf32>
    %c128 = arith.constant 128 : index
    %c0_23 = arith.constant 0 : index
    %59 = vector.load %arg7[%c128, %c0_23] : memref<512x128xf32, #tpu.memory_space<vmem>>, vector<64x128xf32>
    tpu.vector_store %arg7[%c128, %c0_23], %58 {strides = array<i32>} : memref<512x128xf32, #tpu.memory_space<vmem>>, vector<64x128xf32>,
    %cst_24 = arith.constant 1.000000e+30 : f32
    %60 = vector.broadcast %cst_24 : f32 to vector<64x128xf32>
    %61 = arith.select %55, %60, %45 : vector<64x128xi1>, vector<64x128xf32>
    %cst_25 = arith.constant dense<0x7F800000> : vector<64xf32>
    %62 = vector.multi_reduction <minimumf>, %61, %cst_25 [1] : vector<64x128xf32> to vector<64xf32>
    %63 = vector.shape_cast %62 : vector<64xf32> to vector<64x1xf32>
    %64 = vector.broadcast %63 : vector<64x1xf32> to vector<64x128xf32>
    %65 = arith.cmpf ole, %61, %64 : vector<64x128xf32>
    %c128_i32_26 = arith.constant 128 : i32
    %66 = vector.broadcast %c128_i32_26 : i32 to vector<64x128xi32>
    %67 = arith.select %65, %13, %66 : vector<64x128xi1>, vector<64x128xi32>
    %cst_27 = arith.constant dense<2147483647> : vector<64xi32>
    %68 = vector.multi_reduction <minsi>, %67, %cst_27 [1] : vector<64x128xi32> to vector<64xi32>
    %69 = vector.shape_cast %68 : vector<64xi32> to vector<64x1xi32>
    %70 = vector.broadcast %69 : vector<64x1xi32> to vector<64x128xi32>
    %71 = arith.cmpi eq, %13, %70 : vector<64x128xi32>
    %cst_28 = arith.constant 1.000000e+00 : f32
    %cst_29 = arith.constant 0.000000e+00 : f32
    %72 = vector.broadcast %cst_28 : f32 to vector<64x128xf32>
    %73 = vector.broadcast %cst_29 : f32 to vector<64x128xf32>
    %74 = arith.select %71, %72, %73 : vector<64x128xi1>, vector<64x128xf32>
    %c192 = arith.constant 192 : index
    %c0_30 = arith.constant 0 : index
    %75 = vector.load %arg7[%c192, %c0_30] : memref<512x128xf32, #tpu.memory_space<vmem>>, vector<64x128xf32>
    tpu.vector_store %arg7[%c192, %c0_30], %74 {strides = array<i32>} : memref<512x128xf32, #tpu.memory_space<vmem>>, vector<64x128xf32>,
    %cst_31 = arith.constant 1.000000e+30 : f32
    %76 = vector.broadcast %cst_31 : f32 to vector<64x128xf32>
    %77 = arith.select %71, %76, %61 : vector<64x128xi1>, vector<64x128xf32>
    %cst_32 = arith.constant dense<0x7F800000> : vector<64xf32>
    %78 = vector.multi_reduction <minimumf>, %77, %cst_32 [1] : vector<64x128xf32> to vector<64xf32>
    %79 = vector.shape_cast %78 : vector<64xf32> to vector<64x1xf32>
    %80 = vector.broadcast %79 : vector<64x1xf32> to vector<64x128xf32>
    %81 = arith.cmpf ole, %77, %80 : vector<64x128xf32>
    %c128_i32_33 = arith.constant 128 : i32
    %82 = vector.broadcast %c128_i32_33 : i32 to vector<64x128xi32>
    %83 = arith.select %81, %13, %82 : vector<64x128xi1>, vector<64x128xi32>
    %cst_34 = arith.constant dense<2147483647> : vector<64xi32>
    %84 = vector.multi_reduction <minsi>, %83, %cst_34 [1] : vector<64x128xi32> to vector<64xi32>
    %85 = vector.shape_cast %84 : vector<64xi32> to vector<64x1xi32>
    %86 = vector.broadcast %85 : vector<64x1xi32> to vector<64x128xi32>
    %87 = arith.cmpi eq, %13, %86 : vector<64x128xi32>
    %cst_35 = arith.constant 1.000000e+00 : f32
    %cst_36 = arith.constant 0.000000e+00 : f32
    %88 = vector.broadcast %cst_35 : f32 to vector<64x128xf32>
    %89 = vector.broadcast %cst_36 : f32 to vector<64x128xf32>
    %90 = arith.select %87, %88, %89 : vector<64x128xi1>, vector<64x128xf32>
    %c256 = arith.constant 256 : index
    %c0_37 = arith.constant 0 : index
    %91 = vector.load %arg7[%c256, %c0_37] : memref<512x128xf32, #tpu.memory_space<vmem>>, vector<64x128xf32>
    tpu.vector_store %arg7[%c256, %c0_37], %90 {strides = array<i32>} : memref<512x128xf32, #tpu.memory_space<vmem>>, vector<64x128xf32>,
    %cst_38 = arith.constant 1.000000e+30 : f32
    %92 = vector.broadcast %cst_38 : f32 to vector<64x128xf32>
    %93 = arith.select %87, %92, %77 : vector<64x128xi1>, vector<64x128xf32>
    %cst_39 = arith.constant dense<0x7F800000> : vector<64xf32>
    %94 = vector.multi_reduction <minimumf>, %93, %cst_39 [1] : vector<64x128xf32> to vector<64xf32>
    %95 = vector.shape_cast %94 : vector<64xf32> to vector<64x1xf32>
    %96 = vector.broadcast %95 : vector<64x1xf32> to vector<64x128xf32>
    %97 = arith.cmpf ole, %93, %96 : vector<64x128xf32>
    %c128_i32_40 = arith.constant 128 : i32
    %98 = vector.broadcast %c128_i32_40 : i32 to vector<64x128xi32>
    %99 = arith.select %97, %13, %98 : vector<64x128xi1>, vector<64x128xi32>
    %cst_41 = arith.constant dense<2147483647> : vector<64xi32>
    %100 = vector.multi_reduction <minsi>, %99, %cst_41 [1] : vector<64x128xi32> to vector<64xi32>
    %101 = vector.shape_cast %100 : vector<64xi32> to vector<64x1xi32>
    %102 = vector.broadcast %101 : vector<64x1xi32> to vector<64x128xi32>
    %103 = arith.cmpi eq, %13, %102 : vector<64x128xi32>
    %cst_42 = arith.constant 1.000000e+00 : f32
    %cst_43 = arith.constant 0.000000e+00 : f32
    %104 = vector.broadcast %cst_42 : f32 to vector<64x128xf32>
    %105 = vector.broadcast %cst_43 : f32 to vector<64x128xf32>
    %106 = arith.select %103, %104, %105 : vector<64x128xi1>, vector<64x128xf32>
    %c320 = arith.constant 320 : index
    %c0_44 = arith.constant 0 : index
    %107 = vector.load %arg7[%c320, %c0_44] : memref<512x128xf32, #tpu.memory_space<vmem>>, vector<64x128xf32>
    tpu.vector_store %arg7[%c320, %c0_44], %106 {strides = array<i32>} : memref<512x128xf32, #tpu.memory_space<vmem>>, vector<64x128xf32>,
    %cst_45 = arith.constant 1.000000e+30 : f32
    %108 = vector.broadcast %cst_45 : f32 to vector<64x128xf32>
    %109 = arith.select %103, %108, %93 : vector<64x128xi1>, vector<64x128xf32>
    %cst_46 = arith.constant dense<0x7F800000> : vector<64xf32>
    %110 = vector.multi_reduction <minimumf>, %109, %cst_46 [1] : vector<64x128xf32> to vector<64xf32>
    %111 = vector.shape_cast %110 : vector<64xf32> to vector<64x1xf32>
    %112 = vector.broadcast %111 : vector<64x1xf32> to vector<64x128xf32>
    %113 = arith.cmpf ole, %109, %112 : vector<64x128xf32>
    %c128_i32_47 = arith.constant 128 : i32
    %114 = vector.broadcast %c128_i32_47 : i32 to vector<64x128xi32>
    %115 = arith.select %113, %13, %114 : vector<64x128xi1>, vector<64x128xi32>
    %cst_48 = arith.constant dense<2147483647> : vector<64xi32>
    %116 = vector.multi_reduction <minsi>, %115, %cst_48 [1] : vector<64x128xi32> to vector<64xi32>
    %117 = vector.shape_cast %116 : vector<64xi32> to vector<64x1xi32>
    %118 = vector.broadcast %117 : vector<64x1xi32> to vector<64x128xi32>
    %119 = arith.cmpi eq, %13, %118 : vector<64x128xi32>
    %cst_49 = arith.constant 1.000000e+00 : f32
    %cst_50 = arith.constant 0.000000e+00 : f32
    %120 = vector.broadcast %cst_49 : f32 to vector<64x128xf32>
    %121 = vector.broadcast %cst_50 : f32 to vector<64x128xf32>
    %122 = arith.select %119, %120, %121 : vector<64x128xi1>, vector<64x128xf32>
    %c384 = arith.constant 384 : index
    %c0_51 = arith.constant 0 : index
    %123 = vector.load %arg7[%c384, %c0_51] : memref<512x128xf32, #tpu.memory_space<vmem>>, vector<64x128xf32>
    tpu.vector_store %arg7[%c384, %c0_51], %122 {strides = array<i32>} : memref<512x128xf32, #tpu.memory_space<vmem>>, vector<64x128xf32>,
    %cst_52 = arith.constant 1.000000e+30 : f32
    %124 = vector.broadcast %cst_52 : f32 to vector<64x128xf32>
    %125 = arith.select %119, %124, %109 : vector<64x128xi1>, vector<64x128xf32>
    %cst_53 = arith.constant dense<0x7F800000> : vector<64xf32>
    %126 = vector.multi_reduction <minimumf>, %125, %cst_53 [1] : vector<64x128xf32> to vector<64xf32>
    %127 = vector.shape_cast %126 : vector<64xf32> to vector<64x1xf32>
    %128 = vector.broadcast %127 : vector<64x1xf32> to vector<64x128xf32>
    %129 = arith.cmpf ole, %125, %128 : vector<64x128xf32>
    %c128_i32_54 = arith.constant 128 : i32
    %130 = vector.broadcast %c128_i32_54 : i32 to vector<64x128xi32>
    %131 = arith.select %129, %13, %130 : vector<64x128xi1>, vector<64x128xi32>
    %cst_55 = arith.constant dense<2147483647> : vector<64xi32>
    %132 = vector.multi_reduction <minsi>, %131, %cst_55 [1] : vector<64x128xi32> to vector<64xi32>
    %133 = vector.shape_cast %132 : vector<64xi32> to vector<64x1xi32>
    %134 = vector.broadcast %133 : vector<64x1xi32> to vector<64x128xi32>
    %135 = arith.cmpi eq, %13, %134 : vector<64x128xi32>
    %cst_56 = arith.constant 1.000000e+00 : f32
    %cst_57 = arith.constant 0.000000e+00 : f32
    %136 = vector.broadcast %cst_56 : f32 to vector<64x128xf32>
    %137 = vector.broadcast %cst_57 : f32 to vector<64x128xf32>
    %138 = arith.select %135, %136, %137 : vector<64x128xi1>, vector<64x128xf32>
    %c448 = arith.constant 448 : index
    %c0_58 = arith.constant 0 : index
    %139 = vector.load %arg7[%c448, %c0_58] : memref<512x128xf32, #tpu.memory_space<vmem>>, vector<64x128xf32>
    tpu.vector_store %arg7[%c448, %c0_58], %138 {strides = array<i32>} : memref<512x128xf32, #tpu.memory_space<vmem>>, vector<64x128xf32>,
    %c0_59 = arith.constant 0 : index
    %c0_60 = arith.constant 0 : index
    %140 = vector.load %arg2[%c0_59, %c0_60] : memref<64x128xf32, #tpu.memory_space<vmem>>, vector<64x128xf32>
    %c0_61 = arith.constant 0 : index
    %c0_62 = arith.constant 0 : index
    %141 = vector.load %arg7[%c0_61, %c0_62] : memref<512x128xf32, #tpu.memory_space<vmem>>, vector<512x128xf32>
    %c0_63 = arith.constant 0 : index
    %c0_64 = arith.constant 0 : index
    %142 = vector.load %arg3[%c0_63, %c0_64] : memref<128x128xf32, #tpu.memory_space<vmem>>, vector<128x128xf32>
    %cst_65 = arith.constant dense<0.000000e+00> : vector<512x128xf32>
    %143 = tpu.matmul %141, %142, %cst_65 {dimension_numbers = #tpu.dot_dimension_numbers<[1], [0], [0], [1], [0, 0, 1, 1], [], []>} : vector<512x128xf32>, vector<128x128xf32>, vector<512x128xf32> -> vector<512x128xf32>
    %144 = vector.extract_strided_slice %143 {offsets = [0, 0], sizes = [64, 128], strides = [1, 1]} : vector<512x128xf32> to vector<64x128xf32>
    %145 = arith.addf %144, %140 : vector<64x128xf32>
    %cst_66 = arith.constant 0.000000e+00 : f32
    %146 = vector.broadcast %cst_66 : f32 to vector<64x128xf32>
    %147 = arith.maximumf %145, %146 : vector<64x128xf32>
    %c0_67 = arith.constant 0 : index
    %c0_68 = arith.constant 0 : index
    %148 = vector.load %arg8[%c0_67, %c0_68] : memref<512x128xf32, #tpu.memory_space<vmem>>, vector<64x128xf32>
    tpu.vector_store %arg8[%c0_67, %c0_68], %147 {strides = array<i32>} : memref<512x128xf32, #tpu.memory_space<vmem>>, vector<64x128xf32>,
    %149 = vector.extract_strided_slice %143 {offsets = [64, 0], sizes = [64, 128], strides = [1, 1]} : vector<512x128xf32> to vector<64x128xf32>
    %150 = arith.addf %149, %140 : vector<64x128xf32>
    %cst_69 = arith.constant 0.000000e+00 : f32
    %151 = vector.broadcast %cst_69 : f32 to vector<64x128xf32>
    %152 = arith.maximumf %150, %151 : vector<64x128xf32>
    %c64_70 = arith.constant 64 : index
    %c0_71 = arith.constant 0 : index
    %153 = vector.load %arg8[%c64_70, %c0_71] : memref<512x128xf32, #tpu.memory_space<vmem>>, vector<64x128xf32>
    tpu.vector_store %arg8[%c64_70, %c0_71], %152 {strides = array<i32>} : memref<512x128xf32, #tpu.memory_space<vmem>>, vector<64x128xf32>,
    %154 = vector.extract_strided_slice %143 {offsets = [128, 0], sizes = [64, 128], strides = [1, 1]} : vector<512x128xf32> to vector<64x128xf32>
    %155 = arith.addf %154, %140 : vector<64x128xf32>
    %cst_72 = arith.constant 0.000000e+00 : f32
    %156 = vector.broadcast %cst_72 : f32 to vector<64x128xf32>
    %157 = arith.maximumf %155, %156 : vector<64x128xf32>
    %c128_73 = arith.constant 128 : index
    %c0_74 = arith.constant 0 : index
    %158 = vector.load %arg8[%c128_73, %c0_74] : memref<512x128xf32, #tpu.memory_space<vmem>>, vector<64x128xf32>
    tpu.vector_store %arg8[%c128_73, %c0_74], %157 {strides = array<i32>} : memref<512x128xf32, #tpu.memory_space<vmem>>, vector<64x128xf32>,
    %159 = vector.extract_strided_slice %143 {offsets = [192, 0], sizes = [64, 128], strides = [1, 1]} : vector<512x128xf32> to vector<64x128xf32>
    %160 = arith.addf %159, %140 : vector<64x128xf32>
    %cst_75 = arith.constant 0.000000e+00 : f32
    %161 = vector.broadcast %cst_75 : f32 to vector<64x128xf32>
    %162 = arith.maximumf %160, %161 : vector<64x128xf32>
    %c192_76 = arith.constant 192 : index
    %c0_77 = arith.constant 0 : index
    %163 = vector.load %arg8[%c192_76, %c0_77] : memref<512x128xf32, #tpu.memory_space<vmem>>, vector<64x128xf32>
    tpu.vector_store %arg8[%c192_76, %c0_77], %162 {strides = array<i32>} : memref<512x128xf32, #tpu.memory_space<vmem>>, vector<64x128xf32>,
    %164 = vector.extract_strided_slice %143 {offsets = [256, 0], sizes = [64, 128], strides = [1, 1]} : vector<512x128xf32> to vector<64x128xf32>
    %165 = arith.addf %164, %140 : vector<64x128xf32>
    %cst_78 = arith.constant 0.000000e+00 : f32
    %166 = vector.broadcast %cst_78 : f32 to vector<64x128xf32>
    %167 = arith.maximumf %165, %166 : vector<64x128xf32>
    %c256_79 = arith.constant 256 : index
    %c0_80 = arith.constant 0 : index
    %168 = vector.load %arg8[%c256_79, %c0_80] : memref<512x128xf32, #tpu.memory_space<vmem>>, vector<64x128xf32>
    tpu.vector_store %arg8[%c256_79, %c0_80], %167 {strides = array<i32>} : memref<512x128xf32, #tpu.memory_space<vmem>>, vector<64x128xf32>,
    %169 = vector.extract_strided_slice %143 {offsets = [320, 0], sizes = [64, 128], strides = [1, 1]} : vector<512x128xf32> to vector<64x128xf32>
    %170 = arith.addf %169, %140 : vector<64x128xf32>
    %cst_81 = arith.constant 0.000000e+00 : f32
    %171 = vector.broadcast %cst_81 : f32 to vector<64x128xf32>
    %172 = arith.maximumf %170, %171 : vector<64x128xf32>
    %c320_82 = arith.constant 320 : index
    %c0_83 = arith.constant 0 : index
    %173 = vector.load %arg8[%c320_82, %c0_83] : memref<512x128xf32, #tpu.memory_space<vmem>>, vector<64x128xf32>
    tpu.vector_store %arg8[%c320_82, %c0_83], %172 {strides = array<i32>} : memref<512x128xf32, #tpu.memory_space<vmem>>, vector<64x128xf32>,
    %174 = vector.extract_strided_slice %143 {offsets = [384, 0], sizes = [64, 128], strides = [1, 1]} : vector<512x128xf32> to vector<64x128xf32>
    %175 = arith.addf %174, %140 : vector<64x128xf32>
    %cst_84 = arith.constant 0.000000e+00 : f32
    %176 = vector.broadcast %cst_84 : f32 to vector<64x128xf32>
    %177 = arith.maximumf %175, %176 : vector<64x128xf32>
    %c384_85 = arith.constant 384 : index
    %c0_86 = arith.constant 0 : index
    %178 = vector.load %arg8[%c384_85, %c0_86] : memref<512x128xf32, #tpu.memory_space<vmem>>, vector<64x128xf32>
    tpu.vector_store %arg8[%c384_85, %c0_86], %177 {strides = array<i32>} : memref<512x128xf32, #tpu.memory_space<vmem>>, vector<64x128xf32>,
    %179 = vector.extract_strided_slice %143 {offsets = [448, 0], sizes = [64, 128], strides = [1, 1]} : vector<512x128xf32> to vector<64x128xf32>
    %180 = arith.addf %179, %140 : vector<64x128xf32>
    %cst_87 = arith.constant 0.000000e+00 : f32
    %181 = vector.broadcast %cst_87 : f32 to vector<64x128xf32>
    %182 = arith.maximumf %180, %181 : vector<64x128xf32>
    %c448_88 = arith.constant 448 : index
    %c0_89 = arith.constant 0 : index
    %183 = vector.load %arg8[%c448_88, %c0_89] : memref<512x128xf32, #tpu.memory_space<vmem>>, vector<64x128xf32>
    tpu.vector_store %arg8[%c448_88, %c0_89], %182 {strides = array<i32>} : memref<512x128xf32, #tpu.memory_space<vmem>>, vector<64x128xf32>,
    %c0_90 = arith.constant 0 : index
    %c0_91 = arith.constant 0 : index
    %184 = vector.load %arg8[%c0_90, %c0_91] : memref<512x128xf32, #tpu.memory_space<vmem>>, vector<512x128xf32>
    %c0_92 = arith.constant 0 : index
    %c0_93 = arith.constant 0 : index
    %185 = vector.load %arg4[%c0_92, %c0_93] : memref<128x128xf32, #tpu.memory_space<vmem>>, vector<128x128xf32>
    %cst_94 = arith.constant dense<0.000000e+00> : vector<512x128xf32>
    %186 = tpu.matmul %184, %185, %cst_94 {dimension_numbers = #tpu.dot_dimension_numbers<[1], [0], [0], [1], [0, 0, 1, 1], [], []>} : vector<512x128xf32>, vector<128x128xf32>, vector<512x128xf32> -> vector<512x128xf32>
    %187 = vector.extract_strided_slice %186 {offsets = [0, 0], sizes = [64, 128], strides = [1, 1]} : vector<512x128xf32> to vector<64x128xf32>
    %188 = vector.extract_strided_slice %186 {offsets = [64, 0], sizes = [64, 128], strides = [1, 1]} : vector<512x128xf32> to vector<64x128xf32>
    %189 = arith.maximumf %187, %188 : vector<64x128xf32>
    %190 = vector.extract_strided_slice %186 {offsets = [128, 0], sizes = [64, 128], strides = [1, 1]} : vector<512x128xf32> to vector<64x128xf32>
    %191 = arith.maximumf %189, %190 : vector<64x128xf32>
    %192 = vector.extract_strided_slice %186 {offsets = [192, 0], sizes = [64, 128], strides = [1, 1]} : vector<512x128xf32> to vector<64x128xf32>
    %193 = arith.maximumf %191, %192 : vector<64x128xf32>
    %194 = vector.extract_strided_slice %186 {offsets = [256, 0], sizes = [64, 128], strides = [1, 1]} : vector<512x128xf32> to vector<64x128xf32>
    %195 = arith.maximumf %193, %194 : vector<64x128xf32>
    %196 = vector.extract_strided_slice %186 {offsets = [320, 0], sizes = [64, 128], strides = [1, 1]} : vector<512x128xf32> to vector<64x128xf32>
    %197 = arith.maximumf %195, %196 : vector<64x128xf32>
    %198 = vector.extract_strided_slice %186 {offsets = [384, 0], sizes = [64, 128], strides = [1, 1]} : vector<512x128xf32> to vector<64x128xf32>
    %199 = arith.maximumf %197, %198 : vector<64x128xf32>
    %200 = vector.extract_strided_slice %186 {offsets = [448, 0], sizes = [64, 128], strides = [1, 1]} : vector<512x128xf32> to vector<64x128xf32>
    %201 = arith.maximumf %199, %200 : vector<64x128xf32>
    %c0_95 = arith.constant 0 : index
    %c0_96 = arith.constant 0 : index
    %202 = vector.load %arg5[%c0_95, %c0_96] : memref<1x128xf32, #tpu.memory_space<vmem>>, vector<1x128xf32>
    %203 = vector.broadcast %202 : vector<1x128xf32> to vector<64x128xf32>
    %204 = arith.addf %201, %203 : vector<64x128xf32>
    %c0_97 = arith.constant 0 : index
    %c0_98 = arith.constant 0 : index
    %205 = vector.load %arg6[%c0_97, %c0_98] : memref<64x128xf32, #tpu.memory_space<vmem>>, vector<64x128xf32>
    tpu.vector_store %arg6[%c0_97, %c0_98], %204 {strides = array<i32>} : memref<64x128xf32, #tpu.memory_space<vmem>>, vector<64x128xf32>,
    return
  }
  func.func @transform_0(%arg0: i32) -> (i32, i32) {
    %c0_i32 = arith.constant 0 : i32
    %c0_i32_0 = arith.constant 0 : i32
    %c0_i32_1 = arith.constant 0 : i32
    return %c0_i32, %c0_i32_0 : i32, i32
  }
  func.func @transform_1(%arg0: i32) -> (i32, i32) {
    %c0_i32 = arith.constant 0 : i32
    %c0_i32_0 = arith.constant 0 : i32
    return %arg0, %c0_i32 : i32, i32
  }
  func.func @transform_2(%arg0: i32) -> (i32, i32) {
    %c0_i32 = arith.constant 0 : i32
    %c0_i32_0 = arith.constant 0 : i32
    %c0_i32_1 = arith.constant 0 : i32
    return %c0_i32, %c0_i32_0 : i32, i32
  }
  func.func @transform_3(%arg0: i32) -> (i32, i32) {
    %c0_i32 = arith.constant 0 : i32
    %c0_i32_0 = arith.constant 0 : i32
    %c0_i32_1 = arith.constant 0 : i32
    return %c0_i32, %c0_i32_0 : i32, i32
  }
  func.func @transform_4(%arg0: i32) -> (i32, i32) {
    %c0_i32 = arith.constant 0 : i32
    %c0_i32_0 = arith.constant 0 : i32
    %c0_i32_1 = arith.constant 0 : i32
    return %c0_i32, %c0_i32_0 : i32, i32
  }
  func.func @transform_5(%arg0: i32) -> (i32, i32) {
    %c0_i32 = arith.constant 0 : i32
    %c0_i32_0 = arith.constant 0 : i32
    return %arg0, %c0_i32 : i32, i32
  }
}

</mosaic_0001>

<llo_original>
// kernel: tpu_custom_call.1
$region0: #{tpu_custom_call.1}
  #allocation0 [shape = 'u32[]', space=smem, size = 0x4, offset = 0x4, fixed_abs, tag = 'smem constant byte address 0x4 - core index']
  #allocation1 [shape = 'u32[144,128]{1,0:T(1,128)}', space=vmem, size = 0x12000, scoped, tag = 'internal scratch']
  #allocation2 [shape = 'f32[512,128]{1,0:T(8,128)}', space=vmem, size = 0x40000, scoped, tag = 'scratch operand']
  #allocation3 [shape = 'f32[512,128]{1,0:T(8,128)}', space=vmem, size = 0x40000, scoped, tag = 'scratch operand']
  %s0 = inlined_call_operand.vmem [shape: f32[128,8], index: 0, kind: input, shape index: {}]
  %s1 = inlined_call_operand.vmem [shape: f32[128,128], index: 1, kind: input, shape index: {}]
  %s2 = inlined_call_operand.hbm [shape: f32[128,128], index: 2, kind: input, shape index: {}]
  %s3 = inlined_call_operand.hbm [shape: f32[128,128], index: 3, kind: input, shape index: {}]
  %s4 = inlined_call_operand.vmem [shape: f32[1,128], index: 4, kind: input, shape index: {}]
  %s5 = inlined_call_operand.hbm [shape: f32[128,128], index: 5, kind: output, shape index: {}]
  %s6 = sld [smem:[#allocation0]]
  $region61: #{tpu_custom_call.1} parent=0
    _
  %s8 = ssub.s32 1, %s6
  %s9 = scalar_select 0, %s8, %s6
  $region1: #{tpu_custom_call.1} parent=0
    #allocation4 [shape = 'u8[65536]{0}', space=vmem, size = 0x10000, scoped, tag = 'input window, operand 2, single buffered']
    #allocation5 [shape = 's32[2]{0}', space=sflag, size = 0x8, scoped, tag = 'scoped memory for tpu_custom_call.1']
    #allocation6 [shape = 's32[2]{0}', space=sflag, size = 0x8, scoped, tag = 'scoped memory for tpu_custom_call.1']
    #allocation7 [shape = 'u8[65536]{0}', space=vmem, size = 0x10000, scoped, tag = 'input window, operand 3, single buffered']
    #allocation8 [shape = 's32[1]{0}', space=sflag, size = 0x4, scoped, tag = 'scoped memory for tpu_custom_call.1']
    #allocation9 [shape = 'u8[65536]{0}', space=vmem, size = 0x10000, scoped, tag = 'output window, operand 0']
    %10 = vsyncpa [#allocation5], 0
    %11 = vsyncpa [#allocation8], 0
    %12 = vsyncpa [#allocation6], 0
    %s13 = scalar_lea.sflag [#allocation6], 1
    %14 = vsyncpa %s13, 0
    loop: start=0, step=1, limit=4
    $region2: #{tpu_custom_call.1} parent=1 // loop_pre_header
      _
    $region3: #{tpu_custom_call.1} parent=1 // loop_header
      %s16 = sphi 0, %s20
      %p17 = scmp.ge.s32.totalorder %s16, 4
      %s24 = sphi 0, %s24
      %s26 = sphi 0, %s24
      %s27 = sphi 0, %s26
      %s41 = sphi 0, %s27
      %s47 = sphi 0, %s49
      %s50 = sphi 0, %s47
      %s51 = sphi 0, %s50
      %s67 = sphi 0, %s51
      %s71 = sphi 0, %s71
      %s73 = sphi 0, %s71
      %s74 = sphi 0, %s73
      %s88 = sphi 0, %s74
      %s92 = sphi 0, %s92
      %s94 = sphi 0, %s92
      %s95 = sphi 0, %s94
      %s109 = sphi 0, %s95
      %s113 = sphi 0, %s113
      %s115 = sphi 0, %s113
      %s116 = sphi 0, %s115
      %s130 = sphi 0, %s116
      %s136 = sphi 0, %s138
      %s139 = sphi 0, %s136
      %s140 = sphi 0, %s139
      %s156 = sphi 0, %s140
    $region4: #{tpu_custom_call.1} parent=1 // loop_header_branch
      %19 = sbr.rel (%p17) target = $region8
    $region5: #{tpu_custom_call.1} parent=1 // loop_body
      %s21 = ssub.s32 %s16, 1
      %s22 = ssub.s32 %s16, 2
      %s23 = sadd.s32 %s16, 1
      %s25 = sadd.s32 %s24, 1
      %p28 = scmp.eq.s32.totalorder %s16, 1
      %p29 = scmp.ne.s32.totalorder %s24, %s26
      %p30 = scmp.eq.s32.totalorder %s16, 0
      %p31 = por %p29, %p30
      %p32 = scmp.ne.s32.totalorder %s24, %s26
      %p33 = scmp.eq.s32.totalorder %s21, 1
      %p34 = por %p32, %p33
      %p35 = scmp.ne.s32.totalorder %s26, %s27
      %p36 = scmp.eq.s32.totalorder %s21, 0
      %p37 = por %p35, %p36
      %p38 = scmp.ne.s32.totalorder %s26, %s27
      %p39 = scmp.eq.s32.totalorder %s22, 1
      %p40 = por %p38, %p39
      %p42 = scmp.ne.s32.totalorder %s27, %s41
      %p43 = scmp.eq.s32.totalorder %s22, 0
      %p44 = por %p42, %p43
      %s45 = ssub.s32 %s16, %s23
      %p46 = scmp.eq.s32.totalorder %s45, 0
      %s48 = sadd.s32 %s47, 1
      %s49 = scalar_select %p46, %s47, %s48
      %p52 = pneg %p46
      %p53 = scmp.eq.s32.totalorder %s16, 1
      %p54 = por %p52, %p53
      %p55 = scmp.ne.s32.totalorder %s47, %s50
      %p56 = scmp.eq.s32.totalorder %s16, 0
      %p57 = por %p55, %p56
      %p58 = scmp.ne.s32.totalorder %s47, %s50
      %p59 = scmp.eq.s32.totalorder %s21, 1
      %p60 = por %p58, %p59
      %p61 = scmp.ne.s32.totalorder %s50, %s51
      %p62 = scmp.eq.s32.totalorder %s21, 0
      %p63 = por %p61, %p62
      %p64 = scmp.ne.s32.totalorder %s50, %s51
      %p65 = scmp.eq.s32.totalorder %s22, 1
      %p66 = por %p64, %p65
      %p68 = scmp.ne.s32.totalorder %s51, %s67
      %p69 = scmp.eq.s32.totalorder %s22, 0
      %p70 = por %p68, %p69
      %s72 = sadd.s32 %s71, 1
      %p75 = scmp.eq.s32.totalorder %s16, 1
      %p76 = scmp.ne.s32.totalorder %s71, %s73
      %p77 = scmp.eq.s32.totalorder %s16, 0
      %p78 = por %p76, %p77
      %p79 = scmp.ne.s32.totalorder %s71, %s73
      %p80 = scmp.eq.s32.totalorder %s21, 1
      %p81 = por %p79, %p80
      %p82 = scmp.ne.s32.totalorder %s73, %s74
      %p83 = scmp.eq.s32.totalorder %s21, 0
      %p84 = por %p82, %p83
      %p85 = scmp.ne.s32.totalorder %s73, %s74
      %p86 = scmp.eq.s32.totalorder %s22, 1
      %p87 = por %p85, %p86
      %p89 = scmp.ne.s32.totalorder %s74, %s88
      %p90 = scmp.eq.s32.totalorder %s22, 0
      %p91 = por %p89, %p90
      %s93 = sadd.s32 %s92, 1
      %p96 = scmp.eq.s32.totalorder %s16, 1
      %p97 = scmp.ne.s32.totalorder %s92, %s94
      %p98 = scmp.eq.s32.totalorder %s16, 0
      %p99 = por %p97, %p98
      %p100 = scmp.ne.s32.totalorder %s92, %s94
      %p101 = scmp.eq.s32.totalorder %s21, 1
      %p102 = por %p100, %p101
      %p103 = scmp.ne.s32.totalorder %s94, %s95
      %p104 = scmp.eq.s32.totalorder %s21, 0
      %p105 = por %p103, %p104
      %p106 = scmp.ne.s32.totalorder %s94, %s95
      %p107 = scmp.eq.s32.totalorder %s22, 1
      %p108 = por %p106, %p107
      %p110 = scmp.ne.s32.totalorder %s95, %s109
      %p111 = scmp.eq.s32.totalorder %s22, 0
      %p112 = por %p110, %p111
      %s114 = sadd.s32 %s113, 1
      %p117 = scmp.eq.s32.totalorder %s16, 1
      %p118 = scmp.ne.s32.totalorder %s113, %s115
      %p119 = scmp.eq.s32.totalorder %s16, 0
      %p120 = por %p118, %p119
      %p121 = scmp.ne.s32.totalorder %s113, %s115
      %p122 = scmp.eq.s32.totalorder %s21, 1
      %p123 = por %p121, %p122
      %p124 = scmp.ne.s32.totalorder %s115, %s116
      %p125 = scmp.eq.s32.totalorder %s21, 0
      %p126 = por %p124, %p125
      %p127 = scmp.ne.s32.totalorder %s115, %s116
      %p128 = scmp.eq.s32.totalorder %s22, 1
      %p129 = por %p127, %p128
      %p131 = scmp.ne.s32.totalorder %s116, %s130
      %p132 = scmp.eq.s32.totalorder %s22, 0
      %p133 = por %p131, %p132
      %s134 = ssub.s32 %s16, %s23
      %p135 = scmp.eq.s32.totalorder %s134, 0
      %s137 = sadd.s32 %s136, 1
      %s138 = scalar_select %p135, %s136, %s137
      %p141 = pneg %p135
      %p142 = scmp.eq.s32.totalorder %s16, 1
      %p143 = por %p141, %p142
      %p144 = scmp.ne.s32.totalorder %s136, %s139
      %p145 = scmp.eq.s32.totalorder %s16, 0
      %p146 = por %p144, %p145
      %p147 = scmp.ne.s32.totalorder %s136, %s139
      %p148 = scmp.eq.s32.totalorder %s21, 1
      %p149 = por %p147, %p148
      %p150 = scmp.ne.s32.totalorder %s139, %s140
      %p151 = scmp.eq.s32.totalorder %s21, 0
      %p152 = por %p150, %p151
      %p153 = scmp.ne.s32.totalorder %s139, %s140
      %p154 = scmp.eq.s32.totalorder %s22, 1
      %p155 = por %p153, %p154
      %p157 = scmp.ne.s32.totalorder %s140, %s156
      %p158 = scmp.eq.s32.totalorder %s22, 0
      %p159 = por %p157, %p158
      %p160 = scmp.le.s32.totalorder 1, %s16
      %p161 = scmp.lt.s32.totalorder %s16, 3
      %p162 = pnand %p160, %p161
      %p163 = pneg %p162
      // Predicated region
      $region9: #{tpu_custom_call.1} parent=5 // pred_check
        _
      $region10: #{tpu_custom_call.1} parent=5 // pred_check_branch
        %165 = sbr.rel (%p162) target = $region12
      $region11: #{tpu_custom_call.1} parent=5 // pred_region
        %s166 = ssub.s32 %s16, 1
        // Predicated region
        $region13: #{tpu_custom_call.1} parent=11 // pred_check
          %p167 = pneg %p37
        $region14: #{tpu_custom_call.1} parent=11 // pred_check_branch
          %169 = sbr.rel (%p167) target = $region16
        $region15: #{tpu_custom_call.1} parent=11 // pred_region
          _
        $region16: #{tpu_custom_call.1} parent=11 // pred_fallthru
          _
        // Predicated region
        $region17: #{tpu_custom_call.1} parent=11 // pred_check
          %p170 = pneg %p84
        $region18: #{tpu_custom_call.1} parent=11 // pred_check_branch
          %172 = sbr.rel (%p170) target = $region20
        $region19: #{tpu_custom_call.1} parent=11 // pred_region
          %s174 = ssub.s32 2048, 2048
          %175 = vsyncadd [#allocation5], %s174
          %s176 = sshll.u32 [#allocation4], 4
          %s177 = int_to_ptr.vmem [resolvable:$true] %s176
          %182 = dma.hbm_to_vmem [thread:$0]  %s2, 2048, %s177, [#allocation5], 128, 128, 8
        $region20: #{tpu_custom_call.1} parent=11 // pred_fallthru
          _
        // Predicated region
        $region21: #{tpu_custom_call.1} parent=11 // pred_check
          %p183 = pneg %p105
        $region22: #{tpu_custom_call.1} parent=11 // pred_check_branch
          %185 = sbr.rel (%p183) target = $region24
        $region23: #{tpu_custom_call.1} parent=11 // pred_region
          %s187 = ssub.s32 2048, 2048
          %188 = vsyncadd [#allocation8], %s187
          %s189 = sshll.u32 [#allocation7], 4
          %s190 = int_to_ptr.vmem [resolvable:$true] %s189
          %195 = dma.hbm_to_vmem [thread:$0]  %s3, 2048, %s190, [#allocation8], 128, 128, 8
        $region24: #{tpu_custom_call.1} parent=11 // pred_fallthru
          _
        // Predicated region
        $region25: #{tpu_custom_call.1} parent=11 // pred_check
          %p196 = pneg %p126
        $region26: #{tpu_custom_call.1} parent=11 // pred_check_branch
          %198 = sbr.rel (%p196) target = $region28
        $region27: #{tpu_custom_call.1} parent=11 // pred_region
          _
        $region28: #{tpu_custom_call.1} parent=11 // pred_fallthru
          _
      $region12: #{tpu_custom_call.1} parent=5 // pred_fallthru
        _
      %p199 = scmp.lt.s32.totalorder %s16, 2
      // Predicated region
      $region29: #{tpu_custom_call.1} parent=5 // pred_check
        %p200 = pneg %p199
      $region30: #{tpu_custom_call.1} parent=5 // pred_check_branch
        %202 = sbr.rel (%p200) target = $region32
      $region31: #{tpu_custom_call.1} parent=5 // pred_region
        // Predicated region
        $region33: #{tpu_custom_call.1} parent=31 // pred_check
          %p203 = pneg %p57
        $region34: #{tpu_custom_call.1} parent=31 // pred_check_branch
          %205 = sbr.rel (%p203) target = $region36
        $region35: #{tpu_custom_call.1} parent=31 // pred_region
          %s206 = smul.u32 8, %s16
          %p207 = scmp.lt.s32.totalorder %s206, 15
          %s208 = scalar_select %p207, %s206, 15
          %s209 = smul.addr %s208, 8
          %s210 = scalar_lea.vmem %s1, %s209
          %s211 = smul.u32 8, %s16
        $region36: #{tpu_custom_call.1} parent=31 // pred_fallthru
          _
      $region32: #{tpu_custom_call.1} parent=5 // pred_fallthru
        _
      %p212 = scmp.le.s32.totalorder 1, %s16
      %p213 = scmp.lt.s32.totalorder %s16, 3
      %p214 = pnand %p212, %p213
      %p215 = pneg %p214
      // Predicated region
      $region37: #{tpu_custom_call.1} parent=5 // pred_check
        _
      $region38: #{tpu_custom_call.1} parent=5 // pred_check_branch
        %217 = sbr.rel (%p214) target = $region40
      $region39: #{tpu_custom_call.1} parent=5 // pred_region
        %s218 = ssub.s32 %s16, 1
        // Predicated region
        $region41: #{tpu_custom_call.1} parent=39 // pred_check
          %p219 = pneg %p84
        $region42: #{tpu_custom_call.1} parent=39 // pred_check_branch
          %221 = sbr.rel (%p219) target = $region44
        $region43: #{tpu_custom_call.1} parent=39 // pred_region
          %222 = dma.done [#allocation5], 2048
        $region44: #{tpu_custom_call.1} parent=39 // pred_fallthru
          _
        // Predicated region
        $region45: #{tpu_custom_call.1} parent=39 // pred_check
          %p223 = pneg %p105
        $region46: #{tpu_custom_call.1} parent=39 // pred_check_branch
          %225 = sbr.rel (%p223) target = $region48
        $region47: #{tpu_custom_call.1} parent=39 // pred_region
          %226 = dma.done [#allocation8], 2048
        $region48: #{tpu_custom_call.1} parent=39 // pred_fallthru
          _
        %p227 = pneg %p37
        %p228 = pneg %p34
        %s229 = smul.u32 8, %s21
        %p230 = scmp.lt.s32.totalorder %s229, 15
        %s231 = scalar_select %p230, %s229, 15
        %s232 = smul.addr %s231, 8
        %s233 = scalar_lea.vmem %s1, %s232
        %p234 = pneg %p63
        %p235 = pneg %p60
        %p236 = pneg %p84
        %p237 = pneg %p81
        %p238 = pneg %p105
        %p239 = pneg %p102
        %p240 = pneg %p126
        %p241 = pneg %p123
        %p242 = pneg %p152
        %p243 = pneg %p149
        %s244 = sand.u32 %s139, 1
        %s245 = scalar_lea.sflag [#allocation6], %s244
        %s246 = sand.u32 %s139, 1
        %s247 = smul.addr %s246, 64
        %s248 = scalar_lea.vmem [#allocation9], %s247
        %s249 = smul.u32 8, %s21
        %p250 = scmp.lt.s32.totalorder %s249, 15
        %s251 = scalar_select %p250, %s249, 15
        %s252 = smul.addr %s251, 8
        %s253 = scalar_lea.vmem %s1, %s252
        %s254 = smul.u32 8, %s21
        %s255 = smul.u32 8, %s21
        %s256 = smul.u32 %s21, 64
        %s257 = scalar_lea.vmem %s0, %s256
        %v258 = vld [vmem:[%s257] sm:$0xff]
        %v259 = vld [vmem:[%s257 + $0x8] sm:$0xff]
        %v260 = vld [vmem:[%s257 + $0x10] sm:$0xff]
        %v261 = vld [vmem:[%s257 + $0x18] sm:$0xff]
        %v262 = vld [vmem:[%s257 + $0x20] sm:$0xff]
        %v263 = vld [vmem:[%s257 + $0x28] sm:$0xff]
        %v264 = vld [vmem:[%s257 + $0x30] sm:$0xff]
        %v265 = vld [vmem:[%s257 + $0x38] sm:$0xff]
        %v266 = vlaneseq
        %v267 = vand.u32 %v266, 127
        %vm268 = vcmp.eq.s32.totalorder %v267, 3
        %v269 = vmul.f32 %v258, -2.0
        %v270 = vmul.f32 %v259, -2.0
        %v271 = vmul.f32 %v260, -2.0
        %v272 = vmul.f32 %v261, -2.0
        %v273 = vmul.f32 %v262, -2.0
        %v274 = vmul.f32 %v263, -2.0
        %v275 = vmul.f32 %v264, -2.0
        %v276 = vmul.f32 %v265, -2.0
        %v277 = vsel %vm268, 1.0, %v269
        %v278 = vsel %vm268, 1.0, %v270
        %v279 = vsel %vm268, 1.0, %v271
        %v280 = vsel %vm268, 1.0, %v272
        %v281 = vsel %vm268, 1.0, %v273
        %v282 = vsel %vm268, 1.0, %v274
        %v283 = vsel %vm268, 1.0, %v275
        %v284 = vsel %vm268, 1.0, %v276
        %v285 = vld [vmem:[%s0] sm:$0xff]
        %v286 = vld [vmem:[%s0 + $0x8] sm:$0xff]
        %v287 = vld [vmem:[%s0 + $0x10] sm:$0xff]
        %v288 = vld [vmem:[%s0 + $0x18] sm:$0xff]
        %v289 = vld [vmem:[%s0 + $0x20] sm:$0xff]
        %v290 = vld [vmem:[%s0 + $0x28] sm:$0xff]
        %v291 = vld [vmem:[%s0 + $0x30] sm:$0xff]
        %v292 = vld [vmem:[%s0 + $0x38] sm:$0xff]
        %v293 = vld [vmem:[%s0 + $0x40] sm:$0xff]
        %v294 = vld [vmem:[%s0 + $0x48] sm:$0xff]
        %v295 = vld [vmem:[%s0 + $0x50] sm:$0xff]
        %v296 = vld [vmem:[%s0 + $0x58] sm:$0xff]
        %v297 = vld [vmem:[%s0 + $0x60] sm:$0xff]
        %v298 = vld [vmem:[%s0 + $0x68] sm:$0xff]
        %v299 = vld [vmem:[%s0 + $0x70] sm:$0xff]
        %v300 = vld [vmem:[%s0 + $0x78] sm:$0xff]
        %vm301 = vcmask 64512
        %v303 = vsel %vm301, %v277, 0
        %v306 = vsel %vm301, %v278, 0
        %v309 = vsel %vm301, %v279, 0
        %v312 = vsel %vm301, %v280, 0
        %v315 = vsel %vm301, %v281, 0
        %v318 = vsel %vm301, %v282, 0
        %v321 = vsel %vm301, %v283, 0
        %v324 = vsel %vm301, %v284, 0
        %v327 = vsel %vm301, %v285, 0
        %v330 = vsel %vm301, %v286, 0
        %v333 = vsel %vm301, %v287, 0
        %v336 = vsel %vm301, %v288, 0
        %v339 = vsel %vm301, %v289, 0
        %v342 = vsel %vm301, %v290, 0
        %v345 = vsel %vm301, %v291, 0
        %v348 = vsel %vm301, %v292, 0
        %v351 = vsel %vm301, %v293, 0
        %v354 = vsel %vm301, %v294, 0
        %v357 = vsel %vm301, %v295, 0
        %v360 = vsel %vm301, %v296, 0
        %v363 = vsel %vm301, %v297, 0
        %v366 = vsel %vm301, %v298, 0
        %v369 = vsel %vm301, %v299, 0
        %v372 = vsel %vm301, %v300, 0
        %374 = vmatprep.subr.mxu0 0.0
        %375 = vmatpush1.xpose.msra.mxu0 %v372
        %376 = vmatprep.subr.mxu0 0.0
        %377 = vmatpush1.xpose.msra.mxu0 %v369
        %378 = vmatprep.subr.mxu0 0.0
        %379 = vmatpush1.xpose.msra.mxu0 %v366
        %380 = vmatprep.subr.mxu0 0.0
        %381 = vmatpush1.xpose.msra.mxu0 %v363
        %382 = vmatprep.subr.mxu0 0.0
        %383 = vmatpush1.xpose.msra.mxu0 %v360
        %384 = vmatprep.subr.mxu0 0.0
        %385 = vmatpush1.xpose.msra.mxu0 %v357
        %386 = vmatprep.subr.mxu0 0.0
        %387 = vmatpush1.xpose.msra.mxu0 %v354
        %388 = vmatprep.subr.mxu0 0.0
        %389 = vmatpush1.xpose.msra.mxu0 %v351
        %390 = vmatprep.subr.mxu0 0.0
        %391 = vmatpush1.xpose.msra.mxu0 %v348
        %392 = vmatprep.subr.mxu0 0.0
        %393 = vmatpush1.xpose.msra.mxu0 %v345
        %394 = vmatprep.subr.mxu0 0.0
        %395 = vmatpush1.xpose.msra.mxu0 %v342
        %396 = vmatprep.subr.mxu0 0.0
        %397 = vmatpush1.xpose.msra.mxu0 %v339
        %398 = vmatprep.subr.mxu0 0.0
        %399 = vmatpush1.xpose.msra.mxu0 %v336
        %400 = vmatprep.subr.mxu0 0.0
        %401 = vmatpush1.xpose.msra.mxu0 %v333
        %402 = vmatprep.subr.mxu0 0.0
        %403 = vmatpush1.xpose.msra.mxu0 %v330
        %404 = vmatprep.subr.mxu0 0.0
        %405 = vmatpush1.xpose.msra.mxu0 %v327
        %406 = vmatprep.subr.mxu0 0.0
        %407 = vmatpush2.xpose.msra.mxu0 0.0
        %408 = vmatprep.subr.mxu0 0.0
        %409 = vmatpush2.xpose.msra.mxu0 0.0
        %410 = vmatprep.subr.mxu0 0.0
        %411 = vmatpush2.xpose.msra.mxu0 0.0
        %412 = vmatprep.subr.mxu0 0.0
        %413 = vmatpush2.xpose.msra.mxu0 0.0
        %414 = vmatprep.subr.mxu0 0.0
        %415 = vmatpush2.xpose.msra.mxu0 0.0
        %416 = vmatprep.subr.mxu0 0.0
        %417 = vmatpush2.xpose.msra.mxu0 0.0
        %418 = vmatprep.subr.mxu0 0.0
        %419 = vmatpush2.xpose.msra.mxu0 0.0
        %420 = vmatprep.subr.mxu0 0.0
        %421 = vmatpush2.xpose.msra.mxu0 0.0
        %422 = vmatprep.subr.mxu0 0.0
        %423 = vmatpush2.xpose.msra.mxu0 0.0
        %424 = vmatprep.subr.mxu0 0.0
        %425 = vmatpush2.xpose.msra.mxu0 0.0
        %426 = vmatprep.subr.mxu0 0.0
        %427 = vmatpush2.xpose.msra.mxu0 0.0
        %428 = vmatprep.subr.mxu0 0.0
        %429 = vmatpush2.xpose.msra.mxu0 0.0
        %430 = vmatprep.subr.mxu0 0.0
        %431 = vmatpush2.xpose.msra.mxu0 0.0
        %432 = vmatprep.subr.mxu0 0.0
        %433 = vmatpush2.xpose.msra.mxu0 0.0
        %434 = vmatprep.subr.mxu0 0.0
        %435 = vmatpush2.xpose.msra.mxu0 0.0
        %436 = vmatprep.subr.mxu0 0.0
        %437 = vmatpush2.xpose.msra.mxu0 0.0
        %438 = vmatprep.mubr.f32.mxu0 0.0
        %439 = vmatmul.mubr.f32.gmra.mxu0 %v303
        %v440 = vpop.f32.mrf.mxu0
        %v441 = vadd.f32 0.0, %v440
        %v442 = vpop.f32.mrf.mxu0
        %443 = vmatprep.mubr.f32.mxu0 0.0
        %444 = vmatmul.mubr.f32.gmra.mxu0 %v306
        %v445 = vpop.f32.mrf.mxu0
        %v446 = vadd.f32 0.0, %v445
        %v447 = vpop.f32.mrf.mxu0
        %448 = vmatprep.mubr.f32.mxu0 0.0
        %449 = vmatmul.mubr.f32.gmra.mxu0 %v309
        %v450 = vpop.f32.mrf.mxu0
        %v451 = vadd.f32 0.0, %v450
        %v452 = vpop.f32.mrf.mxu0
        %453 = vmatprep.mubr.f32.mxu0 0.0
        %454 = vmatmul.mubr.f32.gmra.mxu0 %v312
        %v455 = vpop.f32.mrf.mxu0
        %v456 = vadd.f32 0.0, %v455
        %v457 = vpop.f32.mrf.mxu0
        %458 = vmatprep.mubr.f32.mxu0 0.0
        %459 = vmatmul.mubr.f32.gmra.mxu0 %v315
        %v460 = vpop.f32.mrf.mxu0
        %v461 = vadd.f32 0.0, %v460
        %v462 = vpop.f32.mrf.mxu0
        %463 = vmatprep.mubr.f32.mxu0 0.0
        %464 = vmatmul.mubr.f32.gmra.mxu0 %v318
        %v465 = vpop.f32.mrf.mxu0
        %v466 = vadd.f32 0.0, %v465
        %v467 = vpop.f32.mrf.mxu0
        %468 = vmatprep.mubr.f32.mxu0 0.0
        %469 = vmatmul.mubr.f32.gmra.mxu0 %v321
        %v470 = vpop.f32.mrf.mxu0
        %v471 = vadd.f32 0.0, %v470
        %v472 = vpop.f32.mrf.mxu0
        %473 = vmatprep.mubr.f32.mxu0 0.0
        %474 = vmatmul.mubr.f32.gmra.mxu0 %v324
        %v475 = vpop.f32.mrf.mxu0
        %v476 = vadd.f32 0.0, %v475
        %v477 = vpop.f32.mrf.mxu0
        %478 = vdwg.mxu0
        %479 = vmin.xlane.f32.xlu0 %v441
        %v480 = vpop.xlane.xlu0 %479
        %481 = vmin.xlane.f32.xlu0 %v446
        %v482 = vpop.xlane.xlu0 %481
        %483 = vmin.xlane.f32.xlu0 %v451
        %v484 = vpop.xlane.xlu0 %483
        %485 = vmin.xlane.f32.xlu0 %v456
        %v486 = vpop.xlane.xlu0 %485
        %487 = vmin.xlane.f32.xlu0 %v461
        %v488 = vpop.xlane.xlu0 %487
        %489 = vmin.xlane.f32.xlu0 %v466
        %v490 = vpop.xlane.xlu0 %489
        %491 = vmin.xlane.f32.xlu0 %v471
        %v492 = vpop.xlane.xlu0 %491
        %493 = vmin.xlane.f32.xlu0 %v476
        %v494 = vpop.xlane.xlu0 %493
        %vm495 = vcmp.le.f32.partialorder %v441, %v480
        %vm496 = vcmp.le.f32.partialorder %v446, %v482
        %vm497 = vcmp.le.f32.partialorder %v451, %v484
        %vm498 = vcmp.le.f32.partialorder %v456, %v486
        %vm499 = vcmp.le.f32.partialorder %v461, %v488
        %vm500 = vcmp.le.f32.partialorder %v466, %v490
        %vm501 = vcmp.le.f32.partialorder %v471, %v492
        %vm502 = vcmp.le.f32.partialorder %v476, %v494
        %v503 = vsel %vm495, %v267, 128
        %v504 = vsel %vm496, %v267, 128
        %v505 = vsel %vm497, %v267, 128
        %v506 = vsel %vm498, %v267, 128
        %v507 = vsel %vm499, %v267, 128
        %v508 = vsel %vm500, %v267, 128
        %v509 = vsel %vm501, %v267, 128
        %v510 = vsel %vm502, %v267, 128
        %v511 = vand.u32 %v503, 65535
        %v512 = vshra.s32 %v503, 16
        %v513 = vcvt.s32.f32 %v511
        %v514 = vcvt.s32.f32 %v512
        %515 = vmin.xlane.f32.xlu0 %v514
        %v516 = vpop.xlane.xlu0 %515
        %vm517 = vcmp.eq.f32.partialorder %v514, %v516
        %v518 = vsel %vm517, %v513, inf
        %519 = vmin.xlane.f32.xlu0 %v518
        %v520 = vpop.xlane.xlu0 %519
        %v521 = vcvt.f32.s32 %v520
        %v522 = vcvt.f32.s32 %v516
        %v523 = vshll.u32 %v522, 16
        %v524 = vadd.s32 %v523, %v521
        %v525 = vand.u32 %v504, 65535
        %v526 = vshra.s32 %v504, 16
        %v527 = vcvt.s32.f32 %v525
        %v528 = vcvt.s32.f32 %v526
        %529 = vmin.xlane.f32.xlu0 %v528
        %v530 = vpop.xlane.xlu0 %529
        %vm531 = vcmp.eq.f32.partialorder %v528, %v530
        %v532 = vsel %vm531, %v527, inf
        %533 = vmin.xlane.f32.xlu0 %v532
        %v534 = vpop.xlane.xlu0 %533
        %v535 = vcvt.f32.s32 %v534
        %v536 = vcvt.f32.s32 %v530
        %v537 = vshll.u32 %v536, 16
        %v538 = vadd.s32 %v537, %v535
        %v539 = vand.u32 %v505, 65535
        %v540 = vshra.s32 %v505, 16
        %v541 = vcvt.s32.f32 %v539
        %v542 = vcvt.s32.f32 %v540
        %543 = vmin.xlane.f32.xlu0 %v542
        %v544 = vpop.xlane.xlu0 %543
        %vm545 = vcmp.eq.f32.partialorder %v542, %v544
        %v546 = vsel %vm545, %v541, inf
        %547 = vmin.xlane.f32.xlu0 %v546
        %v548 = vpop.xlane.xlu0 %547
        %v549 = vcvt.f32.s32 %v548
        %v550 = vcvt.f32.s32 %v544
        %v551 = vshll.u32 %v550, 16
        %v552 = vadd.s32 %v551, %v549
        %v553 = vand.u32 %v506, 65535
        %v554 = vshra.s32 %v506, 16
        %v555 = vcvt.s32.f32 %v553
        %v556 = vcvt.s32.f32 %v554
        %557 = vmin.xlane.f32.xlu0 %v556
        %v558 = vpop.xlane.xlu0 %557
        %vm559 = vcmp.eq.f32.partialorder %v556, %v558
        %v560 = vsel %vm559, %v555, inf
        %561 = vmin.xlane.f32.xlu0 %v560
        %v562 = vpop.xlane.xlu0 %561
        %v563 = vcvt.f32.s32 %v562
        %v564 = vcvt.f32.s32 %v558
        %v565 = vshll.u32 %v564, 16
        %v566 = vadd.s32 %v565, %v563
        %v567 = vand.u32 %v507, 65535
        %v568 = vshra.s32 %v507, 16
        %v569 = vcvt.s32.f32 %v567
        %v570 = vcvt.s32.f32 %v568
        %571 = vmin.xlane.f32.xlu0 %v570
        %v572 = vpop.xlane.xlu0 %571
        %vm573 = vcmp.eq.f32.partialorder %v570, %v572
        %v574 = vsel %vm573, %v569, inf
        %575 = vmin.xlane.f32.xlu0 %v574
        %v576 = vpop.xlane.xlu0 %575
        %v577 = vcvt.f32.s32 %v576
        %v578 = vcvt.f32.s32 %v572
        %v579 = vshll.u32 %v578, 16
        %v580 = vadd.s32 %v579, %v577
        %v581 = vand.u32 %v508, 65535
        %v582 = vshra.s32 %v508, 16
        %v583 = vcvt.s32.f32 %v581
        %v584 = vcvt.s32.f32 %v582
        %585 = vmin.xlane.f32.xlu0 %v584
        %v586 = vpop.xlane.xlu0 %585
        %vm587 = vcmp.eq.f32.partialorder %v584, %v586
        %v588 = vsel %vm587, %v583, inf
        %589 = vmin.xlane.f32.xlu0 %v588
        %v590 = vpop.xlane.xlu0 %589
        %v591 = vcvt.f32.s32 %v590
        %v592 = vcvt.f32.s32 %v586
        %v593 = vshll.u32 %v592, 16
        %v594 = vadd.s32 %v593, %v591
        %v595 = vand.u32 %v509, 65535
        %v596 = vshra.s32 %v509, 16
        %v597 = vcvt.s32.f32 %v595
        %v598 = vcvt.s32.f32 %v596
        %599 = vmin.xlane.f32.xlu0 %v598
        %v600 = vpop.xlane.xlu0 %599
        %vm601 = vcmp.eq.f32.partialorder %v598, %v600
        %v602 = vsel %vm601, %v597, inf
        %603 = vmin.xlane.f32.xlu0 %v602
        %v604 = vpop.xlane.xlu0 %603
        %v605 = vcvt.f32.s32 %v604
        %v606 = vcvt.f32.s32 %v600
        %v607 = vshll.u32 %v606, 16
        %v608 = vadd.s32 %v607, %v605
        %v609 = vand.u32 %v510, 65535
        %v610 = vshra.s32 %v510, 16
        %v611 = vcvt.s32.f32 %v609
        %v612 = vcvt.s32.f32 %v610
        %613 = vmin.xlane.f32.xlu0 %v612
        %v614 = vpop.xlane.xlu0 %613
        %vm615 = vcmp.eq.f32.partialorder %v612, %v614
        %v616 = vsel %vm615, %v611, inf
        %617 = vmin.xlane.f32.xlu0 %v616
        %v618 = vpop.xlane.xlu0 %617
        %v619 = vcvt.f32.s32 %v618
        %v620 = vcvt.f32.s32 %v614
        %v621 = vshll.u32 %v620, 16
        %v622 = vadd.s32 %v621, %v619
        %vm623 = vcmp.eq.s32.totalorder %v267, %v524
        %vm624 = vcmp.eq.s32.totalorder %v267, %v538
        %vm625 = vcmp.eq.s32.totalorder %v267, %v552
        %vm626 = vcmp.eq.s32.totalorder %v267, %v566
        %vm627 = vcmp.eq.s32.totalorder %v267, %v580
        %vm628 = vcmp.eq.s32.totalorder %v267, %v594
        %vm629 = vcmp.eq.s32.totalorder %v267, %v608
        %vm630 = vcmp.eq.s32.totalorder %v267, %v622
        %v631 = vsel %vm623, 1.0, 0.0
        %v632 = vsel %vm624, 1.0, 0.0
        %v633 = vsel %vm625, 1.0, 0.0
        %v634 = vsel %vm626, 1.0, 0.0
        %v635 = vsel %vm627, 1.0, 0.0
        %v636 = vsel %vm628, 1.0, 0.0
        %v637 = vsel %vm629, 1.0, 0.0
        %v638 = vsel %vm630, 1.0, 0.0
        %639 = vst [vmem:[#allocation2] sm:$0xff] %v631
        %640 = vst [vmem:[#allocation2 + $0x8] sm:$0xff] %v632
        %641 = vst [vmem:[#allocation2 + $0x10] sm:$0xff] %v633
        %642 = vst [vmem:[#allocation2 + $0x18] sm:$0xff] %v634
        %643 = vst [vmem:[#allocation2 + $0x20] sm:$0xff] %v635
        %644 = vst [vmem:[#allocation2 + $0x28] sm:$0xff] %v636
        %645 = vst [vmem:[#allocation2 + $0x30] sm:$0xff] %v637
        %646 = vst [vmem:[#allocation2 + $0x38] sm:$0xff] %v638
        %v647 = vsel %vm623, 1e+30, %v441
        %v648 = vsel %vm624, 1e+30, %v446
        %v649 = vsel %vm625, 1e+30, %v451
        %v650 = vsel %vm626, 1e+30, %v456
        %v651 = vsel %vm627, 1e+30, %v461
        %v652 = vsel %vm628, 1e+30, %v466
        %v653 = vsel %vm629, 1e+30, %v471
        %v654 = vsel %vm630, 1e+30, %v476
        %655 = vmin.xlane.f32.xlu0 %v647
        %v656 = vpop.xlane.xlu0 %655
        %657 = vmin.xlane.f32.xlu0 %v648
        %v658 = vpop.xlane.xlu0 %657
        %659 = vmin.xlane.f32.xlu0 %v649
        %v660 = vpop.xlane.xlu0 %659
        %661 = vmin.xlane.f32.xlu0 %v650
        %v662 = vpop.xlane.xlu0 %661
        %663 = vmin.xlane.f32.xlu0 %v651
        %v664 = vpop.xlane.xlu0 %663
        %665 = vmin.xlane.f32.xlu0 %v652
        %v666 = vpop.xlane.xlu0 %665
        %667 = vmin.xlane.f32.xlu0 %v653
        %v668 = vpop.xlane.xlu0 %667
        %669 = vmin.xlane.f32.xlu0 %v654
        %v670 = vpop.xlane.xlu0 %669
        %vm671 = vcmp.le.f32.partialorder %v647, %v656
        %vm672 = vcmp.le.f32.partialorder %v648, %v658
        %vm673 = vcmp.le.f32.partialorder %v649, %v660
        %vm674 = vcmp.le.f32.partialorder %v650, %v662
        %vm675 = vcmp.le.f32.partialorder %v651, %v664
        %vm676 = vcmp.le.f32.partialorder %v652, %v666
        %vm677 = vcmp.le.f32.partialorder %v653, %v668
        %vm678 = vcmp.le.f32.partialorder %v654, %v670
        %v679 = vsel %vm671, %v267, 128
        %v680 = vsel %vm672, %v267, 128
        %v681 = vsel %vm673, %v267, 128
        %v682 = vsel %vm674, %v267, 128
        %v683 = vsel %vm675, %v267, 128
        %v684 = vsel %vm676, %v267, 128
        %v685 = vsel %vm677, %v267, 128
        %v686 = vsel %vm678, %v267, 128
        %v687 = vand.u32 %v679, 65535
        %v688 = vshra.s32 %v679, 16
        %v689 = vcvt.s32.f32 %v687
        %v690 = vcvt.s32.f32 %v688
        %691 = vmin.xlane.f32.xlu0 %v690
        %v692 = vpop.xlane.xlu0 %691
        %vm693 = vcmp.eq.f32.partialorder %v690, %v692
        %v694 = vsel %vm693, %v689, inf
        %695 = vmin.xlane.f32.xlu0 %v694
        %v696 = vpop.xlane.xlu0 %695
        %v697 = vcvt.f32.s32 %v696
        %v698 = vcvt.f32.s32 %v692
        %v699 = vshll.u32 %v698, 16
        %v700 = vadd.s32 %v699, %v697
        %v701 = vand.u32 %v680, 65535
        %v702 = vshra.s32 %v680, 16
        %v703 = vcvt.s32.f32 %v701
        %v704 = vcvt.s32.f32 %v702
        %705 = vmin.xlane.f32.xlu0 %v704
        %v706 = vpop.xlane.xlu0 %705
        %vm707 = vcmp.eq.f32.partialorder %v704, %v706
        %v708 = vsel %vm707, %v703, inf
        %709 = vmin.xlane.f32.xlu0 %v708
        %v710 = vpop.xlane.xlu0 %709
        %v711 = vcvt.f32.s32 %v710
        %v712 = vcvt.f32.s32 %v706
        %v713 = vshll.u32 %v712, 16
        %v714 = vadd.s32 %v713, %v711
        %v715 = vand.u32 %v681, 65535
        %v716 = vshra.s32 %v681, 16
        %v717 = vcvt.s32.f32 %v715
        %v718 = vcvt.s32.f32 %v716
        %719 = vmin.xlane.f32.xlu0 %v718
        %v720 = vpop.xlane.xlu0 %719
        %vm721 = vcmp.eq.f32.partialorder %v718, %v720
        %v722 = vsel %vm721, %v717, inf
        %723 = vmin.xlane.f32.xlu0 %v722
        %v724 = vpop.xlane.xlu0 %723
        %v725 = vcvt.f32.s32 %v724
        %v726 = vcvt.f32.s32 %v720
        %v727 = vshll.u32 %v726, 16
        %v728 = vadd.s32 %v727, %v725
        %v729 = vand.u32 %v682, 65535
        %v730 = vshra.s32 %v682, 16
        %v731 = vcvt.s32.f32 %v729
        %v732 = vcvt.s32.f32 %v730
        %733 = vmin.xlane.f32.xlu0 %v732
        %v734 = vpop.xlane.xlu0 %733
        %vm735 = vcmp.eq.f32.partialorder %v732, %v734
        %v736 = vsel %vm735, %v731, inf
        %737 = vmin.xlane.f32.xlu0 %v736
        %v738 = vpop.xlane.xlu0 %737
        %v739 = vcvt.f32.s32 %v738
        %v740 = vcvt.f32.s32 %v734
        %v741 = vshll.u32 %v740, 16
        %v742 = vadd.s32 %v741, %v739
        %v743 = vand.u32 %v683, 65535
        %v744 = vshra.s32 %v683, 16
        %v745 = vcvt.s32.f32 %v743
        %v746 = vcvt.s32.f32 %v744
        %747 = vmin.xlane.f32.xlu0 %v746
        %v748 = vpop.xlane.xlu0 %747
        %vm749 = vcmp.eq.f32.partialorder %v746, %v748
        %v750 = vsel %vm749, %v745, inf
        %751 = vmin.xlane.f32.xlu0 %v750
        %v752 = vpop.xlane.xlu0 %751
        %v753 = vcvt.f32.s32 %v752
        %v754 = vcvt.f32.s32 %v748
        %v755 = vshll.u32 %v754, 16
        %v756 = vadd.s32 %v755, %v753
        %v757 = vand.u32 %v684, 65535
        %v758 = vshra.s32 %v684, 16
        %v759 = vcvt.s32.f32 %v757
        %v760 = vcvt.s32.f32 %v758
        %761 = vmin.xlane.f32.xlu0 %v760
        %v762 = vpop.xlane.xlu0 %761
        %vm763 = vcmp.eq.f32.partialorder %v760, %v762
        %v764 = vsel %vm763, %v759, inf
        %765 = vmin.xlane.f32.xlu0 %v764
        %v766 = vpop.xlane.xlu0 %765
        %v767 = vcvt.f32.s32 %v766
        %v768 = vcvt.f32.s32 %v762
        %v769 = vshll.u32 %v768, 16
        %v770 = vadd.s32 %v769, %v767
        %v771 = vand.u32 %v685, 65535
        %v772 = vshra.s32 %v685, 16
        %v773 = vcvt.s32.f32 %v771
        %v774 = vcvt.s32.f32 %v772
        %775 = vmin.xlane.f32.xlu0 %v774
        %v776 = vpop.xlane.xlu0 %775
        %vm777 = vcmp.eq.f32.partialorder %v774, %v776
        %v778 = vsel %vm777, %v773, inf
        %779 = vmin.xlane.f32.xlu0 %v778
        %v780 = vpop.xlane.xlu0 %779
        %v781 = vcvt.f32.s32 %v780
        %v782 = vcvt.f32.s32 %v776
        %v783 = vshll.u32 %v782, 16
        %v784 = vadd.s32 %v783, %v781
        %v785 = vand.u32 %v686, 65535
        %v786 = vshra.s32 %v686, 16
        %v787 = vcvt.s32.f32 %v785
        %v788 = vcvt.s32.f32 %v786
        %789 = vmin.xlane.f32.xlu0 %v788
        %v790 = vpop.xlane.xlu0 %789
        %vm791 = vcmp.eq.f32.partialorder %v788, %v790
        %v792 = vsel %vm791, %v787, inf
        %793 = vmin.xlane.f32.xlu0 %v792
        %v794 = vpop.xlane.xlu0 %793
        %v795 = vcvt.f32.s32 %v794
        %v796 = vcvt.f32.s32 %v790
        %v797 = vshll.u32 %v796, 16
        %v798 = vadd.s32 %v797, %v795
        %vm799 = vcmp.eq.s32.totalorder %v267, %v700
        %vm800 = vcmp.eq.s32.totalorder %v267, %v714
        %vm801 = vcmp.eq.s32.totalorder %v267, %v728
        %vm802 = vcmp.eq.s32.totalorder %v267, %v742
        %vm803 = vcmp.eq.s32.totalorder %v267, %v756
        %vm804 = vcmp.eq.s32.totalorder %v267, %v770
        %vm805 = vcmp.eq.s32.totalorder %v267, %v784
        %vm806 = vcmp.eq.s32.totalorder %v267, %v798
        %v807 = vsel %vm799, 1.0, 0.0
        %v808 = vsel %vm800, 1.0, 0.0
        %v809 = vsel %vm801, 1.0, 0.0
        %v810 = vsel %vm802, 1.0, 0.0
        %v811 = vsel %vm803, 1.0, 0.0
        %v812 = vsel %vm804, 1.0, 0.0
        %v813 = vsel %vm805, 1.0, 0.0
        %v814 = vsel %vm806, 1.0, 0.0
        %815 = vst [vmem:[#allocation2 + $0x40] sm:$0xff] %v807
        %816 = vst [vmem:[#allocation2 + $0x48] sm:$0xff] %v808
        %817 = vst [vmem:[#allocation2 + $0x50] sm:$0xff] %v809
        %818 = vst [vmem:[#allocation2 + $0x58] sm:$0xff] %v810
        %819 = vst [vmem:[#allocation2 + $0x60] sm:$0xff] %v811
        %820 = vst [vmem:[#allocation2 + $0x68] sm:$0xff] %v812
        %821 = vst [vmem:[#allocation2 + $0x70] sm:$0xff] %v813
        %822 = vst [vmem:[#allocation2 + $0x78] sm:$0xff] %v814
        %v823 = vsel %vm799, 1e+30, %v647
        %v824 = vsel %vm800, 1e+30, %v648
        %v825 = vsel %vm801, 1e+30, %v649
        %v826 = vsel %vm802, 1e+30, %v650
        %v827 = vsel %vm803, 1e+30, %v651
        %v828 = vsel %vm804, 1e+30, %v652
        %v829 = vsel %vm805, 1e+30, %v653
        %v830 = vsel %vm806, 1e+30, %v654
        %831 = vmin.xlane.f32.xlu0 %v823
        %v832 = vpop.xlane.xlu0 %831
        %833 = vmin.xlane.f32.xlu0 %v824
        %v834 = vpop.xlane.xlu0 %833
        %835 = vmin.xlane.f32.xlu0 %v825
        %v836 = vpop.xlane.xlu0 %835
        %837 = vmin.xlane.f32.xlu0 %v826
        %v838 = vpop.xlane.xlu0 %837
        %839 = vmin.xlane.f32.xlu0 %v827
        %v840 = vpop.xlane.xlu0 %839
        %841 = vmin.xlane.f32.xlu0 %v828
        %v842 = vpop.xlane.xlu0 %841
        %843 = vmin.xlane.f32.xlu0 %v829
        %v844 = vpop.xlane.xlu0 %843
        %845 = vmin.xlane.f32.xlu0 %v830
        %v846 = vpop.xlane.xlu0 %845
        %vm847 = vcmp.le.f32.partialorder %v823, %v832
        %vm848 = vcmp.le.f32.partialorder %v824, %v834
        %vm849 = vcmp.le.f32.partialorder %v825, %v836
        %vm850 = vcmp.le.f32.partialorder %v826, %v838
        %vm851 = vcmp.le.f32.partialorder %v827, %v840
        %vm852 = vcmp.le.f32.partialorder %v828, %v842
        %vm853 = vcmp.le.f32.partialorder %v829, %v844
        %vm854 = vcmp.le.f32.partialorder %v830, %v846
        %v855 = vsel %vm847, %v267, 128
        %v856 = vsel %vm848, %v267, 128
        %v857 = vsel %vm849, %v267, 128
        %v858 = vsel %vm850, %v267, 128
        %v859 = vsel %vm851, %v267, 128
        %v860 = vsel %vm852, %v267, 128
        %v861 = vsel %vm853, %v267, 128
        %v862 = vsel %vm854, %v267, 128
        %v863 = vand.u32 %v855, 65535
        %v864 = vshra.s32 %v855, 16
        %v865 = vcvt.s32.f32 %v863
        %v866 = vcvt.s32.f32 %v864
        %867 = vmin.xlane.f32.xlu0 %v866
        %v868 = vpop.xlane.xlu0 %867
        %vm869 = vcmp.eq.f32.partialorder %v866, %v868
        %v870 = vsel %vm869, %v865, inf
        %871 = vmin.xlane.f32.xlu0 %v870
        %v872 = vpop.xlane.xlu0 %871
        %v873 = vcvt.f32.s32 %v872
        %v874 = vcvt.f32.s32 %v868
        %v875 = vshll.u32 %v874, 16
        %v876 = vadd.s32 %v875, %v873
        %v877 = vand.u32 %v856, 65535
        %v878 = vshra.s32 %v856, 16
        %v879 = vcvt.s32.f32 %v877
        %v880 = vcvt.s32.f32 %v878
        %881 = vmin.xlane.f32.xlu0 %v880
        %v882 = vpop.xlane.xlu0 %881
        %vm883 = vcmp.eq.f32.partialorder %v880, %v882
        %v884 = vsel %vm883, %v879, inf
        %885 = vmin.xlane.f32.xlu0 %v884
        %v886 = vpop.xlane.xlu0 %885
        %v887 = vcvt.f32.s32 %v886
        %v888 = vcvt.f32.s32 %v882
        %v889 = vshll.u32 %v888, 16
        %v890 = vadd.s32 %v889, %v887
        %v891 = vand.u32 %v857, 65535
        %v892 = vshra.s32 %v857, 16
        %v893 = vcvt.s32.f32 %v891
        %v894 = vcvt.s32.f32 %v892
        %895 = vmin.xlane.f32.xlu0 %v894
        %v896 = vpop.xlane.xlu0 %895
        %vm897 = vcmp.eq.f32.partialorder %v894, %v896
        %v898 = vsel %vm897, %v893, inf
        %899 = vmin.xlane.f32.xlu0 %v898
        %v900 = vpop.xlane.xlu0 %899
        %v901 = vcvt.f32.s32 %v900
        %v902 = vcvt.f32.s32 %v896
        %v903 = vshll.u32 %v902, 16
        %v904 = vadd.s32 %v903, %v901
        %v905 = vand.u32 %v858, 65535
        %v906 = vshra.s32 %v858, 16
        %v907 = vcvt.s32.f32 %v905
        %v908 = vcvt.s32.f32 %v906
        %909 = vmin.xlane.f32.xlu0 %v908
        %v910 = vpop.xlane.xlu0 %909
        %vm911 = vcmp.eq.f32.partialorder %v908, %v910
        %v912 = vsel %vm911, %v907, inf
        %913 = vmin.xlane.f32.xlu0 %v912
        %v914 = vpop.xlane.xlu0 %913
        %v915 = vcvt.f32.s32 %v914
        %v916 = vcvt.f32.s32 %v910
        %v917 = vshll.u32 %v916, 16
        %v918 = vadd.s32 %v917, %v915
        %v919 = vand.u32 %v859, 65535
        %v920 = vshra.s32 %v859, 16
        %v921 = vcvt.s32.f32 %v919
        %v922 = vcvt.s32.f32 %v920
        %923 = vmin.xlane.f32.xlu0 %v922
        %v924 = vpop.xlane.xlu0 %923
        %vm925 = vcmp.eq.f32.partialorder %v922, %v924
        %v926 = vsel %vm925, %v921, inf
        %927 = vmin.xlane.f32.xlu0 %v926
        %v928 = vpop.xlane.xlu0 %927
        %v929 = vcvt.f32.s32 %v928
        %v930 = vcvt.f32.s32 %v924
        %v931 = vshll.u32 %v930, 16
        %v932 = vadd.s32 %v931, %v929
        %v933 = vand.u32 %v860, 65535
        %v934 = vshra.s32 %v860, 16
        %v935 = vcvt.s32.f32 %v933
        %v936 = vcvt.s32.f32 %v934
        %937 = vmin.xlane.f32.xlu0 %v936
        %v938 = vpop.xlane.xlu0 %937
        %vm939 = vcmp.eq.f32.partialorder %v936, %v938
        %v940 = vsel %vm939, %v935, inf
        %941 = vmin.xlane.f32.xlu0 %v940
        %v942 = vpop.xlane.xlu0 %941
        %v943 = vcvt.f32.s32 %v942
        %v944 = vcvt.f32.s32 %v938
        %v945 = vshll.u32 %v944, 16
        %v946 = vadd.s32 %v945, %v943
        %v947 = vand.u32 %v861, 65535
        %v948 = vshra.s32 %v861, 16
        %v949 = vcvt.s32.f32 %v947
        %v950 = vcvt.s32.f32 %v948
        %951 = vmin.xlane.f32.xlu0 %v950
        %v952 = vpop.xlane.xlu0 %951
        %vm953 = vcmp.eq.f32.partialorder %v950, %v952
        %v954 = vsel %vm953, %v949, inf
        %955 = vmin.xlane.f32.xlu0 %v954
        %v956 = vpop.xlane.xlu0 %955
        %v957 = vcvt.f32.s32 %v956
        %v958 = vcvt.f32.s32 %v952
        %v959 = vshll.u32 %v958, 16
        %v960 = vadd.s32 %v959, %v957
        %v961 = vand.u32 %v862, 65535
        %v962 = vshra.s32 %v862, 16
        %v963 = vcvt.s32.f32 %v961
        %v964 = vcvt.s32.f32 %v962
        %965 = vmin.xlane.f32.xlu0 %v964
        %v966 = vpop.xlane.xlu0 %965
        %vm967 = vcmp.eq.f32.partialorder %v964, %v966
        %v968 = vsel %vm967, %v963, inf
        %969 = vmin.xlane.f32.xlu0 %v968
        %v970 = vpop.xlane.xlu0 %969
        %v971 = vcvt.f32.s32 %v970
        %v972 = vcvt.f32.s32 %v966
        %v973 = vshll.u32 %v972, 16
        %v974 = vadd.s32 %v973, %v971
        %vm975 = vcmp.eq.s32.totalorder %v267, %v876
        %vm976 = vcmp.eq.s32.totalorder %v267, %v890
        %vm977 = vcmp.eq.s32.totalorder %v267, %v904
        %vm978 = vcmp.eq.s32.totalorder %v267, %v918
        %vm979 = vcmp.eq.s32.totalorder %v267, %v932
        %vm980 = vcmp.eq.s32.totalorder %v267, %v946
        %vm981 = vcmp.eq.s32.totalorder %v267, %v960
        %vm982 = vcmp.eq.s32.totalorder %v267, %v974
        %v983 = vsel %vm975, 1.0, 0.0
        %v984 = vsel %vm976, 1.0, 0.0
        %v985 = vsel %vm977, 1.0, 0.0
        %v986 = vsel %vm978, 1.0, 0.0
        %v987 = vsel %vm979, 1.0, 0.0
        %v988 = vsel %vm980, 1.0, 0.0
        %v989 = vsel %vm981, 1.0, 0.0
        %v990 = vsel %vm982, 1.0, 0.0
        %991 = vst [vmem:[#allocation2 + $0x80] sm:$0xff] %v983
        %992 = vst [vmem:[#allocation2 + $0x88] sm:$0xff] %v984
        %993 = vst [vmem:[#allocation2 + $0x90] sm:$0xff] %v985
        %994 = vst [vmem:[#allocation2 + $0x98] sm:$0xff] %v986
        %995 = vst [vmem:[#allocation2 + $0xa0] sm:$0xff] %v987
        %996 = vst [vmem:[#allocation2 + $0xa8] sm:$0xff] %v988
        %997 = vst [vmem:[#allocation2 + $0xb0] sm:$0xff] %v989
        %998 = vst [vmem:[#allocation2 + $0xb8] sm:$0xff] %v990
        %v999 = vsel %vm975, 1e+30, %v823
        %v1000 = vsel %vm976, 1e+30, %v824
        %v1001 = vsel %vm977, 1e+30, %v825
        %v1002 = vsel %vm978, 1e+30, %v826
        %v1003 = vsel %vm979, 1e+30, %v827
        %v1004 = vsel %vm980, 1e+30, %v828
        %v1005 = vsel %vm981, 1e+30, %v829
        %v1006 = vsel %vm982, 1e+30, %v830
        %1007 = vmin.xlane.f32.xlu0 %v999
        %v1008 = vpop.xlane.xlu0 %1007
        %1009 = vmin.xlane.f32.xlu0 %v1000
        %v1010 = vpop.xlane.xlu0 %1009
        %1011 = vmin.xlane.f32.xlu0 %v1001
        %v1012 = vpop.xlane.xlu0 %1011
        %1013 = vmin.xlane.f32.xlu0 %v1002
        %v1014 = vpop.xlane.xlu0 %1013
        %1015 = vmin.xlane.f32.xlu0 %v1003
        %v1016 = vpop.xlane.xlu0 %1015
        %1017 = vmin.xlane.f32.xlu0 %v1004
        %v1018 = vpop.xlane.xlu0 %1017
        %1019 = vmin.xlane.f32.xlu0 %v1005
        %v1020 = vpop.xlane.xlu0 %1019
        %1021 = vmin.xlane.f32.xlu0 %v1006
        %v1022 = vpop.xlane.xlu0 %1021
        %vm1023 = vcmp.le.f32.partialorder %v999, %v1008
        %vm1024 = vcmp.le.f32.partialorder %v1000, %v1010
        %vm1025 = vcmp.le.f32.partialorder %v1001, %v1012
        %vm1026 = vcmp.le.f32.partialorder %v1002, %v1014
        %vm1027 = vcmp.le.f32.partialorder %v1003, %v1016
        %vm1028 = vcmp.le.f32.partialorder %v1004, %v1018
        %vm1029 = vcmp.le.f32.partialorder %v1005, %v1020
        %vm1030 = vcmp.le.f32.partialorder %v1006, %v1022
        %v1031 = vsel %vm1023, %v267, 128
        %v1032 = vsel %vm1024, %v267, 128
        %v1033 = vsel %vm1025, %v267, 128
        %v1034 = vsel %vm1026, %v267, 128
        %v1035 = vsel %vm1027, %v267, 128
        %v1036 = vsel %vm1028, %v267, 128
        %v1037 = vsel %vm1029, %v267, 128
        %v1038 = vsel %vm1030, %v267, 128
        %v1039 = vand.u32 %v1031, 65535
        %v1040 = vshra.s32 %v1031, 16
        %v1041 = vcvt.s32.f32 %v1039
        %v1042 = vcvt.s32.f32 %v1040
        %1043 = vmin.xlane.f32.xlu0 %v1042
        %v1044 = vpop.xlane.xlu0 %1043
        %vm1045 = vcmp.eq.f32.partialorder %v1042, %v1044
        %v1046 = vsel %vm1045, %v1041, inf
        %1047 = vmin.xlane.f32.xlu0 %v1046
        %v1048 = vpop.xlane.xlu0 %1047
        %v1049 = vcvt.f32.s32 %v1048
        %v1050 = vcvt.f32.s32 %v1044
        %v1051 = vshll.u32 %v1050, 16
        %v1052 = vadd.s32 %v1051, %v1049
        %v1053 = vand.u32 %v1032, 65535
        %v1054 = vshra.s32 %v1032, 16
        %v1055 = vcvt.s32.f32 %v1053
        %v1056 = vcvt.s32.f32 %v1054
        %1057 = vmin.xlane.f32.xlu0 %v1056
        %v1058 = vpop.xlane.xlu0 %1057
        %vm1059 = vcmp.eq.f32.partialorder %v1056, %v1058
        %v1060 = vsel %vm1059, %v1055, inf
        %1061 = vmin.xlane.f32.xlu0 %v1060
        %v1062 = vpop.xlane.xlu0 %1061
        %v1063 = vcvt.f32.s32 %v1062
        %v1064 = vcvt.f32.s32 %v1058
        %v1065 = vshll.u32 %v1064, 16
        %v1066 = vadd.s32 %v1065, %v1063
        %v1067 = vand.u32 %v1033, 65535
        %v1068 = vshra.s32 %v1033, 16
        %v1069 = vcvt.s32.f32 %v1067
        %v1070 = vcvt.s32.f32 %v1068
        %1071 = vmin.xlane.f32.xlu0 %v1070
        %v1072 = vpop.xlane.xlu0 %1071
        %vm1073 = vcmp.eq.f32.partialorder %v1070, %v1072
        %v1074 = vsel %vm1073, %v1069, inf
        %1075 = vmin.xlane.f32.xlu0 %v1074
        %v1076 = vpop.xlane.xlu0 %1075
        %v1077 = vcvt.f32.s32 %v1076
        %v1078 = vcvt.f32.s32 %v1072
        %v1079 = vshll.u32 %v1078, 16
        %v1080 = vadd.s32 %v1079, %v1077
        %v1081 = vand.u32 %v1034, 65535
        %v1082 = vshra.s32 %v1034, 16
        %v1083 = vcvt.s32.f32 %v1081
        %v1084 = vcvt.s32.f32 %v1082
        %1085 = vmin.xlane.f32.xlu0 %v1084
        %v1086 = vpop.xlane.xlu0 %1085
        %vm1087 = vcmp.eq.f32.partialorder %v1084, %v1086
        %v1088 = vsel %vm1087, %v1083, inf
        %1089 = vmin.xlane.f32.xlu0 %v1088
        %v1090 = vpop.xlane.xlu0 %1089
        %v1091 = vcvt.f32.s32 %v1090
        %v1092 = vcvt.f32.s32 %v1086
        %v1093 = vshll.u32 %v1092, 16
        %v1094 = vadd.s32 %v1093, %v1091
        %v1095 = vand.u32 %v1035, 65535
        %v1096 = vshra.s32 %v1035, 16
        %v1097 = vcvt.s32.f32 %v1095
        %v1098 = vcvt.s32.f32 %v1096
        %1099 = vmin.xlane.f32.xlu0 %v1098
        %v1100 = vpop.xlane.xlu0 %1099
        %vm1101 = vcmp.eq.f32.partialorder %v1098, %v1100
        %v1102 = vsel %vm1101, %v1097, inf
        %1103 = vmin.xlane.f32.xlu0 %v1102
        %v1104 = vpop.xlane.xlu0 %1103
        %v1105 = vcvt.f32.s32 %v1104
        %v1106 = vcvt.f32.s32 %v1100
        %v1107 = vshll.u32 %v1106, 16
        %v1108 = vadd.s32 %v1107, %v1105
        %v1109 = vand.u32 %v1036, 65535
        %v1110 = vshra.s32 %v1036, 16
        %v1111 = vcvt.s32.f32 %v1109
        %v1112 = vcvt.s32.f32 %v1110
        %1113 = vmin.xlane.f32.xlu0 %v1112
        %v1114 = vpop.xlane.xlu0 %1113
        %vm1115 = vcmp.eq.f32.partialorder %v1112, %v1114
        %v1116 = vsel %vm1115, %v1111, inf
        %1117 = vmin.xlane.f32.xlu0 %v1116
        %v1118 = vpop.xlane.xlu0 %1117
        %v1119 = vcvt.f32.s32 %v1118
        %v1120 = vcvt.f32.s32 %v1114
        %v1121 = vshll.u32 %v1120, 16
        %v1122 = vadd.s32 %v1121, %v1119
        %v1123 = vand.u32 %v1037, 65535
        %v1124 = vshra.s32 %v1037, 16
        %v1125 = vcvt.s32.f32 %v1123
        %v1126 = vcvt.s32.f32 %v1124
        %1127 = vmin.xlane.f32.xlu0 %v1126
        %v1128 = vpop.xlane.xlu0 %1127
        %vm1129 = vcmp.eq.f32.partialorder %v1126, %v1128
        %v1130 = vsel %vm1129, %v1125, inf
        %1131 = vmin.xlane.f32.xlu0 %v1130
        %v1132 = vpop.xlane.xlu0 %1131
        %v1133 = vcvt.f32.s32 %v1132
        %v1134 = vcvt.f32.s32 %v1128
        %v1135 = vshll.u32 %v1134, 16
        %v1136 = vadd.s32 %v1135, %v1133
        %v1137 = vand.u32 %v1038, 65535
        %v1138 = vshra.s32 %v1038, 16
        %v1139 = vcvt.s32.f32 %v1137
        %v1140 = vcvt.s32.f32 %v1138
        %1141 = vmin.xlane.f32.xlu0 %v1140
        %v1142 = vpop.xlane.xlu0 %1141
        %vm1143 = vcmp.eq.f32.partialorder %v1140, %v1142
        %v1144 = vsel %vm1143, %v1139, inf
        %1145 = vmin.xlane.f32.xlu0 %v1144
        %v1146 = vpop.xlane.xlu0 %1145
        %v1147 = vcvt.f32.s32 %v1146
        %v1148 = vcvt.f32.s32 %v1142
        %v1149 = vshll.u32 %v1148, 16
        %v1150 = vadd.s32 %v1149, %v1147
        %vm1151 = vcmp.eq.s32.totalorder %v267, %v1052
        %vm1152 = vcmp.eq.s32.totalorder %v267, %v1066
        %vm1153 = vcmp.eq.s32.totalorder %v267, %v1080
        %vm1154 = vcmp.eq.s32.totalorder %v267, %v1094
        %vm1155 = vcmp.eq.s32.totalorder %v267, %v1108
        %vm1156 = vcmp.eq.s32.totalorder %v267, %v1122
        %vm1157 = vcmp.eq.s32.totalorder %v267, %v1136
        %vm1158 = vcmp.eq.s32.totalorder %v267, %v1150
        %v1159 = vsel %vm1151, 1.0, 0.0
        %v1160 = vsel %vm1152, 1.0, 0.0
        %v1161 = vsel %vm1153, 1.0, 0.0
        %v1162 = vsel %vm1154, 1.0, 0.0
        %v1163 = vsel %vm1155, 1.0, 0.0
        %v1164 = vsel %vm1156, 1.0, 0.0
        %v1165 = vsel %vm1157, 1.0, 0.0
        %v1166 = vsel %vm1158, 1.0, 0.0
        %1167 = vst [vmem:[#allocation2 + $0xc0] sm:$0xff] %v1159
        %1168 = vst [vmem:[#allocation2 + $0xc8] sm:$0xff] %v1160
        %1169 = vst [vmem:[#allocation2 + $0xd0] sm:$0xff] %v1161
        %1170 = vst [vmem:[#allocation2 + $0xd8] sm:$0xff] %v1162
        %1171 = vst [vmem:[#allocation2 + $0xe0] sm:$0xff] %v1163
        %1172 = vst [vmem:[#allocation2 + $0xe8] sm:$0xff] %v1164
        %1173 = vst [vmem:[#allocation2 + $0xf0] sm:$0xff] %v1165
        %1174 = vst [vmem:[#allocation2 + $0xf8] sm:$0xff] %v1166
        %v1175 = vsel %vm1151, 1e+30, %v999
        %v1176 = vsel %vm1152, 1e+30, %v1000
        %v1177 = vsel %vm1153, 1e+30, %v1001
        %v1178 = vsel %vm1154, 1e+30, %v1002
        %v1179 = vsel %vm1155, 1e+30, %v1003
        %v1180 = vsel %vm1156, 1e+30, %v1004
        %v1181 = vsel %vm1157, 1e+30, %v1005
        %v1182 = vsel %vm1158, 1e+30, %v1006
        %1183 = vmin.xlane.f32.xlu0 %v1175
        %v1184 = vpop.xlane.xlu0 %1183
        %1185 = vmin.xlane.f32.xlu0 %v1176
        %v1186 = vpop.xlane.xlu0 %1185
        %1187 = vmin.xlane.f32.xlu0 %v1177
        %v1188 = vpop.xlane.xlu0 %1187
        %1189 = vmin.xlane.f32.xlu0 %v1178
        %v1190 = vpop.xlane.xlu0 %1189
        %1191 = vmin.xlane.f32.xlu0 %v1179
        %v1192 = vpop.xlane.xlu0 %1191
        %1193 = vmin.xlane.f32.xlu0 %v1180
        %v1194 = vpop.xlane.xlu0 %1193
        %1195 = vmin.xlane.f32.xlu0 %v1181
        %v1196 = vpop.xlane.xlu0 %1195
        %1197 = vmin.xlane.f32.xlu0 %v1182
        %v1198 = vpop.xlane.xlu0 %1197
        %vm1199 = vcmp.le.f32.partialorder %v1175, %v1184
        %vm1200 = vcmp.le.f32.partialorder %v1176, %v1186
        %vm1201 = vcmp.le.f32.partialorder %v1177, %v1188
        %vm1202 = vcmp.le.f32.partialorder %v1178, %v1190
        %vm1203 = vcmp.le.f32.partialorder %v1179, %v1192
        %vm1204 = vcmp.le.f32.partialorder %v1180, %v1194
        %vm1205 = vcmp.le.f32.partialorder %v1181, %v1196
        %vm1206 = vcmp.le.f32.partialorder %v1182, %v1198
        %v1207 = vsel %vm1199, %v267, 128
        %v1208 = vsel %vm1200, %v267, 128
        %v1209 = vsel %vm1201, %v267, 128
        %v1210 = vsel %vm1202, %v267, 128
        %v1211 = vsel %vm1203, %v267, 128
        %v1212 = vsel %vm1204, %v267, 128
        %v1213 = vsel %vm1205, %v267, 128
        %v1214 = vsel %vm1206, %v267, 128
        %v1215 = vand.u32 %v1207, 65535
        %v1216 = vshra.s32 %v1207, 16
        %v1217 = vcvt.s32.f32 %v1215
        %v1218 = vcvt.s32.f32 %v1216
        %1219 = vmin.xlane.f32.xlu0 %v1218
        %v1220 = vpop.xlane.xlu0 %1219
        %vm1221 = vcmp.eq.f32.partialorder %v1218, %v1220
        %v1222 = vsel %vm1221, %v1217, inf
        %1223 = vmin.xlane.f32.xlu0 %v1222
        %v1224 = vpop.xlane.xlu0 %1223
        %v1225 = vcvt.f32.s32 %v1224
        %v1226 = vcvt.f32.s32 %v1220
        %v1227 = vshll.u32 %v1226, 16
        %v1228 = vadd.s32 %v1227, %v1225
        %v1229 = vand.u32 %v1208, 65535
        %v1230 = vshra.s32 %v1208, 16
        %v1231 = vcvt.s32.f32 %v1229
        %v1232 = vcvt.s32.f32 %v1230
        %1233 = vmin.xlane.f32.xlu0 %v1232
        %v1234 = vpop.xlane.xlu0 %1233
        %vm1235 = vcmp.eq.f32.partialorder %v1232, %v1234
        %v1236 = vsel %vm1235, %v1231, inf
        %1237 = vmin.xlane.f32.xlu0 %v1236
        %v1238 = vpop.xlane.xlu0 %1237
        %v1239 = vcvt.f32.s32 %v1238
        %v1240 = vcvt.f32.s32 %v1234
        %v1241 = vshll.u32 %v1240, 16
        %v1242 = vadd.s32 %v1241, %v1239
        %v1243 = vand.u32 %v1209, 65535
        %v1244 = vshra.s32 %v1209, 16
        %v1245 = vcvt.s32.f32 %v1243
        %v1246 = vcvt.s32.f32 %v1244
        %1247 = vmin.xlane.f32.xlu0 %v1246
        %v1248 = vpop.xlane.xlu0 %1247
        %vm1249 = vcmp.eq.f32.partialorder %v1246, %v1248
        %v1250 = vsel %vm1249, %v1245, inf
        %1251 = vmin.xlane.f32.xlu0 %v1250
        %v1252 = vpop.xlane.xlu0 %1251
        %v1253 = vcvt.f32.s32 %v1252
        %v1254 = vcvt.f32.s32 %v1248
        %v1255 = vshll.u32 %v1254, 16
        %v1256 = vadd.s32 %v1255, %v1253
        %v1257 = vand.u32 %v1210, 65535
        %v1258 = vshra.s32 %v1210, 16
        %v1259 = vcvt.s32.f32 %v1257
        %v1260 = vcvt.s32.f32 %v1258
        %1261 = vmin.xlane.f32.xlu0 %v1260
        %v1262 = vpop.xlane.xlu0 %1261
        %vm1263 = vcmp.eq.f32.partialorder %v1260, %v1262
        %v1264 = vsel %vm1263, %v1259, inf
        %1265 = vmin.xlane.f32.xlu0 %v1264
        %v1266 = vpop.xlane.xlu0 %1265
        %v1267 = vcvt.f32.s32 %v1266
        %v1268 = vcvt.f32.s32 %v1262
        %v1269 = vshll.u32 %v1268, 16
        %v1270 = vadd.s32 %v1269, %v1267
        %v1271 = vand.u32 %v1211, 65535
        %v1272 = vshra.s32 %v1211, 16
        %v1273 = vcvt.s32.f32 %v1271
        %v1274 = vcvt.s32.f32 %v1272
        %1275 = vmin.xlane.f32.xlu0 %v1274
        %v1276 = vpop.xlane.xlu0 %1275
        %vm1277 = vcmp.eq.f32.partialorder %v1274, %v1276
        %v1278 = vsel %vm1277, %v1273, inf
        %1279 = vmin.xlane.f32.xlu0 %v1278
        %v1280 = vpop.xlane.xlu0 %1279
        %v1281 = vcvt.f32.s32 %v1280
        %v1282 = vcvt.f32.s32 %v1276
        %v1283 = vshll.u32 %v1282, 16
        %v1284 = vadd.s32 %v1283, %v1281
        %v1285 = vand.u32 %v1212, 65535
        %v1286 = vshra.s32 %v1212, 16
        %v1287 = vcvt.s32.f32 %v1285
        %v1288 = vcvt.s32.f32 %v1286
        %1289 = vmin.xlane.f32.xlu0 %v1288
        %v1290 = vpop.xlane.xlu0 %1289
        %vm1291 = vcmp.eq.f32.partialorder %v1288, %v1290
        %v1292 = vsel %vm1291, %v1287, inf
        %1293 = vmin.xlane.f32.xlu0 %v1292
        %v1294 = vpop.xlane.xlu0 %1293
        %v1295 = vcvt.f32.s32 %v1294
        %v1296 = vcvt.f32.s32 %v1290
        %v1297 = vshll.u32 %v1296, 16
        %v1298 = vadd.s32 %v1297, %v1295
        %v1299 = vand.u32 %v1213, 65535
        %v1300 = vshra.s32 %v1213, 16
        %v1301 = vcvt.s32.f32 %v1299
        %v1302 = vcvt.s32.f32 %v1300
        %1303 = vmin.xlane.f32.xlu0 %v1302
        %v1304 = vpop.xlane.xlu0 %1303
        %vm1305 = vcmp.eq.f32.partialorder %v1302, %v1304
        %v1306 = vsel %vm1305, %v1301, inf
        %1307 = vmin.xlane.f32.xlu0 %v1306
        %v1308 = vpop.xlane.xlu0 %1307
        %v1309 = vcvt.f32.s32 %v1308
        %v1310 = vcvt.f32.s32 %v1304
        %v1311 = vshll.u32 %v1310, 16
        %v1312 = vadd.s32 %v1311, %v1309
        %v1313 = vand.u32 %v1214, 65535
        %v1314 = vshra.s32 %v1214, 16
        %v1315 = vcvt.s32.f32 %v1313
        %v1316 = vcvt.s32.f32 %v1314
        %1317 = vmin.xlane.f32.xlu0 %v1316
        %v1318 = vpop.xlane.xlu0 %1317
        %vm1319 = vcmp.eq.f32.partialorder %v1316, %v1318
        %v1320 = vsel %vm1319, %v1315, inf
        %1321 = vmin.xlane.f32.xlu0 %v1320
        %v1322 = vpop.xlane.xlu0 %1321
        %v1323 = vcvt.f32.s32 %v1322
        %v1324 = vcvt.f32.s32 %v1318
        %v1325 = vshll.u32 %v1324, 16
        %v1326 = vadd.s32 %v1325, %v1323
        %vm1327 = vcmp.eq.s32.totalorder %v267, %v1228
        %vm1328 = vcmp.eq.s32.totalorder %v267, %v1242
        %vm1329 = vcmp.eq.s32.totalorder %v267, %v1256
        %vm1330 = vcmp.eq.s32.totalorder %v267, %v1270
        %vm1331 = vcmp.eq.s32.totalorder %v267, %v1284
        %vm1332 = vcmp.eq.s32.totalorder %v267, %v1298
        %vm1333 = vcmp.eq.s32.totalorder %v267, %v1312
        %vm1334 = vcmp.eq.s32.totalorder %v267, %v1326
        %v1335 = vsel %vm1327, 1.0, 0.0
        %v1336 = vsel %vm1328, 1.0, 0.0
        %v1337 = vsel %vm1329, 1.0, 0.0
        %v1338 = vsel %vm1330, 1.0, 0.0
        %v1339 = vsel %vm1331, 1.0, 0.0
        %v1340 = vsel %vm1332, 1.0, 0.0
        %v1341 = vsel %vm1333, 1.0, 0.0
        %v1342 = vsel %vm1334, 1.0, 0.0
        %1343 = vst [vmem:[#allocation2 + $0x100] sm:$0xff] %v1335
        %1344 = vst [vmem:[#allocation2 + $0x108] sm:$0xff] %v1336
        %1345 = vst [vmem:[#allocation2 + $0x110] sm:$0xff] %v1337
        %1346 = vst [vmem:[#allocation2 + $0x118] sm:$0xff] %v1338
        %1347 = vst [vmem:[#allocation2 + $0x120] sm:$0xff] %v1339
        %1348 = vst [vmem:[#allocation2 + $0x128] sm:$0xff] %v1340
        %1349 = vst [vmem:[#allocation2 + $0x130] sm:$0xff] %v1341
        %1350 = vst [vmem:[#allocation2 + $0x138] sm:$0xff] %v1342
        %v1351 = vsel %vm1327, 1e+30, %v1175
        %v1352 = vsel %vm1328, 1e+30, %v1176
        %v1353 = vsel %vm1329, 1e+30, %v1177
        %v1354 = vsel %vm1330, 1e+30, %v1178
        %v1355 = vsel %vm1331, 1e+30, %v1179
        %v1356 = vsel %vm1332, 1e+30, %v1180
        %v1357 = vsel %vm1333, 1e+30, %v1181
        %v1358 = vsel %vm1334, 1e+30, %v1182
        %1359 = vmin.xlane.f32.xlu0 %v1351
        %v1360 = vpop.xlane.xlu0 %1359
        %1361 = vmin.xlane.f32.xlu0 %v1352
        %v1362 = vpop.xlane.xlu0 %1361
        %1363 = vmin.xlane.f32.xlu0 %v1353
        %v1364 = vpop.xlane.xlu0 %1363
        %1365 = vmin.xlane.f32.xlu0 %v1354
        %v1366 = vpop.xlane.xlu0 %1365
        %1367 = vmin.xlane.f32.xlu0 %v1355
        %v1368 = vpop.xlane.xlu0 %1367
        %1369 = vmin.xlane.f32.xlu0 %v1356
        %v1370 = vpop.xlane.xlu0 %1369
        %1371 = vmin.xlane.f32.xlu0 %v1357
        %v1372 = vpop.xlane.xlu0 %1371
        %1373 = vmin.xlane.f32.xlu0 %v1358
        %v1374 = vpop.xlane.xlu0 %1373
        %vm1375 = vcmp.le.f32.partialorder %v1351, %v1360
        %vm1376 = vcmp.le.f32.partialorder %v1352, %v1362
        %vm1377 = vcmp.le.f32.partialorder %v1353, %v1364
        %vm1378 = vcmp.le.f32.partialorder %v1354, %v1366
        %vm1379 = vcmp.le.f32.partialorder %v1355, %v1368
        %vm1380 = vcmp.le.f32.partialorder %v1356, %v1370
        %vm1381 = vcmp.le.f32.partialorder %v1357, %v1372
        %vm1382 = vcmp.le.f32.partialorder %v1358, %v1374
        %v1383 = vsel %vm1375, %v267, 128
        %v1384 = vsel %vm1376, %v267, 128
        %v1385 = vsel %vm1377, %v267, 128
        %v1386 = vsel %vm1378, %v267, 128
        %v1387 = vsel %vm1379, %v267, 128
        %v1388 = vsel %vm1380, %v267, 128
        %v1389 = vsel %vm1381, %v267, 128
        %v1390 = vsel %vm1382, %v267, 128
        %v1391 = vand.u32 %v1383, 65535
        %v1392 = vshra.s32 %v1383, 16
        %v1393 = vcvt.s32.f32 %v1391
        %v1394 = vcvt.s32.f32 %v1392
        %1395 = vmin.xlane.f32.xlu0 %v1394
        %v1396 = vpop.xlane.xlu0 %1395
        %vm1397 = vcmp.eq.f32.partialorder %v1394, %v1396
        %v1398 = vsel %vm1397, %v1393, inf
        %1399 = vmin.xlane.f32.xlu0 %v1398
        %v1400 = vpop.xlane.xlu0 %1399
        %v1401 = vcvt.f32.s32 %v1400
        %v1402 = vcvt.f32.s32 %v1396
        %v1403 = vshll.u32 %v1402, 16
        %v1404 = vadd.s32 %v1403, %v1401
        %v1405 = vand.u32 %v1384, 65535
        %v1406 = vshra.s32 %v1384, 16
        %v1407 = vcvt.s32.f32 %v1405
        %v1408 = vcvt.s32.f32 %v1406
        %1409 = vmin.xlane.f32.xlu0 %v1408
        %v1410 = vpop.xlane.xlu0 %1409
        %vm1411 = vcmp.eq.f32.partialorder %v1408, %v1410
        %v1412 = vsel %vm1411, %v1407, inf
        %1413 = vmin.xlane.f32.xlu0 %v1412
        %v1414 = vpop.xlane.xlu0 %1413
        %v1415 = vcvt.f32.s32 %v1414
        %v1416 = vcvt.f32.s32 %v1410
        %v1417 = vshll.u32 %v1416, 16
        %v1418 = vadd.s32 %v1417, %v1415
        %v1419 = vand.u32 %v1385, 65535
        %v1420 = vshra.s32 %v1385, 16
        %v1421 = vcvt.s32.f32 %v1419
        %v1422 = vcvt.s32.f32 %v1420
        %1423 = vmin.xlane.f32.xlu0 %v1422
        %v1424 = vpop.xlane.xlu0 %1423
        %vm1425 = vcmp.eq.f32.partialorder %v1422, %v1424
        %v1426 = vsel %vm1425, %v1421, inf
        %1427 = vmin.xlane.f32.xlu0 %v1426
        %v1428 = vpop.xlane.xlu0 %1427
        %v1429 = vcvt.f32.s32 %v1428
        %v1430 = vcvt.f32.s32 %v1424
        %v1431 = vshll.u32 %v1430, 16
        %v1432 = vadd.s32 %v1431, %v1429
        %v1433 = vand.u32 %v1386, 65535
        %v1434 = vshra.s32 %v1386, 16
        %v1435 = vcvt.s32.f32 %v1433
        %v1436 = vcvt.s32.f32 %v1434
        %1437 = vmin.xlane.f32.xlu0 %v1436
        %v1438 = vpop.xlane.xlu0 %1437
        %vm1439 = vcmp.eq.f32.partialorder %v1436, %v1438
        %v1440 = vsel %vm1439, %v1435, inf
        %1441 = vmin.xlane.f32.xlu0 %v1440
        %v1442 = vpop.xlane.xlu0 %1441
        %v1443 = vcvt.f32.s32 %v1442
        %v1444 = vcvt.f32.s32 %v1438
        %v1445 = vshll.u32 %v1444, 16
        %v1446 = vadd.s32 %v1445, %v1443
        %v1447 = vand.u32 %v1387, 65535
        %v1448 = vshra.s32 %v1387, 16
        %v1449 = vcvt.s32.f32 %v1447
        %v1450 = vcvt.s32.f32 %v1448
        %1451 = vmin.xlane.f32.xlu0 %v1450
        %v1452 = vpop.xlane.xlu0 %1451
        %vm1453 = vcmp.eq.f32.partialorder %v1450, %v1452
        %v1454 = vsel %vm1453, %v1449, inf
        %1455 = vmin.xlane.f32.xlu0 %v1454
        %v1456 = vpop.xlane.xlu0 %1455
        %v1457 = vcvt.f32.s32 %v1456
        %v1458 = vcvt.f32.s32 %v1452
        %v1459 = vshll.u32 %v1458, 16
        %v1460 = vadd.s32 %v1459, %v1457
        %v1461 = vand.u32 %v1388, 65535
        %v1462 = vshra.s32 %v1388, 16
        %v1463 = vcvt.s32.f32 %v1461
        %v1464 = vcvt.s32.f32 %v1462
        %1465 = vmin.xlane.f32.xlu0 %v1464
        %v1466 = vpop.xlane.xlu0 %1465
        %vm1467 = vcmp.eq.f32.partialorder %v1464, %v1466
        %v1468 = vsel %vm1467, %v1463, inf
        %1469 = vmin.xlane.f32.xlu0 %v1468
        %v1470 = vpop.xlane.xlu0 %1469
        %v1471 = vcvt.f32.s32 %v1470
        %v1472 = vcvt.f32.s32 %v1466
        %v1473 = vshll.u32 %v1472, 16
        %v1474 = vadd.s32 %v1473, %v1471
        %v1475 = vand.u32 %v1389, 65535
        %v1476 = vshra.s32 %v1389, 16
        %v1477 = vcvt.s32.f32 %v1475
        %v1478 = vcvt.s32.f32 %v1476
        %1479 = vmin.xlane.f32.xlu0 %v1478
        %v1480 = vpop.xlane.xlu0 %1479
        %vm1481 = vcmp.eq.f32.partialorder %v1478, %v1480
        %v1482 = vsel %vm1481, %v1477, inf
        %1483 = vmin.xlane.f32.xlu0 %v1482
        %v1484 = vpop.xlane.xlu0 %1483
        %v1485 = vcvt.f32.s32 %v1484
        %v1486 = vcvt.f32.s32 %v1480
        %v1487 = vshll.u32 %v1486, 16
        %v1488 = vadd.s32 %v1487, %v1485
        %v1489 = vand.u32 %v1390, 65535
        %v1490 = vshra.s32 %v1390, 16
        %v1491 = vcvt.s32.f32 %v1489
        %v1492 = vcvt.s32.f32 %v1490
        %1493 = vmin.xlane.f32.xlu0 %v1492
        %v1494 = vpop.xlane.xlu0 %1493
        %vm1495 = vcmp.eq.f32.partialorder %v1492, %v1494
        %v1496 = vsel %vm1495, %v1491, inf
        %1497 = vmin.xlane.f32.xlu0 %v1496
        %v1498 = vpop.xlane.xlu0 %1497
        %v1499 = vcvt.f32.s32 %v1498
        %v1500 = vcvt.f32.s32 %v1494
        %v1501 = vshll.u32 %v1500, 16
        %v1502 = vadd.s32 %v1501, %v1499
        %vm1503 = vcmp.eq.s32.totalorder %v267, %v1404
        %vm1504 = vcmp.eq.s32.totalorder %v267, %v1418
        %vm1505 = vcmp.eq.s32.totalorder %v267, %v1432
        %vm1506 = vcmp.eq.s32.totalorder %v267, %v1446
        %vm1507 = vcmp.eq.s32.totalorder %v267, %v1460
        %vm1508 = vcmp.eq.s32.totalorder %v267, %v1474
        %vm1509 = vcmp.eq.s32.totalorder %v267, %v1488
        %vm1510 = vcmp.eq.s32.totalorder %v267, %v1502
        %v1511 = vsel %vm1503, 1.0, 0.0
        %v1512 = vsel %vm1504, 1.0, 0.0
        %v1513 = vsel %vm1505, 1.0, 0.0
        %v1514 = vsel %vm1506, 1.0, 0.0
        %v1515 = vsel %vm1507, 1.0, 0.0
        %v1516 = vsel %vm1508, 1.0, 0.0
        %v1517 = vsel %vm1509, 1.0, 0.0
        %v1518 = vsel %vm1510, 1.0, 0.0
        %1519 = vst [vmem:[#allocation2 + $0x140] sm:$0xff] %v1511
        %1520 = vst [vmem:[#allocation2 + $0x148] sm:$0xff] %v1512
        %1521 = vst [vmem:[#allocation2 + $0x150] sm:$0xff] %v1513
        %1522 = vst [vmem:[#allocation2 + $0x158] sm:$0xff] %v1514
        %1523 = vst [vmem:[#allocation2 + $0x160] sm:$0xff] %v1515
        %1524 = vst [vmem:[#allocation2 + $0x168] sm:$0xff] %v1516
        %1525 = vst [vmem:[#allocation2 + $0x170] sm:$0xff] %v1517
        %1526 = vst [vmem:[#allocation2 + $0x178] sm:$0xff] %v1518
        %v1527 = vsel %vm1503, 1e+30, %v1351
        %v1528 = vsel %vm1504, 1e+30, %v1352
        %v1529 = vsel %vm1505, 1e+30, %v1353
        %v1530 = vsel %vm1506, 1e+30, %v1354
        %v1531 = vsel %vm1507, 1e+30, %v1355
        %v1532 = vsel %vm1508, 1e+30, %v1356
        %v1533 = vsel %vm1509, 1e+30, %v1357
        %v1534 = vsel %vm1510, 1e+30, %v1358
        %1535 = vmin.xlane.f32.xlu0 %v1527
        %v1536 = vpop.xlane.xlu0 %1535
        %1537 = vmin.xlane.f32.xlu0 %v1528
        %v1538 = vpop.xlane.xlu0 %1537
        %1539 = vmin.xlane.f32.xlu0 %v1529
        %v1540 = vpop.xlane.xlu0 %1539
        %1541 = vmin.xlane.f32.xlu0 %v1530
        %v1542 = vpop.xlane.xlu0 %1541
        %1543 = vmin.xlane.f32.xlu0 %v1531
        %v1544 = vpop.xlane.xlu0 %1543
        %1545 = vmin.xlane.f32.xlu0 %v1532
        %v1546 = vpop.xlane.xlu0 %1545
        %1547 = vmin.xlane.f32.xlu0 %v1533
        %v1548 = vpop.xlane.xlu0 %1547
        %1549 = vmin.xlane.f32.xlu0 %v1534
        %v1550 = vpop.xlane.xlu0 %1549
        %vm1551 = vcmp.le.f32.partialorder %v1527, %v1536
        %vm1552 = vcmp.le.f32.partialorder %v1528, %v1538
        %vm1553 = vcmp.le.f32.partialorder %v1529, %v1540
        %vm1554 = vcmp.le.f32.partialorder %v1530, %v1542
        %vm1555 = vcmp.le.f32.partialorder %v1531, %v1544
        %vm1556 = vcmp.le.f32.partialorder %v1532, %v1546
        %vm1557 = vcmp.le.f32.partialorder %v1533, %v1548
        %vm1558 = vcmp.le.f32.partialorder %v1534, %v1550
        %v1559 = vsel %vm1551, %v267, 128
        %v1560 = vsel %vm1552, %v267, 128
        %v1561 = vsel %vm1553, %v267, 128
        %v1562 = vsel %vm1554, %v267, 128
        %v1563 = vsel %vm1555, %v267, 128
        %v1564 = vsel %vm1556, %v267, 128
        %v1565 = vsel %vm1557, %v267, 128
        %v1566 = vsel %vm1558, %v267, 128
        %v1567 = vand.u32 %v1559, 65535
        %v1568 = vshra.s32 %v1559, 16
        %v1569 = vcvt.s32.f32 %v1567
        %v1570 = vcvt.s32.f32 %v1568
        %1571 = vmin.xlane.f32.xlu0 %v1570
        %v1572 = vpop.xlane.xlu0 %1571
        %vm1573 = vcmp.eq.f32.partialorder %v1570, %v1572
        %v1574 = vsel %vm1573, %v1569, inf
        %1575 = vmin.xlane.f32.xlu0 %v1574
        %v1576 = vpop.xlane.xlu0 %1575
        %v1577 = vcvt.f32.s32 %v1576
        %v1578 = vcvt.f32.s32 %v1572
        %v1579 = vshll.u32 %v1578, 16
        %v1580 = vadd.s32 %v1579, %v1577
        %v1581 = vand.u32 %v1560, 65535
        %v1582 = vshra.s32 %v1560, 16
        %v1583 = vcvt.s32.f32 %v1581
        %v1584 = vcvt.s32.f32 %v1582
        %1585 = vmin.xlane.f32.xlu0 %v1584
        %v1586 = vpop.xlane.xlu0 %1585
        %vm1587 = vcmp.eq.f32.partialorder %v1584, %v1586
        %v1588 = vsel %vm1587, %v1583, inf
        %1589 = vmin.xlane.f32.xlu0 %v1588
        %v1590 = vpop.xlane.xlu0 %1589
        %v1591 = vcvt.f32.s32 %v1590
        %v1592 = vcvt.f32.s32 %v1586
        %v1593 = vshll.u32 %v1592, 16
        %v1594 = vadd.s32 %v1593, %v1591
        %v1595 = vand.u32 %v1561, 65535
        %v1596 = vshra.s32 %v1561, 16
        %v1597 = vcvt.s32.f32 %v1595
        %v1598 = vcvt.s32.f32 %v1596
        %1599 = vmin.xlane.f32.xlu0 %v1598
        %v1600 = vpop.xlane.xlu0 %1599
        %vm1601 = vcmp.eq.f32.partialorder %v1598, %v1600
        %v1602 = vsel %vm1601, %v1597, inf
        %1603 = vmin.xlane.f32.xlu0 %v1602
        %v1604 = vpop.xlane.xlu0 %1603
        %v1605 = vcvt.f32.s32 %v1604
        %v1606 = vcvt.f32.s32 %v1600
        %v1607 = vshll.u32 %v1606, 16
        %v1608 = vadd.s32 %v1607, %v1605
        %v1609 = vand.u32 %v1562, 65535
        %v1610 = vshra.s32 %v1562, 16
        %v1611 = vcvt.s32.f32 %v1609
        %v1612 = vcvt.s32.f32 %v1610
        %1613 = vmin.xlane.f32.xlu0 %v1612
        %v1614 = vpop.xlane.xlu0 %1613
        %vm1615 = vcmp.eq.f32.partialorder %v1612, %v1614
        %v1616 = vsel %vm1615, %v1611, inf
        %1617 = vmin.xlane.f32.xlu0 %v1616
        %v1618 = vpop.xlane.xlu0 %1617
        %v1619 = vcvt.f32.s32 %v1618
        %v1620 = vcvt.f32.s32 %v1614
        %v1621 = vshll.u32 %v1620, 16
        %v1622 = vadd.s32 %v1621, %v1619
        %v1623 = vand.u32 %v1563, 65535
        %v1624 = vshra.s32 %v1563, 16
        %v1625 = vcvt.s32.f32 %v1623
        %v1626 = vcvt.s32.f32 %v1624
        %1627 = vmin.xlane.f32.xlu0 %v1626
        %v1628 = vpop.xlane.xlu0 %1627
        %vm1629 = vcmp.eq.f32.partialorder %v1626, %v1628
        %v1630 = vsel %vm1629, %v1625, inf
        %1631 = vmin.xlane.f32.xlu0 %v1630
        %v1632 = vpop.xlane.xlu0 %1631
        %v1633 = vcvt.f32.s32 %v1632
        %v1634 = vcvt.f32.s32 %v1628
        %v1635 = vshll.u32 %v1634, 16
        %v1636 = vadd.s32 %v1635, %v1633
        %v1637 = vand.u32 %v1564, 65535
        %v1638 = vshra.s32 %v1564, 16
        %v1639 = vcvt.s32.f32 %v1637
        %v1640 = vcvt.s32.f32 %v1638
        %1641 = vmin.xlane.f32.xlu0 %v1640
        %v1642 = vpop.xlane.xlu0 %1641
        %vm1643 = vcmp.eq.f32.partialorder %v1640, %v1642
        %v1644 = vsel %vm1643, %v1639, inf
        %1645 = vmin.xlane.f32.xlu0 %v1644
        %v1646 = vpop.xlane.xlu0 %1645
        %v1647 = vcvt.f32.s32 %v1646
        %v1648 = vcvt.f32.s32 %v1642
        %v1649 = vshll.u32 %v1648, 16
        %v1650 = vadd.s32 %v1649, %v1647
        %v1651 = vand.u32 %v1565, 65535
        %v1652 = vshra.s32 %v1565, 16
        %v1653 = vcvt.s32.f32 %v1651
        %v1654 = vcvt.s32.f32 %v1652
        %1655 = vmin.xlane.f32.xlu0 %v1654
        %v1656 = vpop.xlane.xlu0 %1655
        %vm1657 = vcmp.eq.f32.partialorder %v1654, %v1656
        %v1658 = vsel %vm1657, %v1653, inf
        %1659 = vmin.xlane.f32.xlu0 %v1658
        %v1660 = vpop.xlane.xlu0 %1659
        %v1661 = vcvt.f32.s32 %v1660
        %v1662 = vcvt.f32.s32 %v1656
        %v1663 = vshll.u32 %v1662, 16
        %v1664 = vadd.s32 %v1663, %v1661
        %v1665 = vand.u32 %v1566, 65535
        %v1666 = vshra.s32 %v1566, 16
        %v1667 = vcvt.s32.f32 %v1665
        %v1668 = vcvt.s32.f32 %v1666
        %1669 = vmin.xlane.f32.xlu0 %v1668
        %v1670 = vpop.xlane.xlu0 %1669
        %vm1671 = vcmp.eq.f32.partialorder %v1668, %v1670
        %v1672 = vsel %vm1671, %v1667, inf
        %1673 = vmin.xlane.f32.xlu0 %v1672
        %v1674 = vpop.xlane.xlu0 %1673
        %v1675 = vcvt.f32.s32 %v1674
        %v1676 = vcvt.f32.s32 %v1670
        %v1677 = vshll.u32 %v1676, 16
        %v1678 = vadd.s32 %v1677, %v1675
        %vm1679 = vcmp.eq.s32.totalorder %v267, %v1580
        %vm1680 = vcmp.eq.s32.totalorder %v267, %v1594
        %vm1681 = vcmp.eq.s32.totalorder %v267, %v1608
        %vm1682 = vcmp.eq.s32.totalorder %v267, %v1622
        %vm1683 = vcmp.eq.s32.totalorder %v267, %v1636
        %vm1684 = vcmp.eq.s32.totalorder %v267, %v1650
        %vm1685 = vcmp.eq.s32.totalorder %v267, %v1664
        %vm1686 = vcmp.eq.s32.totalorder %v267, %v1678
        %v1687 = vsel %vm1679, 1.0, 0.0
        %v1688 = vsel %vm1680, 1.0, 0.0
        %v1689 = vsel %vm1681, 1.0, 0.0
        %v1690 = vsel %vm1682, 1.0, 0.0
        %v1691 = vsel %vm1683, 1.0, 0.0
        %v1692 = vsel %vm1684, 1.0, 0.0
        %v1693 = vsel %vm1685, 1.0, 0.0
        %v1694 = vsel %vm1686, 1.0, 0.0
        %1695 = vst [vmem:[#allocation2 + $0x180] sm:$0xff] %v1687
        %1696 = vst [vmem:[#allocation2 + $0x188] sm:$0xff] %v1688
        %1697 = vst [vmem:[#allocation2 + $0x190] sm:$0xff] %v1689
        %1698 = vst [vmem:[#allocation2 + $0x198] sm:$0xff] %v1690
        %1699 = vst [vmem:[#allocation2 + $0x1a0] sm:$0xff] %v1691
        %1700 = vst [vmem:[#allocation2 + $0x1a8] sm:$0xff] %v1692
        %1701 = vst [vmem:[#allocation2 + $0x1b0] sm:$0xff] %v1693
        %1702 = vst [vmem:[#allocation2 + $0x1b8] sm:$0xff] %v1694
        %v1703 = vsel %vm1679, 1e+30, %v1527
        %v1704 = vsel %vm1680, 1e+30, %v1528
        %v1705 = vsel %vm1681, 1e+30, %v1529
        %v1706 = vsel %vm1682, 1e+30, %v1530
        %v1707 = vsel %vm1683, 1e+30, %v1531
        %v1708 = vsel %vm1684, 1e+30, %v1532
        %v1709 = vsel %vm1685, 1e+30, %v1533
        %v1710 = vsel %vm1686, 1e+30, %v1534
        %1711 = vmin.xlane.f32.xlu0 %v1703
        %v1712 = vpop.xlane.xlu0 %1711
        %1713 = vmin.xlane.f32.xlu0 %v1704
        %v1714 = vpop.xlane.xlu0 %1713
        %1715 = vmin.xlane.f32.xlu0 %v1705
        %v1716 = vpop.xlane.xlu0 %1715
        %1717 = vmin.xlane.f32.xlu0 %v1706
        %v1718 = vpop.xlane.xlu0 %1717
        %1719 = vmin.xlane.f32.xlu0 %v1707
        %v1720 = vpop.xlane.xlu0 %1719
        %1721 = vmin.xlane.f32.xlu0 %v1708
        %v1722 = vpop.xlane.xlu0 %1721
        %1723 = vmin.xlane.f32.xlu0 %v1709
        %v1724 = vpop.xlane.xlu0 %1723
        %1725 = vmin.xlane.f32.xlu0 %v1710
        %v1726 = vpop.xlane.xlu0 %1725
        %vm1727 = vcmp.le.f32.partialorder %v1703, %v1712
        %vm1728 = vcmp.le.f32.partialorder %v1704, %v1714
        %vm1729 = vcmp.le.f32.partialorder %v1705, %v1716
        %vm1730 = vcmp.le.f32.partialorder %v1706, %v1718
        %vm1731 = vcmp.le.f32.partialorder %v1707, %v1720
        %vm1732 = vcmp.le.f32.partialorder %v1708, %v1722
        %vm1733 = vcmp.le.f32.partialorder %v1709, %v1724
        %vm1734 = vcmp.le.f32.partialorder %v1710, %v1726
        %v1735 = vsel %vm1727, %v267, 128
        %v1736 = vsel %vm1728, %v267, 128
        %v1737 = vsel %vm1729, %v267, 128
        %v1738 = vsel %vm1730, %v267, 128
        %v1739 = vsel %vm1731, %v267, 128
        %v1740 = vsel %vm1732, %v267, 128
        %v1741 = vsel %vm1733, %v267, 128
        %v1742 = vsel %vm1734, %v267, 128
        %v1743 = vand.u32 %v1735, 65535
        %v1744 = vshra.s32 %v1735, 16
        %v1745 = vcvt.s32.f32 %v1743
        %v1746 = vcvt.s32.f32 %v1744
        %1747 = vmin.xlane.f32.xlu0 %v1746
        %v1748 = vpop.xlane.xlu0 %1747
        %vm1749 = vcmp.eq.f32.partialorder %v1746, %v1748
        %v1750 = vsel %vm1749, %v1745, inf
        %1751 = vmin.xlane.f32.xlu0 %v1750
        %v1752 = vpop.xlane.xlu0 %1751
        %v1753 = vcvt.f32.s32 %v1752
        %v1754 = vcvt.f32.s32 %v1748
        %v1755 = vshll.u32 %v1754, 16
        %v1756 = vadd.s32 %v1755, %v1753
        %v1757 = vand.u32 %v1736, 65535
        %v1758 = vshra.s32 %v1736, 16
        %v1759 = vcvt.s32.f32 %v1757
        %v1760 = vcvt.s32.f32 %v1758
        %1761 = vmin.xlane.f32.xlu0 %v1760
        %v1762 = vpop.xlane.xlu0 %1761
        %vm1763 = vcmp.eq.f32.partialorder %v1760, %v1762
        %v1764 = vsel %vm1763, %v1759, inf
        %1765 = vmin.xlane.f32.xlu0 %v1764
        %v1766 = vpop.xlane.xlu0 %1765
        %v1767 = vcvt.f32.s32 %v1766
        %v1768 = vcvt.f32.s32 %v1762
        %v1769 = vshll.u32 %v1768, 16
        %v1770 = vadd.s32 %v1769, %v1767
        %v1771 = vand.u32 %v1737, 65535
        %v1772 = vshra.s32 %v1737, 16
        %v1773 = vcvt.s32.f32 %v1771
        %v1774 = vcvt.s32.f32 %v1772
        %1775 = vmin.xlane.f32.xlu0 %v1774
        %v1776 = vpop.xlane.xlu0 %1775
        %vm1777 = vcmp.eq.f32.partialorder %v1774, %v1776
        %v1778 = vsel %vm1777, %v1773, inf
        %1779 = vmin.xlane.f32.xlu0 %v1778
        %v1780 = vpop.xlane.xlu0 %1779
        %v1781 = vcvt.f32.s32 %v1780
        %v1782 = vcvt.f32.s32 %v1776
        %v1783 = vshll.u32 %v1782, 16
        %v1784 = vadd.s32 %v1783, %v1781
        %v1785 = vand.u32 %v1738, 65535
        %v1786 = vshra.s32 %v1738, 16
        %v1787 = vcvt.s32.f32 %v1785
        %v1788 = vcvt.s32.f32 %v1786
        %1789 = vmin.xlane.f32.xlu0 %v1788
        %v1790 = vpop.xlane.xlu0 %1789
        %vm1791 = vcmp.eq.f32.partialorder %v1788, %v1790
        %v1792 = vsel %vm1791, %v1787, inf
        %1793 = vmin.xlane.f32.xlu0 %v1792
        %v1794 = vpop.xlane.xlu0 %1793
        %v1795 = vcvt.f32.s32 %v1794
        %v1796 = vcvt.f32.s32 %v1790
        %v1797 = vshll.u32 %v1796, 16
        %v1798 = vadd.s32 %v1797, %v1795
        %v1799 = vand.u32 %v1739, 65535
        %v1800 = vshra.s32 %v1739, 16
        %v1801 = vcvt.s32.f32 %v1799
        %v1802 = vcvt.s32.f32 %v1800
        %1803 = vmin.xlane.f32.xlu0 %v1802
        %v1804 = vpop.xlane.xlu0 %1803
        %vm1805 = vcmp.eq.f32.partialorder %v1802, %v1804
        %v1806 = vsel %vm1805, %v1801, inf
        %1807 = vmin.xlane.f32.xlu0 %v1806
        %v1808 = vpop.xlane.xlu0 %1807
        %v1809 = vcvt.f32.s32 %v1808
        %v1810 = vcvt.f32.s32 %v1804
        %v1811 = vshll.u32 %v1810, 16
        %v1812 = vadd.s32 %v1811, %v1809
        %v1813 = vand.u32 %v1740, 65535
        %v1814 = vshra.s32 %v1740, 16
        %v1815 = vcvt.s32.f32 %v1813
        %v1816 = vcvt.s32.f32 %v1814
        %1817 = vmin.xlane.f32.xlu0 %v1816
        %v1818 = vpop.xlane.xlu0 %1817
        %vm1819 = vcmp.eq.f32.partialorder %v1816, %v1818
        %v1820 = vsel %vm1819, %v1815, inf
        %1821 = vmin.xlane.f32.xlu0 %v1820
        %v1822 = vpop.xlane.xlu0 %1821
        %v1823 = vcvt.f32.s32 %v1822
        %v1824 = vcvt.f32.s32 %v1818
        %v1825 = vshll.u32 %v1824, 16
        %v1826 = vadd.s32 %v1825, %v1823
        %v1827 = vand.u32 %v1741, 65535
        %v1828 = vshra.s32 %v1741, 16
        %v1829 = vcvt.s32.f32 %v1827
        %v1830 = vcvt.s32.f32 %v1828
        %1831 = vmin.xlane.f32.xlu0 %v1830
        %v1832 = vpop.xlane.xlu0 %1831
        %vm1833 = vcmp.eq.f32.partialorder %v1830, %v1832
        %v1834 = vsel %vm1833, %v1829, inf
        %1835 = vmin.xlane.f32.xlu0 %v1834
        %v1836 = vpop.xlane.xlu0 %1835
        %v1837 = vcvt.f32.s32 %v1836
        %v1838 = vcvt.f32.s32 %v1832
        %v1839 = vshll.u32 %v1838, 16
        %v1840 = vadd.s32 %v1839, %v1837
        %v1841 = vand.u32 %v1742, 65535
        %v1842 = vshra.s32 %v1742, 16
        %v1843 = vcvt.s32.f32 %v1841
        %v1844 = vcvt.s32.f32 %v1842
        %1845 = vmin.xlane.f32.xlu0 %v1844
        %v1846 = vpop.xlane.xlu0 %1845
        %vm1847 = vcmp.eq.f32.partialorder %v1844, %v1846
        %v1848 = vsel %vm1847, %v1843, inf
        %1849 = vmin.xlane.f32.xlu0 %v1848
        %v1850 = vpop.xlane.xlu0 %1849
        %v1851 = vcvt.f32.s32 %v1850
        %v1852 = vcvt.f32.s32 %v1846
        %v1853 = vshll.u32 %v1852, 16
        %v1854 = vadd.s32 %v1853, %v1851
        %vm1855 = vcmp.eq.s32.totalorder %v267, %v1756
        %vm1856 = vcmp.eq.s32.totalorder %v267, %v1770
        %vm1857 = vcmp.eq.s32.totalorder %v267, %v1784
        %vm1858 = vcmp.eq.s32.totalorder %v267, %v1798
        %vm1859 = vcmp.eq.s32.totalorder %v267, %v1812
        %vm1860 = vcmp.eq.s32.totalorder %v267, %v1826
        %vm1861 = vcmp.eq.s32.totalorder %v267, %v1840
        %vm1862 = vcmp.eq.s32.totalorder %v267, %v1854
        %v1863 = vsel %vm1855, 1.0, 0.0
        %v1864 = vsel %vm1856, 1.0, 0.0
        %v1865 = vsel %vm1857, 1.0, 0.0
        %v1866 = vsel %vm1858, 1.0, 0.0
        %v1867 = vsel %vm1859, 1.0, 0.0
        %v1868 = vsel %vm1860, 1.0, 0.0
        %v1869 = vsel %vm1861, 1.0, 0.0
        %v1870 = vsel %vm1862, 1.0, 0.0
        %1871 = vst [vmem:[#allocation2 + $0x1c0] sm:$0xff] %v1863
        %1872 = vst [vmem:[#allocation2 + $0x1c8] sm:$0xff] %v1864
        %1873 = vst [vmem:[#allocation2 + $0x1d0] sm:$0xff] %v1865
        %1874 = vst [vmem:[#allocation2 + $0x1d8] sm:$0xff] %v1866
        %1875 = vst [vmem:[#allocation2 + $0x1e0] sm:$0xff] %v1867
        %1876 = vst [vmem:[#allocation2 + $0x1e8] sm:$0xff] %v1868
        %1877 = vst [vmem:[#allocation2 + $0x1f0] sm:$0xff] %v1869
        %1878 = vst [vmem:[#allocation2 + $0x1f8] sm:$0xff] %v1870
        %v1879 = vld [vmem:[%s253] sm:$0xff]
        %v1880 = vld [vmem:[%s253 + $0x8] sm:$0xff]
        %v1881 = vld [vmem:[%s253 + $0x10] sm:$0xff]
        %v1882 = vld [vmem:[%s253 + $0x18] sm:$0xff]
        %v1883 = vld [vmem:[%s253 + $0x20] sm:$0xff]
        %v1884 = vld [vmem:[%s253 + $0x28] sm:$0xff]
        %v1885 = vld [vmem:[%s253 + $0x30] sm:$0xff]
        %v1886 = vld [vmem:[%s253 + $0x38] sm:$0xff]
        %v1887 = vld [vmem:[#allocation2] sm:$0xff]
        %v1888 = vld [vmem:[#allocation2 + $0x8] sm:$0xff]
        %v1889 = vld [vmem:[#allocation2 + $0x10] sm:$0xff]
        %v1890 = vld [vmem:[#allocation2 + $0x18] sm:$0xff]
        %v1891 = vld [vmem:[#allocation2 + $0x20] sm:$0xff]
        %v1892 = vld [vmem:[#allocation2 + $0x28] sm:$0xff]
        %v1893 = vld [vmem:[#allocation2 + $0x30] sm:$0xff]
        %v1894 = vld [vmem:[#allocation2 + $0x38] sm:$0xff]
        %v1895 = vld [vmem:[#allocation2 + $0x40] sm:$0xff]
        %v1896 = vld [vmem:[#allocation2 + $0x48] sm:$0xff]
        %v1897 = vld [vmem:[#allocation2 + $0x50] sm:$0xff]
        %v1898 = vld [vmem:[#allocation2 + $0x58] sm:$0xff]
        %v1899 = vld [vmem:[#allocation2 + $0x60] sm:$0xff]
        %v1900 = vld [vmem:[#allocation2 + $0x68] sm:$0xff]
        %v1901 = vld [vmem:[#allocation2 + $0x70] sm:$0xff]
        %v1902 = vld [vmem:[#allocation2 + $0x78] sm:$0xff]
        %v1903 = vld [vmem:[#allocation2 + $0x80] sm:$0xff]
        %v1904 = vld [vmem:[#allocation2 + $0x88] sm:$0xff]
        %v1905 = vld [vmem:[#allocation2 + $0x90] sm:$0xff]
        %v1906 = vld [vmem:[#allocation2 + $0x98] sm:$0xff]
        %v1907 = vld [vmem:[#allocation2 + $0xa0] sm:$0xff]
        %v1908 = vld [vmem:[#allocation2 + $0xa8] sm:$0xff]
        %v1909 = vld [vmem:[#allocation2 + $0xb0] sm:$0xff]
        %v1910 = vld [vmem:[#allocation2 + $0xb8] sm:$0xff]
        %v1911 = vld [vmem:[#allocation2 + $0xc0] sm:$0xff]
        %v1912 = vld [vmem:[#allocation2 + $0xc8] sm:$0xff]
        %v1913 = vld [vmem:[#allocation2 + $0xd0] sm:$0xff]
        %v1914 = vld [vmem:[#allocation2 + $0xd8] sm:$0xff]
        %v1915 = vld [vmem:[#allocation2 + $0xe0] sm:$0xff]
        %v1916 = vld [vmem:[#allocation2 + $0xe8] sm:$0xff]
        %v1917 = vld [vmem:[#allocation2 + $0xf0] sm:$0xff]
        %v1918 = vld [vmem:[#allocation2 + $0xf8] sm:$0xff]
        %v1919 = vld [vmem:[#allocation2 + $0x100] sm:$0xff]
        %v1920 = vld [vmem:[#allocation2 + $0x108] sm:$0xff]
        %v1921 = vld [vmem:[#allocation2 + $0x110] sm:$0xff]
        %v1922 = vld [vmem:[#allocation2 + $0x118] sm:$0xff]
        %v1923 = vld [vmem:[#allocation2 + $0x120] sm:$0xff]
        %v1924 = vld [vmem:[#allocation2 + $0x128] sm:$0xff]
        %v1925 = vld [vmem:[#allocation2 + $0x130] sm:$0xff]
        %v1926 = vld [vmem:[#allocation2 + $0x138] sm:$0xff]
        %v1927 = vld [vmem:[#allocation2 + $0x140] sm:$0xff]
        %v1928 = vld [vmem:[#allocation2 + $0x148] sm:$0xff]
        %v1929 = vld [vmem:[#allocation2 + $0x150] sm:$0xff]
        %v1930 = vld [vmem:[#allocation2 + $0x158] sm:$0xff]
        %v1931 = vld [vmem:[#allocation2 + $0x160] sm:$0xff]
        %v1932 = vld [vmem:[#allocation2 + $0x168] sm:$0xff]
        %v1933 = vld [vmem:[#allocation2 + $0x170] sm:$0xff]
        %v1934 = vld [vmem:[#allocation2 + $0x178] sm:$0xff]
        %v1935 = vld [vmem:[#allocation2 + $0x180] sm:$0xff]
        %v1936 = vld [vmem:[#allocation2 + $0x188] sm:$0xff]
        %v1937 = vld [vmem:[#allocation2 + $0x190] sm:$0xff]
        %v1938 = vld [vmem:[#allocation2 + $0x198] sm:$0xff]
        %v1939 = vld [vmem:[#allocation2 + $0x1a0] sm:$0xff]
        %v1940 = vld [vmem:[#allocation2 + $0x1a8] sm:$0xff]
        %v1941 = vld [vmem:[#allocation2 + $0x1b0] sm:$0xff]
        %v1942 = vld [vmem:[#allocation2 + $0x1b8] sm:$0xff]
        %v1943 = vld [vmem:[#allocation2 + $0x1c0] sm:$0xff]
        %v1944 = vld [vmem:[#allocation2 + $0x1c8] sm:$0xff]
        %v1945 = vld [vmem:[#allocation2 + $0x1d0] sm:$0xff]
        %v1946 = vld [vmem:[#allocation2 + $0x1d8] sm:$0xff]
        %v1947 = vld [vmem:[#allocation2 + $0x1e0] sm:$0xff]
        %v1948 = vld [vmem:[#allocation2 + $0x1e8] sm:$0xff]
        %v1949 = vld [vmem:[#allocation2 + $0x1f0] sm:$0xff]
        %v1950 = vld [vmem:[#allocation2 + $0x1f8] sm:$0xff]
        %v1951 = vld [vmem:[#allocation4] sm:$0xff]
        %v1952 = vld [vmem:[#allocation4 + $0x8] sm:$0xff]
        %v1953 = vld [vmem:[#allocation4 + $0x10] sm:$0xff]
        %v1954 = vld [vmem:[#allocation4 + $0x18] sm:$0xff]
        %v1955 = vld [vmem:[#allocation4 + $0x20] sm:$0xff]
        %v1956 = vld [vmem:[#allocation4 + $0x28] sm:$0xff]
        %v1957 = vld [vmem:[#allocation4 + $0x30] sm:$0xff]
        %v1958 = vld [vmem:[#allocation4 + $0x38] sm:$0xff]
        %v1959 = vld [vmem:[#allocation4 + $0x40] sm:$0xff]
        %v1960 = vld [vmem:[#allocation4 + $0x48] sm:$0xff]
        %v1961 = vld [vmem:[#allocation4 + $0x50] sm:$0xff]
        %v1962 = vld [vmem:[#allocation4 + $0x58] sm:$0xff]
        %v1963 = vld [vmem:[#allocation4 + $0x60] sm:$0xff]
        %v1964 = vld [vmem:[#allocation4 + $0x68] sm:$0xff]
        %v1965 = vld [vmem:[#allocation4 + $0x70] sm:$0xff]
        %v1966 = vld [vmem:[#allocation4 + $0x78] sm:$0xff]
        %1967 = vmatprep.subr.mxu0 0.0
        %1968 = vmatpush1.msra.mxu0 %v1966
        %1969 = vmatprep.subr.mxu0 0.0
        %1970 = vmatpush1.msra.mxu0 %v1965
        %1971 = vmatprep.subr.mxu0 0.0
        %1972 = vmatpush1.msra.mxu0 %v1964
        %1973 = vmatprep.subr.mxu0 0.0
        %1974 = vmatpush1.msra.mxu0 %v1963
        %1975 = vmatprep.subr.mxu0 0.0
        %1976 = vmatpush1.msra.mxu0 %v1962
        %1977 = vmatprep.subr.mxu0 0.0
        %1978 = vmatpush1.msra.mxu0 %v1961
        %1979 = vmatprep.subr.mxu0 0.0
        %1980 = vmatpush1.msra.mxu0 %v1960
        %1981 = vmatprep.subr.mxu0 0.0
        %1982 = vmatpush1.msra.mxu0 %v1959
        %1983 = vmatprep.subr.mxu0 0.0
        %1984 = vmatpush1.msra.mxu0 %v1958
        %1985 = vmatprep.subr.mxu0 0.0
        %1986 = vmatpush1.msra.mxu0 %v1957
        %1987 = vmatprep.subr.mxu0 0.0
        %1988 = vmatpush1.msra.mxu0 %v1956
        %1989 = vmatprep.subr.mxu0 0.0
        %1990 = vmatpush1.msra.mxu0 %v1955
        %1991 = vmatprep.subr.mxu0 0.0
        %1992 = vmatpush1.msra.mxu0 %v1954
        %1993 = vmatprep.subr.mxu0 0.0
        %1994 = vmatpush1.msra.mxu0 %v1953
        %1995 = vmatprep.subr.mxu0 0.0
        %1996 = vmatpush1.msra.mxu0 %v1952
        %1997 = vmatprep.subr.mxu0 0.0
        %1998 = vmatpush1.msra.mxu0 %v1951
        %1999 = vmatprep.subr.mxu0 0.0
        %2000 = vmatpush2.msra.mxu0 0.0
        %2001 = vmatprep.subr.mxu0 0.0
        %2002 = vmatpush2.msra.mxu0 0.0
        %2003 = vmatprep.subr.mxu0 0.0
        %2004 = vmatpush2.msra.mxu0 0.0
        %2005 = vmatprep.subr.mxu0 0.0
        %2006 = vmatpush2.msra.mxu0 0.0
        %2007 = vmatprep.subr.mxu0 0.0
        %2008 = vmatpush2.msra.mxu0 0.0
        %2009 = vmatprep.subr.mxu0 0.0
        %2010 = vmatpush2.msra.mxu0 0.0
        %2011 = vmatprep.subr.mxu0 0.0
        %2012 = vmatpush2.msra.mxu0 0.0
        %2013 = vmatprep.subr.mxu0 0.0
        %2014 = vmatpush2.msra.mxu0 0.0
        %2015 = vmatprep.subr.mxu0 0.0
        %2016 = vmatpush2.msra.mxu0 0.0
        %2017 = vmatprep.subr.mxu0 0.0
        %2018 = vmatpush2.msra.mxu0 0.0
        %2019 = vmatprep.subr.mxu0 0.0
        %2020 = vmatpush2.msra.mxu0 0.0
        %2021 = vmatprep.subr.mxu0 0.0
        %2022 = vmatpush2.msra.mxu0 0.0
        %2023 = vmatprep.subr.mxu0 0.0
        %2024 = vmatpush2.msra.mxu0 0.0
        %2025 = vmatprep.subr.mxu0 0.0
        %2026 = vmatpush2.msra.mxu0 0.0
        %2027 = vmatprep.subr.mxu0 0.0
        %2028 = vmatpush2.msra.mxu0 0.0
        %2029 = vmatprep.subr.mxu0 0.0
        %2030 = vmatpush2.msra.mxu0 0.0
        %2031 = vmatprep.mubr.f32.mxu0 0.0
        %2032 = vmatmul.mubr.f32.gmra.mxu0 %v1887
        %v2033 = vpop.f32.mrf.mxu0
        %v2034 = vadd.f32 0.0, %v2033
        %v2035 = vpop.f32.mrf.mxu0
        %2036 = vmatprep.mubr.f32.mxu0 0.0
        %2037 = vmatmul.mubr.f32.gmra.mxu0 %v1888
        %v2038 = vpop.f32.mrf.mxu0
        %v2039 = vadd.f32 0.0, %v2038
        %v2040 = vpop.f32.mrf.mxu0
        %2041 = vmatprep.mubr.f32.mxu0 0.0
        %2042 = vmatmul.mubr.f32.gmra.mxu0 %v1889
        %v2043 = vpop.f32.mrf.mxu0
        %v2044 = vadd.f32 0.0, %v2043
        %v2045 = vpop.f32.mrf.mxu0
        %2046 = vmatprep.mubr.f32.mxu0 0.0
        %2047 = vmatmul.mubr.f32.gmra.mxu0 %v1890
        %v2048 = vpop.f32.mrf.mxu0
        %v2049 = vadd.f32 0.0, %v2048
        %v2050 = vpop.f32.mrf.mxu0
        %2051 = vmatprep.mubr.f32.mxu0 0.0
        %2052 = vmatmul.mubr.f32.gmra.mxu0 %v1891
        %v2053 = vpop.f32.mrf.mxu0
        %v2054 = vadd.f32 0.0, %v2053
        %v2055 = vpop.f32.mrf.mxu0
        %2056 = vmatprep.mubr.f32.mxu0 0.0
        %2057 = vmatmul.mubr.f32.gmra.mxu0 %v1892
        %v2058 = vpop.f32.mrf.mxu0
        %v2059 = vadd.f32 0.0, %v2058
        %v2060 = vpop.f32.mrf.mxu0
        %2061 = vmatprep.mubr.f32.mxu0 0.0
        %2062 = vmatmul.mubr.f32.gmra.mxu0 %v1893
        %v2063 = vpop.f32.mrf.mxu0
        %v2064 = vadd.f32 0.0, %v2063
        %v2065 = vpop.f32.mrf.mxu0
        %2066 = vmatprep.mubr.f32.mxu0 0.0
        %2067 = vmatmul.mubr.f32.gmra.mxu0 %v1894
        %v2068 = vpop.f32.mrf.mxu0
        %v2069 = vadd.f32 0.0, %v2068
        %v2070 = vpop.f32.mrf.mxu0
        %2071 = vmatprep.mubr.f32.mxu0 0.0
        %2072 = vmatmul.mubr.f32.gmra.mxu0 %v1895
        %v2073 = vpop.f32.mrf.mxu0
        %v2074 = vadd.f32 0.0, %v2073
        %v2075 = vpop.f32.mrf.mxu0
        %2076 = vmatprep.mubr.f32.mxu0 0.0
        %2077 = vmatmul.mubr.f32.gmra.mxu0 %v1896
        %v2078 = vpop.f32.mrf.mxu0
        %v2079 = vadd.f32 0.0, %v2078
        %v2080 = vpop.f32.mrf.mxu0
        %2081 = vmatprep.mubr.f32.mxu0 0.0
        %2082 = vmatmul.mubr.f32.gmra.mxu0 %v1897
        %v2083 = vpop.f32.mrf.mxu0
        %v2084 = vadd.f32 0.0, %v2083
        %v2085 = vpop.f32.mrf.mxu0
        %2086 = vmatprep.mubr.f32.mxu0 0.0
        %2087 = vmatmul.mubr.f32.gmra.mxu0 %v1898
        %v2088 = vpop.f32.mrf.mxu0
        %v2089 = vadd.f32 0.0, %v2088
        %v2090 = vpop.f32.mrf.mxu0
        %2091 = vmatprep.mubr.f32.mxu0 0.0
        %2092 = vmatmul.mubr.f32.gmra.mxu0 %v1899
        %v2093 = vpop.f32.mrf.mxu0
        %v2094 = vadd.f32 0.0, %v2093
        %v2095 = vpop.f32.mrf.mxu0
        %2096 = vmatprep.mubr.f32.mxu0 0.0
        %2097 = vmatmul.mubr.f32.gmra.mxu0 %v1900
        %v2098 = vpop.f32.mrf.mxu0
        %v2099 = vadd.f32 0.0, %v2098
        %v2100 = vpop.f32.mrf.mxu0
        %2101 = vmatprep.mubr.f32.mxu0 0.0
        %2102 = vmatmul.mubr.f32.gmra.mxu0 %v1901
        %v2103 = vpop.f32.mrf.mxu0
        %v2104 = vadd.f32 0.0, %v2103
        %v2105 = vpop.f32.mrf.mxu0
        %2106 = vmatprep.mubr.f32.mxu0 0.0
        %2107 = vmatmul.mubr.f32.gmra.mxu0 %v1902
        %v2108 = vpop.f32.mrf.mxu0
        %v2109 = vadd.f32 0.0, %v2108
        %v2110 = vpop.f32.mrf.mxu0
        %2111 = vmatprep.mubr.f32.mxu0 0.0
        %2112 = vmatmul.mubr.f32.gmra.mxu0 %v1903
        %v2113 = vpop.f32.mrf.mxu0
        %v2114 = vadd.f32 0.0, %v2113
        %v2115 = vpop.f32.mrf.mxu0
        %2116 = vmatprep.mubr.f32.mxu0 0.0
        %2117 = vmatmul.mubr.f32.gmra.mxu0 %v1904
        %v2118 = vpop.f32.mrf.mxu0
        %v2119 = vadd.f32 0.0, %v2118
        %v2120 = vpop.f32.mrf.mxu0
        %2121 = vmatprep.mubr.f32.mxu0 0.0
        %2122 = vmatmul.mubr.f32.gmra.mxu0 %v1905
        %v2123 = vpop.f32.mrf.mxu0
        %v2124 = vadd.f32 0.0, %v2123
        %v2125 = vpop.f32.mrf.mxu0
        %2126 = vmatprep.mubr.f32.mxu0 0.0
        %2127 = vmatmul.mubr.f32.gmra.mxu0 %v1906
        %v2128 = vpop.f32.mrf.mxu0
        %v2129 = vadd.f32 0.0, %v2128
        %v2130 = vpop.f32.mrf.mxu0
        %2131 = vmatprep.mubr.f32.mxu0 0.0
        %2132 = vmatmul.mubr.f32.gmra.mxu0 %v1907
        %v2133 = vpop.f32.mrf.mxu0
        %v2134 = vadd.f32 0.0, %v2133
        %v2135 = vpop.f32.mrf.mxu0
        %2136 = vmatprep.mubr.f32.mxu0 0.0
        %2137 = vmatmul.mubr.f32.gmra.mxu0 %v1908
        %v2138 = vpop.f32.mrf.mxu0
        %v2139 = vadd.f32 0.0, %v2138
        %v2140 = vpop.f32.mrf.mxu0
        %2141 = vmatprep.mubr.f32.mxu0 0.0
        %2142 = vmatmul.mubr.f32.gmra.mxu0 %v1909
        %v2143 = vpop.f32.mrf.mxu0
        %v2144 = vadd.f32 0.0, %v2143
        %v2145 = vpop.f32.mrf.mxu0
        %2146 = vmatprep.mubr.f32.mxu0 0.0
        %2147 = vmatmul.mubr.f32.gmra.mxu0 %v1910
        %v2148 = vpop.f32.mrf.mxu0
        %v2149 = vadd.f32 0.0, %v2148
        %v2150 = vpop.f32.mrf.mxu0
        %2151 = vmatprep.mubr.f32.mxu0 0.0
        %2152 = vmatmul.mubr.f32.gmra.mxu0 %v1911
        %v2153 = vpop.f32.mrf.mxu0
        %v2154 = vadd.f32 0.0, %v2153
        %v2155 = vpop.f32.mrf.mxu0
        %2156 = vmatprep.mubr.f32.mxu0 0.0
        %2157 = vmatmul.mubr.f32.gmra.mxu0 %v1912
        %v2158 = vpop.f32.mrf.mxu0
        %v2159 = vadd.f32 0.0, %v2158
        %v2160 = vpop.f32.mrf.mxu0
        %2161 = vmatprep.mubr.f32.mxu0 0.0
        %2162 = vmatmul.mubr.f32.gmra.mxu0 %v1913
        %v2163 = vpop.f32.mrf.mxu0
        %v2164 = vadd.f32 0.0, %v2163
        %v2165 = vpop.f32.mrf.mxu0
        %2166 = vmatprep.mubr.f32.mxu0 0.0
        %2167 = vmatmul.mubr.f32.gmra.mxu0 %v1914
        %v2168 = vpop.f32.mrf.mxu0
        %v2169 = vadd.f32 0.0, %v2168
        %v2170 = vpop.f32.mrf.mxu0
        %2171 = vmatprep.mubr.f32.mxu0 0.0
        %2172 = vmatmul.mubr.f32.gmra.mxu0 %v1915
        %v2173 = vpop.f32.mrf.mxu0
        %v2174 = vadd.f32 0.0, %v2173
        %v2175 = vpop.f32.mrf.mxu0
        %2176 = vmatprep.mubr.f32.mxu0 0.0
        %2177 = vmatmul.mubr.f32.gmra.mxu0 %v1916
        %v2178 = vpop.f32.mrf.mxu0
        %v2179 = vadd.f32 0.0, %v2178
        %v2180 = vpop.f32.mrf.mxu0
        %2181 = vmatprep.mubr.f32.mxu0 0.0
        %2182 = vmatmul.mubr.f32.gmra.mxu0 %v1917
        %v2183 = vpop.f32.mrf.mxu0
        %v2184 = vadd.f32 0.0, %v2183
        %v2185 = vpop.f32.mrf.mxu0
        %2186 = vmatprep.mubr.f32.mxu0 0.0
        %2187 = vmatmul.mubr.f32.gmra.mxu0 %v1918
        %v2188 = vpop.f32.mrf.mxu0
        %v2189 = vadd.f32 0.0, %v2188
        %v2190 = vpop.f32.mrf.mxu0
        %2191 = vmatprep.mubr.f32.mxu0 0.0
        %2192 = vmatmul.mubr.f32.gmra.mxu0 %v1919
        %v2193 = vpop.f32.mrf.mxu0
        %v2194 = vadd.f32 0.0, %v2193
        %v2195 = vpop.f32.mrf.mxu0
        %2196 = vmatprep.mubr.f32.mxu0 0.0
        %2197 = vmatmul.mubr.f32.gmra.mxu0 %v1920
        %v2198 = vpop.f32.mrf.mxu0
        %v2199 = vadd.f32 0.0, %v2198
        %v2200 = vpop.f32.mrf.mxu0
        %2201 = vmatprep.mubr.f32.mxu0 0.0
        %2202 = vmatmul.mubr.f32.gmra.mxu0 %v1921
        %v2203 = vpop.f32.mrf.mxu0
        %v2204 = vadd.f32 0.0, %v2203
        %v2205 = vpop.f32.mrf.mxu0
        %2206 = vmatprep.mubr.f32.mxu0 0.0
        %2207 = vmatmul.mubr.f32.gmra.mxu0 %v1922
        %v2208 = vpop.f32.mrf.mxu0
        %v2209 = vadd.f32 0.0, %v2208
        %v2210 = vpop.f32.mrf.mxu0
        %2211 = vmatprep.mubr.f32.mxu0 0.0
        %2212 = vmatmul.mubr.f32.gmra.mxu0 %v1923
        %v2213 = vpop.f32.mrf.mxu0
        %v2214 = vadd.f32 0.0, %v2213
        %v2215 = vpop.f32.mrf.mxu0
        %2216 = vmatprep.mubr.f32.mxu0 0.0
        %2217 = vmatmul.mubr.f32.gmra.mxu0 %v1924
        %v2218 = vpop.f32.mrf.mxu0
        %v2219 = vadd.f32 0.0, %v2218
        %v2220 = vpop.f32.mrf.mxu0
        %2221 = vmatprep.mubr.f32.mxu0 0.0
        %2222 = vmatmul.mubr.f32.gmra.mxu0 %v1925
        %v2223 = vpop.f32.mrf.mxu0
        %v2224 = vadd.f32 0.0, %v2223
        %v2225 = vpop.f32.mrf.mxu0
        %2226 = vmatprep.mubr.f32.mxu0 0.0
        %2227 = vmatmul.mubr.f32.gmra.mxu0 %v1926
        %v2228 = vpop.f32.mrf.mxu0
        %v2229 = vadd.f32 0.0, %v2228
        %v2230 = vpop.f32.mrf.mxu0
        %2231 = vmatprep.mubr.f32.mxu0 0.0
        %2232 = vmatmul.mubr.f32.gmra.mxu0 %v1927
        %v2233 = vpop.f32.mrf.mxu0
        %v2234 = vadd.f32 0.0, %v2233
        %v2235 = vpop.f32.mrf.mxu0
        %2236 = vmatprep.mubr.f32.mxu0 0.0
        %2237 = vmatmul.mubr.f32.gmra.mxu0 %v1928
        %v2238 = vpop.f32.mrf.mxu0
        %v2239 = vadd.f32 0.0, %v2238
        %v2240 = vpop.f32.mrf.mxu0
        %2241 = vmatprep.mubr.f32.mxu0 0.0
        %2242 = vmatmul.mubr.f32.gmra.mxu0 %v1929
        %v2243 = vpop.f32.mrf.mxu0
        %v2244 = vadd.f32 0.0, %v2243
        %v2245 = vpop.f32.mrf.mxu0
        %2246 = vmatprep.mubr.f32.mxu0 0.0
        %2247 = vmatmul.mubr.f32.gmra.mxu0 %v1930
        %v2248 = vpop.f32.mrf.mxu0
        %v2249 = vadd.f32 0.0, %v2248
        %v2250 = vpop.f32.mrf.mxu0
        %2251 = vmatprep.mubr.f32.mxu0 0.0
        %2252 = vmatmul.mubr.f32.gmra.mxu0 %v1931
        %v2253 = vpop.f32.mrf.mxu0
        %v2254 = vadd.f32 0.0, %v2253
        %v2255 = vpop.f32.mrf.mxu0
        %2256 = vmatprep.mubr.f32.mxu0 0.0
        %2257 = vmatmul.mubr.f32.gmra.mxu0 %v1932
        %v2258 = vpop.f32.mrf.mxu0
        %v2259 = vadd.f32 0.0, %v2258
        %v2260 = vpop.f32.mrf.mxu0
        %2261 = vmatprep.mubr.f32.mxu0 0.0
        %2262 = vmatmul.mubr.f32.gmra.mxu0 %v1933
        %v2263 = vpop.f32.mrf.mxu0
        %v2264 = vadd.f32 0.0, %v2263
        %v2265 = vpop.f32.mrf.mxu0
        %2266 = vmatprep.mubr.f32.mxu0 0.0
        %2267 = vmatmul.mubr.f32.gmra.mxu0 %v1934
        %v2268 = vpop.f32.mrf.mxu0
        %v2269 = vadd.f32 0.0, %v2268
        %v2270 = vpop.f32.mrf.mxu0
        %2271 = vmatprep.mubr.f32.mxu0 0.0
        %2272 = vmatmul.mubr.f32.gmra.mxu0 %v1935
        %v2273 = vpop.f32.mrf.mxu0
        %v2274 = vadd.f32 0.0, %v2273
        %v2275 = vpop.f32.mrf.mxu0
        %2276 = vmatprep.mubr.f32.mxu0 0.0
        %2277 = vmatmul.mubr.f32.gmra.mxu0 %v1936
        %v2278 = vpop.f32.mrf.mxu0
        %v2279 = vadd.f32 0.0, %v2278
        %v2280 = vpop.f32.mrf.mxu0
        %2281 = vmatprep.mubr.f32.mxu0 0.0
        %2282 = vmatmul.mubr.f32.gmra.mxu0 %v1937
        %v2283 = vpop.f32.mrf.mxu0
        %v2284 = vadd.f32 0.0, %v2283
        %v2285 = vpop.f32.mrf.mxu0
        %2286 = vmatprep.mubr.f32.mxu0 0.0
        %2287 = vmatmul.mubr.f32.gmra.mxu0 %v1938
        %v2288 = vpop.f32.mrf.mxu0
        %v2289 = vadd.f32 0.0, %v2288
        %v2290 = vpop.f32.mrf.mxu0
        %2291 = vmatprep.mubr.f32.mxu0 0.0
        %2292 = vmatmul.mubr.f32.gmra.mxu0 %v1939
        %v2293 = vpop.f32.mrf.mxu0
        %v2294 = vadd.f32 0.0, %v2293
        %v2295 = vpop.f32.mrf.mxu0
        %2296 = vmatprep.mubr.f32.mxu0 0.0
        %2297 = vmatmul.mubr.f32.gmra.mxu0 %v1940
        %v2298 = vpop.f32.mrf.mxu0
        %v2299 = vadd.f32 0.0, %v2298
        %v2300 = vpop.f32.mrf.mxu0
        %2301 = vmatprep.mubr.f32.mxu0 0.0
        %2302 = vmatmul.mubr.f32.gmra.mxu0 %v1941
        %v2303 = vpop.f32.mrf.mxu0
        %v2304 = vadd.f32 0.0, %v2303
        %v2305 = vpop.f32.mrf.mxu0
        %2306 = vmatprep.mubr.f32.mxu0 0.0
        %2307 = vmatmul.mubr.f32.gmra.mxu0 %v1942
        %v2308 = vpop.f32.mrf.mxu0
        %v2309 = vadd.f32 0.0, %v2308
        %v2310 = vpop.f32.mrf.mxu0
        %2311 = vmatprep.mubr.f32.mxu0 0.0
        %2312 = vmatmul.mubr.f32.gmra.mxu0 %v1943
        %v2313 = vpop.f32.mrf.mxu0
        %v2314 = vadd.f32 0.0, %v2313
        %v2315 = vpop.f32.mrf.mxu0
        %2316 = vmatprep.mubr.f32.mxu0 0.0
        %2317 = vmatmul.mubr.f32.gmra.mxu0 %v1944
        %v2318 = vpop.f32.mrf.mxu0
        %v2319 = vadd.f32 0.0, %v2318
        %v2320 = vpop.f32.mrf.mxu0
        %2321 = vmatprep.mubr.f32.mxu0 0.0
        %2322 = vmatmul.mubr.f32.gmra.mxu0 %v1945
        %v2323 = vpop.f32.mrf.mxu0
        %v2324 = vadd.f32 0.0, %v2323
        %v2325 = vpop.f32.mrf.mxu0
        %2326 = vmatprep.mubr.f32.mxu0 0.0
        %2327 = vmatmul.mubr.f32.gmra.mxu0 %v1946
        %v2328 = vpop.f32.mrf.mxu0
        %v2329 = vadd.f32 0.0, %v2328
        %v2330 = vpop.f32.mrf.mxu0
        %2331 = vmatprep.mubr.f32.mxu0 0.0
        %2332 = vmatmul.mubr.f32.gmra.mxu0 %v1947
        %v2333 = vpop.f32.mrf.mxu0
        %v2334 = vadd.f32 0.0, %v2333
        %v2335 = vpop.f32.mrf.mxu0
        %2336 = vmatprep.mubr.f32.mxu0 0.0
        %2337 = vmatmul.mubr.f32.gmra.mxu0 %v1948
        %v2338 = vpop.f32.mrf.mxu0
        %v2339 = vadd.f32 0.0, %v2338
        %v2340 = vpop.f32.mrf.mxu0
        %2341 = vmatprep.mubr.f32.mxu0 0.0
        %2342 = vmatmul.mubr.f32.gmra.mxu0 %v1949
        %v2343 = vpop.f32.mrf.mxu0
        %v2344 = vadd.f32 0.0, %v2343
        %v2345 = vpop.f32.mrf.mxu0
        %2346 = vmatprep.mubr.f32.mxu0 0.0
        %2347 = vmatmul.mubr.f32.gmra.mxu0 %v1950
        %v2348 = vpop.f32.mrf.mxu0
        %v2349 = vadd.f32 0.0, %v2348
        %v2350 = vpop.f32.mrf.mxu0
        %2351 = vdwg.mxu0
        %v2352 = vadd.f32 %v2034, %v1879
        %v2353 = vadd.f32 %v2039, %v1880
        %v2354 = vadd.f32 %v2044, %v1881
        %v2355 = vadd.f32 %v2049, %v1882
        %v2356 = vadd.f32 %v2054, %v1883
        %v2357 = vadd.f32 %v2059, %v1884
        %v2358 = vadd.f32 %v2064, %v1885
        %v2359 = vadd.f32 %v2069, %v1886
        %v2360 = vmax.f32 %v2352, 0.0
        %v2361 = vmax.f32 %v2353, 0.0
        %v2362 = vmax.f32 %v2354, 0.0
        %v2363 = vmax.f32 %v2355, 0.0
        %v2364 = vmax.f32 %v2356, 0.0
        %v2365 = vmax.f32 %v2357, 0.0
        %v2366 = vmax.f32 %v2358, 0.0
        %v2367 = vmax.f32 %v2359, 0.0
        %2368 = vst [vmem:[#allocation3] sm:$0xff] %v2360
        %2369 = vst [vmem:[#allocation3 + $0x8] sm:$0xff] %v2361
        %2370 = vst [vmem:[#allocation3 + $0x10] sm:$0xff] %v2362
        %2371 = vst [vmem:[#allocation3 + $0x18] sm:$0xff] %v2363
        %2372 = vst [vmem:[#allocation3 + $0x20] sm:$0xff] %v2364
        %2373 = vst [vmem:[#allocation3 + $0x28] sm:$0xff] %v2365
        %2374 = vst [vmem:[#allocation3 + $0x30] sm:$0xff] %v2366
        %2375 = vst [vmem:[#allocation3 + $0x38] sm:$0xff] %v2367
        %v2376 = vadd.f32 %v2074, %v1879
        %v2377 = vadd.f32 %v2079, %v1880
        %v2378 = vadd.f32 %v2084, %v1881
        %v2379 = vadd.f32 %v2089, %v1882
        %v2380 = vadd.f32 %v2094, %v1883
        %v2381 = vadd.f32 %v2099, %v1884
        %v2382 = vadd.f32 %v2104, %v1885
        %v2383 = vadd.f32 %v2109, %v1886
        %v2384 = vmax.f32 %v2376, 0.0
        %v2385 = vmax.f32 %v2377, 0.0
        %v2386 = vmax.f32 %v2378, 0.0
        %v2387 = vmax.f32 %v2379, 0.0
        %v2388 = vmax.f32 %v2380, 0.0
        %v2389 = vmax.f32 %v2381, 0.0
        %v2390 = vmax.f32 %v2382, 0.0
        %v2391 = vmax.f32 %v2383, 0.0
        %2392 = vst [vmem:[#allocation3 + $0x40] sm:$0xff] %v2384
        %2393 = vst [vmem:[#allocation3 + $0x48] sm:$0xff] %v2385
        %2394 = vst [vmem:[#allocation3 + $0x50] sm:$0xff] %v2386
        %2395 = vst [vmem:[#allocation3 + $0x58] sm:$0xff] %v2387
        %2396 = vst [vmem:[#allocation3 + $0x60] sm:$0xff] %v2388
        %2397 = vst [vmem:[#allocation3 + $0x68] sm:$0xff] %v2389
        %2398 = vst [vmem:[#allocation3 + $0x70] sm:$0xff] %v2390
        %2399 = vst [vmem:[#allocation3 + $0x78] sm:$0xff] %v2391
        %v2400 = vadd.f32 %v2114, %v1879
        %v2401 = vadd.f32 %v2119, %v1880
        %v2402 = vadd.f32 %v2124, %v1881
        %v2403 = vadd.f32 %v2129, %v1882
        %v2404 = vadd.f32 %v2134, %v1883
        %v2405 = vadd.f32 %v2139, %v1884
        %v2406 = vadd.f32 %v2144, %v1885
        %v2407 = vadd.f32 %v2149, %v1886
        %v2408 = vmax.f32 %v2400, 0.0
        %v2409 = vmax.f32 %v2401, 0.0
        %v2410 = vmax.f32 %v2402, 0.0
        %v2411 = vmax.f32 %v2403, 0.0
        %v2412 = vmax.f32 %v2404, 0.0
        %v2413 = vmax.f32 %v2405, 0.0
        %v2414 = vmax.f32 %v2406, 0.0
        %v2415 = vmax.f32 %v2407, 0.0
        %2416 = vst [vmem:[#allocation3 + $0x80] sm:$0xff] %v2408
        %2417 = vst [vmem:[#allocation3 + $0x88] sm:$0xff] %v2409
        %2418 = vst [vmem:[#allocation3 + $0x90] sm:$0xff] %v2410
        %2419 = vst [vmem:[#allocation3 + $0x98] sm:$0xff] %v2411
        %2420 = vst [vmem:[#allocation3 + $0xa0] sm:$0xff] %v2412
        %2421 = vst [vmem:[#allocation3 + $0xa8] sm:$0xff] %v2413
        %2422 = vst [vmem:[#allocation3 + $0xb0] sm:$0xff] %v2414
        %2423 = vst [vmem:[#allocation3 + $0xb8] sm:$0xff] %v2415
        %v2424 = vadd.f32 %v2154, %v1879
        %v2425 = vadd.f32 %v2159, %v1880
        %v2426 = vadd.f32 %v2164, %v1881
        %v2427 = vadd.f32 %v2169, %v1882
        %v2428 = vadd.f32 %v2174, %v1883
        %v2429 = vadd.f32 %v2179, %v1884
        %v2430 = vadd.f32 %v2184, %v1885
        %v2431 = vadd.f32 %v2189, %v1886
        %v2432 = vmax.f32 %v2424, 0.0
        %v2433 = vmax.f32 %v2425, 0.0
        %v2434 = vmax.f32 %v2426, 0.0
        %v2435 = vmax.f32 %v2427, 0.0
        %v2436 = vmax.f32 %v2428, 0.0
        %v2437 = vmax.f32 %v2429, 0.0
        %v2438 = vmax.f32 %v2430, 0.0
        %v2439 = vmax.f32 %v2431, 0.0
        %2440 = vst [vmem:[#allocation3 + $0xc0] sm:$0xff] %v2432
        %2441 = vst [vmem:[#allocation3 + $0xc8] sm:$0xff] %v2433
        %2442 = vst [vmem:[#allocation3 + $0xd0] sm:$0xff] %v2434
        %2443 = vst [vmem:[#allocation3 + $0xd8] sm:$0xff] %v2435
        %2444 = vst [vmem:[#allocation3 + $0xe0] sm:$0xff] %v2436
        %2445 = vst [vmem:[#allocation3 + $0xe8] sm:$0xff] %v2437
        %2446 = vst [vmem:[#allocation3 + $0xf0] sm:$0xff] %v2438
        %2447 = vst [vmem:[#allocation3 + $0xf8] sm:$0xff] %v2439
        %v2448 = vadd.f32 %v2194, %v1879
        %v2449 = vadd.f32 %v2199, %v1880
        %v2450 = vadd.f32 %v2204, %v1881
        %v2451 = vadd.f32 %v2209, %v1882
        %v2452 = vadd.f32 %v2214, %v1883
        %v2453 = vadd.f32 %v2219, %v1884
        %v2454 = vadd.f32 %v2224, %v1885
        %v2455 = vadd.f32 %v2229, %v1886
        %v2456 = vmax.f32 %v2448, 0.0
        %v2457 = vmax.f32 %v2449, 0.0
        %v2458 = vmax.f32 %v2450, 0.0
        %v2459 = vmax.f32 %v2451, 0.0
        %v2460 = vmax.f32 %v2452, 0.0
        %v2461 = vmax.f32 %v2453, 0.0
        %v2462 = vmax.f32 %v2454, 0.0
        %v2463 = vmax.f32 %v2455, 0.0
        %2464 = vst [vmem:[#allocation3 + $0x100] sm:$0xff] %v2456
        %2465 = vst [vmem:[#allocation3 + $0x108] sm:$0xff] %v2457
        %2466 = vst [vmem:[#allocation3 + $0x110] sm:$0xff] %v2458
        %2467 = vst [vmem:[#allocation3 + $0x118] sm:$0xff] %v2459
        %2468 = vst [vmem:[#allocation3 + $0x120] sm:$0xff] %v2460
        %2469 = vst [vmem:[#allocation3 + $0x128] sm:$0xff] %v2461
        %2470 = vst [vmem:[#allocation3 + $0x130] sm:$0xff] %v2462
        %2471 = vst [vmem:[#allocation3 + $0x138] sm:$0xff] %v2463
        %v2472 = vadd.f32 %v2234, %v1879
        %v2473 = vadd.f32 %v2239, %v1880
        %v2474 = vadd.f32 %v2244, %v1881
        %v2475 = vadd.f32 %v2249, %v1882
        %v2476 = vadd.f32 %v2254, %v1883
        %v2477 = vadd.f32 %v2259, %v1884
        %v2478 = vadd.f32 %v2264, %v1885
        %v2479 = vadd.f32 %v2269, %v1886
        %v2480 = vmax.f32 %v2472, 0.0
        %v2481 = vmax.f32 %v2473, 0.0
        %v2482 = vmax.f32 %v2474, 0.0
        %v2483 = vmax.f32 %v2475, 0.0
        %v2484 = vmax.f32 %v2476, 0.0
        %v2485 = vmax.f32 %v2477, 0.0
        %v2486 = vmax.f32 %v2478, 0.0
        %v2487 = vmax.f32 %v2479, 0.0
        %2488 = vst [vmem:[#allocation3 + $0x140] sm:$0xff] %v2480
        %2489 = vst [vmem:[#allocation3 + $0x148] sm:$0xff] %v2481
        %2490 = vst [vmem:[#allocation3 + $0x150] sm:$0xff] %v2482
        %2491 = vst [vmem:[#allocation3 + $0x158] sm:$0xff] %v2483
        %2492 = vst [vmem:[#allocation3 + $0x160] sm:$0xff] %v2484
        %2493 = vst [vmem:[#allocation3 + $0x168] sm:$0xff] %v2485
        %2494 = vst [vmem:[#allocation3 + $0x170] sm:$0xff] %v2486
        %2495 = vst [vmem:[#allocation3 + $0x178] sm:$0xff] %v2487
        %v2496 = vadd.f32 %v2274, %v1879
        %v2497 = vadd.f32 %v2279, %v1880
        %v2498 = vadd.f32 %v2284, %v1881
        %v2499 = vadd.f32 %v2289, %v1882
        %v2500 = vadd.f32 %v2294, %v1883
        %v2501 = vadd.f32 %v2299, %v1884
        %v2502 = vadd.f32 %v2304, %v1885
        %v2503 = vadd.f32 %v2309, %v1886
        %v2504 = vmax.f32 %v2496, 0.0
        %v2505 = vmax.f32 %v2497, 0.0
        %v2506 = vmax.f32 %v2498, 0.0
        %v2507 = vmax.f32 %v2499, 0.0
        %v2508 = vmax.f32 %v2500, 0.0
        %v2509 = vmax.f32 %v2501, 0.0
        %v2510 = vmax.f32 %v2502, 0.0
        %v2511 = vmax.f32 %v2503, 0.0
        %2512 = vst [vmem:[#allocation3 + $0x180] sm:$0xff] %v2504
        %2513 = vst [vmem:[#allocation3 + $0x188] sm:$0xff] %v2505
        %2514 = vst [vmem:[#allocation3 + $0x190] sm:$0xff] %v2506
        %2515 = vst [vmem:[#allocation3 + $0x198] sm:$0xff] %v2507
        %2516 = vst [vmem:[#allocation3 + $0x1a0] sm:$0xff] %v2508
        %2517 = vst [vmem:[#allocation3 + $0x1a8] sm:$0xff] %v2509
        %2518 = vst [vmem:[#allocation3 + $0x1b0] sm:$0xff] %v2510
        %2519 = vst [vmem:[#allocation3 + $0x1b8] sm:$0xff] %v2511
        %v2520 = vadd.f32 %v2314, %v1879
        %v2521 = vadd.f32 %v2319, %v1880
        %v2522 = vadd.f32 %v2324, %v1881
        %v2523 = vadd.f32 %v2329, %v1882
        %v2524 = vadd.f32 %v2334, %v1883
        %v2525 = vadd.f32 %v2339, %v1884
        %v2526 = vadd.f32 %v2344, %v1885
        %v2527 = vadd.f32 %v2349, %v1886
        %v2528 = vmax.f32 %v2520, 0.0
        %v2529 = vmax.f32 %v2521, 0.0
        %v2530 = vmax.f32 %v2522, 0.0
        %v2531 = vmax.f32 %v2523, 0.0
        %v2532 = vmax.f32 %v2524, 0.0
        %v2533 = vmax.f32 %v2525, 0.0
        %v2534 = vmax.f32 %v2526, 0.0
        %v2535 = vmax.f32 %v2527, 0.0
        %2536 = vst [vmem:[#allocation3 + $0x1c0] sm:$0xff] %v2528
        %2537 = vst [vmem:[#allocation3 + $0x1c8] sm:$0xff] %v2529
        %2538 = vst [vmem:[#allocation3 + $0x1d0] sm:$0xff] %v2530
        %2539 = vst [vmem:[#allocation3 + $0x1d8] sm:$0xff] %v2531
        %2540 = vst [vmem:[#allocation3 + $0x1e0] sm:$0xff] %v2532
        %2541 = vst [vmem:[#allocation3 + $0x1e8] sm:$0xff] %v2533
        %2542 = vst [vmem:[#allocation3 + $0x1f0] sm:$0xff] %v2534
        %2543 = vst [vmem:[#allocation3 + $0x1f8] sm:$0xff] %v2535
        %v2544 = vld [vmem:[#allocation3] sm:$0xff]
        %v2545 = vld [vmem:[#allocation3 + $0x8] sm:$0xff]
        %v2546 = vld [vmem:[#allocation3 + $0x10] sm:$0xff]
        %v2547 = vld [vmem:[#allocation3 + $0x18] sm:$0xff]
        %v2548 = vld [vmem:[#allocation3 + $0x20] sm:$0xff]
        %v2549 = vld [vmem:[#allocation3 + $0x28] sm:$0xff]
        %v2550 = vld [vmem:[#allocation3 + $0x30] sm:$0xff]
        %v2551 = vld [vmem:[#allocation3 + $0x38] sm:$0xff]
        %v2552 = vld [vmem:[#allocation3 + $0x40] sm:$0xff]
        %v2553 = vld [vmem:[#allocation3 + $0x48] sm:$0xff]
        %v2554 = vld [vmem:[#allocation3 + $0x50] sm:$0xff]
        %v2555 = vld [vmem:[#allocation3 + $0x58] sm:$0xff]
        %v2556 = vld [vmem:[#allocation3 + $0x60] sm:$0xff]
        %v2557 = vld [vmem:[#allocation3 + $0x68] sm:$0xff]
        %v2558 = vld [vmem:[#allocation3 + $0x70] sm:$0xff]
        %v2559 = vld [vmem:[#allocation3 + $0x78] sm:$0xff]
        %v2560 = vld [vmem:[#allocation3 + $0x80] sm:$0xff]
        %v2561 = vld [vmem:[#allocation3 + $0x88] sm:$0xff]
        %v2562 = vld [vmem:[#allocation3 + $0x90] sm:$0xff]
        %v2563 = vld [vmem:[#allocation3 + $0x98] sm:$0xff]
        %v2564 = vld [vmem:[#allocation3 + $0xa0] sm:$0xff]
        %v2565 = vld [vmem:[#allocation3 + $0xa8] sm:$0xff]
        %v2566 = vld [vmem:[#allocation3 + $0xb0] sm:$0xff]
        %v2567 = vld [vmem:[#allocation3 + $0xb8] sm:$0xff]
        %v2568 = vld [vmem:[#allocation3 + $0xc0] sm:$0xff]
        %v2569 = vld [vmem:[#allocation3 + $0xc8] sm:$0xff]
        %v2570 = vld [vmem:[#allocation3 + $0xd0] sm:$0xff]
        %v2571 = vld [vmem:[#allocation3 + $0xd8] sm:$0xff]
        %v2572 = vld [vmem:[#allocation3 + $0xe0] sm:$0xff]
        %v2573 = vld [vmem:[#allocation3 + $0xe8] sm:$0xff]
        %v2574 = vld [vmem:[#allocation3 + $0xf0] sm:$0xff]
        %v2575 = vld [vmem:[#allocation3 + $0xf8] sm:$0xff]
        %v2576 = vld [vmem:[#allocation3 + $0x100] sm:$0xff]
        %v2577 = vld [vmem:[#allocation3 + $0x108] sm:$0xff]
        %v2578 = vld [vmem:[#allocation3 + $0x110] sm:$0xff]
        %v2579 = vld [vmem:[#allocation3 + $0x118] sm:$0xff]
        %v2580 = vld [vmem:[#allocation3 + $0x120] sm:$0xff]
        %v2581 = vld [vmem:[#allocation3 + $0x128] sm:$0xff]
        %v2582 = vld [vmem:[#allocation3 + $0x130] sm:$0xff]
        %v2583 = vld [vmem:[#allocation3 + $0x138] sm:$0xff]
        %v2584 = vld [vmem:[#allocation3 + $0x140] sm:$0xff]
        %v2585 = vld [vmem:[#allocation3 + $0x148] sm:$0xff]
        %v2586 = vld [vmem:[#allocation3 + $0x150] sm:$0xff]
        %v2587 = vld [vmem:[#allocation3 + $0x158] sm:$0xff]
        %v2588 = vld [vmem:[#allocation3 + $0x160] sm:$0xff]
        %v2589 = vld [vmem:[#allocation3 + $0x168] sm:$0xff]
        %v2590 = vld [vmem:[#allocation3 + $0x170] sm:$0xff]
        %v2591 = vld [vmem:[#allocation3 + $0x178] sm:$0xff]
        %v2592 = vld [vmem:[#allocation3 + $0x180] sm:$0xff]
        %v2593 = vld [vmem:[#allocation3 + $0x188] sm:$0xff]
        %v2594 = vld [vmem:[#allocation3 + $0x190] sm:$0xff]
        %v2595 = vld [vmem:[#allocation3 + $0x198] sm:$0xff]
        %v2596 = vld [vmem:[#allocation3 + $0x1a0] sm:$0xff]
        %v2597 = vld [vmem:[#allocation3 + $0x1a8] sm:$0xff]
        %v2598 = vld [vmem:[#allocation3 + $0x1b0] sm:$0xff]
        %v2599 = vld [vmem:[#allocation3 + $0x1b8] sm:$0xff]
        %v2600 = vld [vmem:[#allocation3 + $0x1c0] sm:$0xff]
        %v2601 = vld [vmem:[#allocation3 + $0x1c8] sm:$0xff]
        %v2602 = vld [vmem:[#allocation3 + $0x1d0] sm:$0xff]
        %v2603 = vld [vmem:[#allocation3 + $0x1d8] sm:$0xff]
        %v2604 = vld [vmem:[#allocation3 + $0x1e0] sm:$0xff]
        %v2605 = vld [vmem:[#allocation3 + $0x1e8] sm:$0xff]
        %v2606 = vld [vmem:[#allocation3 + $0x1f0] sm:$0xff]
        %v2607 = vld [vmem:[#allocation3 + $0x1f8] sm:$0xff]
        %v2608 = vld [vmem:[#allocation7] sm:$0xff]
        %v2609 = vld [vmem:[#allocation7 + $0x8] sm:$0xff]
        %v2610 = vld [vmem:[#allocation7 + $0x10] sm:$0xff]
        %v2611 = vld [vmem:[#allocation7 + $0x18] sm:$0xff]
        %v2612 = vld [vmem:[#allocation7 + $0x20] sm:$0xff]
        %v2613 = vld [vmem:[#allocation7 + $0x28] sm:$0xff]
        %v2614 = vld [vmem:[#allocation7 + $0x30] sm:$0xff]
        %v2615 = vld [vmem:[#allocation7 + $0x38] sm:$0xff]
        %v2616 = vld [vmem:[#allocation7 + $0x40] sm:$0xff]
        %v2617 = vld [vmem:[#allocation7 + $0x48] sm:$0xff]
        %v2618 = vld [vmem:[#allocation7 + $0x50] sm:$0xff]
        %v2619 = vld [vmem:[#allocation7 + $0x58] sm:$0xff]
        %v2620 = vld [vmem:[#allocation7 + $0x60] sm:$0xff]
        %v2621 = vld [vmem:[#allocation7 + $0x68] sm:$0xff]
        %v2622 = vld [vmem:[#allocation7 + $0x70] sm:$0xff]
        %v2623 = vld [vmem:[#allocation7 + $0x78] sm:$0xff]
        %2624 = vmatprep.subr.mxu0 0.0
        %2625 = vmatpush1.msra.mxu0 %v2623
        %2626 = vmatprep.subr.mxu0 0.0
        %2627 = vmatpush1.msra.mxu0 %v2622
        %2628 = vmatprep.subr.mxu0 0.0
        %2629 = vmatpush1.msra.mxu0 %v2621
        %2630 = vmatprep.subr.mxu0 0.0
        %2631 = vmatpush1.msra.mxu0 %v2620
        %2632 = vmatprep.subr.mxu0 0.0
        %2633 = vmatpush1.msra.mxu0 %v2619
        %2634 = vmatprep.subr.mxu0 0.0
        %2635 = vmatpush1.msra.mxu0 %v2618
        %2636 = vmatprep.subr.mxu0 0.0
        %2637 = vmatpush1.msra.mxu0 %v2617
        %2638 = vmatprep.subr.mxu0 0.0
        %2639 = vmatpush1.msra.mxu0 %v2616
        %2640 = vmatprep.subr.mxu0 0.0
        %2641 = vmatpush1.msra.mxu0 %v2615
        %2642 = vmatprep.subr.mxu0 0.0
        %2643 = vmatpush1.msra.mxu0 %v2614
        %2644 = vmatprep.subr.mxu0 0.0
        %2645 = vmatpush1.msra.mxu0 %v2613
        %2646 = vmatprep.subr.mxu0 0.0
        %2647 = vmatpush1.msra.mxu0 %v2612
        %2648 = vmatprep.subr.mxu0 0.0
        %2649 = vmatpush1.msra.mxu0 %v2611
        %2650 = vmatprep.subr.mxu0 0.0
        %2651 = vmatpush1.msra.mxu0 %v2610
        %2652 = vmatprep.subr.mxu0 0.0
        %2653 = vmatpush1.msra.mxu0 %v2609
        %2654 = vmatprep.subr.mxu0 0.0
        %2655 = vmatpush1.msra.mxu0 %v2608
        %2656 = vmatprep.subr.mxu0 0.0
        %2657 = vmatpush2.msra.mxu0 0.0
        %2658 = vmatprep.subr.mxu0 0.0
        %2659 = vmatpush2.msra.mxu0 0.0
        %2660 = vmatprep.subr.mxu0 0.0
        %2661 = vmatpush2.msra.mxu0 0.0
        %2662 = vmatprep.subr.mxu0 0.0
        %2663 = vmatpush2.msra.mxu0 0.0
        %2664 = vmatprep.subr.mxu0 0.0
        %2665 = vmatpush2.msra.mxu0 0.0
        %2666 = vmatprep.subr.mxu0 0.0
        %2667 = vmatpush2.msra.mxu0 0.0
        %2668 = vmatprep.subr.mxu0 0.0
        %2669 = vmatpush2.msra.mxu0 0.0
        %2670 = vmatprep.subr.mxu0 0.0
        %2671 = vmatpush2.msra.mxu0 0.0
        %2672 = vmatprep.subr.mxu0 0.0
        %2673 = vmatpush2.msra.mxu0 0.0
        %2674 = vmatprep.subr.mxu0 0.0
        %2675 = vmatpush2.msra.mxu0 0.0
        %2676 = vmatprep.subr.mxu0 0.0
        %2677 = vmatpush2.msra.mxu0 0.0
        %2678 = vmatprep.subr.mxu0 0.0
        %2679 = vmatpush2.msra.mxu0 0.0
        %2680 = vmatprep.subr.mxu0 0.0
        %2681 = vmatpush2.msra.mxu0 0.0
        %2682 = vmatprep.subr.mxu0 0.0
        %2683 = vmatpush2.msra.mxu0 0.0
        %2684 = vmatprep.subr.mxu0 0.0
        %2685 = vmatpush2.msra.mxu0 0.0
        %2686 = vmatprep.subr.mxu0 0.0
        %2687 = vmatpush2.msra.mxu0 0.0
        %2688 = vmatprep.mubr.f32.mxu0 0.0
        %2689 = vmatmul.mubr.f32.gmra.mxu0 %v2544
        %v2690 = vpop.f32.mrf.mxu0
        %v2691 = vadd.f32 0.0, %v2690
        %v2692 = vpop.f32.mrf.mxu0
        %2693 = vmatprep.mubr.f32.mxu0 0.0
        %2694 = vmatmul.mubr.f32.gmra.mxu0 %v2545
        %v2695 = vpop.f32.mrf.mxu0
        %v2696 = vadd.f32 0.0, %v2695
        %v2697 = vpop.f32.mrf.mxu0
        %2698 = vmatprep.mubr.f32.mxu0 0.0
        %2699 = vmatmul.mubr.f32.gmra.mxu0 %v2546
        %v2700 = vpop.f32.mrf.mxu0
        %v2701 = vadd.f32 0.0, %v2700
        %v2702 = vpop.f32.mrf.mxu0
        %2703 = vmatprep.mubr.f32.mxu0 0.0
        %2704 = vmatmul.mubr.f32.gmra.mxu0 %v2547
        %v2705 = vpop.f32.mrf.mxu0
        %v2706 = vadd.f32 0.0, %v2705
        %v2707 = vpop.f32.mrf.mxu0
        %2708 = vmatprep.mubr.f32.mxu0 0.0
        %2709 = vmatmul.mubr.f32.gmra.mxu0 %v2548
        %v2710 = vpop.f32.mrf.mxu0
        %v2711 = vadd.f32 0.0, %v2710
        %v2712 = vpop.f32.mrf.mxu0
        %2713 = vmatprep.mubr.f32.mxu0 0.0
        %2714 = vmatmul.mubr.f32.gmra.mxu0 %v2549
        %v2715 = vpop.f32.mrf.mxu0
        %v2716 = vadd.f32 0.0, %v2715
        %v2717 = vpop.f32.mrf.mxu0
        %2718 = vmatprep.mubr.f32.mxu0 0.0
        %2719 = vmatmul.mubr.f32.gmra.mxu0 %v2550
        %v2720 = vpop.f32.mrf.mxu0
        %v2721 = vadd.f32 0.0, %v2720
        %v2722 = vpop.f32.mrf.mxu0
        %2723 = vmatprep.mubr.f32.mxu0 0.0
        %2724 = vmatmul.mubr.f32.gmra.mxu0 %v2551
        %v2725 = vpop.f32.mrf.mxu0
        %v2726 = vadd.f32 0.0, %v2725
        %v2727 = vpop.f32.mrf.mxu0
        %2728 = vmatprep.mubr.f32.mxu0 0.0
        %2729 = vmatmul.mubr.f32.gmra.mxu0 %v2552
        %v2730 = vpop.f32.mrf.mxu0
        %v2731 = vadd.f32 0.0, %v2730
        %v2732 = vpop.f32.mrf.mxu0
        %2733 = vmatprep.mubr.f32.mxu0 0.0
        %2734 = vmatmul.mubr.f32.gmra.mxu0 %v2553
        %v2735 = vpop.f32.mrf.mxu0
        %v2736 = vadd.f32 0.0, %v2735
        %v2737 = vpop.f32.mrf.mxu0
        %2738 = vmatprep.mubr.f32.mxu0 0.0
        %2739 = vmatmul.mubr.f32.gmra.mxu0 %v2554
        %v2740 = vpop.f32.mrf.mxu0
        %v2741 = vadd.f32 0.0, %v2740
        %v2742 = vpop.f32.mrf.mxu0
        %2743 = vmatprep.mubr.f32.mxu0 0.0
        %2744 = vmatmul.mubr.f32.gmra.mxu0 %v2555
        %v2745 = vpop.f32.mrf.mxu0
        %v2746 = vadd.f32 0.0, %v2745
        %v2747 = vpop.f32.mrf.mxu0
        %2748 = vmatprep.mubr.f32.mxu0 0.0
        %2749 = vmatmul.mubr.f32.gmra.mxu0 %v2556
        %v2750 = vpop.f32.mrf.mxu0
        %v2751 = vadd.f32 0.0, %v2750
        %v2752 = vpop.f32.mrf.mxu0
        %2753 = vmatprep.mubr.f32.mxu0 0.0
        %2754 = vmatmul.mubr.f32.gmra.mxu0 %v2557
        %v2755 = vpop.f32.mrf.mxu0
        %v2756 = vadd.f32 0.0, %v2755
        %v2757 = vpop.f32.mrf.mxu0
        %2758 = vmatprep.mubr.f32.mxu0 0.0
        %2759 = vmatmul.mubr.f32.gmra.mxu0 %v2558
        %v2760 = vpop.f32.mrf.mxu0
        %v2761 = vadd.f32 0.0, %v2760
        %v2762 = vpop.f32.mrf.mxu0
        %2763 = vmatprep.mubr.f32.mxu0 0.0
        %2764 = vmatmul.mubr.f32.gmra.mxu0 %v2559
        %v2765 = vpop.f32.mrf.mxu0
        %v2766 = vadd.f32 0.0, %v2765
        %v2767 = vpop.f32.mrf.mxu0
        %2768 = vmatprep.mubr.f32.mxu0 0.0
        %2769 = vmatmul.mubr.f32.gmra.mxu0 %v2560
        %v2770 = vpop.f32.mrf.mxu0
        %v2771 = vadd.f32 0.0, %v2770
        %v2772 = vpop.f32.mrf.mxu0
        %2773 = vmatprep.mubr.f32.mxu0 0.0
        %2774 = vmatmul.mubr.f32.gmra.mxu0 %v2561
        %v2775 = vpop.f32.mrf.mxu0
        %v2776 = vadd.f32 0.0, %v2775
        %v2777 = vpop.f32.mrf.mxu0
        %2778 = vmatprep.mubr.f32.mxu0 0.0
        %2779 = vmatmul.mubr.f32.gmra.mxu0 %v2562
        %v2780 = vpop.f32.mrf.mxu0
        %v2781 = vadd.f32 0.0, %v2780
        %v2782 = vpop.f32.mrf.mxu0
        %2783 = vmatprep.mubr.f32.mxu0 0.0
        %2784 = vmatmul.mubr.f32.gmra.mxu0 %v2563
        %v2785 = vpop.f32.mrf.mxu0
        %v2786 = vadd.f32 0.0, %v2785
        %v2787 = vpop.f32.mrf.mxu0
        %2788 = vmatprep.mubr.f32.mxu0 0.0
        %2789 = vmatmul.mubr.f32.gmra.mxu0 %v2564
        %v2790 = vpop.f32.mrf.mxu0
        %v2791 = vadd.f32 0.0, %v2790
        %v2792 = vpop.f32.mrf.mxu0
        %2793 = vmatprep.mubr.f32.mxu0 0.0
        %2794 = vmatmul.mubr.f32.gmra.mxu0 %v2565
        %v2795 = vpop.f32.mrf.mxu0
        %v2796 = vadd.f32 0.0, %v2795
        %v2797 = vpop.f32.mrf.mxu0
        %2798 = vmatprep.mubr.f32.mxu0 0.0
        %2799 = vmatmul.mubr.f32.gmra.mxu0 %v2566
        %v2800 = vpop.f32.mrf.mxu0
        %v2801 = vadd.f32 0.0, %v2800
        %v2802 = vpop.f32.mrf.mxu0
        %2803 = vmatprep.mubr.f32.mxu0 0.0
        %2804 = vmatmul.mubr.f32.gmra.mxu0 %v2567
        %v2805 = vpop.f32.mrf.mxu0
        %v2806 = vadd.f32 0.0, %v2805
        %v2807 = vpop.f32.mrf.mxu0
        %2808 = vmatprep.mubr.f32.mxu0 0.0
        %2809 = vmatmul.mubr.f32.gmra.mxu0 %v2568
        %v2810 = vpop.f32.mrf.mxu0
        %v2811 = vadd.f32 0.0, %v2810
        %v2812 = vpop.f32.mrf.mxu0
        %2813 = vmatprep.mubr.f32.mxu0 0.0
        %2814 = vmatmul.mubr.f32.gmra.mxu0 %v2569
        %v2815 = vpop.f32.mrf.mxu0
        %v2816 = vadd.f32 0.0, %v2815
        %v2817 = vpop.f32.mrf.mxu0
        %2818 = vmatprep.mubr.f32.mxu0 0.0
        %2819 = vmatmul.mubr.f32.gmra.mxu0 %v2570
        %v2820 = vpop.f32.mrf.mxu0
        %v2821 = vadd.f32 0.0, %v2820
        %v2822 = vpop.f32.mrf.mxu0
        %2823 = vmatprep.mubr.f32.mxu0 0.0
        %2824 = vmatmul.mubr.f32.gmra.mxu0 %v2571
        %v2825 = vpop.f32.mrf.mxu0
        %v2826 = vadd.f32 0.0, %v2825
        %v2827 = vpop.f32.mrf.mxu0
        %2828 = vmatprep.mubr.f32.mxu0 0.0
        %2829 = vmatmul.mubr.f32.gmra.mxu0 %v2572
        %v2830 = vpop.f32.mrf.mxu0
        %v2831 = vadd.f32 0.0, %v2830
        %v2832 = vpop.f32.mrf.mxu0
        %2833 = vmatprep.mubr.f32.mxu0 0.0
        %2834 = vmatmul.mubr.f32.gmra.mxu0 %v2573
        %v2835 = vpop.f32.mrf.mxu0
        %v2836 = vadd.f32 0.0, %v2835
        %v2837 = vpop.f32.mrf.mxu0
        %2838 = vmatprep.mubr.f32.mxu0 0.0
        %2839 = vmatmul.mubr.f32.gmra.mxu0 %v2574
        %v2840 = vpop.f32.mrf.mxu0
        %v2841 = vadd.f32 0.0, %v2840
        %v2842 = vpop.f32.mrf.mxu0
        %2843 = vmatprep.mubr.f32.mxu0 0.0
        %2844 = vmatmul.mubr.f32.gmra.mxu0 %v2575
        %v2845 = vpop.f32.mrf.mxu0
        %v2846 = vadd.f32 0.0, %v2845
        %v2847 = vpop.f32.mrf.mxu0
        %2848 = vmatprep.mubr.f32.mxu0 0.0
        %2849 = vmatmul.mubr.f32.gmra.mxu0 %v2576
        %v2850 = vpop.f32.mrf.mxu0
        %v2851 = vadd.f32 0.0, %v2850
        %v2852 = vpop.f32.mrf.mxu0
        %2853 = vmatprep.mubr.f32.mxu0 0.0
        %2854 = vmatmul.mubr.f32.gmra.mxu0 %v2577
        %v2855 = vpop.f32.mrf.mxu0
        %v2856 = vadd.f32 0.0, %v2855
        %v2857 = vpop.f32.mrf.mxu0
        %2858 = vmatprep.mubr.f32.mxu0 0.0
        %2859 = vmatmul.mubr.f32.gmra.mxu0 %v2578
        %v2860 = vpop.f32.mrf.mxu0
        %v2861 = vadd.f32 0.0, %v2860
        %v2862 = vpop.f32.mrf.mxu0
        %2863 = vmatprep.mubr.f32.mxu0 0.0
        %2864 = vmatmul.mubr.f32.gmra.mxu0 %v2579
        %v2865 = vpop.f32.mrf.mxu0
        %v2866 = vadd.f32 0.0, %v2865
        %v2867 = vpop.f32.mrf.mxu0
        %2868 = vmatprep.mubr.f32.mxu0 0.0
        %2869 = vmatmul.mubr.f32.gmra.mxu0 %v2580
        %v2870 = vpop.f32.mrf.mxu0
        %v2871 = vadd.f32 0.0, %v2870
        %v2872 = vpop.f32.mrf.mxu0
        %2873 = vmatprep.mubr.f32.mxu0 0.0
        %2874 = vmatmul.mubr.f32.gmra.mxu0 %v2581
        %v2875 = vpop.f32.mrf.mxu0
        %v2876 = vadd.f32 0.0, %v2875
        %v2877 = vpop.f32.mrf.mxu0
        %2878 = vmatprep.mubr.f32.mxu0 0.0
        %2879 = vmatmul.mubr.f32.gmra.mxu0 %v2582
        %v2880 = vpop.f32.mrf.mxu0
        %v2881 = vadd.f32 0.0, %v2880
        %v2882 = vpop.f32.mrf.mxu0
        %2883 = vmatprep.mubr.f32.mxu0 0.0
        %2884 = vmatmul.mubr.f32.gmra.mxu0 %v2583
        %v2885 = vpop.f32.mrf.mxu0
        %v2886 = vadd.f32 0.0, %v2885
        %v2887 = vpop.f32.mrf.mxu0
        %2888 = vmatprep.mubr.f32.mxu0 0.0
        %2889 = vmatmul.mubr.f32.gmra.mxu0 %v2584
        %v2890 = vpop.f32.mrf.mxu0
        %v2891 = vadd.f32 0.0, %v2890
        %v2892 = vpop.f32.mrf.mxu0
        %2893 = vmatprep.mubr.f32.mxu0 0.0
        %2894 = vmatmul.mubr.f32.gmra.mxu0 %v2585
        %v2895 = vpop.f32.mrf.mxu0
        %v2896 = vadd.f32 0.0, %v2895
        %v2897 = vpop.f32.mrf.mxu0
        %2898 = vmatprep.mubr.f32.mxu0 0.0
        %2899 = vmatmul.mubr.f32.gmra.mxu0 %v2586
        %v2900 = vpop.f32.mrf.mxu0
        %v2901 = vadd.f32 0.0, %v2900
        %v2902 = vpop.f32.mrf.mxu0
        %2903 = vmatprep.mubr.f32.mxu0 0.0
        %2904 = vmatmul.mubr.f32.gmra.mxu0 %v2587
        %v2905 = vpop.f32.mrf.mxu0
        %v2906 = vadd.f32 0.0, %v2905
        %v2907 = vpop.f32.mrf.mxu0
        %2908 = vmatprep.mubr.f32.mxu0 0.0
        %2909 = vmatmul.mubr.f32.gmra.mxu0 %v2588
        %v2910 = vpop.f32.mrf.mxu0
        %v2911 = vadd.f32 0.0, %v2910
        %v2912 = vpop.f32.mrf.mxu0
        %2913 = vmatprep.mubr.f32.mxu0 0.0
        %2914 = vmatmul.mubr.f32.gmra.mxu0 %v2589
        %v2915 = vpop.f32.mrf.mxu0
        %v2916 = vadd.f32 0.0, %v2915
        %v2917 = vpop.f32.mrf.mxu0
        %2918 = vmatprep.mubr.f32.mxu0 0.0
        %2919 = vmatmul.mubr.f32.gmra.mxu0 %v2590
        %v2920 = vpop.f32.mrf.mxu0
        %v2921 = vadd.f32 0.0, %v2920
        %v2922 = vpop.f32.mrf.mxu0
        %2923 = vmatprep.mubr.f32.mxu0 0.0
        %2924 = vmatmul.mubr.f32.gmra.mxu0 %v2591
        %v2925 = vpop.f32.mrf.mxu0
        %v2926 = vadd.f32 0.0, %v2925
        %v2927 = vpop.f32.mrf.mxu0
        %2928 = vmatprep.mubr.f32.mxu0 0.0
        %2929 = vmatmul.mubr.f32.gmra.mxu0 %v2592
        %v2930 = vpop.f32.mrf.mxu0
        %v2931 = vadd.f32 0.0, %v2930
        %v2932 = vpop.f32.mrf.mxu0
        %2933 = vmatprep.mubr.f32.mxu0 0.0
        %2934 = vmatmul.mubr.f32.gmra.mxu0 %v2593
        %v2935 = vpop.f32.mrf.mxu0
        %v2936 = vadd.f32 0.0, %v2935
        %v2937 = vpop.f32.mrf.mxu0
        %2938 = vmatprep.mubr.f32.mxu0 0.0
        %2939 = vmatmul.mubr.f32.gmra.mxu0 %v2594
        %v2940 = vpop.f32.mrf.mxu0
        %v2941 = vadd.f32 0.0, %v2940
        %v2942 = vpop.f32.mrf.mxu0
        %2943 = vmatprep.mubr.f32.mxu0 0.0
        %2944 = vmatmul.mubr.f32.gmra.mxu0 %v2595
        %v2945 = vpop.f32.mrf.mxu0
        %v2946 = vadd.f32 0.0, %v2945
        %v2947 = vpop.f32.mrf.mxu0
        %2948 = vmatprep.mubr.f32.mxu0 0.0
        %2949 = vmatmul.mubr.f32.gmra.mxu0 %v2596
        %v2950 = vpop.f32.mrf.mxu0
        %v2951 = vadd.f32 0.0, %v2950
        %v2952 = vpop.f32.mrf.mxu0
        %2953 = vmatprep.mubr.f32.mxu0 0.0
        %2954 = vmatmul.mubr.f32.gmra.mxu0 %v2597
        %v2955 = vpop.f32.mrf.mxu0
        %v2956 = vadd.f32 0.0, %v2955
        %v2957 = vpop.f32.mrf.mxu0
        %2958 = vmatprep.mubr.f32.mxu0 0.0
        %2959 = vmatmul.mubr.f32.gmra.mxu0 %v2598
        %v2960 = vpop.f32.mrf.mxu0
        %v2961 = vadd.f32 0.0, %v2960
        %v2962 = vpop.f32.mrf.mxu0
        %2963 = vmatprep.mubr.f32.mxu0 0.0
        %2964 = vmatmul.mubr.f32.gmra.mxu0 %v2599
        %v2965 = vpop.f32.mrf.mxu0
        %v2966 = vadd.f32 0.0, %v2965
        %v2967 = vpop.f32.mrf.mxu0
        %2968 = vmatprep.mubr.f32.mxu0 0.0
        %2969 = vmatmul.mubr.f32.gmra.mxu0 %v2600
        %v2970 = vpop.f32.mrf.mxu0
        %v2971 = vadd.f32 0.0, %v2970
        %v2972 = vpop.f32.mrf.mxu0
        %2973 = vmatprep.mubr.f32.mxu0 0.0
        %2974 = vmatmul.mubr.f32.gmra.mxu0 %v2601
        %v2975 = vpop.f32.mrf.mxu0
        %v2976 = vadd.f32 0.0, %v2975
        %v2977 = vpop.f32.mrf.mxu0
        %2978 = vmatprep.mubr.f32.mxu0 0.0
        %2979 = vmatmul.mubr.f32.gmra.mxu0 %v2602
        %v2980 = vpop.f32.mrf.mxu0
        %v2981 = vadd.f32 0.0, %v2980
        %v2982 = vpop.f32.mrf.mxu0
        %2983 = vmatprep.mubr.f32.mxu0 0.0
        %2984 = vmatmul.mubr.f32.gmra.mxu0 %v2603
        %v2985 = vpop.f32.mrf.mxu0
        %v2986 = vadd.f32 0.0, %v2985
        %v2987 = vpop.f32.mrf.mxu0
        %2988 = vmatprep.mubr.f32.mxu0 0.0
        %2989 = vmatmul.mubr.f32.gmra.mxu0 %v2604
        %v2990 = vpop.f32.mrf.mxu0
        %v2991 = vadd.f32 0.0, %v2990
        %v2992 = vpop.f32.mrf.mxu0
        %2993 = vmatprep.mubr.f32.mxu0 0.0
        %2994 = vmatmul.mubr.f32.gmra.mxu0 %v2605
        %v2995 = vpop.f32.mrf.mxu0
        %v2996 = vadd.f32 0.0, %v2995
        %v2997 = vpop.f32.mrf.mxu0
        %2998 = vmatprep.mubr.f32.mxu0 0.0
        %2999 = vmatmul.mubr.f32.gmra.mxu0 %v2606
        %v3000 = vpop.f32.mrf.mxu0
        %v3001 = vadd.f32 0.0, %v3000
        %v3002 = vpop.f32.mrf.mxu0
        %3003 = vmatprep.mubr.f32.mxu0 0.0
        %3004 = vmatmul.mubr.f32.gmra.mxu0 %v2607
        %v3005 = vpop.f32.mrf.mxu0
        %v3006 = vadd.f32 0.0, %v3005
        %v3007 = vpop.f32.mrf.mxu0
        %3008 = vdwg.mxu0
        %v3009 = vmax.f32 %v2691, %v2731
        %v3010 = vmax.f32 %v2696, %v2736
        %v3011 = vmax.f32 %v2701, %v2741
        %v3012 = vmax.f32 %v2706, %v2746
        %v3013 = vmax.f32 %v2711, %v2751
        %v3014 = vmax.f32 %v2716, %v2756
        %v3015 = vmax.f32 %v2721, %v2761
        %v3016 = vmax.f32 %v2726, %v2766
        %v3017 = vmax.f32 %v3009, %v2771
        %v3018 = vmax.f32 %v3010, %v2776
        %v3019 = vmax.f32 %v3011, %v2781
        %v3020 = vmax.f32 %v3012, %v2786
        %v3021 = vmax.f32 %v3013, %v2791
        %v3022 = vmax.f32 %v3014, %v2796
        %v3023 = vmax.f32 %v3015, %v2801
        %v3024 = vmax.f32 %v3016, %v2806
        %v3025 = vmax.f32 %v3017, %v2811
        %v3026 = vmax.f32 %v3018, %v2816
        %v3027 = vmax.f32 %v3019, %v2821
        %v3028 = vmax.f32 %v3020, %v2826
        %v3029 = vmax.f32 %v3021, %v2831
        %v3030 = vmax.f32 %v3022, %v2836
        %v3031 = vmax.f32 %v3023, %v2841
        %v3032 = vmax.f32 %v3024, %v2846
        %v3033 = vmax.f32 %v3025, %v2851
        %v3034 = vmax.f32 %v3026, %v2856
        %v3035 = vmax.f32 %v3027, %v2861
        %v3036 = vmax.f32 %v3028, %v2866
        %v3037 = vmax.f32 %v3029, %v2871
        %v3038 = vmax.f32 %v3030, %v2876
        %v3039 = vmax.f32 %v3031, %v2881
        %v3040 = vmax.f32 %v3032, %v2886
        %v3041 = vmax.f32 %v3033, %v2891
        %v3042 = vmax.f32 %v3034, %v2896
        %v3043 = vmax.f32 %v3035, %v2901
        %v3044 = vmax.f32 %v3036, %v2906
        %v3045 = vmax.f32 %v3037, %v2911
        %v3046 = vmax.f32 %v3038, %v2916
        %v3047 = vmax.f32 %v3039, %v2921
        %v3048 = vmax.f32 %v3040, %v2926
        %v3049 = vmax.f32 %v3041, %v2931
        %v3050 = vmax.f32 %v3042, %v2936
        %v3051 = vmax.f32 %v3043, %v2941
        %v3052 = vmax.f32 %v3044, %v2946
        %v3053 = vmax.f32 %v3045, %v2951
        %v3054 = vmax.f32 %v3046, %v2956
        %v3055 = vmax.f32 %v3047, %v2961
        %v3056 = vmax.f32 %v3048, %v2966
        %v3057 = vmax.f32 %v3049, %v2971
        %v3058 = vmax.f32 %v3050, %v2976
        %v3059 = vmax.f32 %v3051, %v2981
        %v3060 = vmax.f32 %v3052, %v2986
        %v3061 = vmax.f32 %v3053, %v2991
        %v3062 = vmax.f32 %v3054, %v2996
        %v3063 = vmax.f32 %v3055, %v3001
        %v3064 = vmax.f32 %v3056, %v3006
        %v3065 = vld [vmem:[%s4] sm:$0x1]
        %v3067 = vlaneseq
        %v3068 = vshrl.u32 %v3067, 7
        %v3069 = vsub.s32 0, %v3068
        %v3070 = vrot.slane %v3065, %v3069
        %v3072 = vadd.f32 %v3057, %v3070
        %v3073 = vadd.f32 %v3058, %v3070
        %v3074 = vadd.f32 %v3059, %v3070
        %v3075 = vadd.f32 %v3060, %v3070
        %v3076 = vadd.f32 %v3061, %v3070
        %v3077 = vadd.f32 %v3062, %v3070
        %v3078 = vadd.f32 %v3063, %v3070
        %v3079 = vadd.f32 %v3064, %v3070
        %3080 = vst [vmem:[%s248] sm:$0xff] %v3072
        %3081 = vst [vmem:[%s248 + $0x8] sm:$0xff] %v3073
        %3082 = vst [vmem:[%s248 + $0x10] sm:$0xff] %v3074
        %3083 = vst [vmem:[%s248 + $0x18] sm:$0xff] %v3075
        %3084 = vst [vmem:[%s248 + $0x20] sm:$0xff] %v3076
        %3085 = vst [vmem:[%s248 + $0x28] sm:$0xff] %v3077
        %3086 = vst [vmem:[%s248 + $0x30] sm:$0xff] %v3078
        %3087 = vst [vmem:[%s248 + $0x38] sm:$0xff] %v3079
        %s3088 = sand.u32 %s139, 1
        %s3089 = scalar_lea.sflag [#allocation6], %s3088
        %s3090 = sand.u32 %s139, 1
        %s3091 = smul.addr %s3090, 64
        %s3092 = scalar_lea.vmem [#allocation9], %s3091
        // Predicated region
        $region49: #{tpu_custom_call.1} parent=39 // pred_check
          %p3093 = pneg %p149
        $region50: #{tpu_custom_call.1} parent=39 // pred_check_branch
          %3095 = sbr.rel (%p3093) target = $region52
        $region51: #{tpu_custom_call.1} parent=39 // pred_region
          %s3096 = smul.u32 8, %s21
          %s3098 = ssub.s32 1024, 1024
          %3099 = vsyncadd %s3089, %s3098
          %s3100 = smul.addr %s3096, 128
          %s3101 = scalar_lea.hbm %s5, %s3100
          %s3102 = sshll.u32 %s3092, 4
          %s3103 = int_to_ptr.vmem [resolvable:$true] %s3102
          %3108 = dma.vmem_to_hbm [thread:$0]  %s3103, 1024, %s3101, %s3089, 128, 128, 8
        $region52: #{tpu_custom_call.1} parent=39 // pred_fallthru
          _
      $region40: #{tpu_custom_call.1} parent=5 // pred_fallthru
        _
      %p3109 = scmp.le.s32.totalorder 2, %s16
      // Predicated region
      $region53: #{tpu_custom_call.1} parent=5 // pred_check
        %p3110 = pneg %p3109
      $region54: #{tpu_custom_call.1} parent=5 // pred_check_branch
        %3112 = sbr.rel (%p3110) target = $region56
      $region55: #{tpu_custom_call.1} parent=5 // pred_region
        %s3113 = ssub.s32 %s16, 2
        // Predicated region
        $region57: #{tpu_custom_call.1} parent=55 // pred_check
          %p3114 = pneg %p155
        $region58: #{tpu_custom_call.1} parent=55 // pred_check_branch
          %3116 = sbr.rel (%p3114) target = $region60
        $region59: #{tpu_custom_call.1} parent=55 // pred_region
          %s3117 = sand.u32 %s140, 1
          %s3118 = scalar_lea.sflag [#allocation6], %s3117
          %s3119 = sand.u32 %s140, 1
          %s3120 = smul.addr %s3119, 64
          %s3121 = scalar_lea.vmem [#allocation9], %s3120
          %3122 = dma.done %s3118, 1024
        $region60: #{tpu_custom_call.1} parent=55 // pred_fallthru
          _
      $region56: #{tpu_custom_call.1} parent=5 // pred_fallthru
        _
    $region6: #{tpu_custom_call.1} parent=1 // loop_footer
      %s20 = sadd.s32 1, %s16
    $region7: #{tpu_custom_call.1} parent=1 // loop_footer_branch
      %15 = sbr.rel target = $region3
    $region8: #{tpu_custom_call.1} parent=1 // loop_exit
      _
    %3123 = vsyncpa [#allocation5], 1
    %s3124 = scalar_lea.sflag [#allocation5], 1
    %3125 = vsyncpa %s3124, 1
    %3126 = vsyncpa [#allocation8], 1
    %3127 = vsyncpa [#allocation6], 1
    %s3128 = scalar_lea.sflag [#allocation6], 1
    %3129 = vsyncpa %s3128, 1

// kernel: tpu_custom_call.1
$region0: #{tpu_custom_call.1}
  #allocation0 [shape = 'u32[]', space=smem, size = 0x4, offset = 0x4, fixed_abs, tag = 'smem constant byte address 0x4 - core index']
  #allocation1 [shape = 'u32[144,128]{1,0:T(1,128)}', space=vmem, size = 0x12000, scoped, tag = 'internal scratch']
  #allocation2 [shape = 'f32[512,128]{1,0:T(8,128)}', space=vmem, size = 0x40000, scoped, tag = 'scratch operand']
  #allocation3 [shape = 'f32[512,128]{1,0:T(8,128)}', space=vmem, size = 0x40000, scoped, tag = 'scratch operand']
  %s0 = inlined_call_operand.vmem [shape: f32[128,8], index: 0, kind: input, shape index: {}]
  %s1 = inlined_call_operand.vmem [shape: f32[128,128], index: 1, kind: input, shape index: {}]
  %s2 = inlined_call_operand.hbm [shape: f32[128,128], index: 2, kind: input, shape index: {}]
  %s3 = inlined_call_operand.hbm [shape: f32[128,128], index: 3, kind: input, shape index: {}]
  %s4 = inlined_call_operand.vmem [shape: f32[1,128], index: 4, kind: input, shape index: {}]
  %s5 = inlined_call_operand.hbm [shape: f32[128,128], index: 5, kind: output, shape index: {}]
  %s6 = sld [smem:[#allocation0]]
  $region61: #{tpu_custom_call.1} parent=0
    _
  %s8 = ssub.s32 1, %s6
  %s9 = scalar_select 0, %s8, %s6
  $region1: #{tpu_custom_call.1} parent=0
    #allocation4 [shape = 'u8[65536]{0}', space=vmem, size = 0x10000, scoped, tag = 'input window, operand 2, single buffered']
    #allocation5 [shape = 's32[2]{0}', space=sflag, size = 0x8, scoped, tag = 'scoped memory for tpu_custom_call.1']
    #allocation6 [shape = 's32[2]{0}', space=sflag, size = 0x8, scoped, tag = 'scoped memory for tpu_custom_call.1']
    #allocation7 [shape = 'u8[65536]{0}', space=vmem, size = 0x10000, scoped, tag = 'input window, operand 3, single buffered']
    #allocation8 [shape = 's32[1]{0}', space=sflag, size = 0x4, scoped, tag = 'scoped memory for tpu_custom_call.1']
    #allocation9 [shape = 'u8[65536]{0}', space=vmem, size = 0x10000, scoped, tag = 'output window, operand 0']
    %10 = vsyncpa [#allocation5], 0
    %11 = vsyncpa [#allocation8], 0
    %12 = vsyncpa [#allocation6], 0
    %s13 = scalar_lea.sflag [#allocation6], 1
    %14 = vsyncpa %s13, 0
    loop: start=0, step=1, limit=4
    $region2: #{tpu_custom_call.1} parent=1 // loop_pre_header
      _
    $region3: #{tpu_custom_call.1} parent=1 // loop_header
      %s16 = sphi 0, %s20
      %p17 = scmp.ge.s32.totalorder %s16, 4
      %s24 = sphi 0, %s24
      %s26 = sphi 0, %s24
      %s27 = sphi 0, %s26
      %s41 = sphi 0, %s27
      %s47 = sphi 0, %s49
      %s50 = sphi 0, %s47
      %s51 = sphi 0, %s50
      %s67 = sphi 0, %s51
      %s71 = sphi 0, %s71
      %s73 = sphi 0, %s71
      %s74 = sphi 0, %s73
      %s88 = sphi 0, %s74
      %s92 = sphi 0, %s92
      %s94 = sphi 0, %s92
      %s95 = sphi 0, %s94
      %s109 = sphi 0, %s95
      %s113 = sphi 0, %s113
      %s115 = sphi 0, %s113
      %s116 = sphi 0, %s115
      %s130 = sphi 0, %s116
      %s136 = sphi 0, %s138
      %s139 = sphi 0, %s136
      %s140 = sphi 0, %s139
      %s156 = sphi 0, %s140
    $region4: #{tpu_custom_call.1} parent=1 // loop_header_branch
      %19 = sbr.rel (%p17) target = $region8
    $region5: #{tpu_custom_call.1} parent=1 // loop_body
      %s21 = ssub.s32 %s16, 1
      %s22 = ssub.s32 %s16, 2
      %s23 = sadd.s32 %s16, 1
      %s25 = sadd.s32 %s24, 1
      %p28 = scmp.eq.s32.totalorder %s16, 1
      %p29 = scmp.ne.s32.totalorder %s24, %s26
      %p30 = scmp.eq.s32.totalorder %s16, 0
      %p31 = por %p29, %p30
      %p32 = scmp.ne.s32.totalorder %s24, %s26
      %p33 = scmp.eq.s32.totalorder %s21, 1
      %p34 = por %p32, %p33
      %p35 = scmp.ne.s32.totalorder %s26, %s27
      %p36 = scmp.eq.s32.totalorder %s21, 0
      %p37 = por %p35, %p36
      %p38 = scmp.ne.s32.totalorder %s26, %s27
      %p39 = scmp.eq.s32.totalorder %s22, 1
      %p40 = por %p38, %p39
      %p42 = scmp.ne.s32.totalorder %s27, %s41
      %p43 = scmp.eq.s32.totalorder %s22, 0
      %p44 = por %p42, %p43
      %s45 = ssub.s32 %s16, %s23
      %p46 = scmp.eq.s32.totalorder %s45, 0
      %s48 = sadd.s32 %s47, 1
      %s49 = scalar_select %p46, %s47, %s48
      %p52 = pneg %p46
      %p53 = scmp.eq.s32.totalorder %s16, 1
      %p54 = por %p52, %p53
      %p55 = scmp.ne.s32.totalorder %s47, %s50
      %p56 = scmp.eq.s32.totalorder %s16, 0
      %p57 = por %p55, %p56
      %p58 = scmp.ne.s32.totalorder %s47, %s50
      %p59 = scmp.eq.s32.totalorder %s21, 1
      %p60 = por %p58, %p59
      %p61 = scmp.ne.s32.totalorder %s50, %s51
      %p62 = scmp.eq.s32.totalorder %s21, 0
      %p63 = por %p61, %p62
      %p64 = scmp.ne.s32.totalorder %s50, %s51
      %p65 = scmp.eq.s32.totalorder %s22, 1
      %p66 = por %p64, %p65
      %p68 = scmp.ne.s32.totalorder %s51, %s67
      %p69 = scmp.eq.s32.totalorder %s22, 0
      %p70 = por %p68, %p69
      %s72 = sadd.s32 %s71, 1
      %p75 = scmp.eq.s32.totalorder %s16, 1
      %p76 = scmp.ne.s32.totalorder %s71, %s73
      %p77 = scmp.eq.s32.totalorder %s16, 0
      %p78 = por %p76, %p77
      %p79 = scmp.ne.s32.totalorder %s71, %s73
      %p80 = scmp.eq.s32.totalorder %s21, 1
      %p81 = por %p79, %p80
      %p82 = scmp.ne.s32.totalorder %s73, %s74
      %p83 = scmp.eq.s32.totalorder %s21, 0
      %p84 = por %p82, %p83
      %p85 = scmp.ne.s32.totalorder %s73, %s74
      %p86 = scmp.eq.s32.totalorder %s22, 1
      %p87 = por %p85, %p86
      %p89 = scmp.ne.s32.totalorder %s74, %s88
      %p90 = scmp.eq.s32.totalorder %s22, 0
      %p91 = por %p89, %p90
      %s93 = sadd.s32 %s92, 1
      %p96 = scmp.eq.s32.totalorder %s16, 1
      %p97 = scmp.ne.s32.totalorder %s92, %s94
      %p98 = scmp.eq.s32.totalorder %s16, 0
      %p99 = por %p97, %p98
      %p100 = scmp.ne.s32.totalorder %s92, %s94
      %p101 = scmp.eq.s32.totalorder %s21, 1
      %p102 = por %p100, %p101
      %p103 = scmp.ne.s32.totalorder %s94, %s95
      %p104 = scmp.eq.s32.totalorder %s21, 0
      %p105 = por %p103, %p104
      %p106 = scmp.ne.s32.totalorder %s94, %s95
      %p107 = scmp.eq.s32.totalorder %s22, 1
      %p108 = por %p106, %p107
      %p110 = scmp.ne.s32.totalorder %s95, %s109
      %p111 = scmp.eq.s32.totalorder %s22, 0
      %p112 = por %p110, %p111
      %s114 = sadd.s32 %s113, 1
      %p117 = scmp.eq.s32.totalorder %s16, 1
      %p118 = scmp.ne.s32.totalorder %s113, %s115
      %p119 = scmp.eq.s32.totalorder %s16, 0
      %p120 = por %p118, %p119
      %p121 = scmp.ne.s32.totalorder %s113, %s115
      %p122 = scmp.eq.s32.totalorder %s21, 1
      %p123 = por %p121, %p122
      %p124 = scmp.ne.s32.totalorder %s115, %s116
      %p125 = scmp.eq.s32.totalorder %s21, 0
      %p126 = por %p124, %p125
      %p127 = scmp.ne.s32.totalorder %s115, %s116
      %p128 = scmp.eq.s32.totalorder %s22, 1
      %p129 = por %p127, %p128
      %p131 = scmp.ne.s32.totalorder %s116, %s130
      %p132 = scmp.eq.s32.totalorder %s22, 0
      %p133 = por %p131, %p132
      %s134 = ssub.s32 %s16, %s23
      %p135 = scmp.eq.s32.totalorder %s134, 0
      %s137 = sadd.s32 %s136, 1
      %s138 = scalar_select %p135, %s136, %s137
      %p141 = pneg %p135
      %p142 = scmp.eq.s32.totalorder %s16, 1
      %p143 = por %p141, %p142
      %p144 = scmp.ne.s32.totalorder %s136, %s139
      %p145 = scmp.eq.s32.totalorder %s16, 0
      %p146 = por %p144, %p145
      %p147 = scmp.ne.s32.totalorder %s136, %s139
      %p148 = scmp.eq.s32.totalorder %s21, 1
      %p149 = por %p147, %p148
      %p150 = scmp.ne.s32.totalorder %s139, %s140
      %p151 = scmp.eq.s32.totalorder %s21, 0
      %p152 = por %p150, %p151
      %p153 = scmp.ne.s32.totalorder %s139, %s140
      %p154 = scmp.eq.s32.totalorder %s22, 1
      %p155 = por %p153, %p154
      %p157 = scmp.ne.s32.totalorder %s140, %s156
      %p158 = scmp.eq.s32.totalorder %s22, 0
      %p159 = por %p157, %p158
      %p160 = scmp.le.s32.totalorder 1, %s16
      %p161 = scmp.lt.s32.totalorder %s16, 3
      %p162 = pnand %p160, %p161
      %p163 = pneg %p162
      // Predicated region
      $region9: #{tpu_custom_call.1} parent=5 // pred_check
        _
      $region10: #{tpu_custom_call.1} parent=5 // pred_check_branch
        %165 = sbr.rel (%p162) target = $region12
      $region11: #{tpu_custom_call.1} parent=5 // pred_region
        %s166 = ssub.s32 %s16, 1
        // Predicated region
        $region13: #{tpu_custom_call.1} parent=11 // pred_check
          %p167 = pneg %p37
        $region14: #{tpu_custom_call.1} parent=11 // pred_check_branch
          %169 = sbr.rel (%p167) target = $region16
        $region15: #{tpu_custom_call.1} parent=11 // pred_region
          _
        $region16: #{tpu_custom_call.1} parent=11 // pred_fallthru
          _
        // Predicated region
        $region17: #{tpu_custom_call.1} parent=11 // pred_check
          %p170 = pneg %p84
        $region18: #{tpu_custom_call.1} parent=11 // pred_check_branch
          %172 = sbr.rel (%p170) target = $region20
        $region19: #{tpu_custom_call.1} parent=11 // pred_region
          %s174 = ssub.s32 2048, 2048
          %175 = vsyncadd [#allocation5], %s174
          %s176 = sshll.u32 [#allocation4], 4
          %s177 = int_to_ptr.vmem [resolvable:$true] %s176
          %182 = dma.hbm_to_vmem [thread:$0]  %s2, 2048, %s177, [#allocation5], 128, 128, 8
        $region20: #{tpu_custom_call.1} parent=11 // pred_fallthru
          _
        // Predicated region
        $region21: #{tpu_custom_call.1} parent=11 // pred_check
          %p183 = pneg %p105
        $region22: #{tpu_custom_call.1} parent=11 // pred_check_branch
          %185 = sbr.rel (%p183) target = $region24
        $region23: #{tpu_custom_call.1} parent=11 // pred_region
          %s187 = ssub.s32 2048, 2048
          %188 = vsyncadd [#allocation8], %s187
          %s189 = sshll.u32 [#allocation7], 4
          %s190 = int_to_ptr.vmem [resolvable:$true] %s189
          %195 = dma.hbm_to_vmem [thread:$0]  %s3, 2048, %s190, [#allocation8], 128, 128, 8
        $region24: #{tpu_custom_call.1} parent=11 // pred_fallthru
          _
        // Predicated region
        $region25: #{tpu_custom_call.1} parent=11 // pred_check
          %p196 = pneg %p126
        $region26: #{tpu_custom_call.1} parent=11 // pred_check_branch
          %198 = sbr.rel (%p196) target = $region28
        $region27: #{tpu_custom_call.1} parent=11 // pred_region
          _
        $region28: #{tpu_custom_call.1} parent=11 // pred_fallthru
          _
      $region12: #{tpu_custom_call.1} parent=5 // pred_fallthru
        _
      %p199 = scmp.lt.s32.totalorder %s16, 2
      // Predicated region
      $region29: #{tpu_custom_call.1} parent=5 // pred_check
        %p200 = pneg %p199
      $region30: #{tpu_custom_call.1} parent=5 // pred_check_branch
        %202 = sbr.rel (%p200) target = $region32
      $region31: #{tpu_custom_call.1} parent=5 // pred_region
        // Predicated region
        $region33: #{tpu_custom_call.1} parent=31 // pred_check
          %p203 = pneg %p57
        $region34: #{tpu_custom_call.1} parent=31 // pred_check_branch
          %205 = sbr.rel (%p203) target = $region36
        $region35: #{tpu_custom_call.1} parent=31 // pred_region
          %s206 = smul.u32 8, %s16
          %p207 = scmp.lt.s32.totalorder %s206, 15
          %s208 = scalar_select %p207, %s206, 15
          %s209 = smul.addr %s208, 8
          %s210 = scalar_lea.vmem %s1, %s209
          %s211 = smul.u32 8, %s16
        $region36: #{tpu_custom_call.1} parent=31 // pred_fallthru
          _
      $region32: #{tpu_custom_call.1} parent=5 // pred_fallthru
        _
      %p212 = scmp.le.s32.totalorder 1, %s16
      %p213 = scmp.lt.s32.totalorder %s16, 3
      %p214 = pnand %p212, %p213
      %p215 = pneg %p214
      // Predicated region
      $region37: #{tpu_custom_call.1} parent=5 // pred_check
        _
      $region38: #{tpu_custom_call.1} parent=5 // pred_check_branch
        %217 = sbr.rel (%p214) target = $region40
      $region39: #{tpu_custom_call.1} parent=5 // pred_region
        %s218 = ssub.s32 %s16, 1
        // Predicated region
        $region41: #{tpu_custom_call.1} parent=39 // pred_check
          %p219 = pneg %p84
        $region42: #{tpu_custom_call.1} parent=39 // pred_check_branch
          %221 = sbr.rel (%p219) target = $region44
        $region43: #{tpu_custom_call.1} parent=39 // pred_region
          %222 = dma.done [#allocation5], 2048
        $region44: #{tpu_custom_call.1} parent=39 // pred_fallthru
          _
        // Predicated region
        $region45: #{tpu_custom_call.1} parent=39 // pred_check
          %p223 = pneg %p105
        $region46: #{tpu_custom_call.1} parent=39 // pred_check_branch
          %225 = sbr.rel (%p223) target = $region48
        $region47: #{tpu_custom_call.1} parent=39 // pred_region
          %226 = dma.done [#allocation8], 2048
        $region48: #{tpu_custom_call.1} parent=39 // pred_fallthru
          _
        %p227 = pneg %p37
        %p228 = pneg %p34
        %s229 = smul.u32 8, %s21
        %p230 = scmp.lt.s32.totalorder %s229, 15
        %s231 = scalar_select %p230, %s229, 15
        %s232 = smul.addr %s231, 8
        %s233 = scalar_lea.vmem %s1, %s232
        %p234 = pneg %p63
        %p235 = pneg %p60
        %p236 = pneg %p84
        %p237 = pneg %p81
        %p238 = pneg %p105
        %p239 = pneg %p102
        %p240 = pneg %p126
        %p241 = pneg %p123
        %p242 = pneg %p152
        %p243 = pneg %p149
        %s244 = sand.u32 %s139, 1
        %s245 = scalar_lea.sflag [#allocation6], %s244
        %s246 = sand.u32 %s139, 1
        %s247 = smul.addr %s246, 64
        %s248 = scalar_lea.vmem [#allocation9], %s247
        %s249 = smul.u32 8, %s21
        %p250 = scmp.lt.s32.totalorder %s249, 15
        %s251 = scalar_select %p250, %s249, 15
        %s252 = smul.addr %s251, 8
        %s253 = scalar_lea.vmem %s1, %s252
        %s254 = smul.u32 8, %s21
        %s255 = smul.u32 8, %s21
        %s256 = smul.u32 %s21, 64
        %s257 = scalar_lea.vmem %s0, %s256
        %v258 = vld [vmem:[%s257] sm:$0xff]
        %v259 = vld [vmem:[%s257 + $0x8] sm:$0xff]
        %v260 = vld [vmem:[%s257 + $0x10] sm:$0xff]
        %v261 = vld [vmem:[%s257 + $0x18] sm:$0xff]
        %v262 = vld [vmem:[%s257 + $0x20] sm:$0xff]
        %v263 = vld [vmem:[%s257 + $0x28] sm:$0xff]
        %v264 = vld [vmem:[%s257 + $0x30] sm:$0xff]
        %v265 = vld [vmem:[%s257 + $0x38] sm:$0xff]
        %v266 = vlaneseq
        %v267 = vand.u32 %v266, 127
        %vm268 = vcmp.eq.s32.totalorder %v267, 3
        %v269 = vmul.f32 %v258, -2.0
        %v270 = vmul.f32 %v259, -2.0
        %v271 = vmul.f32 %v260, -2.0
        %v272 = vmul.f32 %v261, -2.0
        %v273 = vmul.f32 %v262, -2.0
        %v274 = vmul.f32 %v263, -2.0
        %v275 = vmul.f32 %v264, -2.0
        %v276 = vmul.f32 %v265, -2.0
        %v277 = vsel %vm268, 1.0, %v269
        %v278 = vsel %vm268, 1.0, %v270
        %v279 = vsel %vm268, 1.0, %v271
        %v280 = vsel %vm268, 1.0, %v272
        %v281 = vsel %vm268, 1.0, %v273
        %v282 = vsel %vm268, 1.0, %v274
        %v283 = vsel %vm268, 1.0, %v275
        %v284 = vsel %vm268, 1.0, %v276
        %v285 = vld [vmem:[%s0] sm:$0xff]
        %v286 = vld [vmem:[%s0 + $0x8] sm:$0xff]
        %v287 = vld [vmem:[%s0 + $0x10] sm:$0xff]
        %v288 = vld [vmem:[%s0 + $0x18] sm:$0xff]
        %v289 = vld [vmem:[%s0 + $0x20] sm:$0xff]
        %v290 = vld [vmem:[%s0 + $0x28] sm:$0xff]
        %v291 = vld [vmem:[%s0 + $0x30] sm:$0xff]
        %v292 = vld [vmem:[%s0 + $0x38] sm:$0xff]
        %v293 = vld [vmem:[%s0 + $0x40] sm:$0xff]
        %v294 = vld [vmem:[%s0 + $0x48] sm:$0xff]
        %v295 = vld [vmem:[%s0 + $0x50] sm:$0xff]
        %v296 = vld [vmem:[%s0 + $0x58] sm:$0xff]
        %v297 = vld [vmem:[%s0 + $0x60] sm:$0xff]
        %v298 = vld [vmem:[%s0 + $0x68] sm:$0xff]
        %v299 = vld [vmem:[%s0 + $0x70] sm:$0xff]
        %v300 = vld [vmem:[%s0 + $0x78] sm:$0xff]
        %vm301 = vcmask 64512
        %v303 = vsel %vm301, %v277, 0
        %v306 = vsel %vm301, %v278, 0
        %v309 = vsel %vm301, %v279, 0
        %v312 = vsel %vm301, %v280, 0
        %v315 = vsel %vm301, %v281, 0
        %v318 = vsel %vm301, %v282, 0
        %v321 = vsel %vm301, %v283, 0
        %v324 = vsel %vm301, %v284, 0
        %v327 = vsel %vm301, %v285, 0
        %v330 = vsel %vm301, %v286, 0
        %v333 = vsel %vm301, %v287, 0
        %v336 = vsel %vm301, %v288, 0
        %v339 = vsel %vm301, %v289, 0
        %v342 = vsel %vm301, %v290, 0
        %v345 = vsel %vm301, %v291, 0
        %v348 = vsel %vm301, %v292, 0
        %v351 = vsel %vm301, %v293, 0
        %v354 = vsel %vm301, %v294, 0
        %v357 = vsel %vm301, %v295, 0
        %v360 = vsel %vm301, %v296, 0
        %v363 = vsel %vm301, %v297, 0
        %v366 = vsel %vm301, %v298, 0
        %v369 = vsel %vm301, %v299, 0
        %v372 = vsel %vm301, %v300, 0
        %374 = vmatprep.subr.mxu0 0.0
        %375 = vmatpush1.xpose.msra.mxu0 %v372
        %376 = vmatprep.subr.mxu0 0.0
        %377 = vmatpush1.xpose.msra.mxu0 %v369
        %378 = vmatprep.subr.mxu0 0.0
        %379 = vmatpush1.xpose.msra.mxu0 %v366
        %380 = vmatprep.subr.mxu0 0.0
        %381 = vmatpush1.xpose.msra.mxu0 %v363
        %382 = vmatprep.subr.mxu0 0.0
        %383 = vmatpush1.xpose.msra.mxu0 %v360
        %384 = vmatprep.subr.mxu0 0.0
        %385 = vmatpush1.xpose.msra.mxu0 %v357
        %386 = vmatprep.subr.mxu0 0.0
        %387 = vmatpush1.xpose.msra.mxu0 %v354
        %388 = vmatprep.subr.mxu0 0.0
        %389 = vmatpush1.xpose.msra.mxu0 %v351
        %390 = vmatprep.subr.mxu0 0.0
        %391 = vmatpush1.xpose.msra.mxu0 %v348
        %392 = vmatprep.subr.mxu0 0.0
        %393 = vmatpush1.xpose.msra.mxu0 %v345
        %394 = vmatprep.subr.mxu0 0.0
        %395 = vmatpush1.xpose.msra.mxu0 %v342
        %396 = vmatprep.subr.mxu0 0.0
        %397 = vmatpush1.xpose.msra.mxu0 %v339
        %398 = vmatprep.subr.mxu0 0.0
        %399 = vmatpush1.xpose.msra.mxu0 %v336
        %400 = vmatprep.subr.mxu0 0.0
        %401 = vmatpush1.xpose.msra.mxu0 %v333
        %402 = vmatprep.subr.mxu0 0.0
        %403 = vmatpush1.xpose.msra.mxu0 %v330
        %404 = vmatprep.subr.mxu0 0.0
        %405 = vmatpush1.xpose.msra.mxu0 %v327
        %406 = vmatprep.subr.mxu0 0.0
        %407 = vmatpush2.xpose.msra.mxu0 0.0
        %408 = vmatprep.subr.mxu0 0.0
        %409 = vmatpush2.xpose.msra.mxu0 0.0
        %410 = vmatprep.subr.mxu0 0.0
        %411 = vmatpush2.xpose.msra.mxu0 0.0
        %412 = vmatprep.subr.mxu0 0.0
        %413 = vmatpush2.xpose.msra.mxu0 0.0
        %414 = vmatprep.subr.mxu0 0.0
        %415 = vmatpush2.xpose.msra.mxu0 0.0
        %416 = vmatprep.subr.mxu0 0.0
        %417 = vmatpush2.xpose.msra.mxu0 0.0
        %418 = vmatprep.subr.mxu0 0.0
        %419 = vmatpush2.xpose.msra.mxu0 0.0
        %420 = vmatprep.subr.mxu0 0.0
        %421 = vmatpush2.xpose.msra.mxu0 0.0
        %422 = vmatprep.subr.mxu0 0.0
        %423 = vmatpush2.xpose.msra.mxu0 0.0
        %424 = vmatprep.subr.mxu0 0.0
        %425 = vmatpush2.xpose.msra.mxu0 0.0
        %426 = vmatprep.subr.mxu0 0.0
        %427 = vmatpush2.xpose.msra.mxu0 0.0
        %428 = vmatprep.subr.mxu0 0.0
        %429 = vmatpush2.xpose.msra.mxu0 0.0
        %430 = vmatprep.subr.mxu0 0.0
        %431 = vmatpush2.xpose.msra.mxu0 0.0
        %432 = vmatprep.subr.mxu0 0.0
        %433 = vmatpush2.xpose.msra.mxu0 0.0
        %434 = vmatprep.subr.mxu0 0.0
        %435 = vmatpush2.xpose.msra.mxu0 0.0
        %436 = vmatprep.subr.mxu0 0.0
        %437 = vmatpush2.xpose.msra.mxu0 0.0
        %438 = vmatprep.mubr.f32.mxu0 0.0
        %439 = vmatmul.mubr.f32.gmra.mxu0 %v303
        %v440 = vpop.f32.mrf.mxu0
        %v441 = vadd.f32 0.0, %v440
        %v442 = vpop.f32.mrf.mxu0
        %443 = vmatprep.mubr.f32.mxu0 0.0
        %444 = vmatmul.mubr.f32.gmra.mxu0 %v306
        %v445 = vpop.f32.mrf.mxu0
        %v446 = vadd.f32 0.0, %v445
        %v447 = vpop.f32.mrf.mxu0
        %448 = vmatprep.mubr.f32.mxu0 0.0
        %449 = vmatmul.mubr.f32.gmra.mxu0 %v309
        %v450 = vpop.f32.mrf.mxu0
        %v451 = vadd.f32 0.0, %v450
        %v452 = vpop.f32.mrf.mxu0
        %453 = vmatprep.mubr.f32.mxu0 0.0
        %454 = vmatmul.mubr.f32.gmra.mxu0 %v312
        %v455 = vpop.f32.mrf.mxu0
        %v456 = vadd.f32 0.0, %v455
        %v457 = vpop.f32.mrf.mxu0
        %458 = vmatprep.mubr.f32.mxu0 0.0
        %459 = vmatmul.mubr.f32.gmra.mxu0 %v315
        %v460 = vpop.f32.mrf.mxu0
        %v461 = vadd.f32 0.0, %v460
        %v462 = vpop.f32.mrf.mxu0
        %463 = vmatprep.mubr.f32.mxu0 0.0
        %464 = vmatmul.mubr.f32.gmra.mxu0 %v318
        %v465 = vpop.f32.mrf.mxu0
        %v466 = vadd.f32 0.0, %v465
        %v467 = vpop.f32.mrf.mxu0
        %468 = vmatprep.mubr.f32.mxu0 0.0
        %469 = vmatmul.mubr.f32.gmra.mxu0 %v321
        %v470 = vpop.f32.mrf.mxu0
        %v471 = vadd.f32 0.0, %v470
        %v472 = vpop.f32.mrf.mxu0
        %473 = vmatprep.mubr.f32.mxu0 0.0
        %474 = vmatmul.mubr.f32.gmra.mxu0 %v324
        %v475 = vpop.f32.mrf.mxu0
        %v476 = vadd.f32 0.0, %v475
        %v477 = vpop.f32.mrf.mxu0
        %478 = vdwg.mxu0
        %479 = vmin.xlane.f32.xlu0 %v441
        %v480 = vpop.xlane.xlu0 %479
        %481 = vmin.xlane.f32.xlu0 %v446
        %v482 = vpop.xlane.xlu0 %481
        %483 = vmin.xlane.f32.xlu0 %v451
        %v484 = vpop.xlane.xlu0 %483
        %485 = vmin.xlane.f32.xlu0 %v456
        %v486 = vpop.xlane.xlu0 %485
        %487 = vmin.xlane.f32.xlu0 %v461
        %v488 = vpop.xlane.xlu0 %487
        %489 = vmin.xlane.f32.xlu0 %v466
        %v490 = vpop.xlane.xlu0 %489
        %491 = vmin.xlane.f32.xlu0 %v471
        %v492 = vpop.xlane.xlu0 %491
        %493 = vmin.xlane.f32.xlu0 %v476
        %v494 = vpop.xlane.xlu0 %493
        %vm495 = vcmp.le.f32.partialorder %v441, %v480
        %vm496 = vcmp.le.f32.partialorder %v446, %v482
        %vm497 = vcmp.le.f32.partialorder %v451, %v484
        %vm498 = vcmp.le.f32.partialorder %v456, %v486
        %vm499 = vcmp.le.f32.partialorder %v461, %v488
        %vm500 = vcmp.le.f32.partialorder %v466, %v490
        %vm501 = vcmp.le.f32.partialorder %v471, %v492
        %vm502 = vcmp.le.f32.partialorder %v476, %v494
        %v503 = vsel %vm495, %v267, 128
        %v504 = vsel %vm496, %v267, 128
        %v505 = vsel %vm497, %v267, 128
        %v506 = vsel %vm498, %v267, 128
        %v507 = vsel %vm499, %v267, 128
        %v508 = vsel %vm500, %v267, 128
        %v509 = vsel %vm501, %v267, 128
        %v510 = vsel %vm502, %v267, 128
        %v511 = vand.u32 %v503, 65535
        %v512 = vshra.s32 %v503, 16
        %v513 = vcvt.s32.f32 %v511
        %v514 = vcvt.s32.f32 %v512
        %515 = vmin.xlane.f32.xlu0 %v514
        %v516 = vpop.xlane.xlu0 %515
        %vm517 = vcmp.eq.f32.partialorder %v514, %v516
        %v518 = vsel %vm517, %v513, inf
        %519 = vmin.xlane.f32.xlu0 %v518
        %v520 = vpop.xlane.xlu0 %519
        %v521 = vcvt.f32.s32 %v520
        %v522 = vcvt.f32.s32 %v516
        %v523 = vshll.u32 %v522, 16
        %v524 = vadd.s32 %v523, %v521
        %v525 = vand.u32 %v504, 65535
        %v526 = vshra.s32 %v504, 16
        %v527 = vcvt.s32.f32 %v525
        %v528 = vcvt.s32.f32 %v526
        %529 = vmin.xlane.f32.xlu0 %v528
        %v530 = vpop.xlane.xlu0 %529
        %vm531 = vcmp.eq.f32.partialorder %v528, %v530
        %v532 = vsel %vm531, %v527, inf
        %533 = vmin.xlane.f32.xlu0 %v532
        %v534 = vpop.xlane.xlu0 %533
        %v535 = vcvt.f32.s32 %v534
        %v536 = vcvt.f32.s32 %v530
        %v537 = vshll.u32 %v536, 16
        %v538 = vadd.s32 %v537, %v535
        %v539 = vand.u32 %v505, 65535
        %v540 = vshra.s32 %v505, 16
        %v541 = vcvt.s32.f32 %v539
        %v542 = vcvt.s32.f32 %v540
        %543 = vmin.xlane.f32.xlu0 %v542
        %v544 = vpop.xlane.xlu0 %543
        %vm545 = vcmp.eq.f32.partialorder %v542, %v544
        %v546 = vsel %vm545, %v541, inf
        %547 = vmin.xlane.f32.xlu0 %v546
        %v548 = vpop.xlane.xlu0 %547
        %v549 = vcvt.f32.s32 %v548
        %v550 = vcvt.f32.s32 %v544
        %v551 = vshll.u32 %v550, 16
        %v552 = vadd.s32 %v551, %v549
        %v553 = vand.u32 %v506, 65535
        %v554 = vshra.s32 %v506, 16
        %v555 = vcvt.s32.f32 %v553
        %v556 = vcvt.s32.f32 %v554
        %557 = vmin.xlane.f32.xlu0 %v556
        %v558 = vpop.xlane.xlu0 %557
        %vm559 = vcmp.eq.f32.partialorder %v556, %v558
        %v560 = vsel %vm559, %v555, inf
        %561 = vmin.xlane.f32.xlu0 %v560
        %v562 = vpop.xlane.xlu0 %561
        %v563 = vcvt.f32.s32 %v562
        %v564 = vcvt.f32.s32 %v558
        %v565 = vshll.u32 %v564, 16
        %v566 = vadd.s32 %v565, %v563
        %v567 = vand.u32 %v507, 65535
        %v568 = vshra.s32 %v507, 16
        %v569 = vcvt.s32.f32 %v567
        %v570 = vcvt.s32.f32 %v568
        %571 = vmin.xlane.f32.xlu0 %v570
        %v572 = vpop.xlane.xlu0 %571
        %vm573 = vcmp.eq.f32.partialorder %v570, %v572
        %v574 = vsel %vm573, %v569, inf
        %575 = vmin.xlane.f32.xlu0 %v574
        %v576 = vpop.xlane.xlu0 %575
        %v577 = vcvt.f32.s32 %v576
        %v578 = vcvt.f32.s32 %v572
        %v579 = vshll.u32 %v578, 16
        %v580 = vadd.s32 %v579, %v577
        %v581 = vand.u32 %v508, 65535
        %v582 = vshra.s32 %v508, 16
        %v583 = vcvt.s32.f32 %v581
        %v584 = vcvt.s32.f32 %v582
        %585 = vmin.xlane.f32.xlu0 %v584
        %v586 = vpop.xlane.xlu0 %585
        %vm587 = vcmp.eq.f32.partialorder %v584, %v586
        %v588 = vsel %vm587, %v583, inf
        %589 = vmin.xlane.f32.xlu0 %v588
        %v590 = vpop.xlane.xlu0 %589
        %v591 = vcvt.f32.s32 %v590
        %v592 = vcvt.f32.s32 %v586
        %v593 = vshll.u32 %v592, 16
        %v594 = vadd.s32 %v593, %v591
        %v595 = vand.u32 %v509, 65535
        %v596 = vshra.s32 %v509, 16
        %v597 = vcvt.s32.f32 %v595
        %v598 = vcvt.s32.f32 %v596
        %599 = vmin.xlane.f32.xlu0 %v598
        %v600 = vpop.xlane.xlu0 %599
        %vm601 = vcmp.eq.f32.partialorder %v598, %v600
        %v602 = vsel %vm601, %v597, inf
        %603 = vmin.xlane.f32.xlu0 %v602
        %v604 = vpop.xlane.xlu0 %603
        %v605 = vcvt.f32.s32 %v604
        %v606 = vcvt.f32.s32 %v600
        %v607 = vshll.u32 %v606, 16
        %v608 = vadd.s32 %v607, %v605
        %v609 = vand.u32 %v510, 65535
        %v610 = vshra.s32 %v510, 16
        %v611 = vcvt.s32.f32 %v609
        %v612 = vcvt.s32.f32 %v610
        %613 = vmin.xlane.f32.xlu0 %v612
        %v614 = vpop.xlane.xlu0 %613
        %vm615 = vcmp.eq.f32.partialorder %v612, %v614
        %v616 = vsel %vm615, %v611, inf
        %617 = vmin.xlane.f32.xlu0 %v616
        %v618 = vpop.xlane.xlu0 %617
        %v619 = vcvt.f32.s32 %v618
        %v620 = vcvt.f32.s32 %v614
        %v621 = vshll.u32 %v620, 16
        %v622 = vadd.s32 %v621, %v619
        %vm623 = vcmp.eq.s32.totalorder %v267, %v524
        %vm624 = vcmp.eq.s32.totalorder %v267, %v538
        %vm625 = vcmp.eq.s32.totalorder %v267, %v552
        %vm626 = vcmp.eq.s32.totalorder %v267, %v566
        %vm627 = vcmp.eq.s32.totalorder %v267, %v580
        %vm628 = vcmp.eq.s32.totalorder %v267, %v594
        %vm629 = vcmp.eq.s32.totalorder %v267, %v608
        %vm630 = vcmp.eq.s32.totalorder %v267, %v622
        %v631 = vsel %vm623, 1.0, 0.0
        %v632 = vsel %vm624, 1.0, 0.0
        %v633 = vsel %vm625, 1.0, 0.0
        %v634 = vsel %vm626, 1.0, 0.0
        %v635 = vsel %vm627, 1.0, 0.0
        %v636 = vsel %vm628, 1.0, 0.0
        %v637 = vsel %vm629, 1.0, 0.0
        %v638 = vsel %vm630, 1.0, 0.0
        %639 = vst [vmem:[#allocation2] sm:$0xff] %v631
        %640 = vst [vmem:[#allocation2 + $0x8] sm:$0xff] %v632
        %641 = vst [vmem:[#allocation2 + $0x10] sm:$0xff] %v633
        %642 = vst [vmem:[#allocation2 + $0x18] sm:$0xff] %v634
        %643 = vst [vmem:[#allocation2 + $0x20] sm:$0xff] %v635
        %644 = vst [vmem:[#allocation2 + $0x28] sm:$0xff] %v636
        %645 = vst [vmem:[#allocation2 + $0x30] sm:$0xff] %v637
        %646 = vst [vmem:[#allocation2 + $0x38] sm:$0xff] %v638
        %v647 = vsel %vm623, 1e+30, %v441
        %v648 = vsel %vm624, 1e+30, %v446
        %v649 = vsel %vm625, 1e+30, %v451
        %v650 = vsel %vm626, 1e+30, %v456
        %v651 = vsel %vm627, 1e+30, %v461
        %v652 = vsel %vm628, 1e+30, %v466
        %v653 = vsel %vm629, 1e+30, %v471
        %v654 = vsel %vm630, 1e+30, %v476
        %655 = vmin.xlane.f32.xlu0 %v647
        %v656 = vpop.xlane.xlu0 %655
        %657 = vmin.xlane.f32.xlu0 %v648
        %v658 = vpop.xlane.xlu0 %657
        %659 = vmin.xlane.f32.xlu0 %v649
        %v660 = vpop.xlane.xlu0 %659
        %661 = vmin.xlane.f32.xlu0 %v650
        %v662 = vpop.xlane.xlu0 %661
        %663 = vmin.xlane.f32.xlu0 %v651
        %v664 = vpop.xlane.xlu0 %663
        %665 = vmin.xlane.f32.xlu0 %v652
        %v666 = vpop.xlane.xlu0 %665
        %667 = vmin.xlane.f32.xlu0 %v653
        %v668 = vpop.xlane.xlu0 %667
        %669 = vmin.xlane.f32.xlu0 %v654
        %v670 = vpop.xlane.xlu0 %669
        %vm671 = vcmp.le.f32.partialorder %v647, %v656
        %vm672 = vcmp.le.f32.partialorder %v648, %v658
        %vm673 = vcmp.le.f32.partialorder %v649, %v660
        %vm674 = vcmp.le.f32.partialorder %v650, %v662
        %vm675 = vcmp.le.f32.partialorder %v651, %v664
        %vm676 = vcmp.le.f32.partialorder %v652, %v666
        %vm677 = vcmp.le.f32.partialorder %v653, %v668
        %vm678 = vcmp.le.f32.partialorder %v654, %v670
        %v679 = vsel %vm671, %v267, 128
        %v680 = vsel %vm672, %v267, 128
        %v681 = vsel %vm673, %v267, 128
        %v682 = vsel %vm674, %v267, 128
        %v683 = vsel %vm675, %v267, 128
        %v684 = vsel %vm676, %v267, 128
        %v685 = vsel %vm677, %v267, 128
        %v686 = vsel %vm678, %v267, 128
        %v687 = vand.u32 %v679, 65535
        %v688 = vshra.s32 %v679, 16
        %v689 = vcvt.s32.f32 %v687
        %v690 = vcvt.s32.f32 %v688
        %691 = vmin.xlane.f32.xlu0 %v690
        %v692 = vpop.xlane.xlu0 %691
        %vm693 = vcmp.eq.f32.partialorder %v690, %v692
        %v694 = vsel %vm693, %v689, inf
        %695 = vmin.xlane.f32.xlu0 %v694
        %v696 = vpop.xlane.xlu0 %695
        %v697 = vcvt.f32.s32 %v696
        %v698 = vcvt.f32.s32 %v692
        %v699 = vshll.u32 %v698, 16
        %v700 = vadd.s32 %v699, %v697
        %v701 = vand.u32 %v680, 65535
        %v702 = vshra.s32 %v680, 16
        %v703 = vcvt.s32.f32 %v701
        %v704 = vcvt.s32.f32 %v702
        %705 = vmin.xlane.f32.xlu0 %v704
        %v706 = vpop.xlane.xlu0 %705
        %vm707 = vcmp.eq.f32.partialorder %v704, %v706
        %v708 = vsel %vm707, %v703, inf
        %709 = vmin.xlane.f32.xlu0 %v708
        %v710 = vpop.xlane.xlu0 %709
        %v711 = vcvt.f32.s32 %v710
        %v712 = vcvt.f32.s32 %v706
        %v713 = vshll.u32 %v712, 16
        %v714 = vadd.s32 %v713, %v711
        %v715 = vand.u32 %v681, 65535
        %v716 = vshra.s32 %v681, 16
        %v717 = vcvt.s32.f32 %v715
        %v718 = vcvt.s32.f32 %v716
        %719 = vmin.xlane.f32.xlu0 %v718
        %v720 = vpop.xlane.xlu0 %719
        %vm721 = vcmp.eq.f32.partialorder %v718, %v720
        %v722 = vsel %vm721, %v717, inf
        %723 = vmin.xlane.f32.xlu0 %v722
        %v724 = vpop.xlane.xlu0 %723
        %v725 = vcvt.f32.s32 %v724
        %v726 = vcvt.f32.s32 %v720
        %v727 = vshll.u32 %v726, 16
        %v728 = vadd.s32 %v727, %v725
        %v729 = vand.u32 %v682, 65535
        %v730 = vshra.s32 %v682, 16
        %v731 = vcvt.s32.f32 %v729
        %v732 = vcvt.s32.f32 %v730
        %733 = vmin.xlane.f32.xlu0 %v732
        %v734 = vpop.xlane.xlu0 %733
        %vm735 = vcmp.eq.f32.partialorder %v732, %v734
        %v736 = vsel %vm735, %v731, inf
        %737 = vmin.xlane.f32.xlu0 %v736
        %v738 = vpop.xlane.xlu0 %737
        %v739 = vcvt.f32.s32 %v738
        %v740 = vcvt.f32.s32 %v734
        %v741 = vshll.u32 %v740, 16
        %v742 = vadd.s32 %v741, %v739
        %v743 = vand.u32 %v683, 65535
        %v744 = vshra.s32 %v683, 16
        %v745 = vcvt.s32.f32 %v743
        %v746 = vcvt.s32.f32 %v744
        %747 = vmin.xlane.f32.xlu0 %v746
        %v748 = vpop.xlane.xlu0 %747
        %vm749 = vcmp.eq.f32.partialorder %v746, %v748
        %v750 = vsel %vm749, %v745, inf
        %751 = vmin.xlane.f32.xlu0 %v750
        %v752 = vpop.xlane.xlu0 %751
        %v753 = vcvt.f32.s32 %v752
        %v754 = vcvt.f32.s32 %v748
        %v755 = vshll.u32 %v754, 16
        %v756 = vadd.s32 %v755, %v753
        %v757 = vand.u32 %v684, 65535
        %v758 = vshra.s32 %v684, 16
        %v759 = vcvt.s32.f32 %v757
        %v760 = vcvt.s32.f32 %v758
        %761 = vmin.xlane.f32.xlu0 %v760
        %v762 = vpop.xlane.xlu0 %761
        %vm763 = vcmp.eq.f32.partialorder %v760, %v762
        %v764 = vsel %vm763, %v759, inf
        %765 = vmin.xlane.f32.xlu0 %v764
        %v766 = vpop.xlane.xlu0 %765
        %v767 = vcvt.f32.s32 %v766
        %v768 = vcvt.f32.s32 %v762
        %v769 = vshll.u32 %v768, 16
        %v770 = vadd.s32 %v769, %v767
        %v771 = vand.u32 %v685, 65535
        %v772 = vshra.s32 %v685, 16
        %v773 = vcvt.s32.f32 %v771
        %v774 = vcvt.s32.f32 %v772
        %775 = vmin.xlane.f32.xlu0 %v774
        %v776 = vpop.xlane.xlu0 %775
        %vm777 = vcmp.eq.f32.partialorder %v774, %v776
        %v778 = vsel %vm777, %v773, inf
        %779 = vmin.xlane.f32.xlu0 %v778
        %v780 = vpop.xlane.xlu0 %779
        %v781 = vcvt.f32.s32 %v780
        %v782 = vcvt.f32.s32 %v776
        %v783 = vshll.u32 %v782, 16
        %v784 = vadd.s32 %v783, %v781
        %v785 = vand.u32 %v686, 65535
        %v786 = vshra.s32 %v686, 16
        %v787 = vcvt.s32.f32 %v785
        %v788 = vcvt.s32.f32 %v786
        %789 = vmin.xlane.f32.xlu0 %v788
        %v790 = vpop.xlane.xlu0 %789
        %vm791 = vcmp.eq.f32.partialorder %v788, %v790
        %v792 = vsel %vm791, %v787, inf
        %793 = vmin.xlane.f32.xlu0 %v792
        %v794 = vpop.xlane.xlu0 %793
        %v795 = vcvt.f32.s32 %v794
        %v796 = vcvt.f32.s32 %v790
        %v797 = vshll.u32 %v796, 16
        %v798 = vadd.s32 %v797, %v795
        %vm799 = vcmp.eq.s32.totalorder %v267, %v700
        %vm800 = vcmp.eq.s32.totalorder %v267, %v714
        %vm801 = vcmp.eq.s32.totalorder %v267, %v728
        %vm802 = vcmp.eq.s32.totalorder %v267, %v742
        %vm803 = vcmp.eq.s32.totalorder %v267, %v756
        %vm804 = vcmp.eq.s32.totalorder %v267, %v770
        %vm805 = vcmp.eq.s32.totalorder %v267, %v784
        %vm806 = vcmp.eq.s32.totalorder %v267, %v798
        %v807 = vsel %vm799, 1.0, 0.0
        %v808 = vsel %vm800, 1.0, 0.0
        %v809 = vsel %vm801, 1.0, 0.0
        %v810 = vsel %vm802, 1.0, 0.0
        %v811 = vsel %vm803, 1.0, 0.0
        %v812 = vsel %vm804, 1.0, 0.0
        %v813 = vsel %vm805, 1.0, 0.0
        %v814 = vsel %vm806, 1.0, 0.0
        %815 = vst [vmem:[#allocation2 + $0x40] sm:$0xff] %v807
        %816 = vst [vmem:[#allocation2 + $0x48] sm:$0xff] %v808
        %817 = vst [vmem:[#allocation2 + $0x50] sm:$0xff] %v809
        %818 = vst [vmem:[#allocation2 + $0x58] sm:$0xff] %v810
        %819 = vst [vmem:[#allocation2 + $0x60] sm:$0xff] %v811
        %820 = vst [vmem:[#allocation2 + $0x68] sm:$0xff] %v812
        %821 = vst [vmem:[#allocation2 + $0x70] sm:$0xff] %v813
        %822 = vst [vmem:[#allocation2 + $0x78] sm:$0xff] %v814
        %v823 = vsel %vm799, 1e+30, %v647
        %v824 = vsel %vm800, 1e+30, %v648
        %v825 = vsel %vm801, 1e+30, %v649
        %v826 = vsel %vm802, 1e+30, %v650
        %v827 = vsel %vm803, 1e+30, %v651
        %v828 = vsel %vm804, 1e+30, %v652
        %v829 = vsel %vm805, 1e+30, %v653
        %v830 = vsel %vm806, 1e+30, %v654
        %831 = vmin.xlane.f32.xlu0 %v823
        %v832 = vpop.xlane.xlu0 %831
        %833 = vmin.xlane.f32.xlu0 %v824
        %v834 = vpop.xlane.xlu0 %833
        %835 = vmin.xlane.f32.xlu0 %v825
        %v836 = vpop.xlane.xlu0 %835
        %837 = vmin.xlane.f32.xlu0 %v826
        %v838 = vpop.xlane.xlu0 %837
        %839 = vmin.xlane.f32.xlu0 %v827
        %v840 = vpop.xlane.xlu0 %839
        %841 = vmin.xlane.f32.xlu0 %v828
        %v842 = vpop.xlane.xlu0 %841
        %843 = vmin.xlane.f32.xlu0 %v829
        %v844 = vpop.xlane.xlu0 %843
        %845 = vmin.xlane.f32.xlu0 %v830
        %v846 = vpop.xlane.xlu0 %845
        %vm847 = vcmp.le.f32.partialorder %v823, %v832
        %vm848 = vcmp.le.f32.partialorder %v824, %v834
        %vm849 = vcmp.le.f32.partialorder %v825, %v836
        %vm850 = vcmp.le.f32.partialorder %v826, %v838
        %vm851 = vcmp.le.f32.partialorder %v827, %v840
        %vm852 = vcmp.le.f32.partialorder %v828, %v842
        %vm853 = vcmp.le.f32.partialorder %v829, %v844
        %vm854 = vcmp.le.f32.partialorder %v830, %v846
        %v855 = vsel %vm847, %v267, 128
        %v856 = vsel %vm848, %v267, 128
        %v857 = vsel %vm849, %v267, 128
        %v858 = vsel %vm850, %v267, 128
        %v859 = vsel %vm851, %v267, 128
        %v860 = vsel %vm852, %v267, 128
        %v861 = vsel %vm853, %v267, 128
        %v862 = vsel %vm854, %v267, 128
        %v863 = vand.u32 %v855, 65535
        %v864 = vshra.s32 %v855, 16
        %v865 = vcvt.s32.f32 %v863
        %v866 = vcvt.s32.f32 %v864
        %867 = vmin.xlane.f32.xlu0 %v866
        %v868 = vpop.xlane.xlu0 %867
        %vm869 = vcmp.eq.f32.partialorder %v866, %v868
        %v870 = vsel %vm869, %v865, inf
        %871 = vmin.xlane.f32.xlu0 %v870
        %v872 = vpop.xlane.xlu0 %871
        %v873 = vcvt.f32.s32 %v872
        %v874 = vcvt.f32.s32 %v868
        %v875 = vshll.u32 %v874, 16
        %v876 = vadd.s32 %v875, %v873
        %v877 = vand.u32 %v856, 65535
        %v878 = vshra.s32 %v856, 16
        %v879 = vcvt.s32.f32 %v877
        %v880 = vcvt.s32.f32 %v878
        %881 = vmin.xlane.f32.xlu0 %v880
        %v882 = vpop.xlane.xlu0 %881
        %vm883 = vcmp.eq.f32.partialorder %v880, %v882
        %v884 = vsel %vm883, %v879, inf
        %885 = vmin.xlane.f32.xlu0 %v884
        %v886 = vpop.xlane.xlu0 %885
        %v887 = vcvt.f32.s32 %v886
        %v888 = vcvt.f32.s32 %v882
        %v889 = vshll.u32 %v888, 16
        %v890 = vadd.s32 %v889, %v887
        %v891 = vand.u32 %v857, 65535
        %v892 = vshra.s32 %v857, 16
        %v893 = vcvt.s32.f32 %v891
        %v894 = vcvt.s32.f32 %v892
        %895 = vmin.xlane.f32.xlu0 %v894
        %v896 = vpop.xlane.xlu0 %895
        %vm897 = vcmp.eq.f32.partialorder %v894, %v896
        %v898 = vsel %vm897, %v893, inf
        %899 = vmin.xlane.f32.xlu0 %v898
        %v900 = vpop.xlane.xlu0 %899
        %v901 = vcvt.f32.s32 %v900
        %v902 = vcvt.f32.s32 %v896
        %v903 = vshll.u32 %v902, 16
        %v904 = vadd.s32 %v903, %v901
        %v905 = vand.u32 %v858, 65535
        %v906 = vshra.s32 %v858, 16
        %v907 = vcvt.s32.f32 %v905
        %v908 = vcvt.s32.f32 %v906
        %909 = vmin.xlane.f32.xlu0 %v908
        %v910 = vpop.xlane.xlu0 %909
        %vm911 = vcmp.eq.f32.partialorder %v908, %v910
        %v912 = vsel %vm911, %v907, inf
        %913 = vmin.xlane.f32.xlu0 %v912
        %v914 = vpop.xlane.xlu0 %913
        %v915 = vcvt.f32.s32 %v914
        %v916 = vcvt.f32.s32 %v910
        %v917 = vshll.u32 %v916, 16
        %v918 = vadd.s32 %v917, %v915
        %v919 = vand.u32 %v859, 65535
        %v920 = vshra.s32 %v859, 16
        %v921 = vcvt.s32.f32 %v919
        %v922 = vcvt.s32.f32 %v920
        %923 = vmin.xlane.f32.xlu0 %v922
        %v924 = vpop.xlane.xlu0 %923
        %vm925 = vcmp.eq.f32.partialorder %v922, %v924
        %v926 = vsel %vm925, %v921, inf
        %927 = vmin.xlane.f32.xlu0 %v926
        %v928 = vpop.xlane.xlu0 %927
        %v929 = vcvt.f32.s32 %v928
        %v930 = vcvt.f32.s32 %v924
        %v931 = vshll.u32 %v930, 16
        %v932 = vadd.s32 %v931, %v929
        %v933 = vand.u32 %v860, 65535
        %v934 = vshra.s32 %v860, 16
        %v935 = vcvt.s32.f32 %v933
        %v936 = vcvt.s32.f32 %v934
        %937 = vmin.xlane.f32.xlu0 %v936
        %v938 = vpop.xlane.xlu0 %937
        %vm939 = vcmp.eq.f32.partialorder %v936, %v938
        %v940 = vsel %vm939, %v935, inf
        %941 = vmin.xlane.f32.xlu0 %v940
        %v942 = vpop.xlane.xlu0 %941
        %v943 = vcvt.f32.s32 %v942
        %v944 = vcvt.f32.s32 %v938
        %v945 = vshll.u32 %v944, 16
        %v946 = vadd.s32 %v945, %v943
        %v947 = vand.u32 %v861, 65535
        %v948 = vshra.s32 %v861, 16
        %v949 = vcvt.s32.f32 %v947
        %v950 = vcvt.s32.f32 %v948
        %951 = vmin.xlane.f32.xlu0 %v950
        %v952 = vpop.xlane.xlu0 %951
        %vm953 = vcmp.eq.f32.partialorder %v950, %v952
        %v954 = vsel %vm953, %v949, inf
        %955 = vmin.xlane.f32.xlu0 %v954
        %v956 = vpop.xlane.xlu0 %955
        %v957 = vcvt.f32.s32 %v956
        %v958 = vcvt.f32.s32 %v952
        %v959 = vshll.u32 %v958, 16
        %v960 = vadd.s32 %v959, %v957
        %v961 = vand.u32 %v862, 65535
        %v962 = vshra.s32 %v862, 16
        %v963 = vcvt.s32.f32 %v961
        %v964 = vcvt.s32.f32 %v962
        %965 = vmin.xlane.f32.xlu0 %v964
        %v966 = vpop.xlane.xlu0 %965
        %vm967 = vcmp.eq.f32.partialorder %v964, %v966
        %v968 = vsel %vm967, %v963, inf
        %969 = vmin.xlane.f32.xlu0 %v968
        %v970 = vpop.xlane.xlu0 %969
        %v971 = vcvt.f32.s32 %v970
        %v972 = vcvt.f32.s32 %v966
        %v973 = vshll.u32 %v972, 16
        %v974 = vadd.s32 %v973, %v971
        %vm975 = vcmp.eq.s32.totalorder %v267, %v876
        %vm976 = vcmp.eq.s32.totalorder %v267, %v890
        %vm977 = vcmp.eq.s32.totalorder %v267, %v904
        %vm978 = vcmp.eq.s32.totalorder %v267, %v918
        %vm979 = vcmp.eq.s32.totalorder %v267, %v932
        %vm980 = vcmp.eq.s32.totalorder %v267, %v946
        %vm981 = vcmp.eq.s32.totalorder %v267, %v960
        %vm982 = vcmp.eq.s32.totalorder %v267, %v974
        %v983 = vsel %vm975, 1.0, 0.0
        %v984 = vsel %vm976, 1.0, 0.0
        %v985 = vsel %vm977, 1.0, 0.0
        %v986 = vsel %vm978, 1.0, 0.0
        %v987 = vsel %vm979, 1.0, 0.0
        %v988 = vsel %vm980, 1.0, 0.0
        %v989 = vsel %vm981, 1.0, 0.0
        %v990 = vsel %vm982, 1.0, 0.0
        %991 = vst [vmem:[#allocation2 + $0x80] sm:$0xff] %v983
        %992 = vst [vmem:[#allocation2 + $0x88] sm:$0xff] %v984
        %993 = vst [vmem:[#allocation2 + $0x90] sm:$0xff] %v985
        %994 = vst [vmem:[#allocation2 + $0x98] sm:$0xff] %v986
        %995 = vst [vmem:[#allocation2 + $0xa0] sm:$0xff] %v987
        %996 = vst [vmem:[#allocation2 + $0xa8] sm:$0xff] %v988
        %997 = vst [vmem:[#allocation2 + $0xb0] sm:$0xff] %v989
        %998 = vst [vmem:[#allocation2 + $0xb8] sm:$0xff] %v990
        %v999 = vsel %vm975, 1e+30, %v823
        %v1000 = vsel %vm976, 1e+30, %v824
        %v1001 = vsel %vm977, 1e+30, %v825
        %v1002 = vsel %vm978, 1e+30, %v826
        %v1003 = vsel %vm979, 1e+30, %v827
        %v1004 = vsel %vm980, 1e+30, %v828
        %v1005 = vsel %vm981, 1e+30, %v829
        %v1006 = vsel %vm982, 1e+30, %v830
        %1007 = vmin.xlane.f32.xlu0 %v999
        %v1008 = vpop.xlane.xlu0 %1007
        %1009 = vmin.xlane.f32.xlu0 %v1000
        %v1010 = vpop.xlane.xlu0 %1009
        %1011 = vmin.xlane.f32.xlu0 %v1001
        %v1012 = vpop.xlane.xlu0 %1011
        %1013 = vmin.xlane.f32.xlu0 %v1002
        %v1014 = vpop.xlane.xlu0 %1013
        %1015 = vmin.xlane.f32.xlu0 %v1003
        %v1016 = vpop.xlane.xlu0 %1015
        %1017 = vmin.xlane.f32.xlu0 %v1004
        %v1018 = vpop.xlane.xlu0 %1017
        %1019 = vmin.xlane.f32.xlu0 %v1005
        %v1020 = vpop.xlane.xlu0 %1019
        %1021 = vmin.xlane.f32.xlu0 %v1006
        %v1022 = vpop.xlane.xlu0 %1021
        %vm1023 = vcmp.le.f32.partialorder %v999, %v1008
        %vm1024 = vcmp.le.f32.partialorder %v1000, %v1010
        %vm1025 = vcmp.le.f32.partialorder %v1001, %v1012
        %vm1026 = vcmp.le.f32.partialorder %v1002, %v1014
        %vm1027 = vcmp.le.f32.partialorder %v1003, %v1016
        %vm1028 = vcmp.le.f32.partialorder %v1004, %v1018
        %vm1029 = vcmp.le.f32.partialorder %v1005, %v1020
        %vm1030 = vcmp.le.f32.partialorder %v1006, %v1022
        %v1031 = vsel %vm1023, %v267, 128
        %v1032 = vsel %vm1024, %v267, 128
        %v1033 = vsel %vm1025, %v267, 128
        %v1034 = vsel %vm1026, %v267, 128
        %v1035 = vsel %vm1027, %v267, 128
        %v1036 = vsel %vm1028, %v267, 128
        %v1037 = vsel %vm1029, %v267, 128
        %v1038 = vsel %vm1030, %v267, 128
        %v1039 = vand.u32 %v1031, 65535
        %v1040 = vshra.s32 %v1031, 16
        %v1041 = vcvt.s32.f32 %v1039
        %v1042 = vcvt.s32.f32 %v1040
        %1043 = vmin.xlane.f32.xlu0 %v1042
        %v1044 = vpop.xlane.xlu0 %1043
        %vm1045 = vcmp.eq.f32.partialorder %v1042, %v1044
        %v1046 = vsel %vm1045, %v1041, inf
        %1047 = vmin.xlane.f32.xlu0 %v1046
        %v1048 = vpop.xlane.xlu0 %1047
        %v1049 = vcvt.f32.s32 %v1048
        %v1050 = vcvt.f32.s32 %v1044
        %v1051 = vshll.u32 %v1050, 16
        %v1052 = vadd.s32 %v1051, %v1049
        %v1053 = vand.u32 %v1032, 65535
        %v1054 = vshra.s32 %v1032, 16
        %v1055 = vcvt.s32.f32 %v1053
        %v1056 = vcvt.s32.f32 %v1054
        %1057 = vmin.xlane.f32.xlu0 %v1056
        %v1058 = vpop.xlane.xlu0 %1057
        %vm1059 = vcmp.eq.f32.partialorder %v1056, %v1058
        %v1060 = vsel %vm1059, %v1055, inf
        %1061 = vmin.xlane.f32.xlu0 %v1060
        %v1062 = vpop.xlane.xlu0 %1061
        %v1063 = vcvt.f32.s32 %v1062
        %v1064 = vcvt.f32.s32 %v1058
        %v1065 = vshll.u32 %v1064, 16
        %v1066 = vadd.s32 %v1065, %v1063
        %v1067 = vand.u32 %v1033, 65535
        %v1068 = vshra.s32 %v1033, 16
        %v1069 = vcvt.s32.f32 %v1067
        %v1070 = vcvt.s32.f32 %v1068
        %1071 = vmin.xlane.f32.xlu0 %v1070
        %v1072 = vpop.xlane.xlu0 %1071
        %vm1073 = vcmp.eq.f32.partialorder %v1070, %v1072
        %v1074 = vsel %vm1073, %v1069, inf
        %1075 = vmin.xlane.f32.xlu0 %v1074
        %v1076 = vpop.xlane.xlu0 %1075
        %v1077 = vcvt.f32.s32 %v1076
        %v1078 = vcvt.f32.s32 %v1072
        %v1079 = vshll.u32 %v1078, 16
        %v1080 = vadd.s32 %v1079, %v1077
        %v1081 = vand.u32 %v1034, 65535
        %v1082 = vshra.s32 %v1034, 16
        %v1083 = vcvt.s32.f32 %v1081
        %v1084 = vcvt.s32.f32 %v1082
        %1085 = vmin.xlane.f32.xlu0 %v1084
        %v1086 = vpop.xlane.xlu0 %1085
        %vm1087 = vcmp.eq.f32.partialorder %v1084, %v1086
        %v1088 = vsel %vm1087, %v1083, inf
        %1089 = vmin.xlane.f32.xlu0 %v1088
        %v1090 = vpop.xlane.xlu0 %1089
        %v1091 = vcvt.f32.s32 %v1090
        %v1092 = vcvt.f32.s32 %v1086
        %v1093 = vshll.u32 %v1092, 16
        %v1094 = vadd.s32 %v1093, %v1091
        %v1095 = vand.u32 %v1035, 65535
        %v1096 = vshra.s32 %v1035, 16
        %v1097 = vcvt.s32.f32 %v1095
        %v1098 = vcvt.s32.f32 %v1096
        %1099 = vmin.xlane.f32.xlu0 %v1098
        %v1100 = vpop.xlane.xlu0 %1099
        %vm1101 = vcmp.eq.f32.partialorder %v1098, %v1100
        %v1102 = vsel %vm1101, %v1097, inf
        %1103 = vmin.xlane.f32.xlu0 %v1102
        %v1104 = vpop.xlane.xlu0 %1103
        %v1105 = vcvt.f32.s32 %v1104
        %v1106 = vcvt.f32.s32 %v1100
        %v1107 = vshll.u32 %v1106, 16
        %v1108 = vadd.s32 %v1107, %v1105
        %v1109 = vand.u32 %v1036, 65535
        %v1110 = vshra.s32 %v1036, 16
        %v1111 = vcvt.s32.f32 %v1109
        %v1112 = vcvt.s32.f32 %v1110
        %1113 = vmin.xlane.f32.xlu0 %v1112
        %v1114 = vpop.xlane.xlu0 %1113
        %vm1115 = vcmp.eq.f32.partialorder %v1112, %v1114
        %v1116 = vsel %vm1115, %v1111, inf
        %1117 = vmin.xlane.f32.xlu0 %v1116
        %v1118 = vpop.xlane.xlu0 %1117
        %v1119 = vcvt.f32.s32 %v1118
        %v1120 = vcvt.f32.s32 %v1114
        %v1121 = vshll.u32 %v1120, 16
        %v1122 = vadd.s32 %v1121, %v1119
        %v1123 = vand.u32 %v1037, 65535
        %v1124 = vshra.s32 %v1037, 16
        %v1125 = vcvt.s32.f32 %v1123
        %v1126 = vcvt.s32.f32 %v1124
        %1127 = vmin.xlane.f32.xlu0 %v1126
        %v1128 = vpop.xlane.xlu0 %1127
        %vm1129 = vcmp.eq.f32.partialorder %v1126, %v1128
        %v1130 = vsel %vm1129, %v1125, inf
        %1131 = vmin.xlane.f32.xlu0 %v1130
        %v1132 = vpop.xlane.xlu0 %1131
        %v1133 = vcvt.f32.s32 %v1132
        %v1134 = vcvt.f32.s32 %v1128
        %v1135 = vshll.u32 %v1134, 16
        %v1136 = vadd.s32 %v1135, %v1133
        %v1137 = vand.u32 %v1038, 65535
        %v1138 = vshra.s32 %v1038, 16
        %v1139 = vcvt.s32.f32 %v1137
        %v1140 = vcvt.s32.f32 %v1138
        %1141 = vmin.xlane.f32.xlu0 %v1140
        %v1142 = vpop.xlane.xlu0 %1141
        %vm1143 = vcmp.eq.f32.partialorder %v1140, %v1142
        %v1144 = vsel %vm1143, %v1139, inf
        %1145 = vmin.xlane.f32.xlu0 %v1144
        %v1146 = vpop.xlane.xlu0 %1145
        %v1147 = vcvt.f32.s32 %v1146
        %v1148 = vcvt.f32.s32 %v1142
        %v1149 = vshll.u32 %v1148, 16
        %v1150 = vadd.s32 %v1149, %v1147
        %vm1151 = vcmp.eq.s32.totalorder %v267, %v1052
        %vm1152 = vcmp.eq.s32.totalorder %v267, %v1066
        %vm1153 = vcmp.eq.s32.totalorder %v267, %v1080
        %vm1154 = vcmp.eq.s32.totalorder %v267, %v1094
        %vm1155 = vcmp.eq.s32.totalorder %v267, %v1108
        %vm1156 = vcmp.eq.s32.totalorder %v267, %v1122
        %vm1157 = vcmp.eq.s32.totalorder %v267, %v1136
        %vm1158 = vcmp.eq.s32.totalorder %v267, %v1150
        %v1159 = vsel %vm1151, 1.0, 0.0
        %v1160 = vsel %vm1152, 1.0, 0.0
        %v1161 = vsel %vm1153, 1.0, 0.0
        %v1162 = vsel %vm1154, 1.0, 0.0
        %v1163 = vsel %vm1155, 1.0, 0.0
        %v1164 = vsel %vm1156, 1.0, 0.0
        %v1165 = vsel %vm1157, 1.0, 0.0
        %v1166 = vsel %vm1158, 1.0, 0.0
        %1167 = vst [vmem:[#allocation2 + $0xc0] sm:$0xff] %v1159
        %1168 = vst [vmem:[#allocation2 + $0xc8] sm:$0xff] %v1160
        %1169 = vst [vmem:[#allocation2 + $0xd0] sm:$0xff] %v1161
        %1170 = vst [vmem:[#allocation2 + $0xd8] sm:$0xff] %v1162
        %1171 = vst [vmem:[#allocation2 + $0xe0] sm:$0xff] %v1163
        %1172 = vst [vmem:[#allocation2 + $0xe8] sm:$0xff] %v1164
        %1173 = vst [vmem:[#allocation2 + $0xf0] sm:$0xff] %v1165
        %1174 = vst [vmem:[#allocation2 + $0xf8] sm:$0xff] %v1166
        %v1175 = vsel %vm1151, 1e+30, %v999
        %v1176 = vsel %vm1152, 1e+30, %v1000
        %v1177 = vsel %vm1153, 1e+30, %v1001
        %v1178 = vsel %vm1154, 1e+30, %v1002
        %v1179 = vsel %vm1155, 1e+30, %v1003
        %v1180 = vsel %vm1156, 1e+30, %v1004
        %v1181 = vsel %vm1157, 1e+30, %v1005
        %v1182 = vsel %vm1158, 1e+30, %v1006
        %1183 = vmin.xlane.f32.xlu0 %v1175
        %v1184 = vpop.xlane.xlu0 %1183
        %1185 = vmin.xlane.f32.xlu0 %v1176
        %v1186 = vpop.xlane.xlu0 %1185
        %1187 = vmin.xlane.f32.xlu0 %v1177
        %v1188 = vpop.xlane.xlu0 %1187
        %1189 = vmin.xlane.f32.xlu0 %v1178
        %v1190 = vpop.xlane.xlu0 %1189
        %1191 = vmin.xlane.f32.xlu0 %v1179
        %v1192 = vpop.xlane.xlu0 %1191
        %1193 = vmin.xlane.f32.xlu0 %v1180
        %v1194 = vpop.xlane.xlu0 %1193
        %1195 = vmin.xlane.f32.xlu0 %v1181
        %v1196 = vpop.xlane.xlu0 %1195
        %1197 = vmin.xlane.f32.xlu0 %v1182
        %v1198 = vpop.xlane.xlu0 %1197
        %vm1199 = vcmp.le.f32.partialorder %v1175, %v1184
        %vm1200 = vcmp.le.f32.partialorder %v1176, %v1186
        %vm1201 = vcmp.le.f32.partialorder %v1177, %v1188
        %vm1202 = vcmp.le.f32.partialorder %v1178, %v1190
        %vm1203 = vcmp.le.f32.partialorder %v1179, %v1192
        %vm1204 = vcmp.le.f32.partialorder %v1180, %v1194
        %vm1205 = vcmp.le.f32.partialorder %v1181, %v1196
        %vm1206 = vcmp.le.f32.partialorder %v1182, %v1198
        %v1207 = vsel %vm1199, %v267, 128
        %v1208 = vsel %vm1200, %v267, 128
        %v1209 = vsel %vm1201, %v267, 128
        %v1210 = vsel %vm1202, %v267, 128
        %v1211 = vsel %vm1203, %v267, 128
        %v1212 = vsel %vm1204, %v267, 128
        %v1213 = vsel %vm1205, %v267, 128
        %v1214 = vsel %vm1206, %v267, 128
        %v1215 = vand.u32 %v1207, 65535
        %v1216 = vshra.s32 %v1207, 16
        %v1217 = vcvt.s32.f32 %v1215
        %v1218 = vcvt.s32.f32 %v1216
        %1219 = vmin.xlane.f32.xlu0 %v1218
        %v1220 = vpop.xlane.xlu0 %1219
        %vm1221 = vcmp.eq.f32.partialorder %v1218, %v1220
        %v1222 = vsel %vm1221, %v1217, inf
        %1223 = vmin.xlane.f32.xlu0 %v1222
        %v1224 = vpop.xlane.xlu0 %1223
        %v1225 = vcvt.f32.s32 %v1224
        %v1226 = vcvt.f32.s32 %v1220
        %v1227 = vshll.u32 %v1226, 16
        %v1228 = vadd.s32 %v1227, %v1225
        %v1229 = vand.u32 %v1208, 65535
        %v1230 = vshra.s32 %v1208, 16
        %v1231 = vcvt.s32.f32 %v1229
        %v1232 = vcvt.s32.f32 %v1230
        %1233 = vmin.xlane.f32.xlu0 %v1232
        %v1234 = vpop.xlane.xlu0 %1233
        %vm1235 = vcmp.eq.f32.partialorder %v1232, %v1234
        %v1236 = vsel %vm1235, %v1231, inf
        %1237 = vmin.xlane.f32.xlu0 %v1236
        %v1238 = vpop.xlane.xlu0 %1237
        %v1239 = vcvt.f32.s32 %v1238
        %v1240 = vcvt.f32.s32 %v1234
        %v1241 = vshll.u32 %v1240, 16
        %v1242 = vadd.s32 %v1241, %v1239
        %v1243 = vand.u32 %v1209, 65535
        %v1244 = vshra.s32 %v1209, 16
        %v1245 = vcvt.s32.f32 %v1243
        %v1246 = vcvt.s32.f32 %v1244
        %1247 = vmin.xlane.f32.xlu0 %v1246
        %v1248 = vpop.xlane.xlu0 %1247
        %vm1249 = vcmp.eq.f32.partialorder %v1246, %v1248
        %v1250 = vsel %vm1249, %v1245, inf
        %1251 = vmin.xlane.f32.xlu0 %v1250
        %v1252 = vpop.xlane.xlu0 %1251
        %v1253 = vcvt.f32.s32 %v1252
        %v1254 = vcvt.f32.s32 %v1248
        %v1255 = vshll.u32 %v1254, 16
        %v1256 = vadd.s32 %v1255, %v1253
        %v1257 = vand.u32 %v1210, 65535
        %v1258 = vshra.s32 %v1210, 16
        %v1259 = vcvt.s32.f32 %v1257
        %v1260 = vcvt.s32.f32 %v1258
        %1261 = vmin.xlane.f32.xlu0 %v1260
        %v1262 = vpop.xlane.xlu0 %1261
        %vm1263 = vcmp.eq.f32.partialorder %v1260, %v1262
        %v1264 = vsel %vm1263, %v1259, inf
        %1265 = vmin.xlane.f32.xlu0 %v1264
        %v1266 = vpop.xlane.xlu0 %1265
        %v1267 = vcvt.f32.s32 %v1266
        %v1268 = vcvt.f32.s32 %v1262
        %v1269 = vshll.u32 %v1268, 16
        %v1270 = vadd.s32 %v1269, %v1267
        %v1271 = vand.u32 %v1211, 65535
        %v1272 = vshra.s32 %v1211, 16
        %v1273 = vcvt.s32.f32 %v1271
        %v1274 = vcvt.s32.f32 %v1272
        %1275 = vmin.xlane.f32.xlu0 %v1274
        %v1276 = vpop.xlane.xlu0 %1275
        %vm1277 = vcmp.eq.f32.partialorder %v1274, %v1276
        %v1278 = vsel %vm1277, %v1273, inf
        %1279 = vmin.xlane.f32.xlu0 %v1278
        %v1280 = vpop.xlane.xlu0 %1279
        %v1281 = vcvt.f32.s32 %v1280
        %v1282 = vcvt.f32.s32 %v1276
        %v1283 = vshll.u32 %v1282, 16
        %v1284 = vadd.s32 %v1283, %v1281
        %v1285 = vand.u32 %v1212, 65535
        %v1286 = vshra.s32 %v1212, 16
        %v1287 = vcvt.s32.f32 %v1285
        %v1288 = vcvt.s32.f32 %v1286
        %1289 = vmin.xlane.f32.xlu0 %v1288
        %v1290 = vpop.xlane.xlu0 %1289
        %vm1291 = vcmp.eq.f32.partialorder %v1288, %v1290
        %v1292 = vsel %vm1291, %v1287, inf
        %1293 = vmin.xlane.f32.xlu0 %v1292
        %v1294 = vpop.xlane.xlu0 %1293
        %v1295 = vcvt.f32.s32 %v1294
        %v1296 = vcvt.f32.s32 %v1290
        %v1297 = vshll.u32 %v1296, 16
        %v1298 = vadd.s32 %v1297, %v1295
        %v1299 = vand.u32 %v1213, 65535
        %v1300 = vshra.s32 %v1213, 16
        %v1301 = vcvt.s32.f32 %v1299
        %v1302 = vcvt.s32.f32 %v1300
        %1303 = vmin.xlane.f32.xlu0 %v1302
        %v1304 = vpop.xlane.xlu0 %1303
        %vm1305 = vcmp.eq.f32.partialorder %v1302, %v1304
        %v1306 = vsel %vm1305, %v1301, inf
        %1307 = vmin.xlane.f32.xlu0 %v1306
        %v1308 = vpop.xlane.xlu0 %1307
        %v1309 = vcvt.f32.s32 %v1308
        %v1310 = vcvt.f32.s32 %v1304
        %v1311 = vshll.u32 %v1310, 16
        %v1312 = vadd.s32 %v1311, %v1309
        %v1313 = vand.u32 %v1214, 65535
        %v1314 = vshra.s32 %v1214, 16
        %v1315 = vcvt.s32.f32 %v1313
        %v1316 = vcvt.s32.f32 %v1314
        %1317 = vmin.xlane.f32.xlu0 %v1316
        %v1318 = vpop.xlane.xlu0 %1317
        %vm1319 = vcmp.eq.f32.partialorder %v1316, %v1318
        %v1320 = vsel %vm1319, %v1315, inf
        %1321 = vmin.xlane.f32.xlu0 %v1320
        %v1322 = vpop.xlane.xlu0 %1321
        %v1323 = vcvt.f32.s32 %v1322
        %v1324 = vcvt.f32.s32 %v1318
        %v1325 = vshll.u32 %v1324, 16
        %v1326 = vadd.s32 %v1325, %v1323
        %vm1327 = vcmp.eq.s32.totalorder %v267, %v1228
        %vm1328 = vcmp.eq.s32.totalorder %v267, %v1242
        %vm1329 = vcmp.eq.s32.totalorder %v267, %v1256
        %vm1330 = vcmp.eq.s32.totalorder %v267, %v1270
        %vm1331 = vcmp.eq.s32.totalorder %v267, %v1284
        %vm1332 = vcmp.eq.s32.totalorder %v267, %v1298
        %vm1333 = vcmp.eq.s32.totalorder %v267, %v1312
        %vm1334 = vcmp.eq.s32.totalorder %v267, %v1326
        %v1335 = vsel %vm1327, 1.0, 0.0
        %v1336 = vsel %vm1328, 1.0, 0.0
        %v1337 = vsel %vm1329, 1.0, 0.0
        %v1338 = vsel %vm1330, 1.0, 0.0
        %v1339 = vsel %vm1331, 1.0, 0.0
        %v1340 = vsel %vm1332, 1.0, 0.0
        %v1341 = vsel %vm1333, 1.0, 0.0
        %v1342 = vsel %vm1334, 1.0, 0.0
        %1343 = vst [vmem:[#allocation2 + $0x100] sm:$0xff] %v1335
        %1344 = vst [vmem:[#allocation2 + $0x108] sm:$0xff] %v1336
        %1345 = vst [vmem:[#allocation2 + $0x110] sm:$0xff] %v1337
        %1346 = vst [vmem:[#allocation2 + $0x118] sm:$0xff] %v1338
        %1347 = vst [vmem:[#allocation2 + $0x120] sm:$0xff] %v1339
        %1348 = vst [vmem:[#allocation2 + $0x128] sm:$0xff] %v1340
        %1349 = vst [vmem:[#allocation2 + $0x130] sm:$0xff] %v1341
        %1350 = vst [vmem:[#allocation2 + $0x138] sm:$0xff] %v1342
        %v1351 = vsel %vm1327, 1e+30, %v1175
        %v1352 = vsel %vm1328, 1e+30, %v1176
        %v1353 = vsel %vm1329, 1e+30, %v1177
        %v1354 = vsel %vm1330, 1e+30, %v1178
        %v1355 = vsel %vm1331, 1e+30, %v1179
        %v1356 = vsel %vm1332, 1e+30, %v1180
        %v1357 = vsel %vm1333, 1e+30, %v1181
        %v1358 = vsel %vm1334, 1e+30, %v1182
        %1359 = vmin.xlane.f32.xlu0 %v1351
        %v1360 = vpop.xlane.xlu0 %1359
        %1361 = vmin.xlane.f32.xlu0 %v1352
        %v1362 = vpop.xlane.xlu0 %1361
        %1363 = vmin.xlane.f32.xlu0 %v1353
        %v1364 = vpop.xlane.xlu0 %1363
        %1365 = vmin.xlane.f32.xlu0 %v1354
        %v1366 = vpop.xlane.xlu0 %1365
        %1367 = vmin.xlane.f32.xlu0 %v1355
        %v1368 = vpop.xlane.xlu0 %1367
        %1369 = vmin.xlane.f32.xlu0 %v1356
        %v1370 = vpop.xlane.xlu0 %1369
        %1371 = vmin.xlane.f32.xlu0 %v1357
        %v1372 = vpop.xlane.xlu0 %1371
        %1373 = vmin.xlane.f32.xlu0 %v1358
        %v1374 = vpop.xlane.xlu0 %1373
        %vm1375 = vcmp.le.f32.partialorder %v1351, %v1360
        %vm1376 = vcmp.le.f32.partialorder %v1352, %v1362
        %vm1377 = vcmp.le.f32.partialorder %v1353, %v1364
        %vm1378 = vcmp.le.f32.partialorder %v1354, %v1366
        %vm1379 = vcmp.le.f32.partialorder %v1355, %v1368
        %vm1380 = vcmp.le.f32.partialorder %v1356, %v1370
        %vm1381 = vcmp.le.f32.partialorder %v1357, %v1372
        %vm1382 = vcmp.le.f32.partialorder %v1358, %v1374
        %v1383 = vsel %vm1375, %v267, 128
        %v1384 = vsel %vm1376, %v267, 128
        %v1385 = vsel %vm1377, %v267, 128
        %v1386 = vsel %vm1378, %v267, 128
        %v1387 = vsel %vm1379, %v267, 128
        %v1388 = vsel %vm1380, %v267, 128
        %v1389 = vsel %vm1381, %v267, 128
        %v1390 = vsel %vm1382, %v267, 128
        %v1391 = vand.u32 %v1383, 65535
        %v1392 = vshra.s32 %v1383, 16
        %v1393 = vcvt.s32.f32 %v1391
        %v1394 = vcvt.s32.f32 %v1392
        %1395 = vmin.xlane.f32.xlu0 %v1394
        %v1396 = vpop.xlane.xlu0 %1395
        %vm1397 = vcmp.eq.f32.partialorder %v1394, %v1396
        %v1398 = vsel %vm1397, %v1393, inf
        %1399 = vmin.xlane.f32.xlu0 %v1398
        %v1400 = vpop.xlane.xlu0 %1399
        %v1401 = vcvt.f32.s32 %v1400
        %v1402 = vcvt.f32.s32 %v1396
        %v1403 = vshll.u32 %v1402, 16
        %v1404 = vadd.s32 %v1403, %v1401
        %v1405 = vand.u32 %v1384, 65535
        %v1406 = vshra.s32 %v1384, 16
        %v1407 = vcvt.s32.f32 %v1405
        %v1408 = vcvt.s32.f32 %v1406
        %1409 = vmin.xlane.f32.xlu0 %v1408
        %v1410 = vpop.xlane.xlu0 %1409
        %vm1411 = vcmp.eq.f32.partialorder %v1408, %v1410
        %v1412 = vsel %vm1411, %v1407, inf
        %1413 = vmin.xlane.f32.xlu0 %v1412
        %v1414 = vpop.xlane.xlu0 %1413
        %v1415 = vcvt.f32.s32 %v1414
        %v1416 = vcvt.f32.s32 %v1410
        %v1417 = vshll.u32 %v1416, 16
        %v1418 = vadd.s32 %v1417, %v1415
        %v1419 = vand.u32 %v1385, 65535
        %v1420 = vshra.s32 %v1385, 16
        %v1421 = vcvt.s32.f32 %v1419
        %v1422 = vcvt.s32.f32 %v1420
        %1423 = vmin.xlane.f32.xlu0 %v1422
        %v1424 = vpop.xlane.xlu0 %1423
        %vm1425 = vcmp.eq.f32.partialorder %v1422, %v1424
        %v1426 = vsel %vm1425, %v1421, inf
        %1427 = vmin.xlane.f32.xlu0 %v1426
        %v1428 = vpop.xlane.xlu0 %1427
        %v1429 = vcvt.f32.s32 %v1428
        %v1430 = vcvt.f32.s32 %v1424
        %v1431 = vshll.u32 %v1430, 16
        %v1432 = vadd.s32 %v1431, %v1429
        %v1433 = vand.u32 %v1386, 65535
        %v1434 = vshra.s32 %v1386, 16
        %v1435 = vcvt.s32.f32 %v1433
        %v1436 = vcvt.s32.f32 %v1434
        %1437 = vmin.xlane.f32.xlu0 %v1436
        %v1438 = vpop.xlane.xlu0 %1437
        %vm1439 = vcmp.eq.f32.partialorder %v1436, %v1438
        %v1440 = vsel %vm1439, %v1435, inf
        %1441 = vmin.xlane.f32.xlu0 %v1440
        %v1442 = vpop.xlane.xlu0 %1441
        %v1443 = vcvt.f32.s32 %v1442
        %v1444 = vcvt.f32.s32 %v1438
        %v1445 = vshll.u32 %v1444, 16
        %v1446 = vadd.s32 %v1445, %v1443
        %v1447 = vand.u32 %v1387, 65535
        %v1448 = vshra.s32 %v1387, 16
        %v1449 = vcvt.s32.f32 %v1447
        %v1450 = vcvt.s32.f32 %v1448
        %1451 = vmin.xlane.f32.xlu0 %v1450
        %v1452 = vpop.xlane.xlu0 %1451
        %vm1453 = vcmp.eq.f32.partialorder %v1450, %v1452
        %v1454 = vsel %vm1453, %v1449, inf
        %1455 = vmin.xlane.f32.xlu0 %v1454
        %v1456 = vpop.xlane.xlu0 %1455
        %v1457 = vcvt.f32.s32 %v1456
        %v1458 = vcvt.f32.s32 %v1452
        %v1459 = vshll.u32 %v1458, 16
        %v1460 = vadd.s32 %v1459, %v1457
        %v1461 = vand.u32 %v1388, 65535
        %v1462 = vshra.s32 %v1388, 16
        %v1463 = vcvt.s32.f32 %v1461
        %v1464 = vcvt.s32.f32 %v1462
        %1465 = vmin.xlane.f32.xlu0 %v1464
        %v1466 = vpop.xlane.xlu0 %1465
        %vm1467 = vcmp.eq.f32.partialorder %v1464, %v1466
        %v1468 = vsel %vm1467, %v1463, inf
        %1469 = vmin.xlane.f32.xlu0 %v1468
        %v1470 = vpop.xlane.xlu0 %1469
        %v1471 = vcvt.f32.s32 %v1470
        %v1472 = vcvt.f32.s32 %v1466
        %v1473 = vshll.u32 %v1472, 16
        %v1474 = vadd.s32 %v1473, %v1471
        %v1475 = vand.u32 %v1389, 65535
        %v1476 = vshra.s32 %v1389, 16
        %v1477 = vcvt.s32.f32 %v1475
        %v1478 = vcvt.s32.f32 %v1476
        %1479 = vmin.xlane.f32.xlu0 %v1478
        %v1480 = vpop.xlane.xlu0 %1479
        %vm1481 = vcmp.eq.f32.partialorder %v1478, %v1480
        %v1482 = vsel %vm1481, %v1477, inf
        %1483 = vmin.xlane.f32.xlu0 %v1482
        %v1484 = vpop.xlane.xlu0 %1483
        %v1485 = vcvt.f32.s32 %v1484
        %v1486 = vcvt.f32.s32 %v1480
        %v1487 = vshll.u32 %v1486, 16
        %v1488 = vadd.s32 %v1487, %v1485
        %v1489 = vand.u32 %v1390, 65535
        %v1490 = vshra.s32 %v1390, 16
        %v1491 = vcvt.s32.f32 %v1489
        %v1492 = vcvt.s32.f32 %v1490
        %1493 = vmin.xlane.f32.xlu0 %v1492
        %v1494 = vpop.xlane.xlu0 %1493
        %vm1495 = vcmp.eq.f32.partialorder %v1492, %v1494
        %v1496 = vsel %vm1495, %v1491, inf
        %1497 = vmin.xlane.f32.xlu0 %v1496
        %v1498 = vpop.xlane.xlu0 %1497
        %v1499 = vcvt.f32.s32 %v1498
        %v1500 = vcvt.f32.s32 %v1494
        %v1501 = vshll.u32 %v1500, 16
        %v1502 = vadd.s32 %v1501, %v1499
        %vm1503 = vcmp.eq.s32.totalorder %v267, %v1404
        %vm1504 = vcmp.eq.s32.totalorder %v267, %v1418
        %vm1505 = vcmp.eq.s32.totalorder %v267, %v1432
        %vm1506 = vcmp.eq.s32.totalorder %v267, %v1446
        %vm1507 = vcmp.eq.s32.totalorder %v267, %v1460
        %vm1508 = vcmp.eq.s32.totalorder %v267, %v1474
        %vm1509 = vcmp.eq.s32.totalorder %v267, %v1488
        %vm1510 = vcmp.eq.s32.totalorder %v267, %v1502
        %v1511 = vsel %vm1503, 1.0, 0.0
        %v1512 = vsel %vm1504, 1.0, 0.0
        %v1513 = vsel %vm1505, 1.0, 0.0
        %v1514 = vsel %vm1506, 1.0, 0.0
        %v1515 = vsel %vm1507, 1.0, 0.0
        %v1516 = vsel %vm1508, 1.0, 0.0
        %v1517 = vsel %vm1509, 1.0, 0.0
        %v1518 = vsel %vm1510, 1.0, 0.0
        %1519 = vst [vmem:[#allocation2 + $0x140] sm:$0xff] %v1511
        %1520 = vst [vmem:[#allocation2 + $0x148] sm:$0xff] %v1512
        %1521 = vst [vmem:[#allocation2 + $0x150] sm:$0xff] %v1513
        %1522 = vst [vmem:[#allocation2 + $0x158] sm:$0xff] %v1514
        %1523 = vst [vmem:[#allocation2 + $0x160] sm:$0xff] %v1515
        %1524 = vst [vmem:[#allocation2 + $0x168] sm:$0xff] %v1516
        %1525 = vst [vmem:[#allocation2 + $0x170] sm:$0xff] %v1517
        %1526 = vst [vmem:[#allocation2 + $0x178] sm:$0xff] %v1518
        %v1527 = vsel %vm1503, 1e+30, %v1351
        %v1528 = vsel %vm1504, 1e+30, %v1352
        %v1529 = vsel %vm1505, 1e+30, %v1353
        %v1530 = vsel %vm1506, 1e+30, %v1354
        %v1531 = vsel %vm1507, 1e+30, %v1355
        %v1532 = vsel %vm1508, 1e+30, %v1356
        %v1533 = vsel %vm1509, 1e+30, %v1357
        %v1534 = vsel %vm1510, 1e+30, %v1358
        %1535 = vmin.xlane.f32.xlu0 %v1527
        %v1536 = vpop.xlane.xlu0 %1535
        %1537 = vmin.xlane.f32.xlu0 %v1528
        %v1538 = vpop.xlane.xlu0 %1537
        %1539 = vmin.xlane.f32.xlu0 %v1529
        %v1540 = vpop.xlane.xlu0 %1539
        %1541 = vmin.xlane.f32.xlu0 %v1530
        %v1542 = vpop.xlane.xlu0 %1541
        %1543 = vmin.xlane.f32.xlu0 %v1531
        %v1544 = vpop.xlane.xlu0 %1543
        %1545 = vmin.xlane.f32.xlu0 %v1532
        %v1546 = vpop.xlane.xlu0 %1545
        %1547 = vmin.xlane.f32.xlu0 %v1533
        %v1548 = vpop.xlane.xlu0 %1547
        %1549 = vmin.xlane.f32.xlu0 %v1534
        %v1550 = vpop.xlane.xlu0 %1549
        %vm1551 = vcmp.le.f32.partialorder %v1527, %v1536
        %vm1552 = vcmp.le.f32.partialorder %v1528, %v1538
        %vm1553 = vcmp.le.f32.partialorder %v1529, %v1540
        %vm1554 = vcmp.le.f32.partialorder %v1530, %v1542
        %vm1555 = vcmp.le.f32.partialorder %v1531, %v1544
        %vm1556 = vcmp.le.f32.partialorder %v1532, %v1546
        %vm1557 = vcmp.le.f32.partialorder %v1533, %v1548
        %vm1558 = vcmp.le.f32.partialorder %v1534, %v1550
        %v1559 = vsel %vm1551, %v267, 128
        %v1560 = vsel %vm1552, %v267, 128
        %v1561 = vsel %vm1553, %v267, 128
        %v1562 = vsel %vm1554, %v267, 128
        %v1563 = vsel %vm1555, %v267, 128
        %v1564 = vsel %vm1556, %v267, 128
        %v1565 = vsel %vm1557, %v267, 128
        %v1566 = vsel %vm1558, %v267, 128
        %v1567 = vand.u32 %v1559, 65535
        %v1568 = vshra.s32 %v1559, 16
        %v1569 = vcvt.s32.f32 %v1567
        %v1570 = vcvt.s32.f32 %v1568
        %1571 = vmin.xlane.f32.xlu0 %v1570
        %v1572 = vpop.xlane.xlu0 %1571
        %vm1573 = vcmp.eq.f32.partialorder %v1570, %v1572
        %v1574 = vsel %vm1573, %v1569, inf
        %1575 = vmin.xlane.f32.xlu0 %v1574
        %v1576 = vpop.xlane.xlu0 %1575
        %v1577 = vcvt.f32.s32 %v1576
        %v1578 = vcvt.f32.s32 %v1572
        %v1579 = vshll.u32 %v1578, 16
        %v1580 = vadd.s32 %v1579, %v1577
        %v1581 = vand.u32 %v1560, 65535
        %v1582 = vshra.s32 %v1560, 16
        %v1583 = vcvt.s32.f32 %v1581
        %v1584 = vcvt.s32.f32 %v1582
        %1585 = vmin.xlane.f32.xlu0 %v1584
        %v1586 = vpop.xlane.xlu0 %1585
        %vm1587 = vcmp.eq.f32.partialorder %v1584, %v1586
        %v1588 = vsel %vm1587, %v1583, inf
        %1589 = vmin.xlane.f32.xlu0 %v1588
        %v1590 = vpop.xlane.xlu0 %1589
        %v1591 = vcvt.f32.s32 %v1590
        %v1592 = vcvt.f32.s32 %v1586
        %v1593 = vshll.u32 %v1592, 16
        %v1594 = vadd.s32 %v1593, %v1591
        %v1595 = vand.u32 %v1561, 65535
        %v1596 = vshra.s32 %v1561, 16
        %v1597 = vcvt.s32.f32 %v1595
        %v1598 = vcvt.s32.f32 %v1596
        %1599 = vmin.xlane.f32.xlu0 %v1598
        %v1600 = vpop.xlane.xlu0 %1599
        %vm1601 = vcmp.eq.f32.partialorder %v1598, %v1600
        %v1602 = vsel %vm1601, %v1597, inf
        %1603 = vmin.xlane.f32.xlu0 %v1602
        %v1604 = vpop.xlane.xlu0 %1603
        %v1605 = vcvt.f32.s32 %v1604
        %v1606 = vcvt.f32.s32 %v1600
        %v1607 = vshll.u32 %v1606, 16
        %v1608 = vadd.s32 %v1607, %v1605
        %v1609 = vand.u32 %v1562, 65535
        %v1610 = vshra.s32 %v1562, 16
        %v1611 = vcvt.s32.f32 %v1609
        %v1612 = vcvt.s32.f32 %v1610
        %1613 = vmin.xlane.f32.xlu0 %v1612
        %v1614 = vpop.xlane.xlu0 %1613
        %vm1615 = vcmp.eq.f32.partialorder %v1612, %v1614
        %v1616 = vsel %vm1615, %v1611, inf
        %1617 = vmin.xlane.f32.xlu0 %v1616
        %v1618 = vpop.xlane.xlu0 %1617
        %v1619 = vcvt.f32.s32 %v1618
        %v1620 = vcvt.f32.s32 %v1614
        %v1621 = vshll.u32 %v1620, 16
        %v1622 = vadd.s32 %v1621, %v1619
        %v1623 = vand.u32 %v1563, 65535
        %v1624 = vshra.s32 %v1563, 16
        %v1625 = vcvt.s32.f32 %v1623
        %v1626 = vcvt.s32.f32 %v1624
        %1627 = vmin.xlane.f32.xlu0 %v1626
        %v1628 = vpop.xlane.xlu0 %1627
        %vm1629 = vcmp.eq.f32.partialorder %v1626, %v1628
        %v1630 = vsel %vm1629, %v1625, inf
        %1631 = vmin.xlane.f32.xlu0 %v1630
        %v1632 = vpop.xlane.xlu0 %1631
        %v1633 = vcvt.f32.s32 %v1632
        %v1634 = vcvt.f32.s32 %v1628
        %v1635 = vshll.u32 %v1634, 16
        %v1636 = vadd.s32 %v1635, %v1633
        %v1637 = vand.u32 %v1564, 65535
        %v1638 = vshra.s32 %v1564, 16
        %v1639 = vcvt.s32.f32 %v1637
        %v1640 = vcvt.s32.f32 %v1638
        %1641 = vmin.xlane.f32.xlu0 %v1640
        %v1642 = vpop.xlane.xlu0 %1641
        %vm1643 = vcmp.eq.f32.partialorder %v1640, %v1642
        %v1644 = vsel %vm1643, %v1639, inf
        %1645 = vmin.xlane.f32.xlu0 %v1644
        %v1646 = vpop.xlane.xlu0 %1645
        %v1647 = vcvt.f32.s32 %v1646
        %v1648 = vcvt.f32.s32 %v1642
        %v1649 = vshll.u32 %v1648, 16
        %v1650 = vadd.s32 %v1649, %v1647
        %v1651 = vand.u32 %v1565, 65535
        %v1652 = vshra.s32 %v1565, 16
        %v1653 = vcvt.s32.f32 %v1651
        %v1654 = vcvt.s32.f32 %v1652
        %1655 = vmin.xlane.f32.xlu0 %v1654
        %v1656 = vpop.xlane.xlu0 %1655
        %vm1657 = vcmp.eq.f32.partialorder %v1654, %v1656
        %v1658 = vsel %vm1657, %v1653, inf
        %1659 = vmin.xlane.f32.xlu0 %v1658
        %v1660 = vpop.xlane.xlu0 %1659
        %v1661 = vcvt.f32.s32 %v1660
        %v1662 = vcvt.f32.s32 %v1656
        %v1663 = vshll.u32 %v1662, 16
        %v1664 = vadd.s32 %v1663, %v1661
        %v1665 = vand.u32 %v1566, 65535
        %v1666 = vshra.s32 %v1566, 16
        %v1667 = vcvt.s32.f32 %v1665
        %v1668 = vcvt.s32.f32 %v1666
        %1669 = vmin.xlane.f32.xlu0 %v1668
        %v1670 = vpop.xlane.xlu0 %1669
        %vm1671 = vcmp.eq.f32.partialorder %v1668, %v1670
        %v1672 = vsel %vm1671, %v1667, inf
        %1673 = vmin.xlane.f32.xlu0 %v1672
        %v1674 = vpop.xlane.xlu0 %1673
        %v1675 = vcvt.f32.s32 %v1674
        %v1676 = vcvt.f32.s32 %v1670
        %v1677 = vshll.u32 %v1676, 16
        %v1678 = vadd.s32 %v1677, %v1675
        %vm1679 = vcmp.eq.s32.totalorder %v267, %v1580
        %vm1680 = vcmp.eq.s32.totalorder %v267, %v1594
        %vm1681 = vcmp.eq.s32.totalorder %v267, %v1608
        %vm1682 = vcmp.eq.s32.totalorder %v267, %v1622
        %vm1683 = vcmp.eq.s32.totalorder %v267, %v1636
        %vm1684 = vcmp.eq.s32.totalorder %v267, %v1650
        %vm1685 = vcmp.eq.s32.totalorder %v267, %v1664
        %vm1686 = vcmp.eq.s32.totalorder %v267, %v1678
        %v1687 = vsel %vm1679, 1.0, 0.0
        %v1688 = vsel %vm1680, 1.0, 0.0
        %v1689 = vsel %vm1681, 1.0, 0.0
        %v1690 = vsel %vm1682, 1.0, 0.0
        %v1691 = vsel %vm1683, 1.0, 0.0
        %v1692 = vsel %vm1684, 1.0, 0.0
        %v1693 = vsel %vm1685, 1.0, 0.0
        %v1694 = vsel %vm1686, 1.0, 0.0
        %1695 = vst [vmem:[#allocation2 + $0x180] sm:$0xff] %v1687
        %1696 = vst [vmem:[#allocation2 + $0x188] sm:$0xff] %v1688
        %1697 = vst [vmem:[#allocation2 + $0x190] sm:$0xff] %v1689
        %1698 = vst [vmem:[#allocation2 + $0x198] sm:$0xff] %v1690
        %1699 = vst [vmem:[#allocation2 + $0x1a0] sm:$0xff] %v1691
        %1700 = vst [vmem:[#allocation2 + $0x1a8] sm:$0xff] %v1692
        %1701 = vst [vmem:[#allocation2 + $0x1b0] sm:$0xff] %v1693
        %1702 = vst [vmem:[#allocation2 + $0x1b8] sm:$0xff] %v1694
        %v1703 = vsel %vm1679, 1e+30, %v1527
        %v1704 = vsel %vm1680, 1e+30, %v1528
        %v1705 = vsel %vm1681, 1e+30, %v1529
        %v1706 = vsel %vm1682, 1e+30, %v1530
        %v1707 = vsel %vm1683, 1e+30, %v1531
        %v1708 = vsel %vm1684, 1e+30, %v1532
        %v1709 = vsel %vm1685, 1e+30, %v1533
        %v1710 = vsel %vm1686, 1e+30, %v1534
        %1711 = vmin.xlane.f32.xlu0 %v1703
        %v1712 = vpop.xlane.xlu0 %1711
        %1713 = vmin.xlane.f32.xlu0 %v1704
        %v1714 = vpop.xlane.xlu0 %1713
        %1715 = vmin.xlane.f32.xlu0 %v1705
        %v1716 = vpop.xlane.xlu0 %1715
        %1717 = vmin.xlane.f32.xlu0 %v1706
        %v1718 = vpop.xlane.xlu0 %1717
        %1719 = vmin.xlane.f32.xlu0 %v1707
        %v1720 = vpop.xlane.xlu0 %1719
        %1721 = vmin.xlane.f32.xlu0 %v1708
        %v1722 = vpop.xlane.xlu0 %1721
        %1723 = vmin.xlane.f32.xlu0 %v1709
        %v1724 = vpop.xlane.xlu0 %1723
        %1725 = vmin.xlane.f32.xlu0 %v1710
        %v1726 = vpop.xlane.xlu0 %1725
        %vm1727 = vcmp.le.f32.partialorder %v1703, %v1712
        %vm1728 = vcmp.le.f32.partialorder %v1704, %v1714
        %vm1729 = vcmp.le.f32.partialorder %v1705, %v1716
        %vm1730 = vcmp.le.f32.partialorder %v1706, %v1718
        %vm1731 = vcmp.le.f32.partialorder %v1707, %v1720
        %vm1732 = vcmp.le.f32.partialorder %v1708, %v1722
        %vm1733 = vcmp.le.f32.partialorder %v1709, %v1724
        %vm1734 = vcmp.le.f32.partialorder %v1710, %v1726
        %v1735 = vsel %vm1727, %v267, 128
        %v1736 = vsel %vm1728, %v267, 128
        %v1737 = vsel %vm1729, %v267, 128
        %v1738 = vsel %vm1730, %v267, 128
        %v1739 = vsel %vm1731, %v267, 128
        %v1740 = vsel %vm1732, %v267, 128
        %v1741 = vsel %vm1733, %v267, 128
        %v1742 = vsel %vm1734, %v267, 128
        %v1743 = vand.u32 %v1735, 65535
        %v1744 = vshra.s32 %v1735, 16
        %v1745 = vcvt.s32.f32 %v1743
        %v1746 = vcvt.s32.f32 %v1744
        %1747 = vmin.xlane.f32.xlu0 %v1746
        %v1748 = vpop.xlane.xlu0 %1747
        %vm1749 = vcmp.eq.f32.partialorder %v1746, %v1748
        %v1750 = vsel %vm1749, %v1745, inf
        %1751 = vmin.xlane.f32.xlu0 %v1750
        %v1752 = vpop.xlane.xlu0 %1751
        %v1753 = vcvt.f32.s32 %v1752
        %v1754 = vcvt.f32.s32 %v1748
        %v1755 = vshll.u32 %v1754, 16
        %v1756 = vadd.s32 %v1755, %v1753
        %v1757 = vand.u32 %v1736, 65535
        %v1758 = vshra.s32 %v1736, 16
        %v1759 = vcvt.s32.f32 %v1757
        %v1760 = vcvt.s32.f32 %v1758
        %1761 = vmin.xlane.f32.xlu0 %v1760
        %v1762 = vpop.xlane.xlu0 %1761
        %vm1763 = vcmp.eq.f32.partialorder %v1760, %v1762
        %v1764 = vsel %vm1763, %v1759, inf
        %1765 = vmin.xlane.f32.xlu0 %v1764
        %v1766 = vpop.xlane.xlu0 %1765
        %v1767 = vcvt.f32.s32 %v1766
        %v1768 = vcvt.f32.s32 %v1762
        %v1769 = vshll.u32 %v1768, 16
        %v1770 = vadd.s32 %v1769, %v1767
        %v1771 = vand.u32 %v1737, 65535
        %v1772 = vshra.s32 %v1737, 16
        %v1773 = vcvt.s32.f32 %v1771
        %v1774 = vcvt.s32.f32 %v1772
        %1775 = vmin.xlane.f32.xlu0 %v1774
        %v1776 = vpop.xlane.xlu0 %1775
        %vm1777 = vcmp.eq.f32.partialorder %v1774, %v1776
        %v1778 = vsel %vm1777, %v1773, inf
        %1779 = vmin.xlane.f32.xlu0 %v1778
        %v1780 = vpop.xlane.xlu0 %1779
        %v1781 = vcvt.f32.s32 %v1780
        %v1782 = vcvt.f32.s32 %v1776
        %v1783 = vshll.u32 %v1782, 16
        %v1784 = vadd.s32 %v1783, %v1781
        %v1785 = vand.u32 %v1738, 65535
        %v1786 = vshra.s32 %v1738, 16
        %v1787 = vcvt.s32.f32 %v1785
        %v1788 = vcvt.s32.f32 %v1786
        %1789 = vmin.xlane.f32.xlu0 %v1788
        %v1790 = vpop.xlane.xlu0 %1789
        %vm1791 = vcmp.eq.f32.partialorder %v1788, %v1790
        %v1792 = vsel %vm1791, %v1787, inf
        %1793 = vmin.xlane.f32.xlu0 %v1792
        %v1794 = vpop.xlane.xlu0 %1793
        %v1795 = vcvt.f32.s32 %v1794
        %v1796 = vcvt.f32.s32 %v1790
        %v1797 = vshll.u32 %v1796, 16
        %v1798 = vadd.s32 %v1797, %v1795
        %v1799 = vand.u32 %v1739, 65535
        %v1800 = vshra.s32 %v1739, 16
        %v1801 = vcvt.s32.f32 %v1799
        %v1802 = vcvt.s32.f32 %v1800
        %1803 = vmin.xlane.f32.xlu0 %v1802
        %v1804 = vpop.xlane.xlu0 %1803
        %vm1805 = vcmp.eq.f32.partialorder %v1802, %v1804
        %v1806 = vsel %vm1805, %v1801, inf
        %1807 = vmin.xlane.f32.xlu0 %v1806
        %v1808 = vpop.xlane.xlu0 %1807
        %v1809 = vcvt.f32.s32 %v1808
        %v1810 = vcvt.f32.s32 %v1804
        %v1811 = vshll.u32 %v1810, 16
        %v1812 = vadd.s32 %v1811, %v1809
        %v1813 = vand.u32 %v1740, 65535
        %v1814 = vshra.s32 %v1740, 16
        %v1815 = vcvt.s32.f32 %v1813
        %v1816 = vcvt.s32.f32 %v1814
        %1817 = vmin.xlane.f32.xlu0 %v1816
        %v1818 = vpop.xlane.xlu0 %1817
        %vm1819 = vcmp.eq.f32.partialorder %v1816, %v1818
        %v1820 = vsel %vm1819, %v1815, inf
        %1821 = vmin.xlane.f32.xlu0 %v1820
        %v1822 = vpop.xlane.xlu0 %1821
        %v1823 = vcvt.f32.s32 %v1822
        %v1824 = vcvt.f32.s32 %v1818
        %v1825 = vshll.u32 %v1824, 16
        %v1826 = vadd.s32 %v1825, %v1823
        %v1827 = vand.u32 %v1741, 65535
        %v1828 = vshra.s32 %v1741, 16
        %v1829 = vcvt.s32.f32 %v1827
        %v1830 = vcvt.s32.f32 %v1828
        %1831 = vmin.xlane.f32.xlu0 %v1830
        %v1832 = vpop.xlane.xlu0 %1831
        %vm1833 = vcmp.eq.f32.partialorder %v1830, %v1832
        %v1834 = vsel %vm1833, %v1829, inf
        %1835 = vmin.xlane.f32.xlu0 %v1834
        %v1836 = vpop.xlane.xlu0 %1835
        %v1837 = vcvt.f32.s32 %v1836
        %v1838 = vcvt.f32.s32 %v1832
        %v1839 = vshll.u32 %v1838, 16
        %v1840 = vadd.s32 %v1839, %v1837
        %v1841 = vand.u32 %v1742, 65535
        %v1842 = vshra.s32 %v1742, 16
        %v1843 = vcvt.s32.f32 %v1841
        %v1844 = vcvt.s32.f32 %v1842
        %1845 = vmin.xlane.f32.xlu0 %v1844
        %v1846 = vpop.xlane.xlu0 %1845
        %vm1847 = vcmp.eq.f32.partialorder %v1844, %v1846
        %v1848 = vsel %vm1847, %v1843, inf
        %1849 = vmin.xlane.f32.xlu0 %v1848
        %v1850 = vpop.xlane.xlu0 %1849
        %v1851 = vcvt.f32.s32 %v1850
        %v1852 = vcvt.f32.s32 %v1846
        %v1853 = vshll.u32 %v1852, 16
        %v1854 = vadd.s32 %v1853, %v1851
        %vm1855 = vcmp.eq.s32.totalorder %v267, %v1756
        %vm1856 = vcmp.eq.s32.totalorder %v267, %v1770
        %vm1857 = vcmp.eq.s32.totalorder %v267, %v1784
        %vm1858 = vcmp.eq.s32.totalorder %v267, %v1798
        %vm1859 = vcmp.eq.s32.totalorder %v267, %v1812
        %vm1860 = vcmp.eq.s32.totalorder %v267, %v1826
        %vm1861 = vcmp.eq.s32.totalorder %v267, %v1840
        %vm1862 = vcmp.eq.s32.totalorder %v267, %v1854
        %v1863 = vsel %vm1855, 1.0, 0.0
        %v1864 = vsel %vm1856, 1.0, 0.0
        %v1865 = vsel %vm1857, 1.0, 0.0
        %v1866 = vsel %vm1858, 1.0, 0.0
        %v1867 = vsel %vm1859, 1.0, 0.0
        %v1868 = vsel %vm1860, 1.0, 0.0
        %v1869 = vsel %vm1861, 1.0, 0.0
        %v1870 = vsel %vm1862, 1.0, 0.0
        %1871 = vst [vmem:[#allocation2 + $0x1c0] sm:$0xff] %v1863
        %1872 = vst [vmem:[#allocation2 + $0x1c8] sm:$0xff] %v1864
        %1873 = vst [vmem:[#allocation2 + $0x1d0] sm:$0xff] %v1865
        %1874 = vst [vmem:[#allocation2 + $0x1d8] sm:$0xff] %v1866
        %1875 = vst [vmem:[#allocation2 + $0x1e0] sm:$0xff] %v1867
        %1876 = vst [vmem:[#allocation2 + $0x1e8] sm:$0xff] %v1868
        %1877 = vst [vmem:[#allocation2 + $0x1f0] sm:$0xff] %v1869
        %1878 = vst [vmem:[#allocation2 + $0x1f8] sm:$0xff] %v1870
        %v1879 = vld [vmem:[%s253] sm:$0xff]
        %v1880 = vld [vmem:[%s253 + $0x8] sm:$0xff]
        %v1881 = vld [vmem:[%s253 + $0x10] sm:$0xff]
        %v1882 = vld [vmem:[%s253 + $0x18] sm:$0xff]
        %v1883 = vld [vmem:[%s253 + $0x20] sm:$0xff]
        %v1884 = vld [vmem:[%s253 + $0x28] sm:$0xff]
        %v1885 = vld [vmem:[%s253 + $0x30] sm:$0xff]
        %v1886 = vld [vmem:[%s253 + $0x38] sm:$0xff]
        %v1887 = vld [vmem:[#allocation2] sm:$0xff]
        %v1888 = vld [vmem:[#allocation2 + $0x8] sm:$0xff]
        %v1889 = vld [vmem:[#allocation2 + $0x10] sm:$0xff]
        %v1890 = vld [vmem:[#allocation2 + $0x18] sm:$0xff]
        %v1891 = vld [vmem:[#allocation2 + $0x20] sm:$0xff]
        %v1892 = vld [vmem:[#allocation2 + $0x28] sm:$0xff]
        %v1893 = vld [vmem:[#allocation2 + $0x30] sm:$0xff]
        %v1894 = vld [vmem:[#allocation2 + $0x38] sm:$0xff]
        %v1895 = vld [vmem:[#allocation2 + $0x40] sm:$0xff]
        %v1896 = vld [vmem:[#allocation2 + $0x48] sm:$0xff]
        %v1897 = vld [vmem:[#allocation2 + $0x50] sm:$0xff]
        %v1898 = vld [vmem:[#allocation2 + $0x58] sm:$0xff]
        %v1899 = vld [vmem:[#allocation2 + $0x60] sm:$0xff]
        %v1900 = vld [vmem:[#allocation2 + $0x68] sm:$0xff]
        %v1901 = vld [vmem:[#allocation2 + $0x70] sm:$0xff]
        %v1902 = vld [vmem:[#allocation2 + $0x78] sm:$0xff]
        %v1903 = vld [vmem:[#allocation2 + $0x80] sm:$0xff]
        %v1904 = vld [vmem:[#allocation2 + $0x88] sm:$0xff]
        %v1905 = vld [vmem:[#allocation2 + $0x90] sm:$0xff]
        %v1906 = vld [vmem:[#allocation2 + $0x98] sm:$0xff]
        %v1907 = vld [vmem:[#allocation2 + $0xa0] sm:$0xff]
        %v1908 = vld [vmem:[#allocation2 + $0xa8] sm:$0xff]
        %v1909 = vld [vmem:[#allocation2 + $0xb0] sm:$0xff]
        %v1910 = vld [vmem:[#allocation2 + $0xb8] sm:$0xff]
        %v1911 = vld [vmem:[#allocation2 + $0xc0] sm:$0xff]
        %v1912 = vld [vmem:[#allocation2 + $0xc8] sm:$0xff]
        %v1913 = vld [vmem:[#allocation2 + $0xd0] sm:$0xff]
        %v1914 = vld [vmem:[#allocation2 + $0xd8] sm:$0xff]
        %v1915 = vld [vmem:[#allocation2 + $0xe0] sm:$0xff]
        %v1916 = vld [vmem:[#allocation2 + $0xe8] sm:$0xff]
        %v1917 = vld [vmem:[#allocation2 + $0xf0] sm:$0xff]
        %v1918 = vld [vmem:[#allocation2 + $0xf8] sm:$0xff]
        %v1919 = vld [vmem:[#allocation2 + $0x100] sm:$0xff]
        %v1920 = vld [vmem:[#allocation2 + $0x108] sm:$0xff]
        %v1921 = vld [vmem:[#allocation2 + $0x110] sm:$0xff]
        %v1922 = vld [vmem:[#allocation2 + $0x118] sm:$0xff]
        %v1923 = vld [vmem:[#allocation2 + $0x120] sm:$0xff]
        %v1924 = vld [vmem:[#allocation2 + $0x128] sm:$0xff]
        %v1925 = vld [vmem:[#allocation2 + $0x130] sm:$0xff]
        %v1926 = vld [vmem:[#allocation2 + $0x138] sm:$0xff]
        %v1927 = vld [vmem:[#allocation2 + $0x140] sm:$0xff]
        %v1928 = vld [vmem:[#allocation2 + $0x148] sm:$0xff]
        %v1929 = vld [vmem:[#allocation2 + $0x150] sm:$0xff]
        %v1930 = vld [vmem:[#allocation2 + $0x158] sm:$0xff]
        %v1931 = vld [vmem:[#allocation2 + $0x160] sm:$0xff]
        %v1932 = vld [vmem:[#allocation2 + $0x168] sm:$0xff]
        %v1933 = vld [vmem:[#allocation2 + $0x170] sm:$0xff]
        %v1934 = vld [vmem:[#allocation2 + $0x178] sm:$0xff]
        %v1935 = vld [vmem:[#allocation2 + $0x180] sm:$0xff]
        %v1936 = vld [vmem:[#allocation2 + $0x188] sm:$0xff]
        %v1937 = vld [vmem:[#allocation2 + $0x190] sm:$0xff]
        %v1938 = vld [vmem:[#allocation2 + $0x198] sm:$0xff]
        %v1939 = vld [vmem:[#allocation2 + $0x1a0] sm:$0xff]
        %v1940 = vld [vmem:[#allocation2 + $0x1a8] sm:$0xff]
        %v1941 = vld [vmem:[#allocation2 + $0x1b0] sm:$0xff]
        %v1942 = vld [vmem:[#allocation2 + $0x1b8] sm:$0xff]
        %v1943 = vld [vmem:[#allocation2 + $0x1c0] sm:$0xff]
        %v1944 = vld [vmem:[#allocation2 + $0x1c8] sm:$0xff]
        %v1945 = vld [vmem:[#allocation2 + $0x1d0] sm:$0xff]
        %v1946 = vld [vmem:[#allocation2 + $0x1d8] sm:$0xff]
        %v1947 = vld [vmem:[#allocation2 + $0x1e0] sm:$0xff]
        %v1948 = vld [vmem:[#allocation2 + $0x1e8] sm:$0xff]
        %v1949 = vld [vmem:[#allocation2 + $0x1f0] sm:$0xff]
        %v1950 = vld [vmem:[#allocation2 + $0x1f8] sm:$0xff]
        %v1951 = vld [vmem:[#allocation4] sm:$0xff]
        %v1952 = vld [vmem:[#allocation4 + $0x8] sm:$0xff]
        %v1953 = vld [vmem:[#allocation4 + $0x10] sm:$0xff]
        %v1954 = vld [vmem:[#allocation4 + $0x18] sm:$0xff]
        %v1955 = vld [vmem:[#allocation4 + $0x20] sm:$0xff]
        %v1956 = vld [vmem:[#allocation4 + $0x28] sm:$0xff]
        %v1957 = vld [vmem:[#allocation4 + $0x30] sm:$0xff]
        %v1958 = vld [vmem:[#allocation4 + $0x38] sm:$0xff]
        %v1959 = vld [vmem:[#allocation4 + $0x40] sm:$0xff]
        %v1960 = vld [vmem:[#allocation4 + $0x48] sm:$0xff]
        %v1961 = vld [vmem:[#allocation4 + $0x50] sm:$0xff]
        %v1962 = vld [vmem:[#allocation4 + $0x58] sm:$0xff]
        %v1963 = vld [vmem:[#allocation4 + $0x60] sm:$0xff]
        %v1964 = vld [vmem:[#allocation4 + $0x68] sm:$0xff]
        %v1965 = vld [vmem:[#allocation4 + $0x70] sm:$0xff]
        %v1966 = vld [vmem:[#allocation4 + $0x78] sm:$0xff]
        %1967 = vmatprep.subr.mxu0 0.0
        %1968 = vmatpush1.msra.mxu0 %v1966
        %1969 = vmatprep.subr.mxu0 0.0
        %1970 = vmatpush1.msra.mxu0 %v1965
        %1971 = vmatprep.subr.mxu0 0.0
        %1972 = vmatpush1.msra.mxu0 %v1964
        %1973 = vmatprep.subr.mxu0 0.0
        %1974 = vmatpush1.msra.mxu0 %v1963
        %1975 = vmatprep.subr.mxu0 0.0
        %1976 = vmatpush1.msra.mxu0 %v1962
        %1977 = vmatprep.subr.mxu0 0.0
        %1978 = vmatpush1.msra.mxu0 %v1961
        %1979 = vmatprep.subr.mxu0 0.0
        %1980 = vmatpush1.msra.mxu0 %v1960
        %1981 = vmatprep.subr.mxu0 0.0
        %1982 = vmatpush1.msra.mxu0 %v1959
        %1983 = vmatprep.subr.mxu0 0.0
        %1984 = vmatpush1.msra.mxu0 %v1958
        %1985 = vmatprep.subr.mxu0 0.0
        %1986 = vmatpush1.msra.mxu0 %v1957
        %1987 = vmatprep.subr.mxu0 0.0
        %1988 = vmatpush1.msra.mxu0 %v1956
        %1989 = vmatprep.subr.mxu0 0.0
        %1990 = vmatpush1.msra.mxu0 %v1955
        %1991 = vmatprep.subr.mxu0 0.0
        %1992 = vmatpush1.msra.mxu0 %v1954
        %1993 = vmatprep.subr.mxu0 0.0
        %1994 = vmatpush1.msra.mxu0 %v1953
        %1995 = vmatprep.subr.mxu0 0.0
        %1996 = vmatpush1.msra.mxu0 %v1952
        %1997 = vmatprep.subr.mxu0 0.0
        %1998 = vmatpush1.msra.mxu0 %v1951
        %1999 = vmatprep.subr.mxu0 0.0
        %2000 = vmatpush2.msra.mxu0 0.0
        %2001 = vmatprep.subr.mxu0 0.0
        %2002 = vmatpush2.msra.mxu0 0.0
        %2003 = vmatprep.subr.mxu0 0.0
        %2004 = vmatpush2.msra.mxu0 0.0
        %2005 = vmatprep.subr.mxu0 0.0
        %2006 = vmatpush2.msra.mxu0 0.0
        %2007 = vmatprep.subr.mxu0 0.0
        %2008 = vmatpush2.msra.mxu0 0.0
        %2009 = vmatprep.subr.mxu0 0.0
        %2010 = vmatpush2.msra.mxu0 0.0
        %2011 = vmatprep.subr.mxu0 0.0
        %2012 = vmatpush2.msra.mxu0 0.0
        %2013 = vmatprep.subr.mxu0 0.0
        %2014 = vmatpush2.msra.mxu0 0.0
        %2015 = vmatprep.subr.mxu0 0.0
        %2016 = vmatpush2.msra.mxu0 0.0
        %2017 = vmatprep.subr.mxu0 0.0
        %2018 = vmatpush2.msra.mxu0 0.0
        %2019 = vmatprep.subr.mxu0 0.0
        %2020 = vmatpush2.msra.mxu0 0.0
        %2021 = vmatprep.subr.mxu0 0.0
        %2022 = vmatpush2.msra.mxu0 0.0
        %2023 = vmatprep.subr.mxu0 0.0
        %2024 = vmatpush2.msra.mxu0 0.0
        %2025 = vmatprep.subr.mxu0 0.0
        %2026 = vmatpush2.msra.mxu0 0.0
        %2027 = vmatprep.subr.mxu0 0.0
        %2028 = vmatpush2.msra.mxu0 0.0
        %2029 = vmatprep.subr.mxu0 0.0
        %2030 = vmatpush2.msra.mxu0 0.0
        %2031 = vmatprep.mubr.f32.mxu0 0.0
        %2032 = vmatmul.mubr.f32.gmra.mxu0 %v1887
        %v2033 = vpop.f32.mrf.mxu0
        %v2034 = vadd.f32 0.0, %v2033
        %v2035 = vpop.f32.mrf.mxu0
        %2036 = vmatprep.mubr.f32.mxu0 0.0
        %2037 = vmatmul.mubr.f32.gmra.mxu0 %v1888
        %v2038 = vpop.f32.mrf.mxu0
        %v2039 = vadd.f32 0.0, %v2038
        %v2040 = vpop.f32.mrf.mxu0
        %2041 = vmatprep.mubr.f32.mxu0 0.0
        %2042 = vmatmul.mubr.f32.gmra.mxu0 %v1889
        %v2043 = vpop.f32.mrf.mxu0
        %v2044 = vadd.f32 0.0, %v2043
        %v2045 = vpop.f32.mrf.mxu0
        %2046 = vmatprep.mubr.f32.mxu0 0.0
        %2047 = vmatmul.mubr.f32.gmra.mxu0 %v1890
        %v2048 = vpop.f32.mrf.mxu0
        %v2049 = vadd.f32 0.0, %v2048
        %v2050 = vpop.f32.mrf.mxu0
        %2051 = vmatprep.mubr.f32.mxu0 0.0
        %2052 = vmatmul.mubr.f32.gmra.mxu0 %v1891
        %v2053 = vpop.f32.mrf.mxu0
        %v2054 = vadd.f32 0.0, %v2053
        %v2055 = vpop.f32.mrf.mxu0
        %2056 = vmatprep.mubr.f32.mxu0 0.0
        %2057 = vmatmul.mubr.f32.gmra.mxu0 %v1892
        %v2058 = vpop.f32.mrf.mxu0
        %v2059 = vadd.f32 0.0, %v2058
        %v2060 = vpop.f32.mrf.mxu0
        %2061 = vmatprep.mubr.f32.mxu0 0.0
        %2062 = vmatmul.mubr.f32.gmra.mxu0 %v1893
        %v2063 = vpop.f32.mrf.mxu0
        %v2064 = vadd.f32 0.0, %v2063
        %v2065 = vpop.f32.mrf.mxu0
        %2066 = vmatprep.mubr.f32.mxu0 0.0
        %2067 = vmatmul.mubr.f32.gmra.mxu0 %v1894
        %v2068 = vpop.f32.mrf.mxu0
        %v2069 = vadd.f32 0.0, %v2068
        %v2070 = vpop.f32.mrf.mxu0
        %2071 = vmatprep.mubr.f32.mxu0 0.0
        %2072 = vmatmul.mubr.f32.gmra.mxu0 %v1895
        %v2073 = vpop.f32.mrf.mxu0
        %v2074 = vadd.f32 0.0, %v2073
        %v2075 = vpop.f32.mrf.mxu0
        %2076 = vmatprep.mubr.f32.mxu0 0.0
        %2077 = vmatmul.mubr.f32.gmra.mxu0 %v1896
        %v2078 = vpop.f32.mrf.mxu0
        %v2079 = vadd.f32 0.0, %v2078
        %v2080 = vpop.f32.mrf.mxu0
        %2081 = vmatprep.mubr.f32.mxu0 0.0
        %2082 = vmatmul.mubr.f32.gmra.mxu0 %v1897
        %v2083 = vpop.f32.mrf.mxu0
        %v2084 = vadd.f32 0.0, %v2083
        %v2085 = vpop.f32.mrf.mxu0
        %2086 = vmatprep.mubr.f32.mxu0 0.0
        %2087 = vmatmul.mubr.f32.gmra.mxu0 %v1898
        %v2088 = vpop.f32.mrf.mxu0
        %v2089 = vadd.f32 0.0, %v2088
        %v2090 = vpop.f32.mrf.mxu0
        %2091 = vmatprep.mubr.f32.mxu0 0.0
        %2092 = vmatmul.mubr.f32.gmra.mxu0 %v1899
        %v2093 = vpop.f32.mrf.mxu0
        %v2094 = vadd.f32 0.0, %v2093
        %v2095 = vpop.f32.mrf.mxu0
        %2096 = vmatprep.mubr.f32.mxu0 0.0
        %2097 = vmatmul.mubr.f32.gmra.mxu0 %v1900
        %v2098 = vpop.f32.mrf.mxu0
        %v2099 = vadd.f32 0.0, %v2098
        %v2100 = vpop.f32.mrf.mxu0
        %2101 = vmatprep.mubr.f32.mxu0 0.0
        %2102 = vmatmul.mubr.f32.gmra.mxu0 %v1901
        %v2103 = vpop.f32.mrf.mxu0
        %v2104 = vadd.f32 0.0, %v2103
        %v2105 = vpop.f32.mrf.mxu0
        %2106 = vmatprep.mubr.f32.mxu0 0.0
        %2107 = vmatmul.mubr.f32.gmra.mxu0 %v1902
        %v2108 = vpop.f32.mrf.mxu0
        %v2109 = vadd.f32 0.0, %v2108
        %v2110 = vpop.f32.mrf.mxu0
        %2111 = vmatprep.mubr.f32.mxu0 0.0
        %2112 = vmatmul.mubr.f32.gmra.mxu0 %v1903
        %v2113 = vpop.f32.mrf.mxu0
        %v2114 = vadd.f32 0.0, %v2113
        %v2115 = vpop.f32.mrf.mxu0
        %2116 = vmatprep.mubr.f32.mxu0 0.0
        %2117 = vmatmul.mubr.f32.gmra.mxu0 %v1904
        %v2118 = vpop.f32.mrf.mxu0
        %v2119 = vadd.f32 0.0, %v2118
        %v2120 = vpop.f32.mrf.mxu0
        %2121 = vmatprep.mubr.f32.mxu0 0.0
        %2122 = vmatmul.mubr.f32.gmra.mxu0 %v1905
        %v2123 = vpop.f32.mrf.mxu0
        %v2124 = vadd.f32 0.0, %v2123
        %v2125 = vpop.f32.mrf.mxu0
        %2126 = vmatprep.mubr.f32.mxu0 0.0
        %2127 = vmatmul.mubr.f32.gmra.mxu0 %v1906
        %v2128 = vpop.f32.mrf.mxu0
        %v2129 = vadd.f32 0.0, %v2128
        %v2130 = vpop.f32.mrf.mxu0
        %2131 = vmatprep.mubr.f32.mxu0 0.0
        %2132 = vmatmul.mubr.f32.gmra.mxu0 %v1907
        %v2133 = vpop.f32.mrf.mxu0
        %v2134 = vadd.f32 0.0, %v2133
        %v2135 = vpop.f32.mrf.mxu0
        %2136 = vmatprep.mubr.f32.mxu0 0.0
        %2137 = vmatmul.mubr.f32.gmra.mxu0 %v1908
        %v2138 = vpop.f32.mrf.mxu0
        %v2139 = vadd.f32 0.0, %v2138
        %v2140 = vpop.f32.mrf.mxu0
        %2141 = vmatprep.mubr.f32.mxu0 0.0
        %2142 = vmatmul.mubr.f32.gmra.mxu0 %v1909
        %v2143 = vpop.f32.mrf.mxu0
        %v2144 = vadd.f32 0.0, %v2143
        %v2145 = vpop.f32.mrf.mxu0
        %2146 = vmatprep.mubr.f32.mxu0 0.0
        %2147 = vmatmul.mubr.f32.gmra.mxu0 %v1910
        %v2148 = vpop.f32.mrf.mxu0
        %v2149 = vadd.f32 0.0, %v2148
        %v2150 = vpop.f32.mrf.mxu0
        %2151 = vmatprep.mubr.f32.mxu0 0.0
        %2152 = vmatmul.mubr.f32.gmra.mxu0 %v1911
        %v2153 = vpop.f32.mrf.mxu0
        %v2154 = vadd.f32 0.0, %v2153
        %v2155 = vpop.f32.mrf.mxu0
        %2156 = vmatprep.mubr.f32.mxu0 0.0
        %2157 = vmatmul.mubr.f32.gmra.mxu0 %v1912
        %v2158 = vpop.f32.mrf.mxu0
        %v2159 = vadd.f32 0.0, %v2158
        %v2160 = vpop.f32.mrf.mxu0
        %2161 = vmatprep.mubr.f32.mxu0 0.0
        %2162 = vmatmul.mubr.f32.gmra.mxu0 %v1913
        %v2163 = vpop.f32.mrf.mxu0
        %v2164 = vadd.f32 0.0, %v2163
        %v2165 = vpop.f32.mrf.mxu0
        %2166 = vmatprep.mubr.f32.mxu0 0.0
        %2167 = vmatmul.mubr.f32.gmra.mxu0 %v1914
        %v2168 = vpop.f32.mrf.mxu0
        %v2169 = vadd.f32 0.0, %v2168
        %v2170 = vpop.f32.mrf.mxu0
        %2171 = vmatprep.mubr.f32.mxu0 0.0
        %2172 = vmatmul.mubr.f32.gmra.mxu0 %v1915
        %v2173 = vpop.f32.mrf.mxu0
        %v2174 = vadd.f32 0.0, %v2173
        %v2175 = vpop.f32.mrf.mxu0
        %2176 = vmatprep.mubr.f32.mxu0 0.0
        %2177 = vmatmul.mubr.f32.gmra.mxu0 %v1916
        %v2178 = vpop.f32.mrf.mxu0
        %v2179 = vadd.f32 0.0, %v2178
        %v2180 = vpop.f32.mrf.mxu0
        %2181 = vmatprep.mubr.f32.mxu0 0.0
        %2182 = vmatmul.mubr.f32.gmra.mxu0 %v1917
        %v2183 = vpop.f32.mrf.mxu0
        %v2184 = vadd.f32 0.0, %v2183
        %v2185 = vpop.f32.mrf.mxu0
        %2186 = vmatprep.mubr.f32.mxu0 0.0
        %2187 = vmatmul.mubr.f32.gmra.mxu0 %v1918
        %v2188 = vpop.f32.mrf.mxu0
        %v2189 = vadd.f32 0.0, %v2188
        %v2190 = vpop.f32.mrf.mxu0
        %2191 = vmatprep.mubr.f32.mxu0 0.0
        %2192 = vmatmul.mubr.f32.gmra.mxu0 %v1919
        %v2193 = vpop.f32.mrf.mxu0
        %v2194 = vadd.f32 0.0, %v2193
        %v2195 = vpop.f32.mrf.mxu0
        %2196 = vmatprep.mubr.f32.mxu0 0.0
        %2197 = vmatmul.mubr.f32.gmra.mxu0 %v1920
        %v2198 = vpop.f32.mrf.mxu0
        %v2199 = vadd.f32 0.0, %v2198
        %v2200 = vpop.f32.mrf.mxu0
        %2201 = vmatprep.mubr.f32.mxu0 0.0
        %2202 = vmatmul.mubr.f32.gmra.mxu0 %v1921
        %v2203 = vpop.f32.mrf.mxu0
        %v2204 = vadd.f32 0.0, %v2203
        %v2205 = vpop.f32.mrf.mxu0
        %2206 = vmatprep.mubr.f32.mxu0 0.0
        %2207 = vmatmul.mubr.f32.gmra.mxu0 %v1922
        %v2208 = vpop.f32.mrf.mxu0
        %v2209 = vadd.f32 0.0, %v2208
        %v2210 = vpop.f32.mrf.mxu0
        %2211 = vmatprep.mubr.f32.mxu0 0.0
        %2212 = vmatmul.mubr.f32.gmra.mxu0 %v1923
        %v2213 = vpop.f32.mrf.mxu0
        %v2214 = vadd.f32 0.0, %v2213
        %v2215 = vpop.f32.mrf.mxu0
        %2216 = vmatprep.mubr.f32.mxu0 0.0
        %2217 = vmatmul.mubr.f32.gmra.mxu0 %v1924
        %v2218 = vpop.f32.mrf.mxu0
        %v2219 = vadd.f32 0.0, %v2218
        %v2220 = vpop.f32.mrf.mxu0
        %2221 = vmatprep.mubr.f32.mxu0 0.0
        %2222 = vmatmul.mubr.f32.gmra.mxu0 %v1925
        %v2223 = vpop.f32.mrf.mxu0
        %v2224 = vadd.f32 0.0, %v2223
        %v2225 = vpop.f32.mrf.mxu0
        %2226 = vmatprep.mubr.f32.mxu0 0.0
        %2227 = vmatmul.mubr.f32.gmra.mxu0 %v1926
        %v2228 = vpop.f32.mrf.mxu0
        %v2229 = vadd.f32 0.0, %v2228
        %v2230 = vpop.f32.mrf.mxu0
        %2231 = vmatprep.mubr.f32.mxu0 0.0
        %2232 = vmatmul.mubr.f32.gmra.mxu0 %v1927
        %v2233 = vpop.f32.mrf.mxu0
        %v2234 = vadd.f32 0.0, %v2233
        %v2235 = vpop.f32.mrf.mxu0
        %2236 = vmatprep.mubr.f32.mxu0 0.0
        %2237 = vmatmul.mubr.f32.gmra.mxu0 %v1928
        %v2238 = vpop.f32.mrf.mxu0
        %v2239 = vadd.f32 0.0, %v2238
        %v2240 = vpop.f32.mrf.mxu0
        %2241 = vmatprep.mubr.f32.mxu0 0.0
        %2242 = vmatmul.mubr.f32.gmra.mxu0 %v1929
        %v2243 = vpop.f32.mrf.mxu0
        %v2244 = vadd.f32 0.0, %v2243
        %v2245 = vpop.f32.mrf.mxu0
        %2246 = vmatprep.mubr.f32.mxu0 0.0
        %2247 = vmatmul.mubr.f32.gmra.mxu0 %v1930
        %v2248 = vpop.f32.mrf.mxu0
        %v2249 = vadd.f32 0.0, %v2248
        %v2250 = vpop.f32.mrf.mxu0
        %2251 = vmatprep.mubr.f32.mxu0 0.0
        %2252 = vmatmul.mubr.f32.gmra.mxu0 %v1931
        %v2253 = vpop.f32.mrf.mxu0
        %v2254 = vadd.f32 0.0, %v2253
        %v2255 = vpop.f32.mrf.mxu0
        %2256 = vmatprep.mubr.f32.mxu0 0.0
        %2257 = vmatmul.mubr.f32.gmra.mxu0 %v1932
        %v2258 = vpop.f32.mrf.mxu0
        %v2259 = vadd.f32 0.0, %v2258
        %v2260 = vpop.f32.mrf.mxu0
        %2261 = vmatprep.mubr.f32.mxu0 0.0
        %2262 = vmatmul.mubr.f32.gmra.mxu0 %v1933
        %v2263 = vpop.f32.mrf.mxu0
        %v2264 = vadd.f32 0.0, %v2263
        %v2265 = vpop.f32.mrf.mxu0
        %2266 = vmatprep.mubr.f32.mxu0 0.0
        %2267 = vmatmul.mubr.f32.gmra.mxu0 %v1934
        %v2268 = vpop.f32.mrf.mxu0
        %v2269 = vadd.f32 0.0, %v2268
        %v2270 = vpop.f32.mrf.mxu0
        %2271 = vmatprep.mubr.f32.mxu0 0.0
        %2272 = vmatmul.mubr.f32.gmra.mxu0 %v1935
        %v2273 = vpop.f32.mrf.mxu0
        %v2274 = vadd.f32 0.0, %v2273
        %v2275 = vpop.f32.mrf.mxu0
        %2276 = vmatprep.mubr.f32.mxu0 0.0
        %2277 = vmatmul.mubr.f32.gmra.mxu0 %v1936
        %v2278 = vpop.f32.mrf.mxu0
        %v2279 = vadd.f32 0.0, %v2278
        %v2280 = vpop.f32.mrf.mxu0
        %2281 = vmatprep.mubr.f32.mxu0 0.0
        %2282 = vmatmul.mubr.f32.gmra.mxu0 %v1937
        %v2283 = vpop.f32.mrf.mxu0
        %v2284 = vadd.f32 0.0, %v2283
        %v2285 = vpop.f32.mrf.mxu0
        %2286 = vmatprep.mubr.f32.mxu0 0.0
        %2287 = vmatmul.mubr.f32.gmra.mxu0 %v1938
        %v2288 = vpop.f32.mrf.mxu0
        %v2289 = vadd.f32 0.0, %v2288
        %v2290 = vpop.f32.mrf.mxu0
        %2291 = vmatprep.mubr.f32.mxu0 0.0
        %2292 = vmatmul.mubr.f32.gmra.mxu0 %v1939
        %v2293 = vpop.f32.mrf.mxu0
        %v2294 = vadd.f32 0.0, %v2293
        %v2295 = vpop.f32.mrf.mxu0
        %2296 = vmatprep.mubr.f32.mxu0 0.0
        %2297 = vmatmul.mubr.f32.gmra.mxu0 %v1940
        %v2298 = vpop.f32.mrf.mxu0
        %v2299 = vadd.f32 0.0, %v2298
        %v2300 = vpop.f32.mrf.mxu0
        %2301 = vmatprep.mubr.f32.mxu0 0.0
        %2302 = vmatmul.mubr.f32.gmra.mxu0 %v1941
        %v2303 = vpop.f32.mrf.mxu0
        %v2304 = vadd.f32 0.0, %v2303
        %v2305 = vpop.f32.mrf.mxu0
        %2306 = vmatprep.mubr.f32.mxu0 0.0
        %2307 = vmatmul.mubr.f32.gmra.mxu0 %v1942
        %v2308 = vpop.f32.mrf.mxu0
        %v2309 = vadd.f32 0.0, %v2308
        %v2310 = vpop.f32.mrf.mxu0
        %2311 = vmatprep.mubr.f32.mxu0 0.0
        %2312 = vmatmul.mubr.f32.gmra.mxu0 %v1943
        %v2313 = vpop.f32.mrf.mxu0
        %v2314 = vadd.f32 0.0, %v2313
        %v2315 = vpop.f32.mrf.mxu0
        %2316 = vmatprep.mubr.f32.mxu0 0.0
        %2317 = vmatmul.mubr.f32.gmra.mxu0 %v1944
        %v2318 = vpop.f32.mrf.mxu0
        %v2319 = vadd.f32 0.0, %v2318
        %v2320 = vpop.f32.mrf.mxu0
        %2321 = vmatprep.mubr.f32.mxu0 0.0
        %2322 = vmatmul.mubr.f32.gmra.mxu0 %v1945
        %v2323 = vpop.f32.mrf.mxu0
        %v2324 = vadd.f32 0.0, %v2323
        %v2325 = vpop.f32.mrf.mxu0
        %2326 = vmatprep.mubr.f32.mxu0 0.0
        %2327 = vmatmul.mubr.f32.gmra.mxu0 %v1946
        %v2328 = vpop.f32.mrf.mxu0
        %v2329 = vadd.f32 0.0, %v2328
        %v2330 = vpop.f32.mrf.mxu0
        %2331 = vmatprep.mubr.f32.mxu0 0.0
        %2332 = vmatmul.mubr.f32.gmra.mxu0 %v1947
        %v2333 = vpop.f32.mrf.mxu0
        %v2334 = vadd.f32 0.0, %v2333
        %v2335 = vpop.f32.mrf.mxu0
        %2336 = vmatprep.mubr.f32.mxu0 0.0
        %2337 = vmatmul.mubr.f32.gmra.mxu0 %v1948
        %v2338 = vpop.f32.mrf.mxu0
        %v2339 = vadd.f32 0.0, %v2338
        %v2340 = vpop.f32.mrf.mxu0
        %2341 = vmatprep.mubr.f32.mxu0 0.0
        %2342 = vmatmul.mubr.f32.gmra.mxu0 %v1949
        %v2343 = vpop.f32.mrf.mxu0
        %v2344 = vadd.f32 0.0, %v2343
        %v2345 = vpop.f32.mrf.mxu0
        %2346 = vmatprep.mubr.f32.mxu0 0.0
        %2347 = vmatmul.mubr.f32.gmra.mxu0 %v1950
        %v2348 = vpop.f32.mrf.mxu0
        %v2349 = vadd.f32 0.0, %v2348
        %v2350 = vpop.f32.mrf.mxu0
        %2351 = vdwg.mxu0
        %v2352 = vadd.f32 %v2034, %v1879
        %v2353 = vadd.f32 %v2039, %v1880
        %v2354 = vadd.f32 %v2044, %v1881
        %v2355 = vadd.f32 %v2049, %v1882
        %v2356 = vadd.f32 %v2054, %v1883
        %v2357 = vadd.f32 %v2059, %v1884
        %v2358 = vadd.f32 %v2064, %v1885
        %v2359 = vadd.f32 %v2069, %v1886
        %v2360 = vmax.f32 %v2352, 0.0
        %v2361 = vmax.f32 %v2353, 0.0
        %v2362 = vmax.f32 %v2354, 0.0
        %v2363 = vmax.f32 %v2355, 0.0
        %v2364 = vmax.f32 %v2356, 0.0
        %v2365 = vmax.f32 %v2357, 0.0
        %v2366 = vmax.f32 %v2358, 0.0
        %v2367 = vmax.f32 %v2359, 0.0
        %2368 = vst [vmem:[#allocation3] sm:$0xff] %v2360
        %2369 = vst [vmem:[#allocation3 + $0x8] sm:$0xff] %v2361
        %2370 = vst [vmem:[#allocation3 + $0x10] sm:$0xff] %v2362
        %2371 = vst [vmem:[#allocation3 + $0x18] sm:$0xff] %v2363
        %2372 = vst [vmem:[#allocation3 + $0x20] sm:$0xff] %v2364
        %2373 = vst [vmem:[#allocation3 + $0x28] sm:$0xff] %v2365
        %2374 = vst [vmem:[#allocation3 + $0x30] sm:$0xff] %v2366
        %2375 = vst [vmem:[#allocation3 + $0x38] sm:$0xff] %v2367
        %v2376 = vadd.f32 %v2074, %v1879
        %v2377 = vadd.f32 %v2079, %v1880
        %v2378 = vadd.f32 %v2084, %v1881
        %v2379 = vadd.f32 %v2089, %v1882
        %v2380 = vadd.f32 %v2094, %v1883
        %v2381 = vadd.f32 %v2099, %v1884
        %v2382 = vadd.f32 %v2104, %v1885
        %v2383 = vadd.f32 %v2109, %v1886
        %v2384 = vmax.f32 %v2376, 0.0
        %v2385 = vmax.f32 %v2377, 0.0
        %v2386 = vmax.f32 %v2378, 0.0
        %v2387 = vmax.f32 %v2379, 0.0
        %v2388 = vmax.f32 %v2380, 0.0
        %v2389 = vmax.f32 %v2381, 0.0
        %v2390 = vmax.f32 %v2382, 0.0
        %v2391 = vmax.f32 %v2383, 0.0
        %2392 = vst [vmem:[#allocation3 + $0x40] sm:$0xff] %v2384
        %2393 = vst [vmem:[#allocation3 + $0x48] sm:$0xff] %v2385
        %2394 = vst [vmem:[#allocation3 + $0x50] sm:$0xff] %v2386
        %2395 = vst [vmem:[#allocation3 + $0x58] sm:$0xff] %v2387
        %2396 = vst [vmem:[#allocation3 + $0x60] sm:$0xff] %v2388
        %2397 = vst [vmem:[#allocation3 + $0x68] sm:$0xff] %v2389
        %2398 = vst [vmem:[#allocation3 + $0x70] sm:$0xff] %v2390
        %2399 = vst [vmem:[#allocation3 + $0x78] sm:$0xff] %v2391
        %v2400 = vadd.f32 %v2114, %v1879
        %v2401 = vadd.f32 %v2119, %v1880
        %v2402 = vadd.f32 %v2124, %v1881
        %v2403 = vadd.f32 %v2129, %v1882
        %v2404 = vadd.f32 %v2134, %v1883
        %v2405 = vadd.f32 %v2139, %v1884
        %v2406 = vadd.f32 %v2144, %v1885
        %v2407 = vadd.f32 %v2149, %v1886
        %v2408 = vmax.f32 %v2400, 0.0
        %v2409 = vmax.f32 %v2401, 0.0
        %v2410 = vmax.f32 %v2402, 0.0
        %v2411 = vmax.f32 %v2403, 0.0
        %v2412 = vmax.f32 %v2404, 0.0
        %v2413 = vmax.f32 %v2405, 0.0
        %v2414 = vmax.f32 %v2406, 0.0
        %v2415 = vmax.f32 %v2407, 0.0
        %2416 = vst [vmem:[#allocation3 + $0x80] sm:$0xff] %v2408
        %2417 = vst [vmem:[#allocation3 + $0x88] sm:$0xff] %v2409
        %2418 = vst [vmem:[#allocation3 + $0x90] sm:$0xff] %v2410
        %2419 = vst [vmem:[#allocation3 + $0x98] sm:$0xff] %v2411
        %2420 = vst [vmem:[#allocation3 + $0xa0] sm:$0xff] %v2412
        %2421 = vst [vmem:[#allocation3 + $0xa8] sm:$0xff] %v2413
        %2422 = vst [vmem:[#allocation3 + $0xb0] sm:$0xff] %v2414
        %2423 = vst [vmem:[#allocation3 + $0xb8] sm:$0xff] %v2415
        %v2424 = vadd.f32 %v2154, %v1879
        %v2425 = vadd.f32 %v2159, %v1880
        %v2426 = vadd.f32 %v2164, %v1881
        %v2427 = vadd.f32 %v2169, %v1882
        %v2428 = vadd.f32 %v2174, %v1883
        %v2429 = vadd.f32 %v2179, %v1884
        %v2430 = vadd.f32 %v2184, %v1885
        %v2431 = vadd.f32 %v2189, %v1886
        %v2432 = vmax.f32 %v2424, 0.0
        %v2433 = vmax.f32 %v2425, 0.0
        %v2434 = vmax.f32 %v2426, 0.0
        %v2435 = vmax.f32 %v2427, 0.0
        %v2436 = vmax.f32 %v2428, 0.0
        %v2437 = vmax.f32 %v2429, 0.0
        %v2438 = vmax.f32 %v2430, 0.0
        %v2439 = vmax.f32 %v2431, 0.0
        %2440 = vst [vmem:[#allocation3 + $0xc0] sm:$0xff] %v2432
        %2441 = vst [vmem:[#allocation3 + $0xc8] sm:$0xff] %v2433
        %2442 = vst [vmem:[#allocation3 + $0xd0] sm:$0xff] %v2434
        %2443 = vst [vmem:[#allocation3 + $0xd8] sm:$0xff] %v2435
        %2444 = vst [vmem:[#allocation3 + $0xe0] sm:$0xff] %v2436
        %2445 = vst [vmem:[#allocation3 + $0xe8] sm:$0xff] %v2437
        %2446 = vst [vmem:[#allocation3 + $0xf0] sm:$0xff] %v2438
        %2447 = vst [vmem:[#allocation3 + $0xf8] sm:$0xff] %v2439
        %v2448 = vadd.f32 %v2194, %v1879
        %v2449 = vadd.f32 %v2199, %v1880
        %v2450 = vadd.f32 %v2204, %v1881
        %v2451 = vadd.f32 %v2209, %v1882
        %v2452 = vadd.f32 %v2214, %v1883
        %v2453 = vadd.f32 %v2219, %v1884
        %v2454 = vadd.f32 %v2224, %v1885
        %v2455 = vadd.f32 %v2229, %v1886
        %v2456 = vmax.f32 %v2448, 0.0
        %v2457 = vmax.f32 %v2449, 0.0
        %v2458 = vmax.f32 %v2450, 0.0
        %v2459 = vmax.f32 %v2451, 0.0
        %v2460 = vmax.f32 %v2452, 0.0
        %v2461 = vmax.f32 %v2453, 0.0
        %v2462 = vmax.f32 %v2454, 0.0
        %v2463 = vmax.f32 %v2455, 0.0
        %2464 = vst [vmem:[#allocation3 + $0x100] sm:$0xff] %v2456
        %2465 = vst [vmem:[#allocation3 + $0x108] sm:$0xff] %v2457
        %2466 = vst [vmem:[#allocation3 + $0x110] sm:$0xff] %v2458
        %2467 = vst [vmem:[#allocation3 + $0x118] sm:$0xff] %v2459
        %2468 = vst [vmem:[#allocation3 + $0x120] sm:$0xff] %v2460
        %2469 = vst [vmem:[#allocation3 + $0x128] sm:$0xff] %v2461
        %2470 = vst [vmem:[#allocation3 + $0x130] sm:$0xff] %v2462
        %2471 = vst [vmem:[#allocation3 + $0x138] sm:$0xff] %v2463
        %v2472 = vadd.f32 %v2234, %v1879
        %v2473 = vadd.f32 %v2239, %v1880
        %v2474 = vadd.f32 %v2244, %v1881
        %v2475 = vadd.f32 %v2249, %v1882
        %v2476 = vadd.f32 %v2254, %v1883
        %v2477 = vadd.f32 %v2259, %v1884
        %v2478 = vadd.f32 %v2264, %v1885
        %v2479 = vadd.f32 %v2269, %v1886
        %v2480 = vmax.f32 %v2472, 0.0
        %v2481 = vmax.f32 %v2473, 0.0
        %v2482 = vmax.f32 %v2474, 0.0
        %v2483 = vmax.f32 %v2475, 0.0
        %v2484 = vmax.f32 %v2476, 0.0
        %v2485 = vmax.f32 %v2477, 0.0
        %v2486 = vmax.f32 %v2478, 0.0
        %v2487 = vmax.f32 %v2479, 0.0
        %2488 = vst [vmem:[#allocation3 + $0x140] sm:$0xff] %v2480
        %2489 = vst [vmem:[#allocation3 + $0x148] sm:$0xff] %v2481
        %2490 = vst [vmem:[#allocation3 + $0x150] sm:$0xff] %v2482
        %2491 = vst [vmem:[#allocation3 + $0x158] sm:$0xff] %v2483
        %2492 = vst [vmem:[#allocation3 + $0x160] sm:$0xff] %v2484
        %2493 = vst [vmem:[#allocation3 + $0x168] sm:$0xff] %v2485
        %2494 = vst [vmem:[#allocation3 + $0x170] sm:$0xff] %v2486
        %2495 = vst [vmem:[#allocation3 + $0x178] sm:$0xff] %v2487
        %v2496 = vadd.f32 %v2274, %v1879
        %v2497 = vadd.f32 %v2279, %v1880
        %v2498 = vadd.f32 %v2284, %v1881
        %v2499 = vadd.f32 %v2289, %v1882
        %v2500 = vadd.f32 %v2294, %v1883
        %v2501 = vadd.f32 %v2299, %v1884
        %v2502 = vadd.f32 %v2304, %v1885
        %v2503 = vadd.f32 %v2309, %v1886
        %v2504 = vmax.f32 %v2496, 0.0
        %v2505 = vmax.f32 %v2497, 0.0
        %v2506 = vmax.f32 %v2498, 0.0
        %v2507 = vmax.f32 %v2499, 0.0
        %v2508 = vmax.f32 %v2500, 0.0
        %v2509 = vmax.f32 %v2501, 0.0
        %v2510 = vmax.f32 %v2502, 0.0
        %v2511 = vmax.f32 %v2503, 0.0
        %2512 = vst [vmem:[#allocation3 + $0x180] sm:$0xff] %v2504
        %2513 = vst [vmem:[#allocation3 + $0x188] sm:$0xff] %v2505
        %2514 = vst [vmem:[#allocation3 + $0x190] sm:$0xff] %v2506
        %2515 = vst [vmem:[#allocation3 + $0x198] sm:$0xff] %v2507
        %2516 = vst [vmem:[#allocation3 + $0x1a0] sm:$0xff] %v2508
        %2517 = vst [vmem:[#allocation3 + $0x1a8] sm:$0xff] %v2509
        %2518 = vst [vmem:[#allocation3 + $0x1b0] sm:$0xff] %v2510
        %2519 = vst [vmem:[#allocation3 + $0x1b8] sm:$0xff] %v2511
        %v2520 = vadd.f32 %v2314, %v1879
        %v2521 = vadd.f32 %v2319, %v1880
        %v2522 = vadd.f32 %v2324, %v1881
        %v2523 = vadd.f32 %v2329, %v1882
        %v2524 = vadd.f32 %v2334, %v1883
        %v2525 = vadd.f32 %v2339, %v1884
        %v2526 = vadd.f32 %v2344, %v1885
        %v2527 = vadd.f32 %v2349, %v1886
        %v2528 = vmax.f32 %v2520, 0.0
        %v2529 = vmax.f32 %v2521, 0.0
        %v2530 = vmax.f32 %v2522, 0.0
        %v2531 = vmax.f32 %v2523, 0.0
        %v2532 = vmax.f32 %v2524, 0.0
        %v2533 = vmax.f32 %v2525, 0.0
        %v2534 = vmax.f32 %v2526, 0.0
        %v2535 = vmax.f32 %v2527, 0.0
        %2536 = vst [vmem:[#allocation3 + $0x1c0] sm:$0xff] %v2528
        %2537 = vst [vmem:[#allocation3 + $0x1c8] sm:$0xff] %v2529
        %2538 = vst [vmem:[#allocation3 + $0x1d0] sm:$0xff] %v2530
        %2539 = vst [vmem:[#allocation3 + $0x1d8] sm:$0xff] %v2531
        %2540 = vst [vmem:[#allocation3 + $0x1e0] sm:$0xff] %v2532
        %2541 = vst [vmem:[#allocation3 + $0x1e8] sm:$0xff] %v2533
        %2542 = vst [vmem:[#allocation3 + $0x1f0] sm:$0xff] %v2534
        %2543 = vst [vmem:[#allocation3 + $0x1f8] sm:$0xff] %v2535
        %v2544 = vld [vmem:[#allocation3] sm:$0xff]
        %v2545 = vld [vmem:[#allocation3 + $0x8] sm:$0xff]
        %v2546 = vld [vmem:[#allocation3 + $0x10] sm:$0xff]
        %v2547 = vld [vmem:[#allocation3 + $0x18] sm:$0xff]
        %v2548 = vld [vmem:[#allocation3 + $0x20] sm:$0xff]
        %v2549 = vld [vmem:[#allocation3 + $0x28] sm:$0xff]
        %v2550 = vld [vmem:[#allocation3 + $0x30] sm:$0xff]
        %v2551 = vld [vmem:[#allocation3 + $0x38] sm:$0xff]
        %v2552 = vld [vmem:[#allocation3 + $0x40] sm:$0xff]
        %v2553 = vld [vmem:[#allocation3 + $0x48] sm:$0xff]
        %v2554 = vld [vmem:[#allocation3 + $0x50] sm:$0xff]
        %v2555 = vld [vmem:[#allocation3 + $0x58] sm:$0xff]
        %v2556 = vld [vmem:[#allocation3 + $0x60] sm:$0xff]
        %v2557 = vld [vmem:[#allocation3 + $0x68] sm:$0xff]
        %v2558 = vld [vmem:[#allocation3 + $0x70] sm:$0xff]
        %v2559 = vld [vmem:[#allocation3 + $0x78] sm:$0xff]
        %v2560 = vld [vmem:[#allocation3 + $0x80] sm:$0xff]
        %v2561 = vld [vmem:[#allocation3 + $0x88] sm:$0xff]
        %v2562 = vld [vmem:[#allocation3 + $0x90] sm:$0xff]
        %v2563 = vld [vmem:[#allocation3 + $0x98] sm:$0xff]
        %v2564 = vld [vmem:[#allocation3 + $0xa0] sm:$0xff]
        %v2565 = vld [vmem:[#allocation3 + $0xa8] sm:$0xff]
        %v2566 = vld [vmem:[#allocation3 + $0xb0] sm:$0xff]
        %v2567 = vld [vmem:[#allocation3 + $0xb8] sm:$0xff]
        %v2568 = vld [vmem:[#allocation3 + $0xc0] sm:$0xff]
        %v2569 = vld [vmem:[#allocation3 + $0xc8] sm:$0xff]
        %v2570 = vld [vmem:[#allocation3 + $0xd0] sm:$0xff]
        %v2571 = vld [vmem:[#allocation3 + $0xd8] sm:$0xff]
        %v2572 = vld [vmem:[#allocation3 + $0xe0] sm:$0xff]
        %v2573 = vld [vmem:[#allocation3 + $0xe8] sm:$0xff]
        %v2574 = vld [vmem:[#allocation3 + $0xf0] sm:$0xff]
        %v2575 = vld [vmem:[#allocation3 + $0xf8] sm:$0xff]
        %v2576 = vld [vmem:[#allocation3 + $0x100] sm:$0xff]
        %v2577 = vld [vmem:[#allocation3 + $0x108] sm:$0xff]
        %v2578 = vld [vmem:[#allocation3 + $0x110] sm:$0xff]
        %v2579 = vld [vmem:[#allocation3 + $0x118] sm:$0xff]
        %v2580 = vld [vmem:[#allocation3 + $0x120] sm:$0xff]
        %v2581 = vld [vmem:[#allocation3 + $0x128] sm:$0xff]
        %v2582 = vld [vmem:[#allocation3 + $0x130] sm:$0xff]
        %v2583 = vld [vmem:[#allocation3 + $0x138] sm:$0xff]
        %v2584 = vld [vmem:[#allocation3 + $0x140] sm:$0xff]
        %v2585 = vld [vmem:[#allocation3 + $0x148] sm:$0xff]
        %v2586 = vld [vmem:[#allocation3 + $0x150] sm:$0xff]
        %v2587 = vld [vmem:[#allocation3 + $0x158] sm:$0xff]
        %v2588 = vld [vmem:[#allocation3 + $0x160] sm:$0xff]
        %v2589 = vld [vmem:[#allocation3 + $0x168] sm:$0xff]
        %v2590 = vld [vmem:[#allocation3 + $0x170] sm:$0xff]
        %v2591 = vld [vmem:[#allocation3 + $0x178] sm:$0xff]
        %v2592 = vld [vmem:[#allocation3 + $0x180] sm:$0xff]
        %v2593 = vld [vmem:[#allocation3 + $0x188] sm:$0xff]
        %v2594 = vld [vmem:[#allocation3 + $0x190] sm:$0xff]
        %v2595 = vld [vmem:[#allocation3 + $0x198] sm:$0xff]
        %v2596 = vld [vmem:[#allocation3 + $0x1a0] sm:$0xff]
        %v2597 = vld [vmem:[#allocation3 + $0x1a8] sm:$0xff]
        %v2598 = vld [vmem:[#allocation3 + $0x1b0] sm:$0xff]
        %v2599 = vld [vmem:[#allocation3 + $0x1b8] sm:$0xff]
        %v2600 = vld [vmem:[#allocation3 + $0x1c0] sm:$0xff]
        %v2601 = vld [vmem:[#allocation3 + $0x1c8] sm:$0xff]
        %v2602 = vld [vmem:[#allocation3 + $0x1d0] sm:$0xff]
        %v2603 = vld [vmem:[#allocation3 + $0x1d8] sm:$0xff]
        %v2604 = vld [vmem:[#allocation3 + $0x1e0] sm:$0xff]
        %v2605 = vld [vmem:[#allocation3 + $0x1e8] sm:$0xff]
        %v2606 = vld [vmem:[#allocation3 + $0x1f0] sm:$0xff]
        %v2607 = vld [vmem:[#allocation3 + $0x1f8] sm:$0xff]
        %v2608 = vld [vmem:[#allocation7] sm:$0xff]
        %v2609 = vld [vmem:[#allocation7 + $0x8] sm:$0xff]
        %v2610 = vld [vmem:[#allocation7 + $0x10] sm:$0xff]
        %v2611 = vld [vmem:[#allocation7 + $0x18] sm:$0xff]
        %v2612 = vld [vmem:[#allocation7 + $0x20] sm:$0xff]
        %v2613 = vld [vmem:[#allocation7 + $0x28] sm:$0xff]
        %v2614 = vld [vmem:[#allocation7 + $0x30] sm:$0xff]
        %v2615 = vld [vmem:[#allocation7 + $0x38] sm:$0xff]
        %v2616 = vld [vmem:[#allocation7 + $0x40] sm:$0xff]
        %v2617 = vld [vmem:[#allocation7 + $0x48] sm:$0xff]
        %v2618 = vld [vmem:[#allocation7 + $0x50] sm:$0xff]
        %v2619 = vld [vmem:[#allocation7 + $0x58] sm:$0xff]
        %v2620 = vld [vmem:[#allocation7 + $0x60] sm:$0xff]
        %v2621 = vld [vmem:[#allocation7 + $0x68] sm:$0xff]
        %v2622 = vld [vmem:[#allocation7 + $0x70] sm:$0xff]
        %v2623 = vld [vmem:[#allocation7 + $0x78] sm:$0xff]
        %2624 = vmatprep.subr.mxu0 0.0
        %2625 = vmatpush1.msra.mxu0 %v2623
        %2626 = vmatprep.subr.mxu0 0.0
        %2627 = vmatpush1.msra.mxu0 %v2622
        %2628 = vmatprep.subr.mxu0 0.0
        %2629 = vmatpush1.msra.mxu0 %v2621
        %2630 = vmatprep.subr.mxu0 0.0
        %2631 = vmatpush1.msra.mxu0 %v2620
        %2632 = vmatprep.subr.mxu0 0.0
        %2633 = vmatpush1.msra.mxu0 %v2619
        %2634 = vmatprep.subr.mxu0 0.0
        %2635 = vmatpush1.msra.mxu0 %v2618
        %2636 = vmatprep.subr.mxu0 0.0
        %2637 = vmatpush1.msra.mxu0 %v2617
        %2638 = vmatprep.subr.mxu0 0.0
        %2639 = vmatpush1.msra.mxu0 %v2616
        %2640 = vmatprep.subr.mxu0 0.0
        %2641 = vmatpush1.msra.mxu0 %v2615
        %2642 = vmatprep.subr.mxu0 0.0
        %2643 = vmatpush1.msra.mxu0 %v2614
        %2644 = vmatprep.subr.mxu0 0.0
        %2645 = vmatpush1.msra.mxu0 %v2613
        %2646 = vmatprep.subr.mxu0 0.0
        %2647 = vmatpush1.msra.mxu0 %v2612
        %2648 = vmatprep.subr.mxu0 0.0
        %2649 = vmatpush1.msra.mxu0 %v2611
        %2650 = vmatprep.subr.mxu0 0.0
        %2651 = vmatpush1.msra.mxu0 %v2610
        %2652 = vmatprep.subr.mxu0 0.0
        %2653 = vmatpush1.msra.mxu0 %v2609
        %2654 = vmatprep.subr.mxu0 0.0
        %2655 = vmatpush1.msra.mxu0 %v2608
        %2656 = vmatprep.subr.mxu0 0.0
        %2657 = vmatpush2.msra.mxu0 0.0
        %2658 = vmatprep.subr.mxu0 0.0
        %2659 = vmatpush2.msra.mxu0 0.0
        %2660 = vmatprep.subr.mxu0 0.0
        %2661 = vmatpush2.msra.mxu0 0.0
        %2662 = vmatprep.subr.mxu0 0.0
        %2663 = vmatpush2.msra.mxu0 0.0
        %2664 = vmatprep.subr.mxu0 0.0
        %2665 = vmatpush2.msra.mxu0 0.0
        %2666 = vmatprep.subr.mxu0 0.0
        %2667 = vmatpush2.msra.mxu0 0.0
        %2668 = vmatprep.subr.mxu0 0.0
        %2669 = vmatpush2.msra.mxu0 0.0
        %2670 = vmatprep.subr.mxu0 0.0
        %2671 = vmatpush2.msra.mxu0 0.0
        %2672 = vmatprep.subr.mxu0 0.0
        %2673 = vmatpush2.msra.mxu0 0.0
        %2674 = vmatprep.subr.mxu0 0.0
        %2675 = vmatpush2.msra.mxu0 0.0
        %2676 = vmatprep.subr.mxu0 0.0
        %2677 = vmatpush2.msra.mxu0 0.0
        %2678 = vmatprep.subr.mxu0 0.0
        %2679 = vmatpush2.msra.mxu0 0.0
        %2680 = vmatprep.subr.mxu0 0.0
        %2681 = vmatpush2.msra.mxu0 0.0
        %2682 = vmatprep.subr.mxu0 0.0
        %2683 = vmatpush2.msra.mxu0 0.0
        %2684 = vmatprep.subr.mxu0 0.0
        %2685 = vmatpush2.msra.mxu0 0.0
        %2686 = vmatprep.subr.mxu0 0.0
        %2687 = vmatpush2.msra.mxu0 0.0
        %2688 = vmatprep.mubr.f32.mxu0 0.0
        %2689 = vmatmul.mubr.f32.gmra.mxu0 %v2544
        %v2690 = vpop.f32.mrf.mxu0
        %v2691 = vadd.f32 0.0, %v2690
        %v2692 = vpop.f32.mrf.mxu0
        %2693 = vmatprep.mubr.f32.mxu0 0.0
        %2694 = vmatmul.mubr.f32.gmra.mxu0 %v2545
        %v2695 = vpop.f32.mrf.mxu0
        %v2696 = vadd.f32 0.0, %v2695
        %v2697 = vpop.f32.mrf.mxu0
        %2698 = vmatprep.mubr.f32.mxu0 0.0
        %2699 = vmatmul.mubr.f32.gmra.mxu0 %v2546
        %v2700 = vpop.f32.mrf.mxu0
        %v2701 = vadd.f32 0.0, %v2700
        %v2702 = vpop.f32.mrf.mxu0
        %2703 = vmatprep.mubr.f32.mxu0 0.0
        %2704 = vmatmul.mubr.f32.gmra.mxu0 %v2547
        %v2705 = vpop.f32.mrf.mxu0
        %v2706 = vadd.f32 0.0, %v2705
        %v2707 = vpop.f32.mrf.mxu0
        %2708 = vmatprep.mubr.f32.mxu0 0.0
        %2709 = vmatmul.mubr.f32.gmra.mxu0 %v2548
        %v2710 = vpop.f32.mrf.mxu0
        %v2711 = vadd.f32 0.0, %v2710
        %v2712 = vpop.f32.mrf.mxu0
        %2713 = vmatprep.mubr.f32.mxu0 0.0
        %2714 = vmatmul.mubr.f32.gmra.mxu0 %v2549
        %v2715 = vpop.f32.mrf.mxu0
        %v2716 = vadd.f32 0.0, %v2715
        %v2717 = vpop.f32.mrf.mxu0
        %2718 = vmatprep.mubr.f32.mxu0 0.0
        %2719 = vmatmul.mubr.f32.gmra.mxu0 %v2550
        %v2720 = vpop.f32.mrf.mxu0
        %v2721 = vadd.f32 0.0, %v2720
        %v2722 = vpop.f32.mrf.mxu0
        %2723 = vmatprep.mubr.f32.mxu0 0.0
        %2724 = vmatmul.mubr.f32.gmra.mxu0 %v2551
        %v2725 = vpop.f32.mrf.mxu0
        %v2726 = vadd.f32 0.0, %v2725
        %v2727 = vpop.f32.mrf.mxu0
        %2728 = vmatprep.mubr.f32.mxu0 0.0
        %2729 = vmatmul.mubr.f32.gmra.mxu0 %v2552
        %v2730 = vpop.f32.mrf.mxu0
        %v2731 = vadd.f32 0.0, %v2730
        %v2732 = vpop.f32.mrf.mxu0
        %2733 = vmatprep.mubr.f32.mxu0 0.0
        %2734 = vmatmul.mubr.f32.gmra.mxu0 %v2553
        %v2735 = vpop.f32.mrf.mxu0
        %v2736 = vadd.f32 0.0, %v2735
        %v2737 = vpop.f32.mrf.mxu0
        %2738 = vmatprep.mubr.f32.mxu0 0.0
        %2739 = vmatmul.mubr.f32.gmra.mxu0 %v2554
        %v2740 = vpop.f32.mrf.mxu0
        %v2741 = vadd.f32 0.0, %v2740
        %v2742 = vpop.f32.mrf.mxu0
        %2743 = vmatprep.mubr.f32.mxu0 0.0
        %2744 = vmatmul.mubr.f32.gmra.mxu0 %v2555
        %v2745 = vpop.f32.mrf.mxu0
        %v2746 = vadd.f32 0.0, %v2745
        %v2747 = vpop.f32.mrf.mxu0
        %2748 = vmatprep.mubr.f32.mxu0 0.0
        %2749 = vmatmul.mubr.f32.gmra.mxu0 %v2556
        %v2750 = vpop.f32.mrf.mxu0
        %v2751 = vadd.f32 0.0, %v2750
        %v2752 = vpop.f32.mrf.mxu0
        %2753 = vmatprep.mubr.f32.mxu0 0.0
        %2754 = vmatmul.mubr.f32.gmra.mxu0 %v2557
        %v2755 = vpop.f32.mrf.mxu0
        %v2756 = vadd.f32 0.0, %v2755
        %v2757 = vpop.f32.mrf.mxu0
        %2758 = vmatprep.mubr.f32.mxu0 0.0
        %2759 = vmatmul.mubr.f32.gmra.mxu0 %v2558
        %v2760 = vpop.f32.mrf.mxu0
        %v2761 = vadd.f32 0.0, %v2760
        %v2762 = vpop.f32.mrf.mxu0
        %2763 = vmatprep.mubr.f32.mxu0 0.0
        %2764 = vmatmul.mubr.f32.gmra.mxu0 %v2559
        %v2765 = vpop.f32.mrf.mxu0
        %v2766 = vadd.f32 0.0, %v2765
        %v2767 = vpop.f32.mrf.mxu0
        %2768 = vmatprep.mubr.f32.mxu0 0.0
        %2769 = vmatmul.mubr.f32.gmra.mxu0 %v2560
        %v2770 = vpop.f32.mrf.mxu0
        %v2771 = vadd.f32 0.0, %v2770
        %v2772 = vpop.f32.mrf.mxu0
        %2773 = vmatprep.mubr.f32.mxu0 0.0
        %2774 = vmatmul.mubr.f32.gmra.mxu0 %v2561
        %v2775 = vpop.f32.mrf.mxu0
        %v2776 = vadd.f32 0.0, %v2775
        %v2777 = vpop.f32.mrf.mxu0
        %2778 = vmatprep.mubr.f32.mxu0 0.0
        %2779 = vmatmul.mubr.f32.gmra.mxu0 %v2562
        %v2780 = vpop.f32.mrf.mxu0
        %v2781 = vadd.f32 0.0, %v2780
        %v2782 = vpop.f32.mrf.mxu0
        %2783 = vmatprep.mubr.f32.mxu0 0.0
        %2784 = vmatmul.mubr.f32.gmra.mxu0 %v2563
        %v2785 = vpop.f32.mrf.mxu0
        %v2786 = vadd.f32 0.0, %v2785
        %v2787 = vpop.f32.mrf.mxu0
        %2788 = vmatprep.mubr.f32.mxu0 0.0
        %2789 = vmatmul.mubr.f32.gmra.mxu0 %v2564
        %v2790 = vpop.f32.mrf.mxu0
        %v2791 = vadd.f32 0.0, %v2790
        %v2792 = vpop.f32.mrf.mxu0
        %2793 = vmatprep.mubr.f32.mxu0 0.0
        %2794 = vmatmul.mubr.f32.gmra.mxu0 %v2565
        %v2795 = vpop.f32.mrf.mxu0
        %v2796 = vadd.f32 0.0, %v2795
        %v2797 = vpop.f32.mrf.mxu0
        %2798 = vmatprep.mubr.f32.mxu0 0.0
        %2799 = vmatmul.mubr.f32.gmra.mxu0 %v2566
        %v2800 = vpop.f32.mrf.mxu0
        %v2801 = vadd.f32 0.0, %v2800
        %v2802 = vpop.f32.mrf.mxu0
        %2803 = vmatprep.mubr.f32.mxu0 0.0
        %2804 = vmatmul.mubr.f32.gmra.mxu0 %v2567
        %v2805 = vpop.f32.mrf.mxu0
        %v2806 = vadd.f32 0.0, %v2805
        %v2807 = vpop.f32.mrf.mxu0
        %2808 = vmatprep.mubr.f32.mxu0 0.0
        %2809 = vmatmul.mubr.f32.gmra.mxu0 %v2568
        %v2810 = vpop.f32.mrf.mxu0
        %v2811 = vadd.f32 0.0, %v2810
        %v2812 = vpop.f32.mrf.mxu0
        %2813 = vmatprep.mubr.f32.mxu0 0.0
        %2814 = vmatmul.mubr.f32.gmra.mxu0 %v2569
        %v2815 = vpop.f32.mrf.mxu0
        %v2816 = vadd.f32 0.0, %v2815
        %v2817 = vpop.f32.mrf.mxu0
        %2818 = vmatprep.mubr.f32.mxu0 0.0
        %2819 = vmatmul.mubr.f32.gmra.mxu0 %v2570
        %v2820 = vpop.f32.mrf.mxu0
        %v2821 = vadd.f32 0.0, %v2820
        %v2822 = vpop.f32.mrf.mxu0
        %2823 = vmatprep.mubr.f32.mxu0 0.0
        %2824 = vmatmul.mubr.f32.gmra.mxu0 %v2571
        %v2825 = vpop.f32.mrf.mxu0
        %v2826 = vadd.f32 0.0, %v2825
        %v2827 = vpop.f32.mrf.mxu0
        %2828 = vmatprep.mubr.f32.mxu0 0.0
        %2829 = vmatmul.mubr.f32.gmra.mxu0 %v2572
        %v2830 = vpop.f32.mrf.mxu0
        %v2831 = vadd.f32 0.0, %v2830
        %v2832 = vpop.f32.mrf.mxu0
        %2833 = vmatprep.mubr.f32.mxu0 0.0
        %2834 = vmatmul.mubr.f32.gmra.mxu0 %v2573
        %v2835 = vpop.f32.mrf.mxu0
        %v2836 = vadd.f32 0.0, %v2835
        %v2837 = vpop.f32.mrf.mxu0
        %2838 = vmatprep.mubr.f32.mxu0 0.0
        %2839 = vmatmul.mubr.f32.gmra.mxu0 %v2574
        %v2840 = vpop.f32.mrf.mxu0
        %v2841 = vadd.f32 0.0, %v2840
        %v2842 = vpop.f32.mrf.mxu0
        %2843 = vmatprep.mubr.f32.mxu0 0.0
        %2844 = vmatmul.mubr.f32.gmra.mxu0 %v2575
        %v2845 = vpop.f32.mrf.mxu0
        %v2846 = vadd.f32 0.0, %v2845
        %v2847 = vpop.f32.mrf.mxu0
        %2848 = vmatprep.mubr.f32.mxu0 0.0
        %2849 = vmatmul.mubr.f32.gmra.mxu0 %v2576
        %v2850 = vpop.f32.mrf.mxu0
        %v2851 = vadd.f32 0.0, %v2850
        %v2852 = vpop.f32.mrf.mxu0
        %2853 = vmatprep.mubr.f32.mxu0 0.0
        %2854 = vmatmul.mubr.f32.gmra.mxu0 %v2577
        %v2855 = vpop.f32.mrf.mxu0
        %v2856 = vadd.f32 0.0, %v2855
        %v2857 = vpop.f32.mrf.mxu0
        %2858 = vmatprep.mubr.f32.mxu0 0.0
        %2859 = vmatmul.mubr.f32.gmra.mxu0 %v2578
        %v2860 = vpop.f32.mrf.mxu0
        %v2861 = vadd.f32 0.0, %v2860
        %v2862 = vpop.f32.mrf.mxu0
        %2863 = vmatprep.mubr.f32.mxu0 0.0
        %2864 = vmatmul.mubr.f32.gmra.mxu0 %v2579
        %v2865 = vpop.f32.mrf.mxu0
        %v2866 = vadd.f32 0.0, %v2865
        %v2867 = vpop.f32.mrf.mxu0
        %2868 = vmatprep.mubr.f32.mxu0 0.0
        %2869 = vmatmul.mubr.f32.gmra.mxu0 %v2580
        %v2870 = vpop.f32.mrf.mxu0
        %v2871 = vadd.f32 0.0, %v2870
        %v2872 = vpop.f32.mrf.mxu0
        %2873 = vmatprep.mubr.f32.mxu0 0.0
        %2874 = vmatmul.mubr.f32.gmra.mxu0 %v2581
        %v2875 = vpop.f32.mrf.mxu0
        %v2876 = vadd.f32 0.0, %v2875
        %v2877 = vpop.f32.mrf.mxu0
        %2878 = vmatprep.mubr.f32.mxu0 0.0
        %2879 = vmatmul.mubr.f32.gmra.mxu0 %v2582
        %v2880 = vpop.f32.mrf.mxu0
        %v2881 = vadd.f32 0.0, %v2880
        %v2882 = vpop.f32.mrf.mxu0
        %2883 = vmatprep.mubr.f32.mxu0 0.0
        %2884 = vmatmul.mubr.f32.gmra.mxu0 %v2583
        %v2885 = vpop.f32.mrf.mxu0
        %v2886 = vadd.f32 0.0, %v2885
        %v2887 = vpop.f32.mrf.mxu0
        %2888 = vmatprep.mubr.f32.mxu0 0.0
        %2889 = vmatmul.mubr.f32.gmra.mxu0 %v2584
        %v2890 = vpop.f32.mrf.mxu0
        %v2891 = vadd.f32 0.0, %v2890
        %v2892 = vpop.f32.mrf.mxu0
        %2893 = vmatprep.mubr.f32.mxu0 0.0
        %2894 = vmatmul.mubr.f32.gmra.mxu0 %v2585
        %v2895 = vpop.f32.mrf.mxu0
        %v2896 = vadd.f32 0.0, %v2895
        %v2897 = vpop.f32.mrf.mxu0
        %2898 = vmatprep.mubr.f32.mxu0 0.0
        %2899 = vmatmul.mubr.f32.gmra.mxu0 %v2586
        %v2900 = vpop.f32.mrf.mxu0
        %v2901 = vadd.f32 0.0, %v2900
        %v2902 = vpop.f32.mrf.mxu0
        %2903 = vmatprep.mubr.f32.mxu0 0.0
        %2904 = vmatmul.mubr.f32.gmra.mxu0 %v2587
        %v2905 = vpop.f32.mrf.mxu0
        %v2906 = vadd.f32 0.0, %v2905
        %v2907 = vpop.f32.mrf.mxu0
        %2908 = vmatprep.mubr.f32.mxu0 0.0
        %2909 = vmatmul.mubr.f32.gmra.mxu0 %v2588
        %v2910 = vpop.f32.mrf.mxu0
        %v2911 = vadd.f32 0.0, %v2910
        %v2912 = vpop.f32.mrf.mxu0
        %2913 = vmatprep.mubr.f32.mxu0 0.0
        %2914 = vmatmul.mubr.f32.gmra.mxu0 %v2589
        %v2915 = vpop.f32.mrf.mxu0
        %v2916 = vadd.f32 0.0, %v2915
        %v2917 = vpop.f32.mrf.mxu0
        %2918 = vmatprep.mubr.f32.mxu0 0.0
        %2919 = vmatmul.mubr.f32.gmra.mxu0 %v2590
        %v2920 = vpop.f32.mrf.mxu0
        %v2921 = vadd.f32 0.0, %v2920
        %v2922 = vpop.f32.mrf.mxu0
        %2923 = vmatprep.mubr.f32.mxu0 0.0
        %2924 = vmatmul.mubr.f32.gmra.mxu0 %v2591
        %v2925 = vpop.f32.mrf.mxu0
        %v2926 = vadd.f32 0.0, %v2925
        %v2927 = vpop.f32.mrf.mxu0
        %2928 = vmatprep.mubr.f32.mxu0 0.0
        %2929 = vmatmul.mubr.f32.gmra.mxu0 %v2592
        %v2930 = vpop.f32.mrf.mxu0
        %v2931 = vadd.f32 0.0, %v2930
        %v2932 = vpop.f32.mrf.mxu0
        %2933 = vmatprep.mubr.f32.mxu0 0.0
        %2934 = vmatmul.mubr.f32.gmra.mxu0 %v2593
        %v2935 = vpop.f32.mrf.mxu0
        %v2936 = vadd.f32 0.0, %v2935
        %v2937 = vpop.f32.mrf.mxu0
        %2938 = vmatprep.mubr.f32.mxu0 0.0
        %2939 = vmatmul.mubr.f32.gmra.mxu0 %v2594
        %v2940 = vpop.f32.mrf.mxu0
        %v2941 = vadd.f32 0.0, %v2940
        %v2942 = vpop.f32.mrf.mxu0
        %2943 = vmatprep.mubr.f32.mxu0 0.0
        %2944 = vmatmul.mubr.f32.gmra.mxu0 %v2595
        %v2945 = vpop.f32.mrf.mxu0
        %v2946 = vadd.f32 0.0, %v2945
        %v2947 = vpop.f32.mrf.mxu0
        %2948 = vmatprep.mubr.f32.mxu0 0.0
        %2949 = vmatmul.mubr.f32.gmra.mxu0 %v2596
        %v2950 = vpop.f32.mrf.mxu0
        %v2951 = vadd.f32 0.0, %v2950
        %v2952 = vpop.f32.mrf.mxu0
        %2953 = vmatprep.mubr.f32.mxu0 0.0
        %2954 = vmatmul.mubr.f32.gmra.mxu0 %v2597
        %v2955 = vpop.f32.mrf.mxu0
        %v2956 = vadd.f32 0.0, %v2955
        %v2957 = vpop.f32.mrf.mxu0
        %2958 = vmatprep.mubr.f32.mxu0 0.0
        %2959 = vmatmul.mubr.f32.gmra.mxu0 %v2598
        %v2960 = vpop.f32.mrf.mxu0
        %v2961 = vadd.f32 0.0, %v2960
        %v2962 = vpop.f32.mrf.mxu0
        %2963 = vmatprep.mubr.f32.mxu0 0.0
        %2964 = vmatmul.mubr.f32.gmra.mxu0 %v2599
        %v2965 = vpop.f32.mrf.mxu0
        %v2966 = vadd.f32 0.0, %v2965
        %v2967 = vpop.f32.mrf.mxu0
        %2968 = vmatprep.mubr.f32.mxu0 0.0
        %2969 = vmatmul.mubr.f32.gmra.mxu0 %v2600
        %v2970 = vpop.f32.mrf.mxu0
        %v2971 = vadd.f32 0.0, %v2970
        %v2972 = vpop.f32.mrf.mxu0
        %2973 = vmatprep.mubr.f32.mxu0 0.0
        %2974 = vmatmul.mubr.f32.gmra.mxu0 %v2601
        %v2975 = vpop.f32.mrf.mxu0
        %v2976 = vadd.f32 0.0, %v2975
        %v2977 = vpop.f32.mrf.mxu0
        %2978 = vmatprep.mubr.f32.mxu0 0.0
        %2979 = vmatmul.mubr.f32.gmra.mxu0 %v2602
        %v2980 = vpop.f32.mrf.mxu0
        %v2981 = vadd.f32 0.0, %v2980
        %v2982 = vpop.f32.mrf.mxu0
        %2983 = vmatprep.mubr.f32.mxu0 0.0
        %2984 = vmatmul.mubr.f32.gmra.mxu0 %v2603
        %v2985 = vpop.f32.mrf.mxu0
        %v2986 = vadd.f32 0.0, %v2985
        %v2987 = vpop.f32.mrf.mxu0
        %2988 = vmatprep.mubr.f32.mxu0 0.0
        %2989 = vmatmul.mubr.f32.gmra.mxu0 %v2604
        %v2990 = vpop.f32.mrf.mxu0
        %v2991 = vadd.f32 0.0, %v2990
        %v2992 = vpop.f32.mrf.mxu0
        %2993 = vmatprep.mubr.f32.mxu0 0.0
        %2994 = vmatmul.mubr.f32.gmra.mxu0 %v2605
        %v2995 = vpop.f32.mrf.mxu0
        %v2996 = vadd.f32 0.0, %v2995
        %v2997 = vpop.f32.mrf.mxu0
        %2998 = vmatprep.mubr.f32.mxu0 0.0
        %2999 = vmatmul.mubr.f32.gmra.mxu0 %v2606
        %v3000 = vpop.f32.mrf.mxu0
        %v3001 = vadd.f32 0.0, %v3000
        %v3002 = vpop.f32.mrf.mxu0
        %3003 = vmatprep.mubr.f32.mxu0 0.0
        %3004 = vmatmul.mubr.f32.gmra.mxu0 %v2607
        %v3005 = vpop.f32.mrf.mxu0
        %v3006 = vadd.f32 0.0, %v3005
        %v3007 = vpop.f32.mrf.mxu0
        %3008 = vdwg.mxu0
        %v3009 = vmax.f32 %v2691, %v2731
        %v3010 = vmax.f32 %v2696, %v2736
        %v3011 = vmax.f32 %v2701, %v2741
        %v3012 = vmax.f32 %v2706, %v2746
        %v3013 = vmax.f32 %v2711, %v2751
        %v3014 = vmax.f32 %v2716, %v2756
        %v3015 = vmax.f32 %v2721, %v2761
        %v3016 = vmax.f32 %v2726, %v2766
        %v3017 = vmax.f32 %v3009, %v2771
        %v3018 = vmax.f32 %v3010, %v2776
        %v3019 = vmax.f32 %v3011, %v2781
        %v3020 = vmax.f32 %v3012, %v2786
        %v3021 = vmax.f32 %v3013, %v2791
        %v3022 = vmax.f32 %v3014, %v2796
        %v3023 = vmax.f32 %v3015, %v2801
        %v3024 = vmax.f32 %v3016, %v2806
        %v3025 = vmax.f32 %v3017, %v2811
        %v3026 = vmax.f32 %v3018, %v2816
        %v3027 = vmax.f32 %v3019, %v2821
        %v3028 = vmax.f32 %v3020, %v2826
        %v3029 = vmax.f32 %v3021, %v2831
        %v3030 = vmax.f32 %v3022, %v2836
        %v3031 = vmax.f32 %v3023, %v2841
        %v3032 = vmax.f32 %v3024, %v2846
        %v3033 = vmax.f32 %v3025, %v2851
        %v3034 = vmax.f32 %v3026, %v2856
        %v3035 = vmax.f32 %v3027, %v2861
        %v3036 = vmax.f32 %v3028, %v2866
        %v3037 = vmax.f32 %v3029, %v2871
        %v3038 = vmax.f32 %v3030, %v2876
        %v3039 = vmax.f32 %v3031, %v2881
        %v3040 = vmax.f32 %v3032, %v2886
        %v3041 = vmax.f32 %v3033, %v2891
        %v3042 = vmax.f32 %v3034, %v2896
        %v3043 = vmax.f32 %v3035, %v2901
        %v3044 = vmax.f32 %v3036, %v2906
        %v3045 = vmax.f32 %v3037, %v2911
        %v3046 = vmax.f32 %v3038, %v2916
        %v3047 = vmax.f32 %v3039, %v2921
        %v3048 = vmax.f32 %v3040, %v2926
        %v3049 = vmax.f32 %v3041, %v2931
        %v3050 = vmax.f32 %v3042, %v2936
        %v3051 = vmax.f32 %v3043, %v2941
        %v3052 = vmax.f32 %v3044, %v2946
        %v3053 = vmax.f32 %v3045, %v2951
        %v3054 = vmax.f32 %v3046, %v2956
        %v3055 = vmax.f32 %v3047, %v2961
        %v3056 = vmax.f32 %v3048, %v2966
        %v3057 = vmax.f32 %v3049, %v2971
        %v3058 = vmax.f32 %v3050, %v2976
        %v3059 = vmax.f32 %v3051, %v2981
        %v3060 = vmax.f32 %v3052, %v2986
        %v3061 = vmax.f32 %v3053, %v2991
        %v3062 = vmax.f32 %v3054, %v2996
        %v3063 = vmax.f32 %v3055, %v3001
        %v3064 = vmax.f32 %v3056, %v3006
        %v3065 = vld [vmem:[%s4] sm:$0x1]
        %v3067 = vlaneseq
        %v3068 = vshrl.u32 %v3067, 7
        %v3069 = vsub.s32 0, %v3068
        %v3070 = vrot.slane %v3065, %v3069
        %v3072 = vadd.f32 %v3057, %v3070
        %v3073 = vadd.f32 %v3058, %v3070
        %v3074 = vadd.f32 %v3059, %v3070
        %v3075 = vadd.f32 %v3060, %v3070
        %v3076 = vadd.f32 %v3061, %v3070
        %v3077 = vadd.f32 %v3062, %v3070
        %v3078 = vadd.f32 %v3063, %v3070
        %v3079 = vadd.f32 %v3064, %v3070
        %3080 = vst [vmem:[%s248] sm:$0xff] %v3072
        %3081 = vst [vmem:[%s248 + $0x8] sm:$0xff] %v3073
        %3082 = vst [vmem:[%s248 + $0x10] sm:$0xff] %v3074
        %3083 = vst [vmem:[%s248 + $0x18] sm:$0xff] %v3075
        %3084 = vst [vmem:[%s248 + $0x20] sm:$0xff] %v3076
        %3085 = vst [vmem:[%s248 + $0x28] sm:$0xff] %v3077
        %3086 = vst [vmem:[%s248 + $0x30] sm:$0xff] %v3078
        %3087 = vst [vmem:[%s248 + $0x38] sm:$0xff] %v3079
        %s3088 = sand.u32 %s139, 1
        %s3089 = scalar_lea.sflag [#allocation6], %s3088
        %s3090 = sand.u32 %s139, 1
        %s3091 = smul.addr %s3090, 64
        %s3092 = scalar_lea.vmem [#allocation9], %s3091
        // Predicated region
        $region49: #{tpu_custom_call.1} parent=39 // pred_check
          %p3093 = pneg %p149
        $region50: #{tpu_custom_call.1} parent=39 // pred_check_branch
          %3095 = sbr.rel (%p3093) target = $region52
        $region51: #{tpu_custom_call.1} parent=39 // pred_region
          %s3096 = smul.u32 8, %s21
          %s3098 = ssub.s32 1024, 1024
          %3099 = vsyncadd %s3089, %s3098
          %s3100 = smul.addr %s3096, 128
          %s3101 = scalar_lea.hbm %s5, %s3100
          %s3102 = sshll.u32 %s3092, 4
          %s3103 = int_to_ptr.vmem [resolvable:$true] %s3102
          %3108 = dma.vmem_to_hbm [thread:$0]  %s3103, 1024, %s3101, %s3089, 128, 128, 8
        $region52: #{tpu_custom_call.1} parent=39 // pred_fallthru
          _
      $region40: #{tpu_custom_call.1} parent=5 // pred_fallthru
        _
      %p3109 = scmp.le.s32.totalorder 2, %s16
      // Predicated region
      $region53: #{tpu_custom_call.1} parent=5 // pred_check
        %p3110 = pneg %p3109
      $region54: #{tpu_custom_call.1} parent=5 // pred_check_branch
        %3112 = sbr.rel (%p3110) target = $region56
      $region55: #{tpu_custom_call.1} parent=5 // pred_region
        %s3113 = ssub.s32 %s16, 2
        // Predicated region
        $region57: #{tpu_custom_call.1} parent=55 // pred_check
          %p3114 = pneg %p155
        $region58: #{tpu_custom_call.1} parent=55 // pred_check_branch
          %3116 = sbr.rel (%p3114) target = $region60
        $region59: #{tpu_custom_call.1} parent=55 // pred_region
          %s3117 = sand.u32 %s140, 1
          %s3118 = scalar_lea.sflag [#allocation6], %s3117
          %s3119 = sand.u32 %s140, 1
          %s3120 = smul.addr %s3119, 64
          %s3121 = scalar_lea.vmem [#allocation9], %s3120
          %3122 = dma.done %s3118, 1024
        $region60: #{tpu_custom_call.1} parent=55 // pred_fallthru
          _
      $region56: #{tpu_custom_call.1} parent=5 // pred_fallthru
        _
    $region6: #{tpu_custom_call.1} parent=1 // loop_footer
      %s20 = sadd.s32 1, %s16
    $region7: #{tpu_custom_call.1} parent=1 // loop_footer_branch
      %15 = sbr.rel target = $region3
    $region8: #{tpu_custom_call.1} parent=1 // loop_exit
      _
    %3123 = vsyncpa [#allocation5], 1
    %s3124 = scalar_lea.sflag [#allocation5], 1
    %3125 = vsyncpa %s3124, 1
    %3126 = vsyncpa [#allocation8], 1
    %3127 = vsyncpa [#allocation6], 1
    %s3128 = scalar_lea.sflag [#allocation6], 1
    %3129 = vsyncpa %s3128, 1

</llo_original>
